<compile_context>
chip_gen: v5e
topology: v5e:2x2
jax: 0.10.0
libtpu: 0.0.40
codegen_flags: <defaults>
</compile_context>

<pallas_src>
from functools import partial

import numpy as np
import jax
import jax.numpy as jnp
from jax import lax
from jax.experimental import pallas as pl
from jax.experimental.pallas import tpu as pltpu


# --------------------------------------- Pallas kernel ---------------------------------------

def _resnet1d_kernel(*refs, tb, n_prefilt_extra, n_pw, residual, Kp, F, out_dim, alpha, eps):
    # ref order: x, ln_gamma, ln_beta, conv1_w, conv1_b,
    #            [prefilt_w, prefilt_b]*n_prefilt_extra, [pw_w, pw_b]*n_pw, tm, out, scratch
    p = 0
    x_ref = refs[p]; p += 1
    g_ref = refs[p]; p += 1
    be_ref = refs[p]; p += 1
    w1_ref = refs[p]; p += 1
    b1_ref = refs[p]; p += 1
    pre_refs = []
    for _ in range(n_prefilt_extra):
        pre_refs.append((refs[p], refs[p + 1])); p += 2
    pw_refs = []
    for _ in range(n_pw):
        pw_refs.append((refs[p], refs[p + 1])); p += 2
    tm_ref = refs[p]; p += 1
    out_ref = refs[p]; p += 1
    xpad_ref = refs[p]                                  # (C_max, pad + F + pad) VMEM scratch

    pad = Kp // 2

    def leaky(v):
        return jnp.where(v >= 0, v, alpha * v)

    def channel_mix(w, a):                              # w: (C_o, C_i), a: (C_i, F) -> (C_o, F)
        if w.shape[1] == 1:
            return w * a                                # rank-1 broadcast FMA on the VPU
        return jnp.dot(w, a, preferred_element_type=jnp.float32)   # MXU

    # Pad lanes stay zero for the whole grid step; conv calls only overwrite the interior.
    xpad_ref[...] = jnp.zeros_like(xpad_ref)

    def conv_same(a, w_ref_, b_ref_):                   # a: (C_i, F); w: (Kp, C_o, C_i); b: (C_o, 1)
        C_i = a.shape[0]
        xpad_ref[0:C_i, pad:pad + F] = a
        acc = None
        for t in range(Kp):                             # static unroll over the 15 taps
            xsl = xpad_ref[0:C_i, t:t + F]              # (C_i, F), lane offset t
            contrib = channel_mix(w_ref_[t], xsl)
            acc = contrib if acc is None else acc + contrib
        return acc + b_ref_[...]

    for s in range(tb):                                 # static unroll over the batch block
        xb = x_ref[s]                                   # (C_in, F)

        # ---- LayerNorm over (channels, bins), per sample ----
        n_elem = float(xb.shape[0] * xb.shape[1])
        mu = jnp.sum(jnp.sum(xb, axis=1, keepdims=True), axis=0, keepdims=True) / n_elem
        d = xb - mu
        var = jnp.sum(jnp.sum(d * d, axis=1, keepdims=True), axis=0, keepdims=True) / n_elem
        h = d * (lax.rsqrt(var + eps) * g_ref[...]) + be_ref[...]

        # ---- conv1 (k=15, same padding) + LeakyReLU; Dropout = identity at inference ----
        h = leaky(conv_same(h, w1_ref, b1_ref))

        # ---- prefilter stack (optional extra k=15 conv layers) ----
        for w_r, b_r in pre_refs:
            hn = leaky(conv_same(h, w_r, b_r))
            h = hn + h if residual else hn

        # ---- 1x1 conv stack (channel mixes on the MXU) ----
        for w_r, b_r in pw_refs:
            h = leaky(channel_mix(w_r[...], h) + b_r[...])

        # ---- flatten + ToeplitzLinear as MXU matmuls over the 216 bins ----
        C_last = h.shape[0]
        logits = jnp.dot(h[0:1, :], tm_ref[0], preferred_element_type=jnp.float32)
        for c in range(1, C_last):                      # static; C_last == 1 for defaults
            logits = logits + jnp.dot(h[c:c + 1, :], tm_ref[c],
                                      preferred_element_type=jnp.float32)

        # ---- stable softmax over output_dim (lane-dense row) ----
        m = jnp.max(logits, axis=1, keepdims=True)
        e = jnp.exp(logits - m)
        out_ref[s] = e / jnp.sum(e, axis=1, keepdims=True)


# ------------------------------------ parameter building ------------------------------------

def init_resnet1d_params(key, *, n_chan_input=1, n_chan_layers=(20, 20, 10, 1),
                         n_prefilt_layers=1, prefilt_kernel_size=15, residual=False,
                         n_bins_in=216, output_dim=128, a_lrelu=0.3):
    assert prefilt_kernel_size % 2 == 1
    n_ch = list(n_chan_layers)
    if len(n_ch) < 5:
        n_ch.append(1)                                  # mirrors the in-place append in the module
    n_in, F, Kp, out_dim = n_chan_input, n_bins_in, prefilt_kernel_size, output_dim

    def uinit(k, shape, fan_in):
        bound = 1.0 / np.sqrt(fan_in)
        return jax.random.uniform(k, shape, jnp.float32, -bound, bound)

    n_keys = 8 + 2 * max(0, n_prefilt_layers - 1) + 2 * (len(n_ch) - 1)
    ki = iter(jax.random.split(key, n_keys))

    ln_gamma = 1.0 + 0.1 * jax.random.normal(next(ki), (n_in, F), jnp.float32)
    ln_beta = 0.1 * jax.random.normal(next(ki), (n_in, F), jnp.float32)

    conv1_w = uinit(next(ki), (n_ch[0], n_in, Kp), n_in * Kp)
    conv1_b = uinit(next(ki), (n_ch[0],), n_in * Kp)

    # TODO(synk): for n_prefilt_layers > 1 the PyTorch ModuleList(*[...]) construction is buggy;
    # we implement the intended conv+activation(+residual) semantics.
    prefilt = []
    for _ in range(n_prefilt_layers - 1):
        w = uinit(next(ki), (n_ch[0], n_ch[0], Kp), n_ch[0] * Kp)
        b = uinit(next(ki), (n_ch[0],), n_ch[0] * Kp)
        prefilt.append((w, b))

    pointwise = []
    for i in range(len(n_ch) - 1):
        w = uinit(next(ki), (n_ch[i + 1], n_ch[i], 1), n_ch[i])
        b = uinit(next(ki), (n_ch[i + 1],), n_ch[i])
        pointwise.append((w, b))

    n_flat = n_ch[-1] * F
    fc_ksize = n_flat + out_dim - 1                     # ToeplitzLinear conv kernel length
    fc_w = uinit(next(ki), (fc_ksize,), fc_ksize)

    # ---- fold / rearrange constants for the Pallas kernel (build time, free) ----
    idx = np.arange(n_flat)[:, None] - np.arange(out_dim)[None, :] + (out_dim - 1)
    tm = fc_w[jnp.asarray(idx)]                         # (n_flat, out): flat @ tm == ToeplitzLinear
    tm_k = tm.reshape(n_ch[-1], F, out_dim)

    return dict(
        cfg=dict(n_in=n_in, n_ch=tuple(n_ch), n_prefilt_extra=n_prefilt_layers - 1,
                 residual=bool(residual), Kp=Kp, F=F, out_dim=out_dim,
                 alpha=float(a_lrelu), eps=1e-5),
        # raw (PyTorch-layout) parameters for the reference path
        ln_gamma=ln_gamma, ln_beta=ln_beta,
        conv1_w=conv1_w, conv1_b=conv1_b,
        prefilt=prefilt, pointwise=pointwise, fc_w=fc_w,
        # kernel-layout copies for the (C, F) lane-dense layout
        conv1_wk=jnp.transpose(conv1_w, (2, 0, 1)),                               # (Kp, C_out, C_in)
        conv1_bk=conv1_b.reshape(-1, 1),                                          # (C_out, 1)
        prefilt_k=[(jnp.transpose(w, (2, 0, 1)), b.reshape(-1, 1)) for (w, b) in prefilt],
        pointwise_k=[(w[:, :, 0], b.reshape(-1, 1)) for (w, b) in pointwise],     # (C_out, C_in)
        tm_k=tm_k,
    )


# --------------------------------------- forward wrapper ---------------------------------------

def resnet1d_forward(x, params, *, tb=8):
    cfg = params["cfg"]
    n_in, F, Kp, out_dim = cfg["n_in"], cfg["F"], cfg["Kp"], cfg["out_dim"]
    n_ch = cfg["n_ch"]
    B = x.shape[0]
    assert x.shape == (B, n_in, F), x.shape

    tb = max(1, min(tb, B))
    nb = pl.cdiv(B, tb)                                 # keep nb >= 2 on v7x by choosing tb <= B/2
    Bp = nb * tb
    if Bp != B:
        x = jnp.pad(x, ((0, Bp - B), (0, 0), (0, 0)))

    inputs = [x, params["ln_gamma"], params["ln_beta"],
              params["conv1_wk"], params["conv1_bk"]]
    in_specs = [
        pl.BlockSpec((tb, n_in, F), lambda b: (b, 0, 0)),
        pl.BlockSpec((n_in, F), lambda b: (0, 0)),
        pl.BlockSpec((n_in, F), lambda b: (0, 0)),
        pl.BlockSpec((Kp, n_ch[0], n_in), lambda b: (0, 0, 0)),
        pl.BlockSpec((n_ch[0], 1), lambda b: (0, 0)),
    ]
    for w, bb in params["prefilt_k"]:
        inputs += [w, bb]
        in_specs += [pl.BlockSpec(w.shape, lambda b: (0, 0, 0)),
                     pl.BlockSpec(bb.shape, lambda b: (0, 0))]
    for w, bb in params["pointwise_k"]:
        inputs += [w, bb]
        in_specs += [pl.BlockSpec(w.shape, lambda b: (0, 0)),
                     pl.BlockSpec(bb.shape, lambda b: (0, 0))]
    inputs.append(params["tm_k"])
    in_specs.append(pl.BlockSpec(params["tm_k"].shape, lambda b: (0, 0, 0)))

    pad = Kp // 2
    c_max = n_in if cfg["n_prefilt_extra"] == 0 else max(n_in, n_ch[0])

    kernel = partial(
        _resnet1d_kernel,
        tb=tb, n_prefilt_extra=cfg["n_prefilt_extra"], n_pw=len(n_ch) - 1,
        residual=cfg["residual"], Kp=Kp, F=F, out_dim=out_dim,
        alpha=cfg["alpha"], eps=cfg["eps"],
    )

    out = pl.pallas_call(
        kernel,
        out_shape=jax.ShapeDtypeStruct((Bp, 1, out_dim), jnp.float32),
        grid=(nb,),
        in_specs=in_specs,
        out_specs=pl.BlockSpec((tb, 1, out_dim), lambda b: (b, 0, 0)),
        scratch_shapes=[pltpu.VMEM((c_max, F + 2 * pad), jnp.float32)],
        compiler_params=pltpu.CompilerParams(dimension_semantics=("parallel",)),
    )(*inputs)
    return out.reshape(Bp, out_dim)[:B]


# ------------------------------------ pure-JAX reference ------------------------------------

def resnet1d_reference(x, params):
    cfg = params["cfg"]
    alpha, eps, out_dim = cfg["alpha"], cfg["eps"], cfg["out_dim"]
    hp = jax.lax.Precision.HIGHEST

    def leaky(v):
        return jnp.where(v >= 0, v, alpha * v)

    mu = jnp.mean(x, axis=(1, 2), keepdims=True)
    var = jnp.mean((x - mu) ** 2, axis=(1, 2), keepdims=True)
    h = (x - mu) / jnp.sqrt(var + eps) * params["ln_gamma"][None] + params["ln_beta"][None]

    def conv_same(h, w, b):
        K = w.shape[2]
        pad = K // 2
        F = h.shape[2]
        hpad = jnp.pad(h, ((0, 0), (0, 0), (pad, pad)))
        idx = jnp.arange(F)[:, None] + jnp.arange(K)[None, :]
        fr = hpad[:, :, idx]                                        # (B, Ci, F, K)
        return jnp.einsum("bcfk,ock->bof", fr, w, precision=hp) + b[None, :, None]

    h = leaky(conv_same(h, params["conv1_w"], params["conv1_b"]))
    for w, b in params["prefilt"]:
        hn = leaky(conv_same(h, w, b))
        h = hn + h if cfg["residual"] else hn
    for w, b in params["pointwise"]:
        h = leaky(jnp.einsum("bcf,oc->bof", h, w[:, :, 0], precision=hp) + b[None, :, None])
    flat = h.reshape(h.shape[0], -1)
    w_fc = params["fc_w"]
    fpad = jnp.pad(flat, ((0, 0), (out_dim - 1, out_dim - 1)))
    idx2 = jnp.arange(out_dim)[:, None] + jnp.arange(w_fc.shape[0])[None, :]
    logits = jnp.einsum("bjk,k->bj", fpad[:, idx2], w_fc, precision=hp)
    return jax.nn.softmax(logits, axis=-1)


# ------------------------------------------- main -------------------------------------------

if __name__ == "__main__":
    key = jax.random.PRNGKey(0)
    kp, kx = jax.random.split(key)

    # Module defaults: n_chan_input=1, n_chan_layers=(20, 20, 10, 1), n_prefilt_layers=1,
    # prefilt_kernel_size=15, n_bins_in=216, output_dim=128.
    params = init_resnet1d_params(kp)
    B = 8
    x = jax.random.normal(kx, (B, params["cfg"]["n_in"], params["cfg"]["F"]), jnp.float32)

    # tb=4 -> grid of 2 batch blocks: amortizes per-step overhead and keeps both v7x TCs busy.
    out = jax.block_until_ready(resnet1d_forward(x, params, tb=4))
    assert out.shape == (B, params["cfg"]["out_dim"]), out.shape
    assert out.dtype == jnp.float32

    ref = jax.block_until_ready(resnet1d_reference(x, params))
    np.testing.assert_allclose(np.asarray(out), np.asarray(ref), rtol=2e-3, atol=5e-5)
    np.testing.assert_allclose(np.asarray(out).sum(axis=-1), np.ones(B), rtol=1e-4, atol=1e-4)

    print("KERNEL_OK")
</pallas_src>

<mosaic_0001>
module attributes {stable_mosaic.version = 11 : i64} {
  func.func @_resnet1d_kernel(%arg0: i32, %arg1: memref<4x1x216xf32, #tpu.memory_space<vmem>>, %arg2: memref<1x216xf32, #tpu.memory_space<vmem>>, %arg3: memref<1x216xf32, #tpu.memory_space<vmem>>, %arg4: memref<15x20x1xf32, #tpu.memory_space<vmem>>, %arg5: memref<20x1xf32, #tpu.memory_space<vmem>>, %arg6: memref<20x20xf32, #tpu.memory_space<vmem>>, %arg7: memref<20x1xf32, #tpu.memory_space<vmem>>, %arg8: memref<10x20xf32, #tpu.memory_space<vmem>>, %arg9: memref<10x1xf32, #tpu.memory_space<vmem>>, %arg10: memref<1x10xf32, #tpu.memory_space<vmem>>, %arg11: memref<1x1xf32, #tpu.memory_space<vmem>>, %arg12: memref<1x1xf32, #tpu.memory_space<vmem>>, %arg13: memref<1x1xf32, #tpu.memory_space<vmem>>, %arg14: memref<1x216x128xf32, #tpu.memory_space<vmem>>, %arg15: memref<4x1x128xf32, #tpu.memory_space<vmem>>, %arg16: memref<1x230xf32, #tpu.memory_space<vmem>>) attributes {dimension_semantics = [#tpu.dimension_semantics<parallel>], iteration_bounds = array<i64: 2>, scalar_prefetch = 0 : i64, scratch_operands = 1 : i64, tpu.core_type = #tpu.core_type<tc>, window_params = [{transform_indices = @transform_0, window_bounds = array<i64: 4, 1, 216>}, {pipeline_mode = #tpu.pipeline_mode<synchronous>, transform_indices = @transform_1, window_bounds = array<i64: 1, 216>}, {pipeline_mode = #tpu.pipeline_mode<synchronous>, transform_indices = @transform_2, window_bounds = array<i64: 1, 216>}, {pipeline_mode = #tpu.pipeline_mode<synchronous>, transform_indices = @transform_3, window_bounds = array<i64: 15, 20, 1>}, {pipeline_mode = #tpu.pipeline_mode<synchronous>, transform_indices = @transform_4, window_bounds = array<i64: 20, 1>}, {pipeline_mode = #tpu.pipeline_mode<synchronous>, transform_indices = @transform_5, window_bounds = array<i64: 20, 20>}, {pipeline_mode = #tpu.pipeline_mode<synchronous>, transform_indices = @transform_6, window_bounds = array<i64: 20, 1>}, {pipeline_mode = #tpu.pipeline_mode<synchronous>, transform_indices = @transform_7, window_bounds = array<i64: 10, 20>}, {pipeline_mode = #tpu.pipeline_mode<synchronous>, transform_indices = @transform_8, window_bounds = array<i64: 10, 1>}, {pipeline_mode = #tpu.pipeline_mode<synchronous>, transform_indices = @transform_9, window_bounds = array<i64: 1, 10>}, {pipeline_mode = #tpu.pipeline_mode<synchronous>, transform_indices = @transform_10, window_bounds = array<i64: 1, 1>}, {pipeline_mode = #tpu.pipeline_mode<synchronous>, transform_indices = @transform_11, window_bounds = array<i64: 1, 1>}, {pipeline_mode = #tpu.pipeline_mode<synchronous>, transform_indices = @transform_12, window_bounds = array<i64: 1, 1>}, {pipeline_mode = #tpu.pipeline_mode<synchronous>, transform_indices = @transform_13, window_bounds = array<i64: 1, 216, 128>}, {transform_indices = @transform_14, window_bounds = array<i64: 4, 1, 128>}]} {
    %cst = arith.constant 0.000000e+00 : f32
    %0 = vector.broadcast %cst : f32 to vector<1x230xf32>
    %c0 = arith.constant 0 : index
    %c0_0 = arith.constant 0 : index
    %1 = vector.load %arg16[%c0, %c0_0] : memref<1x230xf32, #tpu.memory_space<vmem>>, vector<1x230xf32>
    tpu.vector_store %arg16[%c0, %c0_0], %0 {strides = array<i32>} : memref<1x230xf32, #tpu.memory_space<vmem>>, vector<1x230xf32>,
    %c0_1 = arith.constant 0 : index
    %c0_2 = arith.constant 0 : index
    %c0_3 = arith.constant 0 : index
    %2 = vector.load %arg1[%c0_1, %c0_2, %c0_3] : memref<4x1x216xf32, #tpu.memory_space<vmem>>, vector<1x1x216xf32>
    %3 = vector.shape_cast %2 : vector<1x1x216xf32> to vector<1x216xf32>
    %cst_4 = arith.constant dense<0.000000e+00> : vector<1xf32>
    %4 = vector.multi_reduction <add>, %3, %cst_4 [1] : vector<1x216xf32> to vector<1xf32>
    %5 = vector.shape_cast %4 : vector<1xf32> to vector<1x1xf32>
    %cst_5 = arith.constant dense<0.000000e+00> : vector<1xf32>
    %6 = vector.multi_reduction <add>, %5, %cst_5 [0] : vector<1x1xf32> to vector<1xf32>
    %7 = vector.shape_cast %6 : vector<1xf32> to vector<1x1xf32>
    %cst_6 = arith.constant 2.160000e+02 : f32
    %8 = vector.broadcast %cst_6 : f32 to vector<1x1xf32>
    %9 = arith.divf %7, %8 : vector<1x1xf32>
    %10 = vector.broadcast %9 : vector<1x1xf32> to vector<1x216xf32>
    %11 = arith.subf %3, %10 : vector<1x216xf32>
    %12 = arith.mulf %11, %11 : vector<1x216xf32>
    %cst_7 = arith.constant dense<0.000000e+00> : vector<1xf32>
    %13 = vector.multi_reduction <add>, %12, %cst_7 [1] : vector<1x216xf32> to vector<1xf32>
    %14 = vector.shape_cast %13 : vector<1xf32> to vector<1x1xf32>
    %cst_8 = arith.constant dense<0.000000e+00> : vector<1xf32>
    %15 = vector.multi_reduction <add>, %14, %cst_8 [0] : vector<1x1xf32> to vector<1xf32>
    %16 = vector.shape_cast %15 : vector<1xf32> to vector<1x1xf32>
    %cst_9 = arith.constant 2.160000e+02 : f32
    %17 = vector.broadcast %cst_9 : f32 to vector<1x1xf32>
    %18 = arith.divf %16, %17 : vector<1x1xf32>
    %cst_10 = arith.constant 9.99999974E-6 : f32
    %19 = vector.broadcast %cst_10 : f32 to vector<1x1xf32>
    %20 = arith.addf %18, %19 : vector<1x1xf32>
    %21 = math.rsqrt %20 : vector<1x1xf32>
    %c0_11 = arith.constant 0 : index
    %c0_12 = arith.constant 0 : index
    %22 = vector.load %arg2[%c0_11, %c0_12] : memref<1x216xf32, #tpu.memory_space<vmem>>, vector<1x216xf32>
    %23 = vector.broadcast %21 : vector<1x1xf32> to vector<1x216xf32>
    %24 = arith.mulf %23, %22 : vector<1x216xf32>
    %25 = arith.mulf %11, %24 : vector<1x216xf32>
    %c0_13 = arith.constant 0 : index
    %c0_14 = arith.constant 0 : index
    %26 = vector.load %arg3[%c0_13, %c0_14] : memref<1x216xf32, #tpu.memory_space<vmem>>, vector<1x216xf32>
    %27 = arith.addf %25, %26 : vector<1x216xf32>
    %c0_15 = arith.constant 0 : index
    %c7 = arith.constant 7 : index
    %28 = vector.load %arg16[%c0_15, %c7] : memref<1x230xf32, #tpu.memory_space<vmem>>, vector<1x216xf32>
    tpu.vector_store %arg16[%c0_15, %c7], %27 {strides = array<i32>} : memref<1x230xf32, #tpu.memory_space<vmem>>, vector<1x216xf32>,
    %c0_16 = arith.constant 0 : index
    %c0_17 = arith.constant 0 : index
    %29 = vector.load %arg16[%c0_16, %c0_17] : memref<1x230xf32, #tpu.memory_space<vmem>>, vector<1x216xf32>
    %c0_18 = arith.constant 0 : index
    %c0_19 = arith.constant 0 : index
    %c0_20 = arith.constant 0 : index
    %30 = vector.load %arg4[%c0_18, %c0_19, %c0_20] : memref<15x20x1xf32, #tpu.memory_space<vmem>>, vector<1x20x1xf32>
    %31 = vector.shape_cast %30 : vector<1x20x1xf32> to vector<20x1xf32>
    %32 = vector.broadcast %31 : vector<20x1xf32> to vector<20x216xf32>
    %33 = vector.broadcast %29 : vector<1x216xf32> to vector<20x216xf32>
    %34 = arith.mulf %32, %33 : vector<20x216xf32>
    %c0_21 = arith.constant 0 : index
    %c1 = arith.constant 1 : index
    %35 = vector.load %arg16[%c0_21, %c1] : memref<1x230xf32, #tpu.memory_space<vmem>>, vector<1x216xf32>
    %c1_22 = arith.constant 1 : index
    %c0_23 = arith.constant 0 : index
    %c0_24 = arith.constant 0 : index
    %36 = vector.load %arg4[%c1_22, %c0_23, %c0_24] : memref<15x20x1xf32, #tpu.memory_space<vmem>>, vector<1x20x1xf32>
    %37 = vector.shape_cast %36 : vector<1x20x1xf32> to vector<20x1xf32>
    %38 = vector.broadcast %37 : vector<20x1xf32> to vector<20x216xf32>
    %39 = vector.broadcast %35 : vector<1x216xf32> to vector<20x216xf32>
    %40 = arith.mulf %38, %39 : vector<20x216xf32>
    %41 = arith.addf %34, %40 : vector<20x216xf32>
    %c0_25 = arith.constant 0 : index
    %c2 = arith.constant 2 : index
    %42 = vector.load %arg16[%c0_25, %c2] : memref<1x230xf32, #tpu.memory_space<vmem>>, vector<1x216xf32>
    %c2_26 = arith.constant 2 : index
    %c0_27 = arith.constant 0 : index
    %c0_28 = arith.constant 0 : index
    %43 = vector.load %arg4[%c2_26, %c0_27, %c0_28] : memref<15x20x1xf32, #tpu.memory_space<vmem>>, vector<1x20x1xf32>
    %44 = vector.shape_cast %43 : vector<1x20x1xf32> to vector<20x1xf32>
    %45 = vector.broadcast %44 : vector<20x1xf32> to vector<20x216xf32>
    %46 = vector.broadcast %42 : vector<1x216xf32> to vector<20x216xf32>
    %47 = arith.mulf %45, %46 : vector<20x216xf32>
    %48 = arith.addf %41, %47 : vector<20x216xf32>
    %c0_29 = arith.constant 0 : index
    %c3 = arith.constant 3 : index
    %49 = vector.load %arg16[%c0_29, %c3] : memref<1x230xf32, #tpu.memory_space<vmem>>, vector<1x216xf32>
    %c3_30 = arith.constant 3 : index
    %c0_31 = arith.constant 0 : index
    %c0_32 = arith.constant 0 : index
    %50 = vector.load %arg4[%c3_30, %c0_31, %c0_32] : memref<15x20x1xf32, #tpu.memory_space<vmem>>, vector<1x20x1xf32>
    %51 = vector.shape_cast %50 : vector<1x20x1xf32> to vector<20x1xf32>
    %52 = vector.broadcast %51 : vector<20x1xf32> to vector<20x216xf32>
    %53 = vector.broadcast %49 : vector<1x216xf32> to vector<20x216xf32>
    %54 = arith.mulf %52, %53 : vector<20x216xf32>
    %55 = arith.addf %48, %54 : vector<20x216xf32>
    %c0_33 = arith.constant 0 : index
    %c4 = arith.constant 4 : index
    %56 = vector.load %arg16[%c0_33, %c4] : memref<1x230xf32, #tpu.memory_space<vmem>>, vector<1x216xf32>
    %c4_34 = arith.constant 4 : index
    %c0_35 = arith.constant 0 : index
    %c0_36 = arith.constant 0 : index
    %57 = vector.load %arg4[%c4_34, %c0_35, %c0_36] : memref<15x20x1xf32, #tpu.memory_space<vmem>>, vector<1x20x1xf32>
    %58 = vector.shape_cast %57 : vector<1x20x1xf32> to vector<20x1xf32>
    %59 = vector.broadcast %58 : vector<20x1xf32> to vector<20x216xf32>
    %60 = vector.broadcast %56 : vector<1x216xf32> to vector<20x216xf32>
    %61 = arith.mulf %59, %60 : vector<20x216xf32>
    %62 = arith.addf %55, %61 : vector<20x216xf32>
    %c0_37 = arith.constant 0 : index
    %c5 = arith.constant 5 : index
    %63 = vector.load %arg16[%c0_37, %c5] : memref<1x230xf32, #tpu.memory_space<vmem>>, vector<1x216xf32>
    %c5_38 = arith.constant 5 : index
    %c0_39 = arith.constant 0 : index
    %c0_40 = arith.constant 0 : index
    %64 = vector.load %arg4[%c5_38, %c0_39, %c0_40] : memref<15x20x1xf32, #tpu.memory_space<vmem>>, vector<1x20x1xf32>
    %65 = vector.shape_cast %64 : vector<1x20x1xf32> to vector<20x1xf32>
    %66 = vector.broadcast %65 : vector<20x1xf32> to vector<20x216xf32>
    %67 = vector.broadcast %63 : vector<1x216xf32> to vector<20x216xf32>
    %68 = arith.mulf %66, %67 : vector<20x216xf32>
    %69 = arith.addf %62, %68 : vector<20x216xf32>
    %c0_41 = arith.constant 0 : index
    %c6 = arith.constant 6 : index
    %70 = vector.load %arg16[%c0_41, %c6] : memref<1x230xf32, #tpu.memory_space<vmem>>, vector<1x216xf32>
    %c6_42 = arith.constant 6 : index
    %c0_43 = arith.constant 0 : index
    %c0_44 = arith.constant 0 : index
    %71 = vector.load %arg4[%c6_42, %c0_43, %c0_44] : memref<15x20x1xf32, #tpu.memory_space<vmem>>, vector<1x20x1xf32>
    %72 = vector.shape_cast %71 : vector<1x20x1xf32> to vector<20x1xf32>
    %73 = vector.broadcast %72 : vector<20x1xf32> to vector<20x216xf32>
    %74 = vector.broadcast %70 : vector<1x216xf32> to vector<20x216xf32>
    %75 = arith.mulf %73, %74 : vector<20x216xf32>
    %76 = arith.addf %69, %75 : vector<20x216xf32>
    %c0_45 = arith.constant 0 : index
    %c7_46 = arith.constant 7 : index
    %77 = vector.load %arg16[%c0_45, %c7_46] : memref<1x230xf32, #tpu.memory_space<vmem>>, vector<1x216xf32>
    %c7_47 = arith.constant 7 : index
    %c0_48 = arith.constant 0 : index
    %c0_49 = arith.constant 0 : index
    %78 = vector.load %arg4[%c7_47, %c0_48, %c0_49] : memref<15x20x1xf32, #tpu.memory_space<vmem>>, vector<1x20x1xf32>
    %79 = vector.shape_cast %78 : vector<1x20x1xf32> to vector<20x1xf32>
    %80 = vector.broadcast %79 : vector<20x1xf32> to vector<20x216xf32>
    %81 = vector.broadcast %77 : vector<1x216xf32> to vector<20x216xf32>
    %82 = arith.mulf %80, %81 : vector<20x216xf32>
    %83 = arith.addf %76, %82 : vector<20x216xf32>
    %c0_50 = arith.constant 0 : index
    %c8 = arith.constant 8 : index
    %84 = vector.load %arg16[%c0_50, %c8] : memref<1x230xf32, #tpu.memory_space<vmem>>, vector<1x216xf32>
    %c8_51 = arith.constant 8 : index
    %c0_52 = arith.constant 0 : index
    %c0_53 = arith.constant 0 : index
    %85 = vector.load %arg4[%c8_51, %c0_52, %c0_53] : memref<15x20x1xf32, #tpu.memory_space<vmem>>, vector<1x20x1xf32>
    %86 = vector.shape_cast %85 : vector<1x20x1xf32> to vector<20x1xf32>
    %87 = vector.broadcast %86 : vector<20x1xf32> to vector<20x216xf32>
    %88 = vector.broadcast %84 : vector<1x216xf32> to vector<20x216xf32>
    %89 = arith.mulf %87, %88 : vector<20x216xf32>
    %90 = arith.addf %83, %89 : vector<20x216xf32>
    %c0_54 = arith.constant 0 : index
    %c9 = arith.constant 9 : index
    %91 = vector.load %arg16[%c0_54, %c9] : memref<1x230xf32, #tpu.memory_space<vmem>>, vector<1x216xf32>
    %c9_55 = arith.constant 9 : index
    %c0_56 = arith.constant 0 : index
    %c0_57 = arith.constant 0 : index
    %92 = vector.load %arg4[%c9_55, %c0_56, %c0_57] : memref<15x20x1xf32, #tpu.memory_space<vmem>>, vector<1x20x1xf32>
    %93 = vector.shape_cast %92 : vector<1x20x1xf32> to vector<20x1xf32>
    %94 = vector.broadcast %93 : vector<20x1xf32> to vector<20x216xf32>
    %95 = vector.broadcast %91 : vector<1x216xf32> to vector<20x216xf32>
    %96 = arith.mulf %94, %95 : vector<20x216xf32>
    %97 = arith.addf %90, %96 : vector<20x216xf32>
    %c0_58 = arith.constant 0 : index
    %c10 = arith.constant 10 : index
    %98 = vector.load %arg16[%c0_58, %c10] : memref<1x230xf32, #tpu.memory_space<vmem>>, vector<1x216xf32>
    %c10_59 = arith.constant 10 : index
    %c0_60 = arith.constant 0 : index
    %c0_61 = arith.constant 0 : index
    %99 = vector.load %arg4[%c10_59, %c0_60, %c0_61] : memref<15x20x1xf32, #tpu.memory_space<vmem>>, vector<1x20x1xf32>
    %100 = vector.shape_cast %99 : vector<1x20x1xf32> to vector<20x1xf32>
    %101 = vector.broadcast %100 : vector<20x1xf32> to vector<20x216xf32>
    %102 = vector.broadcast %98 : vector<1x216xf32> to vector<20x216xf32>
    %103 = arith.mulf %101, %102 : vector<20x216xf32>
    %104 = arith.addf %97, %103 : vector<20x216xf32>
    %c0_62 = arith.constant 0 : index
    %c11 = arith.constant 11 : index
    %105 = vector.load %arg16[%c0_62, %c11] : memref<1x230xf32, #tpu.memory_space<vmem>>, vector<1x216xf32>
    %c11_63 = arith.constant 11 : index
    %c0_64 = arith.constant 0 : index
    %c0_65 = arith.constant 0 : index
    %106 = vector.load %arg4[%c11_63, %c0_64, %c0_65] : memref<15x20x1xf32, #tpu.memory_space<vmem>>, vector<1x20x1xf32>
    %107 = vector.shape_cast %106 : vector<1x20x1xf32> to vector<20x1xf32>
    %108 = vector.broadcast %107 : vector<20x1xf32> to vector<20x216xf32>
    %109 = vector.broadcast %105 : vector<1x216xf32> to vector<20x216xf32>
    %110 = arith.mulf %108, %109 : vector<20x216xf32>
    %111 = arith.addf %104, %110 : vector<20x216xf32>
    %c0_66 = arith.constant 0 : index
    %c12 = arith.constant 12 : index
    %112 = vector.load %arg16[%c0_66, %c12] : memref<1x230xf32, #tpu.memory_space<vmem>>, vector<1x216xf32>
    %c12_67 = arith.constant 12 : index
    %c0_68 = arith.constant 0 : index
    %c0_69 = arith.constant 0 : index
    %113 = vector.load %arg4[%c12_67, %c0_68, %c0_69] : memref<15x20x1xf32, #tpu.memory_space<vmem>>, vector<1x20x1xf32>
    %114 = vector.shape_cast %113 : vector<1x20x1xf32> to vector<20x1xf32>
    %115 = vector.broadcast %114 : vector<20x1xf32> to vector<20x216xf32>
    %116 = vector.broadcast %112 : vector<1x216xf32> to vector<20x216xf32>
    %117 = arith.mulf %115, %116 : vector<20x216xf32>
    %118 = arith.addf %111, %117 : vector<20x216xf32>
    %c0_70 = arith.constant 0 : index
    %c13 = arith.constant 13 : index
    %119 = vector.load %arg16[%c0_70, %c13] : memref<1x230xf32, #tpu.memory_space<vmem>>, vector<1x216xf32>
    %c13_71 = arith.constant 13 : index
    %c0_72 = arith.constant 0 : index
    %c0_73 = arith.constant 0 : index
    %120 = vector.load %arg4[%c13_71, %c0_72, %c0_73] : memref<15x20x1xf32, #tpu.memory_space<vmem>>, vector<1x20x1xf32>
    %121 = vector.shape_cast %120 : vector<1x20x1xf32> to vector<20x1xf32>
    %122 = vector.broadcast %121 : vector<20x1xf32> to vector<20x216xf32>
    %123 = vector.broadcast %119 : vector<1x216xf32> to vector<20x216xf32>
    %124 = arith.mulf %122, %123 : vector<20x216xf32>
    %125 = arith.addf %118, %124 : vector<20x216xf32>
    %c0_74 = arith.constant 0 : index
    %c14 = arith.constant 14 : index
    %126 = vector.load %arg16[%c0_74, %c14] : memref<1x230xf32, #tpu.memory_space<vmem>>, vector<1x216xf32>
    %c14_75 = arith.constant 14 : index
    %c0_76 = arith.constant 0 : index
    %c0_77 = arith.constant 0 : index
    %127 = vector.load %arg4[%c14_75, %c0_76, %c0_77] : memref<15x20x1xf32, #tpu.memory_space<vmem>>, vector<1x20x1xf32>
    %128 = vector.shape_cast %127 : vector<1x20x1xf32> to vector<20x1xf32>
    %129 = vector.broadcast %128 : vector<20x1xf32> to vector<20x216xf32>
    %130 = vector.broadcast %126 : vector<1x216xf32> to vector<20x216xf32>
    %131 = arith.mulf %129, %130 : vector<20x216xf32>
    %132 = arith.addf %125, %131 : vector<20x216xf32>
    %c0_78 = arith.constant 0 : index
    %c0_79 = arith.constant 0 : index
    %133 = vector.load %arg5[%c0_78, %c0_79] : memref<20x1xf32, #tpu.memory_space<vmem>>, vector<20x1xf32>
    %134 = vector.broadcast %133 : vector<20x1xf32> to vector<20x216xf32>
    %135 = arith.addf %132, %134 : vector<20x216xf32>
    %cst_80 = arith.constant 0.000000e+00 : f32
    %136 = vector.broadcast %cst_80 : f32 to vector<20x216xf32>
    %137 = arith.cmpf oge, %135, %136 : vector<20x216xf32>
    %cst_81 = arith.constant 3.000000e-01 : f32
    %138 = vector.broadcast %cst_81 : f32 to vector<20x216xf32>
    %139 = arith.mulf %138, %135 : vector<20x216xf32>
    %140 = arith.select %137, %135, %139 : vector<20x216xi1>, vector<20x216xf32>
    %c0_82 = arith.constant 0 : index
    %c0_83 = arith.constant 0 : index
    %141 = vector.load %arg6[%c0_82, %c0_83] : memref<20x20xf32, #tpu.memory_space<vmem>>, vector<20x20xf32>
    %cst_84 = arith.constant dense<0.000000e+00> : vector<20x216xf32>
    %142 = tpu.matmul %141, %140, %cst_84 {dimension_numbers = #tpu.dot_dimension_numbers<[1], [0], [0], [1], [0, 0, 1, 1], [], []>} : vector<20x20xf32>, vector<20x216xf32>, vector<20x216xf32> -> vector<20x216xf32>
    %c0_85 = arith.constant 0 : index
    %c0_86 = arith.constant 0 : index
    %143 = vector.load %arg7[%c0_85, %c0_86] : memref<20x1xf32, #tpu.memory_space<vmem>>, vector<20x1xf32>
    %144 = vector.broadcast %143 : vector<20x1xf32> to vector<20x216xf32>
    %145 = arith.addf %142, %144 : vector<20x216xf32>
    %cst_87 = arith.constant 0.000000e+00 : f32
    %146 = vector.broadcast %cst_87 : f32 to vector<20x216xf32>
    %147 = arith.cmpf oge, %145, %146 : vector<20x216xf32>
    %cst_88 = arith.constant 3.000000e-01 : f32
    %148 = vector.broadcast %cst_88 : f32 to vector<20x216xf32>
    %149 = arith.mulf %148, %145 : vector<20x216xf32>
    %150 = arith.select %147, %145, %149 : vector<20x216xi1>, vector<20x216xf32>
    %c0_89 = arith.constant 0 : index
    %c0_90 = arith.constant 0 : index
    %151 = vector.load %arg8[%c0_89, %c0_90] : memref<10x20xf32, #tpu.memory_space<vmem>>, vector<10x20xf32>
    %cst_91 = arith.constant dense<0.000000e+00> : vector<10x216xf32>
    %152 = tpu.matmul %151, %150, %cst_91 {dimension_numbers = #tpu.dot_dimension_numbers<[1], [0], [0], [1], [0, 0, 1, 1], [], []>} : vector<10x20xf32>, vector<20x216xf32>, vector<10x216xf32> -> vector<10x216xf32>
    %c0_92 = arith.constant 0 : index
    %c0_93 = arith.constant 0 : index
    %153 = vector.load %arg9[%c0_92, %c0_93] : memref<10x1xf32, #tpu.memory_space<vmem>>, vector<10x1xf32>
    %154 = vector.broadcast %153 : vector<10x1xf32> to vector<10x216xf32>
    %155 = arith.addf %152, %154 : vector<10x216xf32>
    %cst_94 = arith.constant 0.000000e+00 : f32
    %156 = vector.broadcast %cst_94 : f32 to vector<10x216xf32>
    %157 = arith.cmpf oge, %155, %156 : vector<10x216xf32>
    %cst_95 = arith.constant 3.000000e-01 : f32
    %158 = vector.broadcast %cst_95 : f32 to vector<10x216xf32>
    %159 = arith.mulf %158, %155 : vector<10x216xf32>
    %160 = arith.select %157, %155, %159 : vector<10x216xi1>, vector<10x216xf32>
    %c0_96 = arith.constant 0 : index
    %c0_97 = arith.constant 0 : index
    %161 = vector.load %arg10[%c0_96, %c0_97] : memref<1x10xf32, #tpu.memory_space<vmem>>, vector<1x10xf32>
    %cst_98 = arith.constant dense<0.000000e+00> : vector<1x216xf32>
    %162 = tpu.matmul %161, %160, %cst_98 {dimension_numbers = #tpu.dot_dimension_numbers<[1], [0], [0], [1], [0, 0, 1, 1], [], []>} : vector<1x10xf32>, vector<10x216xf32>, vector<1x216xf32> -> vector<1x216xf32>
    %c0_99 = arith.constant 0 : index
    %c0_100 = arith.constant 0 : index
    %163 = vector.load %arg11[%c0_99, %c0_100] : memref<1x1xf32, #tpu.memory_space<vmem>>, vector<1x1xf32>
    %164 = vector.broadcast %163 : vector<1x1xf32> to vector<1x216xf32>
    %165 = arith.addf %162, %164 : vector<1x216xf32>
    %cst_101 = arith.constant 0.000000e+00 : f32
    %166 = vector.broadcast %cst_101 : f32 to vector<1x216xf32>
    %167 = arith.cmpf oge, %165, %166 : vector<1x216xf32>
    %cst_102 = arith.constant 3.000000e-01 : f32
    %168 = vector.broadcast %cst_102 : f32 to vector<1x216xf32>
    %169 = arith.mulf %168, %165 : vector<1x216xf32>
    %170 = arith.select %167, %165, %169 : vector<1x216xi1>, vector<1x216xf32>
    %c0_103 = arith.constant 0 : index
    %c0_104 = arith.constant 0 : index
    %171 = vector.load %arg12[%c0_103, %c0_104] : memref<1x1xf32, #tpu.memory_space<vmem>>, vector<1x1xf32>
    %172 = vector.broadcast %171 : vector<1x1xf32> to vector<1x216xf32>
    %173 = arith.mulf %172, %170 : vector<1x216xf32>
    %c0_105 = arith.constant 0 : index
    %c0_106 = arith.constant 0 : index
    %174 = vector.load %arg13[%c0_105, %c0_106] : memref<1x1xf32, #tpu.memory_space<vmem>>, vector<1x1xf32>
    %175 = vector.broadcast %174 : vector<1x1xf32> to vector<1x216xf32>
    %176 = arith.addf %173, %175 : vector<1x216xf32>
    %cst_107 = arith.constant 0.000000e+00 : f32
    %177 = vector.broadcast %cst_107 : f32 to vector<1x216xf32>
    %178 = arith.cmpf oge, %176, %177 : vector<1x216xf32>
    %cst_108 = arith.constant 3.000000e-01 : f32
    %179 = vector.broadcast %cst_108 : f32 to vector<1x216xf32>
    %180 = arith.mulf %179, %176 : vector<1x216xf32>
    %181 = arith.select %178, %176, %180 : vector<1x216xi1>, vector<1x216xf32>
    %c0_109 = arith.constant 0 : index
    %c0_110 = arith.constant 0 : index
    %c0_111 = arith.constant 0 : index
    %182 = vector.load %arg14[%c0_109, %c0_110, %c0_111] : memref<1x216x128xf32, #tpu.memory_space<vmem>>, vector<1x216x128xf32>
    %183 = vector.shape_cast %182 : vector<1x216x128xf32> to vector<216x128xf32>
    %cst_112 = arith.constant dense<0.000000e+00> : vector<1x128xf32>
    %184 = tpu.matmul %181, %183, %cst_112 {dimension_numbers = #tpu.dot_dimension_numbers<[1], [0], [0], [1], [0, 0, 1, 1], [], []>} : vector<1x216xf32>, vector<216x128xf32>, vector<1x128xf32> -> vector<1x128xf32>
    %cst_113 = arith.constant dense<0xFF800000> : vector<1xf32>
    %185 = vector.multi_reduction <maximumf>, %184, %cst_113 [1] : vector<1x128xf32> to vector<1xf32>
    %186 = vector.shape_cast %185 : vector<1xf32> to vector<1x1xf32>
    %187 = vector.broadcast %186 : vector<1x1xf32> to vector<1x128xf32>
    %188 = arith.subf %184, %187 : vector<1x128xf32>
    %189 = math.exp %188 : vector<1x128xf32>
    %cst_114 = arith.constant dense<0.000000e+00> : vector<1xf32>
    %190 = vector.multi_reduction <add>, %189, %cst_114 [1] : vector<1x128xf32> to vector<1xf32>
    %191 = vector.shape_cast %190 : vector<1xf32> to vector<1x1xf32>
    %192 = vector.broadcast %191 : vector<1x1xf32> to vector<1x128xf32>
    %193 = arith.divf %189, %192 : vector<1x128xf32>
    %c0_115 = arith.constant 0 : index
    %c0_116 = arith.constant 0 : index
    %c0_117 = arith.constant 0 : index
    %194 = vector.load %arg15[%c0_115, %c0_116, %c0_117] : memref<4x1x128xf32, #tpu.memory_space<vmem>>, vector<1x1x128xf32>
    %195 = vector.shape_cast %194 : vector<1x1x128xf32> to vector<1x128xf32>
    %196 = vector.shape_cast %193 : vector<1x128xf32> to vector<1x1x128xf32>
    tpu.vector_store %arg15[%c0_115, %c0_116, %c0_117], %196 {strides = array<i32>} : memref<4x1x128xf32, #tpu.memory_space<vmem>>, vector<1x1x128xf32>,
    %c1_118 = arith.constant 1 : index
    %c0_119 = arith.constant 0 : index
    %c0_120 = arith.constant 0 : index
    %197 = vector.load %arg1[%c1_118, %c0_119, %c0_120] : memref<4x1x216xf32, #tpu.memory_space<vmem>>, vector<1x1x216xf32>
    %198 = vector.shape_cast %197 : vector<1x1x216xf32> to vector<1x216xf32>
    %cst_121 = arith.constant dense<0.000000e+00> : vector<1xf32>
    %199 = vector.multi_reduction <add>, %198, %cst_121 [1] : vector<1x216xf32> to vector<1xf32>
    %200 = vector.shape_cast %199 : vector<1xf32> to vector<1x1xf32>
    %cst_122 = arith.constant dense<0.000000e+00> : vector<1xf32>
    %201 = vector.multi_reduction <add>, %200, %cst_122 [0] : vector<1x1xf32> to vector<1xf32>
    %202 = vector.shape_cast %201 : vector<1xf32> to vector<1x1xf32>
    %cst_123 = arith.constant 2.160000e+02 : f32
    %203 = vector.broadcast %cst_123 : f32 to vector<1x1xf32>
    %204 = arith.divf %202, %203 : vector<1x1xf32>
    %205 = vector.broadcast %204 : vector<1x1xf32> to vector<1x216xf32>
    %206 = arith.subf %198, %205 : vector<1x216xf32>
    %207 = arith.mulf %206, %206 : vector<1x216xf32>
    %cst_124 = arith.constant dense<0.000000e+00> : vector<1xf32>
    %208 = vector.multi_reduction <add>, %207, %cst_124 [1] : vector<1x216xf32> to vector<1xf32>
    %209 = vector.shape_cast %208 : vector<1xf32> to vector<1x1xf32>
    %cst_125 = arith.constant dense<0.000000e+00> : vector<1xf32>
    %210 = vector.multi_reduction <add>, %209, %cst_125 [0] : vector<1x1xf32> to vector<1xf32>
    %211 = vector.shape_cast %210 : vector<1xf32> to vector<1x1xf32>
    %cst_126 = arith.constant 2.160000e+02 : f32
    %212 = vector.broadcast %cst_126 : f32 to vector<1x1xf32>
    %213 = arith.divf %211, %212 : vector<1x1xf32>
    %cst_127 = arith.constant 9.99999974E-6 : f32
    %214 = vector.broadcast %cst_127 : f32 to vector<1x1xf32>
    %215 = arith.addf %213, %214 : vector<1x1xf32>
    %216 = math.rsqrt %215 : vector<1x1xf32>
    %c0_128 = arith.constant 0 : index
    %c0_129 = arith.constant 0 : index
    %217 = vector.load %arg2[%c0_128, %c0_129] : memref<1x216xf32, #tpu.memory_space<vmem>>, vector<1x216xf32>
    %218 = vector.broadcast %216 : vector<1x1xf32> to vector<1x216xf32>
    %219 = arith.mulf %218, %217 : vector<1x216xf32>
    %220 = arith.mulf %206, %219 : vector<1x216xf32>
    %c0_130 = arith.constant 0 : index
    %c0_131 = arith.constant 0 : index
    %221 = vector.load %arg3[%c0_130, %c0_131] : memref<1x216xf32, #tpu.memory_space<vmem>>, vector<1x216xf32>
    %222 = arith.addf %220, %221 : vector<1x216xf32>
    %c0_132 = arith.constant 0 : index
    %c7_133 = arith.constant 7 : index
    %223 = vector.load %arg16[%c0_132, %c7_133] : memref<1x230xf32, #tpu.memory_space<vmem>>, vector<1x216xf32>
    tpu.vector_store %arg16[%c0_132, %c7_133], %222 {strides = array<i32>} : memref<1x230xf32, #tpu.memory_space<vmem>>, vector<1x216xf32>,
    %c0_134 = arith.constant 0 : index
    %c0_135 = arith.constant 0 : index
    %224 = vector.load %arg16[%c0_134, %c0_135] : memref<1x230xf32, #tpu.memory_space<vmem>>, vector<1x216xf32>
    %c0_136 = arith.constant 0 : index
    %c0_137 = arith.constant 0 : index
    %c0_138 = arith.constant 0 : index
    %225 = vector.load %arg4[%c0_136, %c0_137, %c0_138] : memref<15x20x1xf32, #tpu.memory_space<vmem>>, vector<1x20x1xf32>
    %226 = vector.shape_cast %225 : vector<1x20x1xf32> to vector<20x1xf32>
    %227 = vector.broadcast %226 : vector<20x1xf32> to vector<20x216xf32>
    %228 = vector.broadcast %224 : vector<1x216xf32> to vector<20x216xf32>
    %229 = arith.mulf %227, %228 : vector<20x216xf32>
    %c0_139 = arith.constant 0 : index
    %c1_140 = arith.constant 1 : index
    %230 = vector.load %arg16[%c0_139, %c1_140] : memref<1x230xf32, #tpu.memory_space<vmem>>, vector<1x216xf32>
    %c1_141 = arith.constant 1 : index
    %c0_142 = arith.constant 0 : index
    %c0_143 = arith.constant 0 : index
    %231 = vector.load %arg4[%c1_141, %c0_142, %c0_143] : memref<15x20x1xf32, #tpu.memory_space<vmem>>, vector<1x20x1xf32>
    %232 = vector.shape_cast %231 : vector<1x20x1xf32> to vector<20x1xf32>
    %233 = vector.broadcast %232 : vector<20x1xf32> to vector<20x216xf32>
    %234 = vector.broadcast %230 : vector<1x216xf32> to vector<20x216xf32>
    %235 = arith.mulf %233, %234 : vector<20x216xf32>
    %236 = arith.addf %229, %235 : vector<20x216xf32>
    %c0_144 = arith.constant 0 : index
    %c2_145 = arith.constant 2 : index
    %237 = vector.load %arg16[%c0_144, %c2_145] : memref<1x230xf32, #tpu.memory_space<vmem>>, vector<1x216xf32>
    %c2_146 = arith.constant 2 : index
    %c0_147 = arith.constant 0 : index
    %c0_148 = arith.constant 0 : index
    %238 = vector.load %arg4[%c2_146, %c0_147, %c0_148] : memref<15x20x1xf32, #tpu.memory_space<vmem>>, vector<1x20x1xf32>
    %239 = vector.shape_cast %238 : vector<1x20x1xf32> to vector<20x1xf32>
    %240 = vector.broadcast %239 : vector<20x1xf32> to vector<20x216xf32>
    %241 = vector.broadcast %237 : vector<1x216xf32> to vector<20x216xf32>
    %242 = arith.mulf %240, %241 : vector<20x216xf32>
    %243 = arith.addf %236, %242 : vector<20x216xf32>
    %c0_149 = arith.constant 0 : index
    %c3_150 = arith.constant 3 : index
    %244 = vector.load %arg16[%c0_149, %c3_150] : memref<1x230xf32, #tpu.memory_space<vmem>>, vector<1x216xf32>
    %c3_151 = arith.constant 3 : index
    %c0_152 = arith.constant 0 : index
    %c0_153 = arith.constant 0 : index
    %245 = vector.load %arg4[%c3_151, %c0_152, %c0_153] : memref<15x20x1xf32, #tpu.memory_space<vmem>>, vector<1x20x1xf32>
    %246 = vector.shape_cast %245 : vector<1x20x1xf32> to vector<20x1xf32>
    %247 = vector.broadcast %246 : vector<20x1xf32> to vector<20x216xf32>
    %248 = vector.broadcast %244 : vector<1x216xf32> to vector<20x216xf32>
    %249 = arith.mulf %247, %248 : vector<20x216xf32>
    %250 = arith.addf %243, %249 : vector<20x216xf32>
    %c0_154 = arith.constant 0 : index
    %c4_155 = arith.constant 4 : index
    %251 = vector.load %arg16[%c0_154, %c4_155] : memref<1x230xf32, #tpu.memory_space<vmem>>, vector<1x216xf32>
    %c4_156 = arith.constant 4 : index
    %c0_157 = arith.constant 0 : index
    %c0_158 = arith.constant 0 : index
    %252 = vector.load %arg4[%c4_156, %c0_157, %c0_158] : memref<15x20x1xf32, #tpu.memory_space<vmem>>, vector<1x20x1xf32>
    %253 = vector.shape_cast %252 : vector<1x20x1xf32> to vector<20x1xf32>
    %254 = vector.broadcast %253 : vector<20x1xf32> to vector<20x216xf32>
    %255 = vector.broadcast %251 : vector<1x216xf32> to vector<20x216xf32>
    %256 = arith.mulf %254, %255 : vector<20x216xf32>
    %257 = arith.addf %250, %256 : vector<20x216xf32>
    %c0_159 = arith.constant 0 : index
    %c5_160 = arith.constant 5 : index
    %258 = vector.load %arg16[%c0_159, %c5_160] : memref<1x230xf32, #tpu.memory_space<vmem>>, vector<1x216xf32>
    %c5_161 = arith.constant 5 : index
    %c0_162 = arith.constant 0 : index
    %c0_163 = arith.constant 0 : index
    %259 = vector.load %arg4[%c5_161, %c0_162, %c0_163] : memref<15x20x1xf32, #tpu.memory_space<vmem>>, vector<1x20x1xf32>
    %260 = vector.shape_cast %259 : vector<1x20x1xf32> to vector<20x1xf32>
    %261 = vector.broadcast %260 : vector<20x1xf32> to vector<20x216xf32>
    %262 = vector.broadcast %258 : vector<1x216xf32> to vector<20x216xf32>
    %263 = arith.mulf %261, %262 : vector<20x216xf32>
    %264 = arith.addf %257, %263 : vector<20x216xf32>
    %c0_164 = arith.constant 0 : index
    %c6_165 = arith.constant 6 : index
    %265 = vector.load %arg16[%c0_164, %c6_165] : memref<1x230xf32, #tpu.memory_space<vmem>>, vector<1x216xf32>
    %c6_166 = arith.constant 6 : index
    %c0_167 = arith.constant 0 : index
    %c0_168 = arith.constant 0 : index
    %266 = vector.load %arg4[%c6_166, %c0_167, %c0_168] : memref<15x20x1xf32, #tpu.memory_space<vmem>>, vector<1x20x1xf32>
    %267 = vector.shape_cast %266 : vector<1x20x1xf32> to vector<20x1xf32>
    %268 = vector.broadcast %267 : vector<20x1xf32> to vector<20x216xf32>
    %269 = vector.broadcast %265 : vector<1x216xf32> to vector<20x216xf32>
    %270 = arith.mulf %268, %269 : vector<20x216xf32>
    %271 = arith.addf %264, %270 : vector<20x216xf32>
    %c0_169 = arith.constant 0 : index
    %c7_170 = arith.constant 7 : index
    %272 = vector.load %arg16[%c0_169, %c7_170] : memref<1x230xf32, #tpu.memory_space<vmem>>, vector<1x216xf32>
    %c7_171 = arith.constant 7 : index
    %c0_172 = arith.constant 0 : index
    %c0_173 = arith.constant 0 : index
    %273 = vector.load %arg4[%c7_171, %c0_172, %c0_173] : memref<15x20x1xf32, #tpu.memory_space<vmem>>, vector<1x20x1xf32>
    %274 = vector.shape_cast %273 : vector<1x20x1xf32> to vector<20x1xf32>
    %275 = vector.broadcast %274 : vector<20x1xf32> to vector<20x216xf32>
    %276 = vector.broadcast %272 : vector<1x216xf32> to vector<20x216xf32>
    %277 = arith.mulf %275, %276 : vector<20x216xf32>
    %278 = arith.addf %271, %277 : vector<20x216xf32>
    %c0_174 = arith.constant 0 : index
    %c8_175 = arith.constant 8 : index
    %279 = vector.load %arg16[%c0_174, %c8_175] : memref<1x230xf32, #tpu.memory_space<vmem>>, vector<1x216xf32>
    %c8_176 = arith.constant 8 : index
    %c0_177 = arith.constant 0 : index
    %c0_178 = arith.constant 0 : index
    %280 = vector.load %arg4[%c8_176, %c0_177, %c0_178] : memref<15x20x1xf32, #tpu.memory_space<vmem>>, vector<1x20x1xf32>
    %281 = vector.shape_cast %280 : vector<1x20x1xf32> to vector<20x1xf32>
    %282 = vector.broadcast %281 : vector<20x1xf32> to vector<20x216xf32>
    %283 = vector.broadcast %279 : vector<1x216xf32> to vector<20x216xf32>
    %284 = arith.mulf %282, %283 : vector<20x216xf32>
    %285 = arith.addf %278, %284 : vector<20x216xf32>
    %c0_179 = arith.constant 0 : index
    %c9_180 = arith.constant 9 : index
    %286 = vector.load %arg16[%c0_179, %c9_180] : memref<1x230xf32, #tpu.memory_space<vmem>>, vector<1x216xf32>
    %c9_181 = arith.constant 9 : index
    %c0_182 = arith.constant 0 : index
    %c0_183 = arith.constant 0 : index
    %287 = vector.load %arg4[%c9_181, %c0_182, %c0_183] : memref<15x20x1xf32, #tpu.memory_space<vmem>>, vector<1x20x1xf32>
    %288 = vector.shape_cast %287 : vector<1x20x1xf32> to vector<20x1xf32>
    %289 = vector.broadcast %288 : vector<20x1xf32> to vector<20x216xf32>
    %290 = vector.broadcast %286 : vector<1x216xf32> to vector<20x216xf32>
    %291 = arith.mulf %289, %290 : vector<20x216xf32>
    %292 = arith.addf %285, %291 : vector<20x216xf32>
    %c0_184 = arith.constant 0 : index
    %c10_185 = arith.constant 10 : index
    %293 = vector.load %arg16[%c0_184, %c10_185] : memref<1x230xf32, #tpu.memory_space<vmem>>, vector<1x216xf32>
    %c10_186 = arith.constant 10 : index
    %c0_187 = arith.constant 0 : index
    %c0_188 = arith.constant 0 : index
    %294 = vector.load %arg4[%c10_186, %c0_187, %c0_188] : memref<15x20x1xf32, #tpu.memory_space<vmem>>, vector<1x20x1xf32>
    %295 = vector.shape_cast %294 : vector<1x20x1xf32> to vector<20x1xf32>
    %296 = vector.broadcast %295 : vector<20x1xf32> to vector<20x216xf32>
    %297 = vector.broadcast %293 : vector<1x216xf32> to vector<20x216xf32>
    %298 = arith.mulf %296, %297 : vector<20x216xf32>
    %299 = arith.addf %292, %298 : vector<20x216xf32>
    %c0_189 = arith.constant 0 : index
    %c11_190 = arith.constant 11 : index
    %300 = vector.load %arg16[%c0_189, %c11_190] : memref<1x230xf32, #tpu.memory_space<vmem>>, vector<1x216xf32>
    %c11_191 = arith.constant 11 : index
    %c0_192 = arith.constant 0 : index
    %c0_193 = arith.constant 0 : index
    %301 = vector.load %arg4[%c11_191, %c0_192, %c0_193] : memref<15x20x1xf32, #tpu.memory_space<vmem>>, vector<1x20x1xf32>
    %302 = vector.shape_cast %301 : vector<1x20x1xf32> to vector<20x1xf32>
    %303 = vector.broadcast %302 : vector<20x1xf32> to vector<20x216xf32>
    %304 = vector.broadcast %300 : vector<1x216xf32> to vector<20x216xf32>
    %305 = arith.mulf %303, %304 : vector<20x216xf32>
    %306 = arith.addf %299, %305 : vector<20x216xf32>
    %c0_194 = arith.constant 0 : index
    %c12_195 = arith.constant 12 : index
    %307 = vector.load %arg16[%c0_194, %c12_195] : memref<1x230xf32, #tpu.memory_space<vmem>>, vector<1x216xf32>
    %c12_196 = arith.constant 12 : index
    %c0_197 = arith.constant 0 : index
    %c0_198 = arith.constant 0 : index
    %308 = vector.load %arg4[%c12_196, %c0_197, %c0_198] : memref<15x20x1xf32, #tpu.memory_space<vmem>>, vector<1x20x1xf32>
    %309 = vector.shape_cast %308 : vector<1x20x1xf32> to vector<20x1xf32>
    %310 = vector.broadcast %309 : vector<20x1xf32> to vector<20x216xf32>
    %311 = vector.broadcast %307 : vector<1x216xf32> to vector<20x216xf32>
    %312 = arith.mulf %310, %311 : vector<20x216xf32>
    %313 = arith.addf %306, %312 : vector<20x216xf32>
    %c0_199 = arith.constant 0 : index
    %c13_200 = arith.constant 13 : index
    %314 = vector.load %arg16[%c0_199, %c13_200] : memref<1x230xf32, #tpu.memory_space<vmem>>, vector<1x216xf32>
    %c13_201 = arith.constant 13 : index
    %c0_202 = arith.constant 0 : index
    %c0_203 = arith.constant 0 : index
    %315 = vector.load %arg4[%c13_201, %c0_202, %c0_203] : memref<15x20x1xf32, #tpu.memory_space<vmem>>, vector<1x20x1xf32>
    %316 = vector.shape_cast %315 : vector<1x20x1xf32> to vector<20x1xf32>
    %317 = vector.broadcast %316 : vector<20x1xf32> to vector<20x216xf32>
    %318 = vector.broadcast %314 : vector<1x216xf32> to vector<20x216xf32>
    %319 = arith.mulf %317, %318 : vector<20x216xf32>
    %320 = arith.addf %313, %319 : vector<20x216xf32>
    %c0_204 = arith.constant 0 : index
    %c14_205 = arith.constant 14 : index
    %321 = vector.load %arg16[%c0_204, %c14_205] : memref<1x230xf32, #tpu.memory_space<vmem>>, vector<1x216xf32>
    %c14_206 = arith.constant 14 : index
    %c0_207 = arith.constant 0 : index
    %c0_208 = arith.constant 0 : index
    %322 = vector.load %arg4[%c14_206, %c0_207, %c0_208] : memref<15x20x1xf32, #tpu.memory_space<vmem>>, vector<1x20x1xf32>
    %323 = vector.shape_cast %322 : vector<1x20x1xf32> to vector<20x1xf32>
    %324 = vector.broadcast %323 : vector<20x1xf32> to vector<20x216xf32>
    %325 = vector.broadcast %321 : vector<1x216xf32> to vector<20x216xf32>
    %326 = arith.mulf %324, %325 : vector<20x216xf32>
    %327 = arith.addf %320, %326 : vector<20x216xf32>
    %c0_209 = arith.constant 0 : index
    %c0_210 = arith.constant 0 : index
    %328 = vector.load %arg5[%c0_209, %c0_210] : memref<20x1xf32, #tpu.memory_space<vmem>>, vector<20x1xf32>
    %329 = vector.broadcast %328 : vector<20x1xf32> to vector<20x216xf32>
    %330 = arith.addf %327, %329 : vector<20x216xf32>
    %cst_211 = arith.constant 0.000000e+00 : f32
    %331 = vector.broadcast %cst_211 : f32 to vector<20x216xf32>
    %332 = arith.cmpf oge, %330, %331 : vector<20x216xf32>
    %cst_212 = arith.constant 3.000000e-01 : f32
    %333 = vector.broadcast %cst_212 : f32 to vector<20x216xf32>
    %334 = arith.mulf %333, %330 : vector<20x216xf32>
    %335 = arith.select %332, %330, %334 : vector<20x216xi1>, vector<20x216xf32>
    %c0_213 = arith.constant 0 : index
    %c0_214 = arith.constant 0 : index
    %336 = vector.load %arg6[%c0_213, %c0_214] : memref<20x20xf32, #tpu.memory_space<vmem>>, vector<20x20xf32>
    %cst_215 = arith.constant dense<0.000000e+00> : vector<20x216xf32>
    %337 = tpu.matmul %336, %335, %cst_215 {dimension_numbers = #tpu.dot_dimension_numbers<[1], [0], [0], [1], [0, 0, 1, 1], [], []>} : vector<20x20xf32>, vector<20x216xf32>, vector<20x216xf32> -> vector<20x216xf32>
    %c0_216 = arith.constant 0 : index
    %c0_217 = arith.constant 0 : index
    %338 = vector.load %arg7[%c0_216, %c0_217] : memref<20x1xf32, #tpu.memory_space<vmem>>, vector<20x1xf32>
    %339 = vector.broadcast %338 : vector<20x1xf32> to vector<20x216xf32>
    %340 = arith.addf %337, %339 : vector<20x216xf32>
    %cst_218 = arith.constant 0.000000e+00 : f32
    %341 = vector.broadcast %cst_218 : f32 to vector<20x216xf32>
    %342 = arith.cmpf oge, %340, %341 : vector<20x216xf32>
    %cst_219 = arith.constant 3.000000e-01 : f32
    %343 = vector.broadcast %cst_219 : f32 to vector<20x216xf32>
    %344 = arith.mulf %343, %340 : vector<20x216xf32>
    %345 = arith.select %342, %340, %344 : vector<20x216xi1>, vector<20x216xf32>
    %c0_220 = arith.constant 0 : index
    %c0_221 = arith.constant 0 : index
    %346 = vector.load %arg8[%c0_220, %c0_221] : memref<10x20xf32, #tpu.memory_space<vmem>>, vector<10x20xf32>
    %cst_222 = arith.constant dense<0.000000e+00> : vector<10x216xf32>
    %347 = tpu.matmul %346, %345, %cst_222 {dimension_numbers = #tpu.dot_dimension_numbers<[1], [0], [0], [1], [0, 0, 1, 1], [], []>} : vector<10x20xf32>, vector<20x216xf32>, vector<10x216xf32> -> vector<10x216xf32>
    %c0_223 = arith.constant 0 : index
    %c0_224 = arith.constant 0 : index
    %348 = vector.load %arg9[%c0_223, %c0_224] : memref<10x1xf32, #tpu.memory_space<vmem>>, vector<10x1xf32>
    %349 = vector.broadcast %348 : vector<10x1xf32> to vector<10x216xf32>
    %350 = arith.addf %347, %349 : vector<10x216xf32>
    %cst_225 = arith.constant 0.000000e+00 : f32
    %351 = vector.broadcast %cst_225 : f32 to vector<10x216xf32>
    %352 = arith.cmpf oge, %350, %351 : vector<10x216xf32>
    %cst_226 = arith.constant 3.000000e-01 : f32
    %353 = vector.broadcast %cst_226 : f32 to vector<10x216xf32>
    %354 = arith.mulf %353, %350 : vector<10x216xf32>
    %355 = arith.select %352, %350, %354 : vector<10x216xi1>, vector<10x216xf32>
    %c0_227 = arith.constant 0 : index
    %c0_228 = arith.constant 0 : index
    %356 = vector.load %arg10[%c0_227, %c0_228] : memref<1x10xf32, #tpu.memory_space<vmem>>, vector<1x10xf32>
    %cst_229 = arith.constant dense<0.000000e+00> : vector<1x216xf32>
    %357 = tpu.matmul %356, %355, %cst_229 {dimension_numbers = #tpu.dot_dimension_numbers<[1], [0], [0], [1], [0, 0, 1, 1], [], []>} : vector<1x10xf32>, vector<10x216xf32>, vector<1x216xf32> -> vector<1x216xf32>
    %c0_230 = arith.constant 0 : index
    %c0_231 = arith.constant 0 : index
    %358 = vector.load %arg11[%c0_230, %c0_231] : memref<1x1xf32, #tpu.memory_space<vmem>>, vector<1x1xf32>
    %359 = vector.broadcast %358 : vector<1x1xf32> to vector<1x216xf32>
    %360 = arith.addf %357, %359 : vector<1x216xf32>
    %cst_232 = arith.constant 0.000000e+00 : f32
    %361 = vector.broadcast %cst_232 : f32 to vector<1x216xf32>
    %362 = arith.cmpf oge, %360, %361 : vector<1x216xf32>
    %cst_233 = arith.constant 3.000000e-01 : f32
    %363 = vector.broadcast %cst_233 : f32 to vector<1x216xf32>
    %364 = arith.mulf %363, %360 : vector<1x216xf32>
    %365 = arith.select %362, %360, %364 : vector<1x216xi1>, vector<1x216xf32>
    %c0_234 = arith.constant 0 : index
    %c0_235 = arith.constant 0 : index
    %366 = vector.load %arg12[%c0_234, %c0_235] : memref<1x1xf32, #tpu.memory_space<vmem>>, vector<1x1xf32>
    %367 = vector.broadcast %366 : vector<1x1xf32> to vector<1x216xf32>
    %368 = arith.mulf %367, %365 : vector<1x216xf32>
    %c0_236 = arith.constant 0 : index
    %c0_237 = arith.constant 0 : index
    %369 = vector.load %arg13[%c0_236, %c0_237] : memref<1x1xf32, #tpu.memory_space<vmem>>, vector<1x1xf32>
    %370 = vector.broadcast %369 : vector<1x1xf32> to vector<1x216xf32>
    %371 = arith.addf %368, %370 : vector<1x216xf32>
    %cst_238 = arith.constant 0.000000e+00 : f32
    %372 = vector.broadcast %cst_238 : f32 to vector<1x216xf32>
    %373 = arith.cmpf oge, %371, %372 : vector<1x216xf32>
    %cst_239 = arith.constant 3.000000e-01 : f32
    %374 = vector.broadcast %cst_239 : f32 to vector<1x216xf32>
    %375 = arith.mulf %374, %371 : vector<1x216xf32>
    %376 = arith.select %373, %371, %375 : vector<1x216xi1>, vector<1x216xf32>
    %c0_240 = arith.constant 0 : index
    %c0_241 = arith.constant 0 : index
    %c0_242 = arith.constant 0 : index
    %377 = vector.load %arg14[%c0_240, %c0_241, %c0_242] : memref<1x216x128xf32, #tpu.memory_space<vmem>>, vector<1x216x128xf32>
    %378 = vector.shape_cast %377 : vector<1x216x128xf32> to vector<216x128xf32>
    %cst_243 = arith.constant dense<0.000000e+00> : vector<1x128xf32>
    %379 = tpu.matmul %376, %378, %cst_243 {dimension_numbers = #tpu.dot_dimension_numbers<[1], [0], [0], [1], [0, 0, 1, 1], [], []>} : vector<1x216xf32>, vector<216x128xf32>, vector<1x128xf32> -> vector<1x128xf32>
    %cst_244 = arith.constant dense<0xFF800000> : vector<1xf32>
    %380 = vector.multi_reduction <maximumf>, %379, %cst_244 [1] : vector<1x128xf32> to vector<1xf32>
    %381 = vector.shape_cast %380 : vector<1xf32> to vector<1x1xf32>
    %382 = vector.broadcast %381 : vector<1x1xf32> to vector<1x128xf32>
    %383 = arith.subf %379, %382 : vector<1x128xf32>
    %384 = math.exp %383 : vector<1x128xf32>
    %cst_245 = arith.constant dense<0.000000e+00> : vector<1xf32>
    %385 = vector.multi_reduction <add>, %384, %cst_245 [1] : vector<1x128xf32> to vector<1xf32>
    %386 = vector.shape_cast %385 : vector<1xf32> to vector<1x1xf32>
    %387 = vector.broadcast %386 : vector<1x1xf32> to vector<1x128xf32>
    %388 = arith.divf %384, %387 : vector<1x128xf32>
    %c1_246 = arith.constant 1 : index
    %c0_247 = arith.constant 0 : index
    %c0_248 = arith.constant 0 : index
    %389 = vector.load %arg15[%c1_246, %c0_247, %c0_248] : memref<4x1x128xf32, #tpu.memory_space<vmem>>, vector<1x1x128xf32>
    %390 = vector.shape_cast %389 : vector<1x1x128xf32> to vector<1x128xf32>
    %391 = vector.shape_cast %388 : vector<1x128xf32> to vector<1x1x128xf32>
    tpu.vector_store %arg15[%c1_246, %c0_247, %c0_248], %391 {strides = array<i32>} : memref<4x1x128xf32, #tpu.memory_space<vmem>>, vector<1x1x128xf32>,
    %c2_249 = arith.constant 2 : index
    %c0_250 = arith.constant 0 : index
    %c0_251 = arith.constant 0 : index
    %392 = vector.load %arg1[%c2_249, %c0_250, %c0_251] : memref<4x1x216xf32, #tpu.memory_space<vmem>>, vector<1x1x216xf32>
    %393 = vector.shape_cast %392 : vector<1x1x216xf32> to vector<1x216xf32>
    %cst_252 = arith.constant dense<0.000000e+00> : vector<1xf32>
    %394 = vector.multi_reduction <add>, %393, %cst_252 [1] : vector<1x216xf32> to vector<1xf32>
    %395 = vector.shape_cast %394 : vector<1xf32> to vector<1x1xf32>
    %cst_253 = arith.constant dense<0.000000e+00> : vector<1xf32>
    %396 = vector.multi_reduction <add>, %395, %cst_253 [0] : vector<1x1xf32> to vector<1xf32>
    %397 = vector.shape_cast %396 : vector<1xf32> to vector<1x1xf32>
    %cst_254 = arith.constant 2.160000e+02 : f32
    %398 = vector.broadcast %cst_254 : f32 to vector<1x1xf32>
    %399 = arith.divf %397, %398 : vector<1x1xf32>
    %400 = vector.broadcast %399 : vector<1x1xf32> to vector<1x216xf32>
    %401 = arith.subf %393, %400 : vector<1x216xf32>
    %402 = arith.mulf %401, %401 : vector<1x216xf32>
    %cst_255 = arith.constant dense<0.000000e+00> : vector<1xf32>
    %403 = vector.multi_reduction <add>, %402, %cst_255 [1] : vector<1x216xf32> to vector<1xf32>
    %404 = vector.shape_cast %403 : vector<1xf32> to vector<1x1xf32>
    %cst_256 = arith.constant dense<0.000000e+00> : vector<1xf32>
    %405 = vector.multi_reduction <add>, %404, %cst_256 [0] : vector<1x1xf32> to vector<1xf32>
    %406 = vector.shape_cast %405 : vector<1xf32> to vector<1x1xf32>
    %cst_257 = arith.constant 2.160000e+02 : f32
    %407 = vector.broadcast %cst_257 : f32 to vector<1x1xf32>
    %408 = arith.divf %406, %407 : vector<1x1xf32>
    %cst_258 = arith.constant 9.99999974E-6 : f32
    %409 = vector.broadcast %cst_258 : f32 to vector<1x1xf32>
    %410 = arith.addf %408, %409 : vector<1x1xf32>
    %411 = math.rsqrt %410 : vector<1x1xf32>
    %c0_259 = arith.constant 0 : index
    %c0_260 = arith.constant 0 : index
    %412 = vector.load %arg2[%c0_259, %c0_260] : memref<1x216xf32, #tpu.memory_space<vmem>>, vector<1x216xf32>
    %413 = vector.broadcast %411 : vector<1x1xf32> to vector<1x216xf32>
    %414 = arith.mulf %413, %412 : vector<1x216xf32>
    %415 = arith.mulf %401, %414 : vector<1x216xf32>
    %c0_261 = arith.constant 0 : index
    %c0_262 = arith.constant 0 : index
    %416 = vector.load %arg3[%c0_261, %c0_262] : memref<1x216xf32, #tpu.memory_space<vmem>>, vector<1x216xf32>
    %417 = arith.addf %415, %416 : vector<1x216xf32>
    %c0_263 = arith.constant 0 : index
    %c7_264 = arith.constant 7 : index
    %418 = vector.load %arg16[%c0_263, %c7_264] : memref<1x230xf32, #tpu.memory_space<vmem>>, vector<1x216xf32>
    tpu.vector_store %arg16[%c0_263, %c7_264], %417 {strides = array<i32>} : memref<1x230xf32, #tpu.memory_space<vmem>>, vector<1x216xf32>,
    %c0_265 = arith.constant 0 : index
    %c0_266 = arith.constant 0 : index
    %419 = vector.load %arg16[%c0_265, %c0_266] : memref<1x230xf32, #tpu.memory_space<vmem>>, vector<1x216xf32>
    %c0_267 = arith.constant 0 : index
    %c0_268 = arith.constant 0 : index
    %c0_269 = arith.constant 0 : index
    %420 = vector.load %arg4[%c0_267, %c0_268, %c0_269] : memref<15x20x1xf32, #tpu.memory_space<vmem>>, vector<1x20x1xf32>
    %421 = vector.shape_cast %420 : vector<1x20x1xf32> to vector<20x1xf32>
    %422 = vector.broadcast %421 : vector<20x1xf32> to vector<20x216xf32>
    %423 = vector.broadcast %419 : vector<1x216xf32> to vector<20x216xf32>
    %424 = arith.mulf %422, %423 : vector<20x216xf32>
    %c0_270 = arith.constant 0 : index
    %c1_271 = arith.constant 1 : index
    %425 = vector.load %arg16[%c0_270, %c1_271] : memref<1x230xf32, #tpu.memory_space<vmem>>, vector<1x216xf32>
    %c1_272 = arith.constant 1 : index
    %c0_273 = arith.constant 0 : index
    %c0_274 = arith.constant 0 : index
    %426 = vector.load %arg4[%c1_272, %c0_273, %c0_274] : memref<15x20x1xf32, #tpu.memory_space<vmem>>, vector<1x20x1xf32>
    %427 = vector.shape_cast %426 : vector<1x20x1xf32> to vector<20x1xf32>
    %428 = vector.broadcast %427 : vector<20x1xf32> to vector<20x216xf32>
    %429 = vector.broadcast %425 : vector<1x216xf32> to vector<20x216xf32>
    %430 = arith.mulf %428, %429 : vector<20x216xf32>
    %431 = arith.addf %424, %430 : vector<20x216xf32>
    %c0_275 = arith.constant 0 : index
    %c2_276 = arith.constant 2 : index
    %432 = vector.load %arg16[%c0_275, %c2_276] : memref<1x230xf32, #tpu.memory_space<vmem>>, vector<1x216xf32>
    %c2_277 = arith.constant 2 : index
    %c0_278 = arith.constant 0 : index
    %c0_279 = arith.constant 0 : index
    %433 = vector.load %arg4[%c2_277, %c0_278, %c0_279] : memref<15x20x1xf32, #tpu.memory_space<vmem>>, vector<1x20x1xf32>
    %434 = vector.shape_cast %433 : vector<1x20x1xf32> to vector<20x1xf32>
    %435 = vector.broadcast %434 : vector<20x1xf32> to vector<20x216xf32>
    %436 = vector.broadcast %432 : vector<1x216xf32> to vector<20x216xf32>
    %437 = arith.mulf %435, %436 : vector<20x216xf32>
    %438 = arith.addf %431, %437 : vector<20x216xf32>
    %c0_280 = arith.constant 0 : index
    %c3_281 = arith.constant 3 : index
    %439 = vector.load %arg16[%c0_280, %c3_281] : memref<1x230xf32, #tpu.memory_space<vmem>>, vector<1x216xf32>
    %c3_282 = arith.constant 3 : index
    %c0_283 = arith.constant 0 : index
    %c0_284 = arith.constant 0 : index
    %440 = vector.load %arg4[%c3_282, %c0_283, %c0_284] : memref<15x20x1xf32, #tpu.memory_space<vmem>>, vector<1x20x1xf32>
    %441 = vector.shape_cast %440 : vector<1x20x1xf32> to vector<20x1xf32>
    %442 = vector.broadcast %441 : vector<20x1xf32> to vector<20x216xf32>
    %443 = vector.broadcast %439 : vector<1x216xf32> to vector<20x216xf32>
    %444 = arith.mulf %442, %443 : vector<20x216xf32>
    %445 = arith.addf %438, %444 : vector<20x216xf32>
    %c0_285 = arith.constant 0 : index
    %c4_286 = arith.constant 4 : index
    %446 = vector.load %arg16[%c0_285, %c4_286] : memref<1x230xf32, #tpu.memory_space<vmem>>, vector<1x216xf32>
    %c4_287 = arith.constant 4 : index
    %c0_288 = arith.constant 0 : index
    %c0_289 = arith.constant 0 : index
    %447 = vector.load %arg4[%c4_287, %c0_288, %c0_289] : memref<15x20x1xf32, #tpu.memory_space<vmem>>, vector<1x20x1xf32>
    %448 = vector.shape_cast %447 : vector<1x20x1xf32> to vector<20x1xf32>
    %449 = vector.broadcast %448 : vector<20x1xf32> to vector<20x216xf32>
    %450 = vector.broadcast %446 : vector<1x216xf32> to vector<20x216xf32>
    %451 = arith.mulf %449, %450 : vector<20x216xf32>
    %452 = arith.addf %445, %451 : vector<20x216xf32>
    %c0_290 = arith.constant 0 : index
    %c5_291 = arith.constant 5 : index
    %453 = vector.load %arg16[%c0_290, %c5_291] : memref<1x230xf32, #tpu.memory_space<vmem>>, vector<1x216xf32>
    %c5_292 = arith.constant 5 : index
    %c0_293 = arith.constant 0 : index
    %c0_294 = arith.constant 0 : index
    %454 = vector.load %arg4[%c5_292, %c0_293, %c0_294] : memref<15x20x1xf32, #tpu.memory_space<vmem>>, vector<1x20x1xf32>
    %455 = vector.shape_cast %454 : vector<1x20x1xf32> to vector<20x1xf32>
    %456 = vector.broadcast %455 : vector<20x1xf32> to vector<20x216xf32>
    %457 = vector.broadcast %453 : vector<1x216xf32> to vector<20x216xf32>
    %458 = arith.mulf %456, %457 : vector<20x216xf32>
    %459 = arith.addf %452, %458 : vector<20x216xf32>
    %c0_295 = arith.constant 0 : index
    %c6_296 = arith.constant 6 : index
    %460 = vector.load %arg16[%c0_295, %c6_296] : memref<1x230xf32, #tpu.memory_space<vmem>>, vector<1x216xf32>
    %c6_297 = arith.constant 6 : index
    %c0_298 = arith.constant 0 : index
    %c0_299 = arith.constant 0 : index
    %461 = vector.load %arg4[%c6_297, %c0_298, %c0_299] : memref<15x20x1xf32, #tpu.memory_space<vmem>>, vector<1x20x1xf32>
    %462 = vector.shape_cast %461 : vector<1x20x1xf32> to vector<20x1xf32>
    %463 = vector.broadcast %462 : vector<20x1xf32> to vector<20x216xf32>
    %464 = vector.broadcast %460 : vector<1x216xf32> to vector<20x216xf32>
    %465 = arith.mulf %463, %464 : vector<20x216xf32>
    %466 = arith.addf %459, %465 : vector<20x216xf32>
    %c0_300 = arith.constant 0 : index
    %c7_301 = arith.constant 7 : index
    %467 = vector.load %arg16[%c0_300, %c7_301] : memref<1x230xf32, #tpu.memory_space<vmem>>, vector<1x216xf32>
    %c7_302 = arith.constant 7 : index
    %c0_303 = arith.constant 0 : index
    %c0_304 = arith.constant 0 : index
    %468 = vector.load %arg4[%c7_302, %c0_303, %c0_304] : memref<15x20x1xf32, #tpu.memory_space<vmem>>, vector<1x20x1xf32>
    %469 = vector.shape_cast %468 : vector<1x20x1xf32> to vector<20x1xf32>
    %470 = vector.broadcast %469 : vector<20x1xf32> to vector<20x216xf32>
    %471 = vector.broadcast %467 : vector<1x216xf32> to vector<20x216xf32>
    %472 = arith.mulf %470, %471 : vector<20x216xf32>
    %473 = arith.addf %466, %472 : vector<20x216xf32>
    %c0_305 = arith.constant 0 : index
    %c8_306 = arith.constant 8 : index
    %474 = vector.load %arg16[%c0_305, %c8_306] : memref<1x230xf32, #tpu.memory_space<vmem>>, vector<1x216xf32>
    %c8_307 = arith.constant 8 : index
    %c0_308 = arith.constant 0 : index
    %c0_309 = arith.constant 0 : index
    %475 = vector.load %arg4[%c8_307, %c0_308, %c0_309] : memref<15x20x1xf32, #tpu.memory_space<vmem>>, vector<1x20x1xf32>
    %476 = vector.shape_cast %475 : vector<1x20x1xf32> to vector<20x1xf32>
    %477 = vector.broadcast %476 : vector<20x1xf32> to vector<20x216xf32>
    %478 = vector.broadcast %474 : vector<1x216xf32> to vector<20x216xf32>
    %479 = arith.mulf %477, %478 : vector<20x216xf32>
    %480 = arith.addf %473, %479 : vector<20x216xf32>
    %c0_310 = arith.constant 0 : index
    %c9_311 = arith.constant 9 : index
    %481 = vector.load %arg16[%c0_310, %c9_311] : memref<1x230xf32, #tpu.memory_space<vmem>>, vector<1x216xf32>
    %c9_312 = arith.constant 9 : index
    %c0_313 = arith.constant 0 : index
    %c0_314 = arith.constant 0 : index
    %482 = vector.load %arg4[%c9_312, %c0_313, %c0_314] : memref<15x20x1xf32, #tpu.memory_space<vmem>>, vector<1x20x1xf32>
    %483 = vector.shape_cast %482 : vector<1x20x1xf32> to vector<20x1xf32>
    %484 = vector.broadcast %483 : vector<20x1xf32> to vector<20x216xf32>
    %485 = vector.broadcast %481 : vector<1x216xf32> to vector<20x216xf32>
    %486 = arith.mulf %484, %485 : vector<20x216xf32>
    %487 = arith.addf %480, %486 : vector<20x216xf32>
    %c0_315 = arith.constant 0 : index
    %c10_316 = arith.constant 10 : index
    %488 = vector.load %arg16[%c0_315, %c10_316] : memref<1x230xf32, #tpu.memory_space<vmem>>, vector<1x216xf32>
    %c10_317 = arith.constant 10 : index
    %c0_318 = arith.constant 0 : index
    %c0_319 = arith.constant 0 : index
    %489 = vector.load %arg4[%c10_317, %c0_318, %c0_319] : memref<15x20x1xf32, #tpu.memory_space<vmem>>, vector<1x20x1xf32>
    %490 = vector.shape_cast %489 : vector<1x20x1xf32> to vector<20x1xf32>
    %491 = vector.broadcast %490 : vector<20x1xf32> to vector<20x216xf32>
    %492 = vector.broadcast %488 : vector<1x216xf32> to vector<20x216xf32>
    %493 = arith.mulf %491, %492 : vector<20x216xf32>
    %494 = arith.addf %487, %493 : vector<20x216xf32>
    %c0_320 = arith.constant 0 : index
    %c11_321 = arith.constant 11 : index
    %495 = vector.load %arg16[%c0_320, %c11_321] : memref<1x230xf32, #tpu.memory_space<vmem>>, vector<1x216xf32>
    %c11_322 = arith.constant 11 : index
    %c0_323 = arith.constant 0 : index
    %c0_324 = arith.constant 0 : index
    %496 = vector.load %arg4[%c11_322, %c0_323, %c0_324] : memref<15x20x1xf32, #tpu.memory_space<vmem>>, vector<1x20x1xf32>
    %497 = vector.shape_cast %496 : vector<1x20x1xf32> to vector<20x1xf32>
    %498 = vector.broadcast %497 : vector<20x1xf32> to vector<20x216xf32>
    %499 = vector.broadcast %495 : vector<1x216xf32> to vector<20x216xf32>
    %500 = arith.mulf %498, %499 : vector<20x216xf32>
    %501 = arith.addf %494, %500 : vector<20x216xf32>
    %c0_325 = arith.constant 0 : index
    %c12_326 = arith.constant 12 : index
    %502 = vector.load %arg16[%c0_325, %c12_326] : memref<1x230xf32, #tpu.memory_space<vmem>>, vector<1x216xf32>
    %c12_327 = arith.constant 12 : index
    %c0_328 = arith.constant 0 : index
    %c0_329 = arith.constant 0 : index
    %503 = vector.load %arg4[%c12_327, %c0_328, %c0_329] : memref<15x20x1xf32, #tpu.memory_space<vmem>>, vector<1x20x1xf32>
    %504 = vector.shape_cast %503 : vector<1x20x1xf32> to vector<20x1xf32>
    %505 = vector.broadcast %504 : vector<20x1xf32> to vector<20x216xf32>
    %506 = vector.broadcast %502 : vector<1x216xf32> to vector<20x216xf32>
    %507 = arith.mulf %505, %506 : vector<20x216xf32>
    %508 = arith.addf %501, %507 : vector<20x216xf32>
    %c0_330 = arith.constant 0 : index
    %c13_331 = arith.constant 13 : index
    %509 = vector.load %arg16[%c0_330, %c13_331] : memref<1x230xf32, #tpu.memory_space<vmem>>, vector<1x216xf32>
    %c13_332 = arith.constant 13 : index
    %c0_333 = arith.constant 0 : index
    %c0_334 = arith.constant 0 : index
    %510 = vector.load %arg4[%c13_332, %c0_333, %c0_334] : memref<15x20x1xf32, #tpu.memory_space<vmem>>, vector<1x20x1xf32>
    %511 = vector.shape_cast %510 : vector<1x20x1xf32> to vector<20x1xf32>
    %512 = vector.broadcast %511 : vector<20x1xf32> to vector<20x216xf32>
    %513 = vector.broadcast %509 : vector<1x216xf32> to vector<20x216xf32>
    %514 = arith.mulf %512, %513 : vector<20x216xf32>
    %515 = arith.addf %508, %514 : vector<20x216xf32>
    %c0_335 = arith.constant 0 : index
    %c14_336 = arith.constant 14 : index
    %516 = vector.load %arg16[%c0_335, %c14_336] : memref<1x230xf32, #tpu.memory_space<vmem>>, vector<1x216xf32>
    %c14_337 = arith.constant 14 : index
    %c0_338 = arith.constant 0 : index
    %c0_339 = arith.constant 0 : index
    %517 = vector.load %arg4[%c14_337, %c0_338, %c0_339] : memref<15x20x1xf32, #tpu.memory_space<vmem>>, vector<1x20x1xf32>
    %518 = vector.shape_cast %517 : vector<1x20x1xf32> to vector<20x1xf32>
    %519 = vector.broadcast %518 : vector<20x1xf32> to vector<20x216xf32>
    %520 = vector.broadcast %516 : vector<1x216xf32> to vector<20x216xf32>
    %521 = arith.mulf %519, %520 : vector<20x216xf32>
    %522 = arith.addf %515, %521 : vector<20x216xf32>
    %c0_340 = arith.constant 0 : index
    %c0_341 = arith.constant 0 : index
    %523 = vector.load %arg5[%c0_340, %c0_341] : memref<20x1xf32, #tpu.memory_space<vmem>>, vector<20x1xf32>
    %524 = vector.broadcast %523 : vector<20x1xf32> to vector<20x216xf32>
    %525 = arith.addf %522, %524 : vector<20x216xf32>
    %cst_342 = arith.constant 0.000000e+00 : f32
    %526 = vector.broadcast %cst_342 : f32 to vector<20x216xf32>
    %527 = arith.cmpf oge, %525, %526 : vector<20x216xf32>
    %cst_343 = arith.constant 3.000000e-01 : f32
    %528 = vector.broadcast %cst_343 : f32 to vector<20x216xf32>
    %529 = arith.mulf %528, %525 : vector<20x216xf32>
    %530 = arith.select %527, %525, %529 : vector<20x216xi1>, vector<20x216xf32>
    %c0_344 = arith.constant 0 : index
    %c0_345 = arith.constant 0 : index
    %531 = vector.load %arg6[%c0_344, %c0_345] : memref<20x20xf32, #tpu.memory_space<vmem>>, vector<20x20xf32>
    %cst_346 = arith.constant dense<0.000000e+00> : vector<20x216xf32>
    %532 = tpu.matmul %531, %530, %cst_346 {dimension_numbers = #tpu.dot_dimension_numbers<[1], [0], [0], [1], [0, 0, 1, 1], [], []>} : vector<20x20xf32>, vector<20x216xf32>, vector<20x216xf32> -> vector<20x216xf32>
    %c0_347 = arith.constant 0 : index
    %c0_348 = arith.constant 0 : index
    %533 = vector.load %arg7[%c0_347, %c0_348] : memref<20x1xf32, #tpu.memory_space<vmem>>, vector<20x1xf32>
    %534 = vector.broadcast %533 : vector<20x1xf32> to vector<20x216xf32>
    %535 = arith.addf %532, %534 : vector<20x216xf32>
    %cst_349 = arith.constant 0.000000e+00 : f32
    %536 = vector.broadcast %cst_349 : f32 to vector<20x216xf32>
    %537 = arith.cmpf oge, %535, %536 : vector<20x216xf32>
    %cst_350 = arith.constant 3.000000e-01 : f32
    %538 = vector.broadcast %cst_350 : f32 to vector<20x216xf32>
    %539 = arith.mulf %538, %535 : vector<20x216xf32>
    %540 = arith.select %537, %535, %539 : vector<20x216xi1>, vector<20x216xf32>
    %c0_351 = arith.constant 0 : index
    %c0_352 = arith.constant 0 : index
    %541 = vector.load %arg8[%c0_351, %c0_352] : memref<10x20xf32, #tpu.memory_space<vmem>>, vector<10x20xf32>
    %cst_353 = arith.constant dense<0.000000e+00> : vector<10x216xf32>
    %542 = tpu.matmul %541, %540, %cst_353 {dimension_numbers = #tpu.dot_dimension_numbers<[1], [0], [0], [1], [0, 0, 1, 1], [], []>} : vector<10x20xf32>, vector<20x216xf32>, vector<10x216xf32> -> vector<10x216xf32>
    %c0_354 = arith.constant 0 : index
    %c0_355 = arith.constant 0 : index
    %543 = vector.load %arg9[%c0_354, %c0_355] : memref<10x1xf32, #tpu.memory_space<vmem>>, vector<10x1xf32>
    %544 = vector.broadcast %543 : vector<10x1xf32> to vector<10x216xf32>
    %545 = arith.addf %542, %544 : vector<10x216xf32>
    %cst_356 = arith.constant 0.000000e+00 : f32
    %546 = vector.broadcast %cst_356 : f32 to vector<10x216xf32>
    %547 = arith.cmpf oge, %545, %546 : vector<10x216xf32>
    %cst_357 = arith.constant 3.000000e-01 : f32
    %548 = vector.broadcast %cst_357 : f32 to vector<10x216xf32>
    %549 = arith.mulf %548, %545 : vector<10x216xf32>
    %550 = arith.select %547, %545, %549 : vector<10x216xi1>, vector<10x216xf32>
    %c0_358 = arith.constant 0 : index
    %c0_359 = arith.constant 0 : index
    %551 = vector.load %arg10[%c0_358, %c0_359] : memref<1x10xf32, #tpu.memory_space<vmem>>, vector<1x10xf32>
    %cst_360 = arith.constant dense<0.000000e+00> : vector<1x216xf32>
    %552 = tpu.matmul %551, %550, %cst_360 {dimension_numbers = #tpu.dot_dimension_numbers<[1], [0], [0], [1], [0, 0, 1, 1], [], []>} : vector<1x10xf32>, vector<10x216xf32>, vector<1x216xf32> -> vector<1x216xf32>
    %c0_361 = arith.constant 0 : index
    %c0_362 = arith.constant 0 : index
    %553 = vector.load %arg11[%c0_361, %c0_362] : memref<1x1xf32, #tpu.memory_space<vmem>>, vector<1x1xf32>
    %554 = vector.broadcast %553 : vector<1x1xf32> to vector<1x216xf32>
    %555 = arith.addf %552, %554 : vector<1x216xf32>
    %cst_363 = arith.constant 0.000000e+00 : f32
    %556 = vector.broadcast %cst_363 : f32 to vector<1x216xf32>
    %557 = arith.cmpf oge, %555, %556 : vector<1x216xf32>
    %cst_364 = arith.constant 3.000000e-01 : f32
    %558 = vector.broadcast %cst_364 : f32 to vector<1x216xf32>
    %559 = arith.mulf %558, %555 : vector<1x216xf32>
    %560 = arith.select %557, %555, %559 : vector<1x216xi1>, vector<1x216xf32>
    %c0_365 = arith.constant 0 : index
    %c0_366 = arith.constant 0 : index
    %561 = vector.load %arg12[%c0_365, %c0_366] : memref<1x1xf32, #tpu.memory_space<vmem>>, vector<1x1xf32>
    %562 = vector.broadcast %561 : vector<1x1xf32> to vector<1x216xf32>
    %563 = arith.mulf %562, %560 : vector<1x216xf32>
    %c0_367 = arith.constant 0 : index
    %c0_368 = arith.constant 0 : index
    %564 = vector.load %arg13[%c0_367, %c0_368] : memref<1x1xf32, #tpu.memory_space<vmem>>, vector<1x1xf32>
    %565 = vector.broadcast %564 : vector<1x1xf32> to vector<1x216xf32>
    %566 = arith.addf %563, %565 : vector<1x216xf32>
    %cst_369 = arith.constant 0.000000e+00 : f32
    %567 = vector.broadcast %cst_369 : f32 to vector<1x216xf32>
    %568 = arith.cmpf oge, %566, %567 : vector<1x216xf32>
    %cst_370 = arith.constant 3.000000e-01 : f32
    %569 = vector.broadcast %cst_370 : f32 to vector<1x216xf32>
    %570 = arith.mulf %569, %566 : vector<1x216xf32>
    %571 = arith.select %568, %566, %570 : vector<1x216xi1>, vector<1x216xf32>
    %c0_371 = arith.constant 0 : index
    %c0_372 = arith.constant 0 : index
    %c0_373 = arith.constant 0 : index
    %572 = vector.load %arg14[%c0_371, %c0_372, %c0_373] : memref<1x216x128xf32, #tpu.memory_space<vmem>>, vector<1x216x128xf32>
    %573 = vector.shape_cast %572 : vector<1x216x128xf32> to vector<216x128xf32>
    %cst_374 = arith.constant dense<0.000000e+00> : vector<1x128xf32>
    %574 = tpu.matmul %571, %573, %cst_374 {dimension_numbers = #tpu.dot_dimension_numbers<[1], [0], [0], [1], [0, 0, 1, 1], [], []>} : vector<1x216xf32>, vector<216x128xf32>, vector<1x128xf32> -> vector<1x128xf32>
    %cst_375 = arith.constant dense<0xFF800000> : vector<1xf32>
    %575 = vector.multi_reduction <maximumf>, %574, %cst_375 [1] : vector<1x128xf32> to vector<1xf32>
    %576 = vector.shape_cast %575 : vector<1xf32> to vector<1x1xf32>
    %577 = vector.broadcast %576 : vector<1x1xf32> to vector<1x128xf32>
    %578 = arith.subf %574, %577 : vector<1x128xf32>
    %579 = math.exp %578 : vector<1x128xf32>
    %cst_376 = arith.constant dense<0.000000e+00> : vector<1xf32>
    %580 = vector.multi_reduction <add>, %579, %cst_376 [1] : vector<1x128xf32> to vector<1xf32>
    %581 = vector.shape_cast %580 : vector<1xf32> to vector<1x1xf32>
    %582 = vector.broadcast %581 : vector<1x1xf32> to vector<1x128xf32>
    %583 = arith.divf %579, %582 : vector<1x128xf32>
    %c2_377 = arith.constant 2 : index
    %c0_378 = arith.constant 0 : index
    %c0_379 = arith.constant 0 : index
    %584 = vector.load %arg15[%c2_377, %c0_378, %c0_379] : memref<4x1x128xf32, #tpu.memory_space<vmem>>, vector<1x1x128xf32>
    %585 = vector.shape_cast %584 : vector<1x1x128xf32> to vector<1x128xf32>
    %586 = vector.shape_cast %583 : vector<1x128xf32> to vector<1x1x128xf32>
    tpu.vector_store %arg15[%c2_377, %c0_378, %c0_379], %586 {strides = array<i32>} : memref<4x1x128xf32, #tpu.memory_space<vmem>>, vector<1x1x128xf32>,
    %c3_380 = arith.constant 3 : index
    %c0_381 = arith.constant 0 : index
    %c0_382 = arith.constant 0 : index
    %587 = vector.load %arg1[%c3_380, %c0_381, %c0_382] : memref<4x1x216xf32, #tpu.memory_space<vmem>>, vector<1x1x216xf32>
    %588 = vector.shape_cast %587 : vector<1x1x216xf32> to vector<1x216xf32>
    %cst_383 = arith.constant dense<0.000000e+00> : vector<1xf32>
    %589 = vector.multi_reduction <add>, %588, %cst_383 [1] : vector<1x216xf32> to vector<1xf32>
    %590 = vector.shape_cast %589 : vector<1xf32> to vector<1x1xf32>
    %cst_384 = arith.constant dense<0.000000e+00> : vector<1xf32>
    %591 = vector.multi_reduction <add>, %590, %cst_384 [0] : vector<1x1xf32> to vector<1xf32>
    %592 = vector.shape_cast %591 : vector<1xf32> to vector<1x1xf32>
    %cst_385 = arith.constant 2.160000e+02 : f32
    %593 = vector.broadcast %cst_385 : f32 to vector<1x1xf32>
    %594 = arith.divf %592, %593 : vector<1x1xf32>
    %595 = vector.broadcast %594 : vector<1x1xf32> to vector<1x216xf32>
    %596 = arith.subf %588, %595 : vector<1x216xf32>
    %597 = arith.mulf %596, %596 : vector<1x216xf32>
    %cst_386 = arith.constant dense<0.000000e+00> : vector<1xf32>
    %598 = vector.multi_reduction <add>, %597, %cst_386 [1] : vector<1x216xf32> to vector<1xf32>
    %599 = vector.shape_cast %598 : vector<1xf32> to vector<1x1xf32>
    %cst_387 = arith.constant dense<0.000000e+00> : vector<1xf32>
    %600 = vector.multi_reduction <add>, %599, %cst_387 [0] : vector<1x1xf32> to vector<1xf32>
    %601 = vector.shape_cast %600 : vector<1xf32> to vector<1x1xf32>
    %cst_388 = arith.constant 2.160000e+02 : f32
    %602 = vector.broadcast %cst_388 : f32 to vector<1x1xf32>
    %603 = arith.divf %601, %602 : vector<1x1xf32>
    %cst_389 = arith.constant 9.99999974E-6 : f32
    %604 = vector.broadcast %cst_389 : f32 to vector<1x1xf32>
    %605 = arith.addf %603, %604 : vector<1x1xf32>
    %606 = math.rsqrt %605 : vector<1x1xf32>
    %c0_390 = arith.constant 0 : index
    %c0_391 = arith.constant 0 : index
    %607 = vector.load %arg2[%c0_390, %c0_391] : memref<1x216xf32, #tpu.memory_space<vmem>>, vector<1x216xf32>
    %608 = vector.broadcast %606 : vector<1x1xf32> to vector<1x216xf32>
    %609 = arith.mulf %608, %607 : vector<1x216xf32>
    %610 = arith.mulf %596, %609 : vector<1x216xf32>
    %c0_392 = arith.constant 0 : index
    %c0_393 = arith.constant 0 : index
    %611 = vector.load %arg3[%c0_392, %c0_393] : memref<1x216xf32, #tpu.memory_space<vmem>>, vector<1x216xf32>
    %612 = arith.addf %610, %611 : vector<1x216xf32>
    %c0_394 = arith.constant 0 : index
    %c7_395 = arith.constant 7 : index
    %613 = vector.load %arg16[%c0_394, %c7_395] : memref<1x230xf32, #tpu.memory_space<vmem>>, vector<1x216xf32>
    tpu.vector_store %arg16[%c0_394, %c7_395], %612 {strides = array<i32>} : memref<1x230xf32, #tpu.memory_space<vmem>>, vector<1x216xf32>,
    %c0_396 = arith.constant 0 : index
    %c0_397 = arith.constant 0 : index
    %614 = vector.load %arg16[%c0_396, %c0_397] : memref<1x230xf32, #tpu.memory_space<vmem>>, vector<1x216xf32>
    %c0_398 = arith.constant 0 : index
    %c0_399 = arith.constant 0 : index
    %c0_400 = arith.constant 0 : index
    %615 = vector.load %arg4[%c0_398, %c0_399, %c0_400] : memref<15x20x1xf32, #tpu.memory_space<vmem>>, vector<1x20x1xf32>
    %616 = vector.shape_cast %615 : vector<1x20x1xf32> to vector<20x1xf32>
    %617 = vector.broadcast %616 : vector<20x1xf32> to vector<20x216xf32>
    %618 = vector.broadcast %614 : vector<1x216xf32> to vector<20x216xf32>
    %619 = arith.mulf %617, %618 : vector<20x216xf32>
    %c0_401 = arith.constant 0 : index
    %c1_402 = arith.constant 1 : index
    %620 = vector.load %arg16[%c0_401, %c1_402] : memref<1x230xf32, #tpu.memory_space<vmem>>, vector<1x216xf32>
    %c1_403 = arith.constant 1 : index
    %c0_404 = arith.constant 0 : index
    %c0_405 = arith.constant 0 : index
    %621 = vector.load %arg4[%c1_403, %c0_404, %c0_405] : memref<15x20x1xf32, #tpu.memory_space<vmem>>, vector<1x20x1xf32>
    %622 = vector.shape_cast %621 : vector<1x20x1xf32> to vector<20x1xf32>
    %623 = vector.broadcast %622 : vector<20x1xf32> to vector<20x216xf32>
    %624 = vector.broadcast %620 : vector<1x216xf32> to vector<20x216xf32>
    %625 = arith.mulf %623, %624 : vector<20x216xf32>
    %626 = arith.addf %619, %625 : vector<20x216xf32>
    %c0_406 = arith.constant 0 : index
    %c2_407 = arith.constant 2 : index
    %627 = vector.load %arg16[%c0_406, %c2_407] : memref<1x230xf32, #tpu.memory_space<vmem>>, vector<1x216xf32>
    %c2_408 = arith.constant 2 : index
    %c0_409 = arith.constant 0 : index
    %c0_410 = arith.constant 0 : index
    %628 = vector.load %arg4[%c2_408, %c0_409, %c0_410] : memref<15x20x1xf32, #tpu.memory_space<vmem>>, vector<1x20x1xf32>
    %629 = vector.shape_cast %628 : vector<1x20x1xf32> to vector<20x1xf32>
    %630 = vector.broadcast %629 : vector<20x1xf32> to vector<20x216xf32>
    %631 = vector.broadcast %627 : vector<1x216xf32> to vector<20x216xf32>
    %632 = arith.mulf %630, %631 : vector<20x216xf32>
    %633 = arith.addf %626, %632 : vector<20x216xf32>
    %c0_411 = arith.constant 0 : index
    %c3_412 = arith.constant 3 : index
    %634 = vector.load %arg16[%c0_411, %c3_412] : memref<1x230xf32, #tpu.memory_space<vmem>>, vector<1x216xf32>
    %c3_413 = arith.constant 3 : index
    %c0_414 = arith.constant 0 : index
    %c0_415 = arith.constant 0 : index
    %635 = vector.load %arg4[%c3_413, %c0_414, %c0_415] : memref<15x20x1xf32, #tpu.memory_space<vmem>>, vector<1x20x1xf32>
    %636 = vector.shape_cast %635 : vector<1x20x1xf32> to vector<20x1xf32>
    %637 = vector.broadcast %636 : vector<20x1xf32> to vector<20x216xf32>
    %638 = vector.broadcast %634 : vector<1x216xf32> to vector<20x216xf32>
    %639 = arith.mulf %637, %638 : vector<20x216xf32>
    %640 = arith.addf %633, %639 : vector<20x216xf32>
    %c0_416 = arith.constant 0 : index
    %c4_417 = arith.constant 4 : index
    %641 = vector.load %arg16[%c0_416, %c4_417] : memref<1x230xf32, #tpu.memory_space<vmem>>, vector<1x216xf32>
    %c4_418 = arith.constant 4 : index
    %c0_419 = arith.constant 0 : index
    %c0_420 = arith.constant 0 : index
    %642 = vector.load %arg4[%c4_418, %c0_419, %c0_420] : memref<15x20x1xf32, #tpu.memory_space<vmem>>, vector<1x20x1xf32>
    %643 = vector.shape_cast %642 : vector<1x20x1xf32> to vector<20x1xf32>
    %644 = vector.broadcast %643 : vector<20x1xf32> to vector<20x216xf32>
    %645 = vector.broadcast %641 : vector<1x216xf32> to vector<20x216xf32>
    %646 = arith.mulf %644, %645 : vector<20x216xf32>
    %647 = arith.addf %640, %646 : vector<20x216xf32>
    %c0_421 = arith.constant 0 : index
    %c5_422 = arith.constant 5 : index
    %648 = vector.load %arg16[%c0_421, %c5_422] : memref<1x230xf32, #tpu.memory_space<vmem>>, vector<1x216xf32>
    %c5_423 = arith.constant 5 : index
    %c0_424 = arith.constant 0 : index
    %c0_425 = arith.constant 0 : index
    %649 = vector.load %arg4[%c5_423, %c0_424, %c0_425] : memref<15x20x1xf32, #tpu.memory_space<vmem>>, vector<1x20x1xf32>
    %650 = vector.shape_cast %649 : vector<1x20x1xf32> to vector<20x1xf32>
    %651 = vector.broadcast %650 : vector<20x1xf32> to vector<20x216xf32>
    %652 = vector.broadcast %648 : vector<1x216xf32> to vector<20x216xf32>
    %653 = arith.mulf %651, %652 : vector<20x216xf32>
    %654 = arith.addf %647, %653 : vector<20x216xf32>
    %c0_426 = arith.constant 0 : index
    %c6_427 = arith.constant 6 : index
    %655 = vector.load %arg16[%c0_426, %c6_427] : memref<1x230xf32, #tpu.memory_space<vmem>>, vector<1x216xf32>
    %c6_428 = arith.constant 6 : index
    %c0_429 = arith.constant 0 : index
    %c0_430 = arith.constant 0 : index
    %656 = vector.load %arg4[%c6_428, %c0_429, %c0_430] : memref<15x20x1xf32, #tpu.memory_space<vmem>>, vector<1x20x1xf32>
    %657 = vector.shape_cast %656 : vector<1x20x1xf32> to vector<20x1xf32>
    %658 = vector.broadcast %657 : vector<20x1xf32> to vector<20x216xf32>
    %659 = vector.broadcast %655 : vector<1x216xf32> to vector<20x216xf32>
    %660 = arith.mulf %658, %659 : vector<20x216xf32>
    %661 = arith.addf %654, %660 : vector<20x216xf32>
    %c0_431 = arith.constant 0 : index
    %c7_432 = arith.constant 7 : index
    %662 = vector.load %arg16[%c0_431, %c7_432] : memref<1x230xf32, #tpu.memory_space<vmem>>, vector<1x216xf32>
    %c7_433 = arith.constant 7 : index
    %c0_434 = arith.constant 0 : index
    %c0_435 = arith.constant 0 : index
    %663 = vector.load %arg4[%c7_433, %c0_434, %c0_435] : memref<15x20x1xf32, #tpu.memory_space<vmem>>, vector<1x20x1xf32>
    %664 = vector.shape_cast %663 : vector<1x20x1xf32> to vector<20x1xf32>
    %665 = vector.broadcast %664 : vector<20x1xf32> to vector<20x216xf32>
    %666 = vector.broadcast %662 : vector<1x216xf32> to vector<20x216xf32>
    %667 = arith.mulf %665, %666 : vector<20x216xf32>
    %668 = arith.addf %661, %667 : vector<20x216xf32>
    %c0_436 = arith.constant 0 : index
    %c8_437 = arith.constant 8 : index
    %669 = vector.load %arg16[%c0_436, %c8_437] : memref<1x230xf32, #tpu.memory_space<vmem>>, vector<1x216xf32>
    %c8_438 = arith.constant 8 : index
    %c0_439 = arith.constant 0 : index
    %c0_440 = arith.constant 0 : index
    %670 = vector.load %arg4[%c8_438, %c0_439, %c0_440] : memref<15x20x1xf32, #tpu.memory_space<vmem>>, vector<1x20x1xf32>
    %671 = vector.shape_cast %670 : vector<1x20x1xf32> to vector<20x1xf32>
    %672 = vector.broadcast %671 : vector<20x1xf32> to vector<20x216xf32>
    %673 = vector.broadcast %669 : vector<1x216xf32> to vector<20x216xf32>
    %674 = arith.mulf %672, %673 : vector<20x216xf32>
    %675 = arith.addf %668, %674 : vector<20x216xf32>
    %c0_441 = arith.constant 0 : index
    %c9_442 = arith.constant 9 : index
    %676 = vector.load %arg16[%c0_441, %c9_442] : memref<1x230xf32, #tpu.memory_space<vmem>>, vector<1x216xf32>
    %c9_443 = arith.constant 9 : index
    %c0_444 = arith.constant 0 : index
    %c0_445 = arith.constant 0 : index
    %677 = vector.load %arg4[%c9_443, %c0_444, %c0_445] : memref<15x20x1xf32, #tpu.memory_space<vmem>>, vector<1x20x1xf32>
    %678 = vector.shape_cast %677 : vector<1x20x1xf32> to vector<20x1xf32>
    %679 = vector.broadcast %678 : vector<20x1xf32> to vector<20x216xf32>
    %680 = vector.broadcast %676 : vector<1x216xf32> to vector<20x216xf32>
    %681 = arith.mulf %679, %680 : vector<20x216xf32>
    %682 = arith.addf %675, %681 : vector<20x216xf32>
    %c0_446 = arith.constant 0 : index
    %c10_447 = arith.constant 10 : index
    %683 = vector.load %arg16[%c0_446, %c10_447] : memref<1x230xf32, #tpu.memory_space<vmem>>, vector<1x216xf32>
    %c10_448 = arith.constant 10 : index
    %c0_449 = arith.constant 0 : index
    %c0_450 = arith.constant 0 : index
    %684 = vector.load %arg4[%c10_448, %c0_449, %c0_450] : memref<15x20x1xf32, #tpu.memory_space<vmem>>, vector<1x20x1xf32>
    %685 = vector.shape_cast %684 : vector<1x20x1xf32> to vector<20x1xf32>
    %686 = vector.broadcast %685 : vector<20x1xf32> to vector<20x216xf32>
    %687 = vector.broadcast %683 : vector<1x216xf32> to vector<20x216xf32>
    %688 = arith.mulf %686, %687 : vector<20x216xf32>
    %689 = arith.addf %682, %688 : vector<20x216xf32>
    %c0_451 = arith.constant 0 : index
    %c11_452 = arith.constant 11 : index
    %690 = vector.load %arg16[%c0_451, %c11_452] : memref<1x230xf32, #tpu.memory_space<vmem>>, vector<1x216xf32>
    %c11_453 = arith.constant 11 : index
    %c0_454 = arith.constant 0 : index
    %c0_455 = arith.constant 0 : index
    %691 = vector.load %arg4[%c11_453, %c0_454, %c0_455] : memref<15x20x1xf32, #tpu.memory_space<vmem>>, vector<1x20x1xf32>
    %692 = vector.shape_cast %691 : vector<1x20x1xf32> to vector<20x1xf32>
    %693 = vector.broadcast %692 : vector<20x1xf32> to vector<20x216xf32>
    %694 = vector.broadcast %690 : vector<1x216xf32> to vector<20x216xf32>
    %695 = arith.mulf %693, %694 : vector<20x216xf32>
    %696 = arith.addf %689, %695 : vector<20x216xf32>
    %c0_456 = arith.constant 0 : index
    %c12_457 = arith.constant 12 : index
    %697 = vector.load %arg16[%c0_456, %c12_457] : memref<1x230xf32, #tpu.memory_space<vmem>>, vector<1x216xf32>
    %c12_458 = arith.constant 12 : index
    %c0_459 = arith.constant 0 : index
    %c0_460 = arith.constant 0 : index
    %698 = vector.load %arg4[%c12_458, %c0_459, %c0_460] : memref<15x20x1xf32, #tpu.memory_space<vmem>>, vector<1x20x1xf32>
    %699 = vector.shape_cast %698 : vector<1x20x1xf32> to vector<20x1xf32>
    %700 = vector.broadcast %699 : vector<20x1xf32> to vector<20x216xf32>
    %701 = vector.broadcast %697 : vector<1x216xf32> to vector<20x216xf32>
    %702 = arith.mulf %700, %701 : vector<20x216xf32>
    %703 = arith.addf %696, %702 : vector<20x216xf32>
    %c0_461 = arith.constant 0 : index
    %c13_462 = arith.constant 13 : index
    %704 = vector.load %arg16[%c0_461, %c13_462] : memref<1x230xf32, #tpu.memory_space<vmem>>, vector<1x216xf32>
    %c13_463 = arith.constant 13 : index
    %c0_464 = arith.constant 0 : index
    %c0_465 = arith.constant 0 : index
    %705 = vector.load %arg4[%c13_463, %c0_464, %c0_465] : memref<15x20x1xf32, #tpu.memory_space<vmem>>, vector<1x20x1xf32>
    %706 = vector.shape_cast %705 : vector<1x20x1xf32> to vector<20x1xf32>
    %707 = vector.broadcast %706 : vector<20x1xf32> to vector<20x216xf32>
    %708 = vector.broadcast %704 : vector<1x216xf32> to vector<20x216xf32>
    %709 = arith.mulf %707, %708 : vector<20x216xf32>
    %710 = arith.addf %703, %709 : vector<20x216xf32>
    %c0_466 = arith.constant 0 : index
    %c14_467 = arith.constant 14 : index
    %711 = vector.load %arg16[%c0_466, %c14_467] : memref<1x230xf32, #tpu.memory_space<vmem>>, vector<1x216xf32>
    %c14_468 = arith.constant 14 : index
    %c0_469 = arith.constant 0 : index
    %c0_470 = arith.constant 0 : index
    %712 = vector.load %arg4[%c14_468, %c0_469, %c0_470] : memref<15x20x1xf32, #tpu.memory_space<vmem>>, vector<1x20x1xf32>
    %713 = vector.shape_cast %712 : vector<1x20x1xf32> to vector<20x1xf32>
    %714 = vector.broadcast %713 : vector<20x1xf32> to vector<20x216xf32>
    %715 = vector.broadcast %711 : vector<1x216xf32> to vector<20x216xf32>
    %716 = arith.mulf %714, %715 : vector<20x216xf32>
    %717 = arith.addf %710, %716 : vector<20x216xf32>
    %c0_471 = arith.constant 0 : index
    %c0_472 = arith.constant 0 : index
    %718 = vector.load %arg5[%c0_471, %c0_472] : memref<20x1xf32, #tpu.memory_space<vmem>>, vector<20x1xf32>
    %719 = vector.broadcast %718 : vector<20x1xf32> to vector<20x216xf32>
    %720 = arith.addf %717, %719 : vector<20x216xf32>
    %cst_473 = arith.constant 0.000000e+00 : f32
    %721 = vector.broadcast %cst_473 : f32 to vector<20x216xf32>
    %722 = arith.cmpf oge, %720, %721 : vector<20x216xf32>
    %cst_474 = arith.constant 3.000000e-01 : f32
    %723 = vector.broadcast %cst_474 : f32 to vector<20x216xf32>
    %724 = arith.mulf %723, %720 : vector<20x216xf32>
    %725 = arith.select %722, %720, %724 : vector<20x216xi1>, vector<20x216xf32>
    %c0_475 = arith.constant 0 : index
    %c0_476 = arith.constant 0 : index
    %726 = vector.load %arg6[%c0_475, %c0_476] : memref<20x20xf32, #tpu.memory_space<vmem>>, vector<20x20xf32>
    %cst_477 = arith.constant dense<0.000000e+00> : vector<20x216xf32>
    %727 = tpu.matmul %726, %725, %cst_477 {dimension_numbers = #tpu.dot_dimension_numbers<[1], [0], [0], [1], [0, 0, 1, 1], [], []>} : vector<20x20xf32>, vector<20x216xf32>, vector<20x216xf32> -> vector<20x216xf32>
    %c0_478 = arith.constant 0 : index
    %c0_479 = arith.constant 0 : index
    %728 = vector.load %arg7[%c0_478, %c0_479] : memref<20x1xf32, #tpu.memory_space<vmem>>, vector<20x1xf32>
    %729 = vector.broadcast %728 : vector<20x1xf32> to vector<20x216xf32>
    %730 = arith.addf %727, %729 : vector<20x216xf32>
    %cst_480 = arith.constant 0.000000e+00 : f32
    %731 = vector.broadcast %cst_480 : f32 to vector<20x216xf32>
    %732 = arith.cmpf oge, %730, %731 : vector<20x216xf32>
    %cst_481 = arith.constant 3.000000e-01 : f32
    %733 = vector.broadcast %cst_481 : f32 to vector<20x216xf32>
    %734 = arith.mulf %733, %730 : vector<20x216xf32>
    %735 = arith.select %732, %730, %734 : vector<20x216xi1>, vector<20x216xf32>
    %c0_482 = arith.constant 0 : index
    %c0_483 = arith.constant 0 : index
    %736 = vector.load %arg8[%c0_482, %c0_483] : memref<10x20xf32, #tpu.memory_space<vmem>>, vector<10x20xf32>
    %cst_484 = arith.constant dense<0.000000e+00> : vector<10x216xf32>
    %737 = tpu.matmul %736, %735, %cst_484 {dimension_numbers = #tpu.dot_dimension_numbers<[1], [0], [0], [1], [0, 0, 1, 1], [], []>} : vector<10x20xf32>, vector<20x216xf32>, vector<10x216xf32> -> vector<10x216xf32>
    %c0_485 = arith.constant 0 : index
    %c0_486 = arith.constant 0 : index
    %738 = vector.load %arg9[%c0_485, %c0_486] : memref<10x1xf32, #tpu.memory_space<vmem>>, vector<10x1xf32>
    %739 = vector.broadcast %738 : vector<10x1xf32> to vector<10x216xf32>
    %740 = arith.addf %737, %739 : vector<10x216xf32>
    %cst_487 = arith.constant 0.000000e+00 : f32
    %741 = vector.broadcast %cst_487 : f32 to vector<10x216xf32>
    %742 = arith.cmpf oge, %740, %741 : vector<10x216xf32>
    %cst_488 = arith.constant 3.000000e-01 : f32
    %743 = vector.broadcast %cst_488 : f32 to vector<10x216xf32>
    %744 = arith.mulf %743, %740 : vector<10x216xf32>
    %745 = arith.select %742, %740, %744 : vector<10x216xi1>, vector<10x216xf32>
    %c0_489 = arith.constant 0 : index
    %c0_490 = arith.constant 0 : index
    %746 = vector.load %arg10[%c0_489, %c0_490] : memref<1x10xf32, #tpu.memory_space<vmem>>, vector<1x10xf32>
    %cst_491 = arith.constant dense<0.000000e+00> : vector<1x216xf32>
    %747 = tpu.matmul %746, %745, %cst_491 {dimension_numbers = #tpu.dot_dimension_numbers<[1], [0], [0], [1], [0, 0, 1, 1], [], []>} : vector<1x10xf32>, vector<10x216xf32>, vector<1x216xf32> -> vector<1x216xf32>
    %c0_492 = arith.constant 0 : index
    %c0_493 = arith.constant 0 : index
    %748 = vector.load %arg11[%c0_492, %c0_493] : memref<1x1xf32, #tpu.memory_space<vmem>>, vector<1x1xf32>
    %749 = vector.broadcast %748 : vector<1x1xf32> to vector<1x216xf32>
    %750 = arith.addf %747, %749 : vector<1x216xf32>
    %cst_494 = arith.constant 0.000000e+00 : f32
    %751 = vector.broadcast %cst_494 : f32 to vector<1x216xf32>
    %752 = arith.cmpf oge, %750, %751 : vector<1x216xf32>
    %cst_495 = arith.constant 3.000000e-01 : f32
    %753 = vector.broadcast %cst_495 : f32 to vector<1x216xf32>
    %754 = arith.mulf %753, %750 : vector<1x216xf32>
    %755 = arith.select %752, %750, %754 : vector<1x216xi1>, vector<1x216xf32>
    %c0_496 = arith.constant 0 : index
    %c0_497 = arith.constant 0 : index
    %756 = vector.load %arg12[%c0_496, %c0_497] : memref<1x1xf32, #tpu.memory_space<vmem>>, vector<1x1xf32>
    %757 = vector.broadcast %756 : vector<1x1xf32> to vector<1x216xf32>
    %758 = arith.mulf %757, %755 : vector<1x216xf32>
    %c0_498 = arith.constant 0 : index
    %c0_499 = arith.constant 0 : index
    %759 = vector.load %arg13[%c0_498, %c0_499] : memref<1x1xf32, #tpu.memory_space<vmem>>, vector<1x1xf32>
    %760 = vector.broadcast %759 : vector<1x1xf32> to vector<1x216xf32>
    %761 = arith.addf %758, %760 : vector<1x216xf32>
    %cst_500 = arith.constant 0.000000e+00 : f32
    %762 = vector.broadcast %cst_500 : f32 to vector<1x216xf32>
    %763 = arith.cmpf oge, %761, %762 : vector<1x216xf32>
    %cst_501 = arith.constant 3.000000e-01 : f32
    %764 = vector.broadcast %cst_501 : f32 to vector<1x216xf32>
    %765 = arith.mulf %764, %761 : vector<1x216xf32>
    %766 = arith.select %763, %761, %765 : vector<1x216xi1>, vector<1x216xf32>
    %c0_502 = arith.constant 0 : index
    %c0_503 = arith.constant 0 : index
    %c0_504 = arith.constant 0 : index
    %767 = vector.load %arg14[%c0_502, %c0_503, %c0_504] : memref<1x216x128xf32, #tpu.memory_space<vmem>>, vector<1x216x128xf32>
    %768 = vector.shape_cast %767 : vector<1x216x128xf32> to vector<216x128xf32>
    %cst_505 = arith.constant dense<0.000000e+00> : vector<1x128xf32>
    %769 = tpu.matmul %766, %768, %cst_505 {dimension_numbers = #tpu.dot_dimension_numbers<[1], [0], [0], [1], [0, 0, 1, 1], [], []>} : vector<1x216xf32>, vector<216x128xf32>, vector<1x128xf32> -> vector<1x128xf32>
    %cst_506 = arith.constant dense<0xFF800000> : vector<1xf32>
    %770 = vector.multi_reduction <maximumf>, %769, %cst_506 [1] : vector<1x128xf32> to vector<1xf32>
    %771 = vector.shape_cast %770 : vector<1xf32> to vector<1x1xf32>
    %772 = vector.broadcast %771 : vector<1x1xf32> to vector<1x128xf32>
    %773 = arith.subf %769, %772 : vector<1x128xf32>
    %774 = math.exp %773 : vector<1x128xf32>
    %cst_507 = arith.constant dense<0.000000e+00> : vector<1xf32>
    %775 = vector.multi_reduction <add>, %774, %cst_507 [1] : vector<1x128xf32> to vector<1xf32>
    %776 = vector.shape_cast %775 : vector<1xf32> to vector<1x1xf32>
    %777 = vector.broadcast %776 : vector<1x1xf32> to vector<1x128xf32>
    %778 = arith.divf %774, %777 : vector<1x128xf32>
    %c3_508 = arith.constant 3 : index
    %c0_509 = arith.constant 0 : index
    %c0_510 = arith.constant 0 : index
    %779 = vector.load %arg15[%c3_508, %c0_509, %c0_510] : memref<4x1x128xf32, #tpu.memory_space<vmem>>, vector<1x1x128xf32>
    %780 = vector.shape_cast %779 : vector<1x1x128xf32> to vector<1x128xf32>
    %781 = vector.shape_cast %778 : vector<1x128xf32> to vector<1x1x128xf32>
    tpu.vector_store %arg15[%c3_508, %c0_509, %c0_510], %781 {strides = array<i32>} : memref<4x1x128xf32, #tpu.memory_space<vmem>>, vector<1x1x128xf32>,
    return
  }
  func.func @transform_0(%arg0: i32) -> (i32, i32, i32) {
    %c0_i32 = arith.constant 0 : i32
    %c0_i32_0 = arith.constant 0 : i32
    %c0_i32_1 = arith.constant 0 : i32
    return %arg0, %c0_i32, %c0_i32_0 : i32, i32, i32
  }
  func.func @transform_1(%arg0: i32) -> (i32, i32) {
    %c0_i32 = arith.constant 0 : i32
    %c0_i32_0 = arith.constant 0 : i32
    %c0_i32_1 = arith.constant 0 : i32
    return %c0_i32, %c0_i32_0 : i32, i32
  }
  func.func @transform_2(%arg0: i32) -> (i32, i32) {
    %c0_i32 = arith.constant 0 : i32
    %c0_i32_0 = arith.constant 0 : i32
    %c0_i32_1 = arith.constant 0 : i32
    return %c0_i32, %c0_i32_0 : i32, i32
  }
  func.func @transform_3(%arg0: i32) -> (i32, i32, i32) {
    %c0_i32 = arith.constant 0 : i32
    %c0_i32_0 = arith.constant 0 : i32
    %c0_i32_1 = arith.constant 0 : i32
    %c0_i32_2 = arith.constant 0 : i32
    return %c0_i32, %c0_i32_0, %c0_i32_1 : i32, i32, i32
  }
  func.func @transform_4(%arg0: i32) -> (i32, i32) {
    %c0_i32 = arith.constant 0 : i32
    %c0_i32_0 = arith.constant 0 : i32
    %c0_i32_1 = arith.constant 0 : i32
    return %c0_i32, %c0_i32_0 : i32, i32
  }
  func.func @transform_5(%arg0: i32) -> (i32, i32) {
    %c0_i32 = arith.constant 0 : i32
    %c0_i32_0 = arith.constant 0 : i32
    %c0_i32_1 = arith.constant 0 : i32
    return %c0_i32, %c0_i32_0 : i32, i32
  }
  func.func @transform_6(%arg0: i32) -> (i32, i32) {
    %c0_i32 = arith.constant 0 : i32
    %c0_i32_0 = arith.constant 0 : i32
    %c0_i32_1 = arith.constant 0 : i32
    return %c0_i32, %c0_i32_0 : i32, i32
  }
  func.func @transform_7(%arg0: i32) -> (i32, i32) {
    %c0_i32 = arith.constant 0 : i32
    %c0_i32_0 = arith.constant 0 : i32
    %c0_i32_1 = arith.constant 0 : i32
    return %c0_i32, %c0_i32_0 : i32, i32
  }
  func.func @transform_8(%arg0: i32) -> (i32, i32) {
    %c0_i32 = arith.constant 0 : i32
    %c0_i32_0 = arith.constant 0 : i32
    %c0_i32_1 = arith.constant 0 : i32
    return %c0_i32, %c0_i32_0 : i32, i32
  }
  func.func @transform_9(%arg0: i32) -> (i32, i32) {
    %c0_i32 = arith.constant 0 : i32
    %c0_i32_0 = arith.constant 0 : i32
    %c0_i32_1 = arith.constant 0 : i32
    return %c0_i32, %c0_i32_0 : i32, i32
  }
  func.func @transform_10(%arg0: i32) -> (i32, i32) {
    %c0_i32 = arith.constant 0 : i32
    %c0_i32_0 = arith.constant 0 : i32
    %c0_i32_1 = arith.constant 0 : i32
    return %c0_i32, %c0_i32_0 : i32, i32
  }
  func.func @transform_11(%arg0: i32) -> (i32, i32) {
    %c0_i32 = arith.constant 0 : i32
    %c0_i32_0 = arith.constant 0 : i32
    %c0_i32_1 = arith.constant 0 : i32
    return %c0_i32, %c0_i32_0 : i32, i32
  }
  func.func @transform_12(%arg0: i32) -> (i32, i32) {
    %c0_i32 = arith.constant 0 : i32
    %c0_i32_0 = arith.constant 0 : i32
    %c0_i32_1 = arith.constant 0 : i32
    return %c0_i32, %c0_i32_0 : i32, i32
  }
  func.func @transform_13(%arg0: i32) -> (i32, i32, i32) {
    %c0_i32 = arith.constant 0 : i32
    %c0_i32_0 = arith.constant 0 : i32
    %c0_i32_1 = arith.constant 0 : i32
    %c0_i32_2 = arith.constant 0 : i32
    return %c0_i32, %c0_i32_0, %c0_i32_1 : i32, i32, i32
  }
  func.func @transform_14(%arg0: i32) -> (i32, i32, i32) {
    %c0_i32 = arith.constant 0 : i32
    %c0_i32_0 = arith.constant 0 : i32
    %c0_i32_1 = arith.constant 0 : i32
    return %arg0, %c0_i32, %c0_i32_0 : i32, i32, i32
  }
}

</mosaic_0001>

<llo_original>
// kernel: tpu_custom_call.1
$region0: #{tpu_custom_call.1}
  #allocation0 [shape = 'u32[]', space=smem, size = 0x4, offset = 0x4, fixed_abs, tag = 'smem constant byte address 0x4 - core index']
  #allocation1 [shape = 'u32[72,128]{1,0:T(1,128)}', space=vmem, size = 0x9000, scoped, tag = 'internal scratch']
  #allocation2 [shape = 'f32[1,230]{1,0:T(1,128)}', space=vmem, size = 0x400, scoped, tag = 'scratch operand']
  #allocation3 [shape = 'f32[1,1]{1,0:T(1,128)S(1)}', space=vmem, size = 0x200, scoped, tag = 'scoped memory for tpu_custom_call.1']
  #allocation4 [shape = 'f32[1,1]{1,0:T(1,128)S(1)}', space=vmem, size = 0x200, scoped, tag = 'scoped memory for tpu_custom_call.1']
  #allocation5 [shape = 'f32[1,1]{1,0:T(1,128)S(1)}', space=vmem, size = 0x200, scoped, tag = 'scoped memory for tpu_custom_call.1']
  %s0 = inlined_call_operand.vmem [shape: f32[8,1,216], index: 0, kind: input, shape index: {}]
  %s1 = inlined_call_operand.vmem [shape: f32[1,216], index: 1, kind: input, shape index: {}]
  %s2 = inlined_call_operand.vmem [shape: f32[1,216], index: 2, kind: input, shape index: {}]
  %s3 = inlined_call_operand.vmem [shape: f32[15,20,1], index: 3, kind: input, shape index: {}]
  %s4 = inlined_call_operand.vmem [shape: f32[20,1], index: 4, kind: input, shape index: {}]
  %s5 = inlined_call_operand.vmem [shape: f32[20,20], index: 5, kind: input, shape index: {}]
  %s6 = inlined_call_operand.vmem [shape: f32[20,1], index: 6, kind: input, shape index: {}]
  %s7 = inlined_call_operand.vmem [shape: f32[10,20], index: 7, kind: input, shape index: {}]
  %s8 = inlined_call_operand.vmem [shape: f32[10,1], index: 8, kind: input, shape index: {}]
  %s9 = inlined_call_operand.vmem [shape: f32[1,10], index: 9, kind: input, shape index: {}]
  %s10 = inlined_call_operand.<no memory space> [shape: f32[1,1], index: 10, kind: input, shape index: {}]
  %s11 = inlined_call_operand.<no memory space> [shape: f32[1,1], index: 11, kind: input, shape index: {}]
  %s12 = inlined_call_operand.<no memory space> [shape: f32[1,1], index: 12, kind: input, shape index: {}]
  %s13 = inlined_call_operand.vmem [shape: f32[1,216,128], index: 13, kind: input, shape index: {}]
  %s14 = inlined_call_operand.hbm [shape: f32[8,1,128], index: 14, kind: output, shape index: {}]
  %s15 = sld [smem:[#allocation0]]
  $region89: #{tpu_custom_call.1} parent=0
    _
  %s17 = ssub.s32 1, %s15
  %s18 = scalar_select 0, %s17, %s15
  %v19 = vstv %s10
  %20 = vst [vmem:[#allocation3] sm:$0x1] %v19
  %v21 = vstv %s11
  %22 = vst [vmem:[#allocation4] sm:$0x1] %v21
  %v23 = vstv %s12
  %24 = vst [vmem:[#allocation5] sm:$0x1] %v23
  $region1: #{tpu_custom_call.1} parent=0
    #allocation6 [shape = 'u8[4096]{0}', space=vmem, size = 0x1000, scoped, tag = 'output window, operand 0']
    #allocation7 [shape = 's32[2]{0}', space=sflag, size = 0x8, scoped, tag = 'scoped memory for tpu_custom_call.1']
    %25 = vsyncpa [#allocation7], 0
    %s26 = scalar_lea.sflag [#allocation7], 1
    %27 = vsyncpa %s26, 0
    loop: start=0, step=1, limit=4
    $region2: #{tpu_custom_call.1} parent=1 // loop_pre_header
      _
    $region3: #{tpu_custom_call.1} parent=1 // loop_header
      %s29 = sphi 0, %s33
      %p30 = scmp.ge.s32.totalorder %s29, 4
      %s39 = sphi 0, %s41
      %s42 = sphi 0, %s39
      %s43 = sphi 0, %s42
      %s59 = sphi 0, %s43
      %s63 = sphi 0, %s63
      %s65 = sphi 0, %s63
      %s66 = sphi 0, %s65
      %s80 = sphi 0, %s66
      %s84 = sphi 0, %s84
      %s86 = sphi 0, %s84
      %s87 = sphi 0, %s86
      %s101 = sphi 0, %s87
      %s105 = sphi 0, %s105
      %s107 = sphi 0, %s105
      %s108 = sphi 0, %s107
      %s122 = sphi 0, %s108
      %s126 = sphi 0, %s126
      %s128 = sphi 0, %s126
      %s129 = sphi 0, %s128
      %s143 = sphi 0, %s129
      %s147 = sphi 0, %s147
      %s149 = sphi 0, %s147
      %s150 = sphi 0, %s149
      %s164 = sphi 0, %s150
      %s168 = sphi 0, %s168
      %s170 = sphi 0, %s168
      %s171 = sphi 0, %s170
      %s185 = sphi 0, %s171
      %s189 = sphi 0, %s189
      %s191 = sphi 0, %s189
      %s192 = sphi 0, %s191
      %s206 = sphi 0, %s192
      %s210 = sphi 0, %s210
      %s212 = sphi 0, %s210
      %s213 = sphi 0, %s212
      %s227 = sphi 0, %s213
      %s231 = sphi 0, %s231
      %s233 = sphi 0, %s231
      %s234 = sphi 0, %s233
      %s248 = sphi 0, %s234
      %s252 = sphi 0, %s252
      %s254 = sphi 0, %s252
      %s255 = sphi 0, %s254
      %s269 = sphi 0, %s255
      %s273 = sphi 0, %s273
      %s275 = sphi 0, %s273
      %s276 = sphi 0, %s275
      %s290 = sphi 0, %s276
      %s294 = sphi 0, %s294
      %s296 = sphi 0, %s294
      %s297 = sphi 0, %s296
      %s311 = sphi 0, %s297
      %s315 = sphi 0, %s315
      %s317 = sphi 0, %s315
      %s318 = sphi 0, %s317
      %s332 = sphi 0, %s318
      %s338 = sphi 0, %s340
      %s341 = sphi 0, %s338
      %s342 = sphi 0, %s341
      %s358 = sphi 0, %s342
    $region4: #{tpu_custom_call.1} parent=1 // loop_header_branch
      %32 = sbr.rel (%p30) target = $region8
    $region5: #{tpu_custom_call.1} parent=1 // loop_body
      %s34 = ssub.s32 %s29, 1
      %s35 = ssub.s32 %s29, 2
      %s36 = sadd.s32 %s29, 1
      %s37 = ssub.s32 %s29, %s36
      %p38 = scmp.eq.s32.totalorder %s37, 0
      %s40 = sadd.s32 %s39, 1
      %s41 = scalar_select %p38, %s39, %s40
      %p44 = pneg %p38
      %p45 = scmp.eq.s32.totalorder %s29, 1
      %p46 = por %p44, %p45
      %p47 = scmp.ne.s32.totalorder %s39, %s42
      %p48 = scmp.eq.s32.totalorder %s29, 0
      %p49 = por %p47, %p48
      %p50 = scmp.ne.s32.totalorder %s39, %s42
      %p51 = scmp.eq.s32.totalorder %s34, 1
      %p52 = por %p50, %p51
      %p53 = scmp.ne.s32.totalorder %s42, %s43
      %p54 = scmp.eq.s32.totalorder %s34, 0
      %p55 = por %p53, %p54
      %p56 = scmp.ne.s32.totalorder %s42, %s43
      %p57 = scmp.eq.s32.totalorder %s35, 1
      %p58 = por %p56, %p57
      %p60 = scmp.ne.s32.totalorder %s43, %s59
      %p61 = scmp.eq.s32.totalorder %s35, 0
      %p62 = por %p60, %p61
      %s64 = sadd.s32 %s63, 1
      %p67 = scmp.eq.s32.totalorder %s29, 1
      %p68 = scmp.ne.s32.totalorder %s63, %s65
      %p69 = scmp.eq.s32.totalorder %s29, 0
      %p70 = por %p68, %p69
      %p71 = scmp.ne.s32.totalorder %s63, %s65
      %p72 = scmp.eq.s32.totalorder %s34, 1
      %p73 = por %p71, %p72
      %p74 = scmp.ne.s32.totalorder %s65, %s66
      %p75 = scmp.eq.s32.totalorder %s34, 0
      %p76 = por %p74, %p75
      %p77 = scmp.ne.s32.totalorder %s65, %s66
      %p78 = scmp.eq.s32.totalorder %s35, 1
      %p79 = por %p77, %p78
      %p81 = scmp.ne.s32.totalorder %s66, %s80
      %p82 = scmp.eq.s32.totalorder %s35, 0
      %p83 = por %p81, %p82
      %s85 = sadd.s32 %s84, 1
      %p88 = scmp.eq.s32.totalorder %s29, 1
      %p89 = scmp.ne.s32.totalorder %s84, %s86
      %p90 = scmp.eq.s32.totalorder %s29, 0
      %p91 = por %p89, %p90
      %p92 = scmp.ne.s32.totalorder %s84, %s86
      %p93 = scmp.eq.s32.totalorder %s34, 1
      %p94 = por %p92, %p93
      %p95 = scmp.ne.s32.totalorder %s86, %s87
      %p96 = scmp.eq.s32.totalorder %s34, 0
      %p97 = por %p95, %p96
      %p98 = scmp.ne.s32.totalorder %s86, %s87
      %p99 = scmp.eq.s32.totalorder %s35, 1
      %p100 = por %p98, %p99
      %p102 = scmp.ne.s32.totalorder %s87, %s101
      %p103 = scmp.eq.s32.totalorder %s35, 0
      %p104 = por %p102, %p103
      %s106 = sadd.s32 %s105, 1
      %p109 = scmp.eq.s32.totalorder %s29, 1
      %p110 = scmp.ne.s32.totalorder %s105, %s107
      %p111 = scmp.eq.s32.totalorder %s29, 0
      %p112 = por %p110, %p111
      %p113 = scmp.ne.s32.totalorder %s105, %s107
      %p114 = scmp.eq.s32.totalorder %s34, 1
      %p115 = por %p113, %p114
      %p116 = scmp.ne.s32.totalorder %s107, %s108
      %p117 = scmp.eq.s32.totalorder %s34, 0
      %p118 = por %p116, %p117
      %p119 = scmp.ne.s32.totalorder %s107, %s108
      %p120 = scmp.eq.s32.totalorder %s35, 1
      %p121 = por %p119, %p120
      %p123 = scmp.ne.s32.totalorder %s108, %s122
      %p124 = scmp.eq.s32.totalorder %s35, 0
      %p125 = por %p123, %p124
      %s127 = sadd.s32 %s126, 1
      %p130 = scmp.eq.s32.totalorder %s29, 1
      %p131 = scmp.ne.s32.totalorder %s126, %s128
      %p132 = scmp.eq.s32.totalorder %s29, 0
      %p133 = por %p131, %p132
      %p134 = scmp.ne.s32.totalorder %s126, %s128
      %p135 = scmp.eq.s32.totalorder %s34, 1
      %p136 = por %p134, %p135
      %p137 = scmp.ne.s32.totalorder %s128, %s129
      %p138 = scmp.eq.s32.totalorder %s34, 0
      %p139 = por %p137, %p138
      %p140 = scmp.ne.s32.totalorder %s128, %s129
      %p141 = scmp.eq.s32.totalorder %s35, 1
      %p142 = por %p140, %p141
      %p144 = scmp.ne.s32.totalorder %s129, %s143
      %p145 = scmp.eq.s32.totalorder %s35, 0
      %p146 = por %p144, %p145
      %s148 = sadd.s32 %s147, 1
      %p151 = scmp.eq.s32.totalorder %s29, 1
      %p152 = scmp.ne.s32.totalorder %s147, %s149
      %p153 = scmp.eq.s32.totalorder %s29, 0
      %p154 = por %p152, %p153
      %p155 = scmp.ne.s32.totalorder %s147, %s149
      %p156 = scmp.eq.s32.totalorder %s34, 1
      %p157 = por %p155, %p156
      %p158 = scmp.ne.s32.totalorder %s149, %s150
      %p159 = scmp.eq.s32.totalorder %s34, 0
      %p160 = por %p158, %p159
      %p161 = scmp.ne.s32.totalorder %s149, %s150
      %p162 = scmp.eq.s32.totalorder %s35, 1
      %p163 = por %p161, %p162
      %p165 = scmp.ne.s32.totalorder %s150, %s164
      %p166 = scmp.eq.s32.totalorder %s35, 0
      %p167 = por %p165, %p166
      %s169 = sadd.s32 %s168, 1
      %p172 = scmp.eq.s32.totalorder %s29, 1
      %p173 = scmp.ne.s32.totalorder %s168, %s170
      %p174 = scmp.eq.s32.totalorder %s29, 0
      %p175 = por %p173, %p174
      %p176 = scmp.ne.s32.totalorder %s168, %s170
      %p177 = scmp.eq.s32.totalorder %s34, 1
      %p178 = por %p176, %p177
      %p179 = scmp.ne.s32.totalorder %s170, %s171
      %p180 = scmp.eq.s32.totalorder %s34, 0
      %p181 = por %p179, %p180
      %p182 = scmp.ne.s32.totalorder %s170, %s171
      %p183 = scmp.eq.s32.totalorder %s35, 1
      %p184 = por %p182, %p183
      %p186 = scmp.ne.s32.totalorder %s171, %s185
      %p187 = scmp.eq.s32.totalorder %s35, 0
      %p188 = por %p186, %p187
      %s190 = sadd.s32 %s189, 1
      %p193 = scmp.eq.s32.totalorder %s29, 1
      %p194 = scmp.ne.s32.totalorder %s189, %s191
      %p195 = scmp.eq.s32.totalorder %s29, 0
      %p196 = por %p194, %p195
      %p197 = scmp.ne.s32.totalorder %s189, %s191
      %p198 = scmp.eq.s32.totalorder %s34, 1
      %p199 = por %p197, %p198
      %p200 = scmp.ne.s32.totalorder %s191, %s192
      %p201 = scmp.eq.s32.totalorder %s34, 0
      %p202 = por %p200, %p201
      %p203 = scmp.ne.s32.totalorder %s191, %s192
      %p204 = scmp.eq.s32.totalorder %s35, 1
      %p205 = por %p203, %p204
      %p207 = scmp.ne.s32.totalorder %s192, %s206
      %p208 = scmp.eq.s32.totalorder %s35, 0
      %p209 = por %p207, %p208
      %s211 = sadd.s32 %s210, 1
      %p214 = scmp.eq.s32.totalorder %s29, 1
      %p215 = scmp.ne.s32.totalorder %s210, %s212
      %p216 = scmp.eq.s32.totalorder %s29, 0
      %p217 = por %p215, %p216
      %p218 = scmp.ne.s32.totalorder %s210, %s212
      %p219 = scmp.eq.s32.totalorder %s34, 1
      %p220 = por %p218, %p219
      %p221 = scmp.ne.s32.totalorder %s212, %s213
      %p222 = scmp.eq.s32.totalorder %s34, 0
      %p223 = por %p221, %p222
      %p224 = scmp.ne.s32.totalorder %s212, %s213
      %p225 = scmp.eq.s32.totalorder %s35, 1
      %p226 = por %p224, %p225
      %p228 = scmp.ne.s32.totalorder %s213, %s227
      %p229 = scmp.eq.s32.totalorder %s35, 0
      %p230 = por %p228, %p229
      %s232 = sadd.s32 %s231, 1
      %p235 = scmp.eq.s32.totalorder %s29, 1
      %p236 = scmp.ne.s32.totalorder %s231, %s233
      %p237 = scmp.eq.s32.totalorder %s29, 0
      %p238 = por %p236, %p237
      %p239 = scmp.ne.s32.totalorder %s231, %s233
      %p240 = scmp.eq.s32.totalorder %s34, 1
      %p241 = por %p239, %p240
      %p242 = scmp.ne.s32.totalorder %s233, %s234
      %p243 = scmp.eq.s32.totalorder %s34, 0
      %p244 = por %p242, %p243
      %p245 = scmp.ne.s32.totalorder %s233, %s234
      %p246 = scmp.eq.s32.totalorder %s35, 1
      %p247 = por %p245, %p246
      %p249 = scmp.ne.s32.totalorder %s234, %s248
      %p250 = scmp.eq.s32.totalorder %s35, 0
      %p251 = por %p249, %p250
      %s253 = sadd.s32 %s252, 1
      %p256 = scmp.eq.s32.totalorder %s29, 1
      %p257 = scmp.ne.s32.totalorder %s252, %s254
      %p258 = scmp.eq.s32.totalorder %s29, 0
      %p259 = por %p257, %p258
      %p260 = scmp.ne.s32.totalorder %s252, %s254
      %p261 = scmp.eq.s32.totalorder %s34, 1
      %p262 = por %p260, %p261
      %p263 = scmp.ne.s32.totalorder %s254, %s255
      %p264 = scmp.eq.s32.totalorder %s34, 0
      %p265 = por %p263, %p264
      %p266 = scmp.ne.s32.totalorder %s254, %s255
      %p267 = scmp.eq.s32.totalorder %s35, 1
      %p268 = por %p266, %p267
      %p270 = scmp.ne.s32.totalorder %s255, %s269
      %p271 = scmp.eq.s32.totalorder %s35, 0
      %p272 = por %p270, %p271
      %s274 = sadd.s32 %s273, 1
      %p277 = scmp.eq.s32.totalorder %s29, 1
      %p278 = scmp.ne.s32.totalorder %s273, %s275
      %p279 = scmp.eq.s32.totalorder %s29, 0
      %p280 = por %p278, %p279
      %p281 = scmp.ne.s32.totalorder %s273, %s275
      %p282 = scmp.eq.s32.totalorder %s34, 1
      %p283 = por %p281, %p282
      %p284 = scmp.ne.s32.totalorder %s275, %s276
      %p285 = scmp.eq.s32.totalorder %s34, 0
      %p286 = por %p284, %p285
      %p287 = scmp.ne.s32.totalorder %s275, %s276
      %p288 = scmp.eq.s32.totalorder %s35, 1
      %p289 = por %p287, %p288
      %p291 = scmp.ne.s32.totalorder %s276, %s290
      %p292 = scmp.eq.s32.totalorder %s35, 0
      %p293 = por %p291, %p292
      %s295 = sadd.s32 %s294, 1
      %p298 = scmp.eq.s32.totalorder %s29, 1
      %p299 = scmp.ne.s32.totalorder %s294, %s296
      %p300 = scmp.eq.s32.totalorder %s29, 0
      %p301 = por %p299, %p300
      %p302 = scmp.ne.s32.totalorder %s294, %s296
      %p303 = scmp.eq.s32.totalorder %s34, 1
      %p304 = por %p302, %p303
      %p305 = scmp.ne.s32.totalorder %s296, %s297
      %p306 = scmp.eq.s32.totalorder %s34, 0
      %p307 = por %p305, %p306
      %p308 = scmp.ne.s32.totalorder %s296, %s297
      %p309 = scmp.eq.s32.totalorder %s35, 1
      %p310 = por %p308, %p309
      %p312 = scmp.ne.s32.totalorder %s297, %s311
      %p313 = scmp.eq.s32.totalorder %s35, 0
      %p314 = por %p312, %p313
      %s316 = sadd.s32 %s315, 1
      %p319 = scmp.eq.s32.totalorder %s29, 1
      %p320 = scmp.ne.s32.totalorder %s315, %s317
      %p321 = scmp.eq.s32.totalorder %s29, 0
      %p322 = por %p320, %p321
      %p323 = scmp.ne.s32.totalorder %s315, %s317
      %p324 = scmp.eq.s32.totalorder %s34, 1
      %p325 = por %p323, %p324
      %p326 = scmp.ne.s32.totalorder %s317, %s318
      %p327 = scmp.eq.s32.totalorder %s34, 0
      %p328 = por %p326, %p327
      %p329 = scmp.ne.s32.totalorder %s317, %s318
      %p330 = scmp.eq.s32.totalorder %s35, 1
      %p331 = por %p329, %p330
      %p333 = scmp.ne.s32.totalorder %s318, %s332
      %p334 = scmp.eq.s32.totalorder %s35, 0
      %p335 = por %p333, %p334
      %s336 = ssub.s32 %s29, %s36
      %p337 = scmp.eq.s32.totalorder %s336, 0
      %s339 = sadd.s32 %s338, 1
      %s340 = scalar_select %p337, %s338, %s339
      %p343 = pneg %p337
      %p344 = scmp.eq.s32.totalorder %s29, 1
      %p345 = por %p343, %p344
      %p346 = scmp.ne.s32.totalorder %s338, %s341
      %p347 = scmp.eq.s32.totalorder %s29, 0
      %p348 = por %p346, %p347
      %p349 = scmp.ne.s32.totalorder %s338, %s341
      %p350 = scmp.eq.s32.totalorder %s34, 1
      %p351 = por %p349, %p350
      %p352 = scmp.ne.s32.totalorder %s341, %s342
      %p353 = scmp.eq.s32.totalorder %s34, 0
      %p354 = por %p352, %p353
      %p355 = scmp.ne.s32.totalorder %s341, %s342
      %p356 = scmp.eq.s32.totalorder %s35, 1
      %p357 = por %p355, %p356
      %p359 = scmp.ne.s32.totalorder %s342, %s358
      %p360 = scmp.eq.s32.totalorder %s35, 0
      %p361 = por %p359, %p360
      %p362 = scmp.le.s32.totalorder 1, %s29
      %p363 = scmp.lt.s32.totalorder %s29, 3
      %p364 = pnand %p362, %p363
      %p365 = pneg %p364
      // Predicated region
      $region9: #{tpu_custom_call.1} parent=5 // pred_check
        _
      $region10: #{tpu_custom_call.1} parent=5 // pred_check_branch
        %367 = sbr.rel (%p364) target = $region12
      $region11: #{tpu_custom_call.1} parent=5 // pred_region
        %s368 = ssub.s32 %s29, 1
        // Predicated region
        $region13: #{tpu_custom_call.1} parent=11 // pred_check
          %p369 = pneg %p76
        $region14: #{tpu_custom_call.1} parent=11 // pred_check_branch
          %371 = sbr.rel (%p369) target = $region16
        $region15: #{tpu_custom_call.1} parent=11 // pred_region
          _
        $region16: #{tpu_custom_call.1} parent=11 // pred_fallthru
          _
        // Predicated region
        $region17: #{tpu_custom_call.1} parent=11 // pred_check
          %p372 = pneg %p97
        $region18: #{tpu_custom_call.1} parent=11 // pred_check_branch
          %374 = sbr.rel (%p372) target = $region20
        $region19: #{tpu_custom_call.1} parent=11 // pred_region
          _
        $region20: #{tpu_custom_call.1} parent=11 // pred_fallthru
          _
        // Predicated region
        $region21: #{tpu_custom_call.1} parent=11 // pred_check
          %p375 = pneg %p118
        $region22: #{tpu_custom_call.1} parent=11 // pred_check_branch
          %377 = sbr.rel (%p375) target = $region24
        $region23: #{tpu_custom_call.1} parent=11 // pred_region
          _
        $region24: #{tpu_custom_call.1} parent=11 // pred_fallthru
          _
        // Predicated region
        $region25: #{tpu_custom_call.1} parent=11 // pred_check
          %p378 = pneg %p139
        $region26: #{tpu_custom_call.1} parent=11 // pred_check_branch
          %380 = sbr.rel (%p378) target = $region28
        $region27: #{tpu_custom_call.1} parent=11 // pred_region
          _
        $region28: #{tpu_custom_call.1} parent=11 // pred_fallthru
          _
        // Predicated region
        $region29: #{tpu_custom_call.1} parent=11 // pred_check
          %p381 = pneg %p160
        $region30: #{tpu_custom_call.1} parent=11 // pred_check_branch
          %383 = sbr.rel (%p381) target = $region32
        $region31: #{tpu_custom_call.1} parent=11 // pred_region
          _
        $region32: #{tpu_custom_call.1} parent=11 // pred_fallthru
          _
        // Predicated region
        $region33: #{tpu_custom_call.1} parent=11 // pred_check
          %p384 = pneg %p181
        $region34: #{tpu_custom_call.1} parent=11 // pred_check_branch
          %386 = sbr.rel (%p384) target = $region36
        $region35: #{tpu_custom_call.1} parent=11 // pred_region
          _
        $region36: #{tpu_custom_call.1} parent=11 // pred_fallthru
          _
        // Predicated region
        $region37: #{tpu_custom_call.1} parent=11 // pred_check
          %p387 = pneg %p202
        $region38: #{tpu_custom_call.1} parent=11 // pred_check_branch
          %389 = sbr.rel (%p387) target = $region40
        $region39: #{tpu_custom_call.1} parent=11 // pred_region
          _
        $region40: #{tpu_custom_call.1} parent=11 // pred_fallthru
          _
        // Predicated region
        $region41: #{tpu_custom_call.1} parent=11 // pred_check
          %p390 = pneg %p223
        $region42: #{tpu_custom_call.1} parent=11 // pred_check_branch
          %392 = sbr.rel (%p390) target = $region44
        $region43: #{tpu_custom_call.1} parent=11 // pred_region
          _
        $region44: #{tpu_custom_call.1} parent=11 // pred_fallthru
          _
        // Predicated region
        $region45: #{tpu_custom_call.1} parent=11 // pred_check
          %p393 = pneg %p244
        $region46: #{tpu_custom_call.1} parent=11 // pred_check_branch
          %395 = sbr.rel (%p393) target = $region48
        $region47: #{tpu_custom_call.1} parent=11 // pred_region
          _
        $region48: #{tpu_custom_call.1} parent=11 // pred_fallthru
          _
        // Predicated region
        $region49: #{tpu_custom_call.1} parent=11 // pred_check
          %p396 = pneg %p265
        $region50: #{tpu_custom_call.1} parent=11 // pred_check_branch
          %398 = sbr.rel (%p396) target = $region52
        $region51: #{tpu_custom_call.1} parent=11 // pred_region
          _
        $region52: #{tpu_custom_call.1} parent=11 // pred_fallthru
          _
        // Predicated region
        $region53: #{tpu_custom_call.1} parent=11 // pred_check
          %p399 = pneg %p286
        $region54: #{tpu_custom_call.1} parent=11 // pred_check_branch
          %401 = sbr.rel (%p399) target = $region56
        $region55: #{tpu_custom_call.1} parent=11 // pred_region
          _
        $region56: #{tpu_custom_call.1} parent=11 // pred_fallthru
          _
        // Predicated region
        $region57: #{tpu_custom_call.1} parent=11 // pred_check
          %p402 = pneg %p307
        $region58: #{tpu_custom_call.1} parent=11 // pred_check_branch
          %404 = sbr.rel (%p402) target = $region60
        $region59: #{tpu_custom_call.1} parent=11 // pred_region
          _
        $region60: #{tpu_custom_call.1} parent=11 // pred_fallthru
          _
        // Predicated region
        $region61: #{tpu_custom_call.1} parent=11 // pred_check
          %p405 = pneg %p328
        $region62: #{tpu_custom_call.1} parent=11 // pred_check_branch
          %407 = sbr.rel (%p405) target = $region64
        $region63: #{tpu_custom_call.1} parent=11 // pred_region
          _
        $region64: #{tpu_custom_call.1} parent=11 // pred_fallthru
          _
      $region12: #{tpu_custom_call.1} parent=5 // pred_fallthru
        _
      %p408 = scmp.lt.s32.totalorder %s29, 2
      // Predicated region
      $region65: #{tpu_custom_call.1} parent=5 // pred_check
        %p409 = pneg %p408
      $region66: #{tpu_custom_call.1} parent=5 // pred_check_branch
        %411 = sbr.rel (%p409) target = $region68
      $region67: #{tpu_custom_call.1} parent=5 // pred_region
        // Predicated region
        $region69: #{tpu_custom_call.1} parent=67 // pred_check
          %p412 = pneg %p49
        $region70: #{tpu_custom_call.1} parent=67 // pred_check_branch
          %414 = sbr.rel (%p412) target = $region72
        $region71: #{tpu_custom_call.1} parent=67 // pred_region
          %s415 = smul.u32 4, %s29
          %p416 = scmp.lt.s32.totalorder %s415, 7
          %s417 = scalar_select %p416, %s415, 7
          %s418 = smul.addr %s417, 2
          %s419 = scalar_lea.vmem %s0, %s418
          %s420 = smul.u32 4, %s29
        $region72: #{tpu_custom_call.1} parent=67 // pred_fallthru
          _
      $region68: #{tpu_custom_call.1} parent=5 // pred_fallthru
        _
      %p421 = scmp.le.s32.totalorder 1, %s29
      %p422 = scmp.lt.s32.totalorder %s29, 3
      %p423 = pnand %p421, %p422
      %p424 = pneg %p423
      // Predicated region
      $region73: #{tpu_custom_call.1} parent=5 // pred_check
        _
      $region74: #{tpu_custom_call.1} parent=5 // pred_check_branch
        %426 = sbr.rel (%p423) target = $region76
      $region75: #{tpu_custom_call.1} parent=5 // pred_region
        %s427 = ssub.s32 %s29, 1
        %s428 = smul.u32 4, %s34
        %p429 = scmp.lt.s32.totalorder %s428, 7
        %s430 = scalar_select %p429, %s428, 7
        %s431 = smul.addr %s430, 2
        %s432 = scalar_lea.vmem %s0, %s431
        %p433 = pneg %p55
        %p434 = pneg %p52
        %p435 = pneg %p76
        %p436 = pneg %p73
        %p437 = pneg %p97
        %p438 = pneg %p94
        %p439 = pneg %p118
        %p440 = pneg %p115
        %p441 = pneg %p139
        %p442 = pneg %p136
        %p443 = pneg %p160
        %p444 = pneg %p157
        %p445 = pneg %p181
        %p446 = pneg %p178
        %p447 = pneg %p202
        %p448 = pneg %p199
        %p449 = pneg %p223
        %p450 = pneg %p220
        %p451 = pneg %p244
        %p452 = pneg %p241
        %p453 = pneg %p265
        %p454 = pneg %p262
        %p455 = pneg %p286
        %p456 = pneg %p283
        %p457 = pneg %p307
        %p458 = pneg %p304
        %p459 = pneg %p328
        %p460 = pneg %p325
        %p461 = pneg %p354
        %p462 = pneg %p351
        %s463 = sand.u32 %s341, 1
        %s464 = scalar_lea.sflag [#allocation7], %s463
        %s465 = sand.u32 %s341, 1
        %s466 = smul.addr %s465, 4
        %s467 = scalar_lea.vmem [#allocation6], %s466
        %s468 = smul.u32 4, %s34
        %p469 = scmp.lt.s32.totalorder %s468, 7
        %s470 = scalar_select %p469, %s468, 7
        %s471 = smul.addr %s470, 2
        %s472 = scalar_lea.vmem %s0, %s471
        %s473 = smul.u32 4, %s34
        %s474 = smul.u32 4, %s34
        %v475 = vlaneseq
        %vm476 = vcmp.ge.s32.totalorder %v475, 0
        %vm477 = vcmp.lt.s32.totalorder %v475, 230
        %vm478 = vmand %vm476, %vm477
        %479 = vst.msk [vmem:[#allocation2] sm:$0x3] %vm478, 0.0
        %v480 = vld [vmem:[%s472] sm:$0x3]
        %v482 = vperm.slane %v480, 0
        %v483 = vperm.slane %v480, 1
        %vm486 = vcmask 1040384
        %v487 = vsel %vm486, %v482, 0.0
        %vm488 = vcmask 712704
        %v489 = vsel %vm488, %v483, 0.0
        %v490 = vadd.f32 %v487, %v489
        %491 = vadd.xlane.f32.xlu0 %v490
        %v492 = vpop.xlane.xlu0 %491
        %v493 = vadd.f32 %v492, 0.0
        %v494 = vrcp.pop 216.0
        %v495 = vmul.f32 216.0, %v494
        %v496 = vsub.f32 1.0, %v495
        %v497 = vmul.f32 %v494, %v496
        %v498 = vadd.f32 %v494, %v497
        %vm499 = vweird.f32 %v494
        %v500 = vsel %vm499, %v494, %v498
        %v501 = vmul.f32 %v493, %v500
        %v503 = vperm.slane %v501, 0
        %v505 = vsub.f32 %v480, %v503
        %v506 = vmul.f32 %v505, %v505
        %v508 = vperm.slane %v506, 0
        %v509 = vperm.slane %v506, 1
        %v512 = vsel %vm486, %v508, 0.0
        %v513 = vsel %vm488, %v509, 0.0
        %v514 = vadd.f32 %v512, %v513
        %515 = vadd.xlane.f32.xlu0 %v514
        %v516 = vpop.xlane.xlu0 %515
        %v517 = vadd.f32 %v516, 0.0
        %v518 = vmul.f32 %v517, %v500
        %v519 = vadd.f32 %v518, 1e-05
        %v520 = vrsqrt.pop %v519
        %v521 = vmul.f32 %v520, %v519
        %v522 = vmul.f32 %v521, %v520
        %v523 = vmul.f32 0.5, %v522
        %v524 = vsub.f32 1.5, %v523
        %v525 = vmul.f32 %v520, %v524
        %vm526 = vweird.f32 %v519
        %vm527 = vweird.f32 %v520
        %vm528 = vmor %vm526, %vm527
        %v529 = vsel %vm528, %v520, %v525
        %v530 = vld [vmem:[%s1] sm:$0x3]
        %v532 = vperm.slane %v530, 0
        %v533 = vperm.slane %v530, 1
        %v536 = vmul.f32 %v529, %v532
        %v537 = vmul.f32 %v529, %v533
        %v540 = vrot.slane %v537, 7
        %v541 = vsel %vm486, %v536, %v540
        %v543 = vmul.f32 %v505, %v541
        %v544 = vld [vmem:[%s2] sm:$0x3]
        %v545 = vadd.f32 %v543, %v544
        %547 = vrot.lane.b32.xlu0 %v545, 7
        %v548 = vpop.permute.xlu0 %547
        %v549 = vrot.slane %v548, 7
        %vm550 = vcmask 56320
        %v551 = vsel %vm550, %v549, %v548
        %vm553 = vcmp.ge.s32.totalorder %v475, 7
        %vm554 = vcmp.lt.s32.totalorder %v475, 223
        %vm555 = vmand %vm553, %vm554
        %556 = vst.msk [vmem:[#allocation2] sm:$0x3] %vm555, %v551
        %v557 = vld [vmem:[#allocation2] sm:$0x3]
        %v558 = vld [vmem:[%s3] sm:$0xff]
        %v559 = vld [vmem:[%s3 + $0x8] sm:$0xff]
        %v560 = vld [vmem:[%s3 + $0x10] sm:$0xf]
        %562 = vset.pattern.permute.xlu0 0
        %563 = vperm.xlu0 %562, %v558
        %v564 = vpop.permute.xlu0 %563
        %567 = vset.pattern.permute.xlu0 0
        %568 = vperm.xlu0 %567, %v559
        %v569 = vpop.permute.xlu0 %568
        %572 = vset.pattern.permute.xlu0 0
        %573 = vperm.xlu0 %572, %v560
        %v574 = vpop.permute.xlu0 %573
        %v577 = vperm.slane %v557, 0
        %v578 = vperm.slane %v557, 1
        %v581 = vmul.f32 %v564, %v577
        %v582 = vmul.f32 %v564, %v578
        %v583 = vmul.f32 %v569, %v577
        %v584 = vmul.f32 %v569, %v578
        %v585 = vmul.f32 %v574, %v577
        %v586 = vmul.f32 %v574, %v578
        %s587 = scalar_lea.vmem %s3, 24
        %v588 = vld [vmem:[%s587] sm:$0xff]
        %v589 = vld [vmem:[%s587 + $0x8] sm:$0xff]
        %v590 = vld [vmem:[%s587 + $0x10] sm:$0xf]
        %592 = vset.pattern.permute.xlu0 0
        %593 = vperm.xlu0 %592, %v588
        %v594 = vpop.permute.xlu0 %593
        %597 = vset.pattern.permute.xlu0 0
        %598 = vperm.xlu0 %597, %v589
        %v599 = vpop.permute.xlu0 %598
        %602 = vset.pattern.permute.xlu0 0
        %603 = vperm.xlu0 %602, %v590
        %v604 = vpop.permute.xlu0 %603
        %v606 = vmul.f32 %v594, %v577
        %v607 = vmul.f32 %v594, %v578
        %v608 = vmul.f32 %v599, %v577
        %v609 = vmul.f32 %v599, %v578
        %v610 = vmul.f32 %v604, %v577
        %v611 = vmul.f32 %v604, %v578
        %618 = vrot.lane.b32.xlu0 %v606, 127
        %v619 = vpop.permute.xlu0 %618
        %620 = vrot.lane.b32.xlu0 %v607, 127
        %v621 = vpop.permute.xlu0 %620
        %622 = vrot.lane.b32.xlu0 %v608, 127
        %v623 = vpop.permute.xlu0 %622
        %624 = vrot.lane.b32.xlu0 %v609, 127
        %v625 = vpop.permute.xlu0 %624
        %626 = vrot.lane.b32.xlu0 %v610, 127
        %v627 = vpop.permute.xlu0 %626
        %628 = vrot.lane.b32.xlu0 %v611, 127
        %v629 = vpop.permute.xlu0 %628
        %vm630 = vcmask 1039360
        %v631 = vsel %vm630, %v619, %v621
        %v632 = vsel %vm630, %v623, %v625
        %v633 = vsel %vm630, %v627, %v629
        %v640 = vadd.f32 %v581, %v631
        %v641 = vadd.f32 %v582, %v621
        %v642 = vadd.f32 %v583, %v632
        %v643 = vadd.f32 %v584, %v625
        %v644 = vadd.f32 %v585, %v633
        %v645 = vadd.f32 %v586, %v629
        %s646 = scalar_lea.vmem %s3, 48
        %v647 = vld [vmem:[%s646] sm:$0xff]
        %v648 = vld [vmem:[%s646 + $0x8] sm:$0xff]
        %v649 = vld [vmem:[%s646 + $0x10] sm:$0xf]
        %651 = vset.pattern.permute.xlu0 0
        %652 = vperm.xlu0 %651, %v647
        %v653 = vpop.permute.xlu0 %652
        %656 = vset.pattern.permute.xlu0 0
        %657 = vperm.xlu0 %656, %v648
        %v658 = vpop.permute.xlu0 %657
        %661 = vset.pattern.permute.xlu0 0
        %662 = vperm.xlu0 %661, %v649
        %v663 = vpop.permute.xlu0 %662
        %v665 = vmul.f32 %v653, %v577
        %v666 = vmul.f32 %v653, %v578
        %v667 = vmul.f32 %v658, %v577
        %v668 = vmul.f32 %v658, %v578
        %v669 = vmul.f32 %v663, %v577
        %v670 = vmul.f32 %v663, %v578
        %677 = vrot.lane.b32.xlu0 %v665, 126
        %v678 = vpop.permute.xlu0 %677
        %679 = vrot.lane.b32.xlu0 %v666, 126
        %v680 = vpop.permute.xlu0 %679
        %681 = vrot.lane.b32.xlu0 %v667, 126
        %v682 = vpop.permute.xlu0 %681
        %683 = vrot.lane.b32.xlu0 %v668, 126
        %v684 = vpop.permute.xlu0 %683
        %685 = vrot.lane.b32.xlu0 %v669, 126
        %v686 = vpop.permute.xlu0 %685
        %687 = vrot.lane.b32.xlu0 %v670, 126
        %v688 = vpop.permute.xlu0 %687
        %vm689 = vcmask 1031168
        %v690 = vsel %vm689, %v678, %v680
        %v691 = vsel %vm689, %v682, %v684
        %v692 = vsel %vm689, %v686, %v688
        %v699 = vadd.f32 %v640, %v690
        %v700 = vadd.f32 %v641, %v680
        %v701 = vadd.f32 %v642, %v691
        %v702 = vadd.f32 %v643, %v684
        %v703 = vadd.f32 %v644, %v692
        %v704 = vadd.f32 %v645, %v688
        %s705 = scalar_lea.vmem %s3, 72
        %v706 = vld [vmem:[%s705] sm:$0xff]
        %v707 = vld [vmem:[%s705 + $0x8] sm:$0xff]
        %v708 = vld [vmem:[%s705 + $0x10] sm:$0xf]
        %710 = vset.pattern.permute.xlu0 0
        %711 = vperm.xlu0 %710, %v706
        %v712 = vpop.permute.xlu0 %711
        %715 = vset.pattern.permute.xlu0 0
        %716 = vperm.xlu0 %715, %v707
        %v717 = vpop.permute.xlu0 %716
        %720 = vset.pattern.permute.xlu0 0
        %721 = vperm.xlu0 %720, %v708
        %v722 = vpop.permute.xlu0 %721
        %v724 = vmul.f32 %v712, %v577
        %v725 = vmul.f32 %v712, %v578
        %v726 = vmul.f32 %v717, %v577
        %v727 = vmul.f32 %v717, %v578
        %v728 = vmul.f32 %v722, %v577
        %v729 = vmul.f32 %v722, %v578
        %736 = vrot.lane.b32.xlu0 %v724, 125
        %v737 = vpop.permute.xlu0 %736
        %738 = vrot.lane.b32.xlu0 %v725, 125
        %v739 = vpop.permute.xlu0 %738
        %740 = vrot.lane.b32.xlu0 %v726, 125
        %v741 = vpop.permute.xlu0 %740
        %742 = vrot.lane.b32.xlu0 %v727, 125
        %v743 = vpop.permute.xlu0 %742
        %744 = vrot.lane.b32.xlu0 %v728, 125
        %v745 = vpop.permute.xlu0 %744
        %746 = vrot.lane.b32.xlu0 %v729, 125
        %v747 = vpop.permute.xlu0 %746
        %vm748 = vcmask 1022976
        %v749 = vsel %vm748, %v737, %v739
        %v750 = vsel %vm748, %v741, %v743
        %v751 = vsel %vm748, %v745, %v747
        %v758 = vadd.f32 %v699, %v749
        %v759 = vadd.f32 %v700, %v739
        %v760 = vadd.f32 %v701, %v750
        %v761 = vadd.f32 %v702, %v743
        %v762 = vadd.f32 %v703, %v751
        %v763 = vadd.f32 %v704, %v747
        %s764 = scalar_lea.vmem %s3, 96
        %v765 = vld [vmem:[%s764] sm:$0xff]
        %v766 = vld [vmem:[%s764 + $0x8] sm:$0xff]
        %v767 = vld [vmem:[%s764 + $0x10] sm:$0xf]
        %769 = vset.pattern.permute.xlu0 0
        %770 = vperm.xlu0 %769, %v765
        %v771 = vpop.permute.xlu0 %770
        %774 = vset.pattern.permute.xlu0 0
        %775 = vperm.xlu0 %774, %v766
        %v776 = vpop.permute.xlu0 %775
        %779 = vset.pattern.permute.xlu0 0
        %780 = vperm.xlu0 %779, %v767
        %v781 = vpop.permute.xlu0 %780
        %v783 = vmul.f32 %v771, %v577
        %v784 = vmul.f32 %v771, %v578
        %v785 = vmul.f32 %v776, %v577
        %v786 = vmul.f32 %v776, %v578
        %v787 = vmul.f32 %v781, %v577
        %v788 = vmul.f32 %v781, %v578
        %795 = vrot.lane.b32.xlu0 %v783, 124
        %v796 = vpop.permute.xlu0 %795
        %797 = vrot.lane.b32.xlu0 %v784, 124
        %v798 = vpop.permute.xlu0 %797
        %799 = vrot.lane.b32.xlu0 %v785, 124
        %v800 = vpop.permute.xlu0 %799
        %801 = vrot.lane.b32.xlu0 %v786, 124
        %v802 = vpop.permute.xlu0 %801
        %803 = vrot.lane.b32.xlu0 %v787, 124
        %v804 = vpop.permute.xlu0 %803
        %805 = vrot.lane.b32.xlu0 %v788, 124
        %v806 = vpop.permute.xlu0 %805
        %vm807 = vcmask 1014784
        %v808 = vsel %vm807, %v796, %v798
        %v809 = vsel %vm807, %v800, %v802
        %v810 = vsel %vm807, %v804, %v806
        %v817 = vadd.f32 %v758, %v808
        %v818 = vadd.f32 %v759, %v798
        %v819 = vadd.f32 %v760, %v809
        %v820 = vadd.f32 %v761, %v802
        %v821 = vadd.f32 %v762, %v810
        %v822 = vadd.f32 %v763, %v806
        %s823 = scalar_lea.vmem %s3, 120
        %v824 = vld [vmem:[%s823] sm:$0xff]
        %v825 = vld [vmem:[%s823 + $0x8] sm:$0xff]
        %v826 = vld [vmem:[%s823 + $0x10] sm:$0xf]
        %828 = vset.pattern.permute.xlu0 0
        %829 = vperm.xlu0 %828, %v824
        %v830 = vpop.permute.xlu0 %829
        %833 = vset.pattern.permute.xlu0 0
        %834 = vperm.xlu0 %833, %v825
        %v835 = vpop.permute.xlu0 %834
        %838 = vset.pattern.permute.xlu0 0
        %839 = vperm.xlu0 %838, %v826
        %v840 = vpop.permute.xlu0 %839
        %v842 = vmul.f32 %v830, %v577
        %v843 = vmul.f32 %v830, %v578
        %v844 = vmul.f32 %v835, %v577
        %v845 = vmul.f32 %v835, %v578
        %v846 = vmul.f32 %v840, %v577
        %v847 = vmul.f32 %v840, %v578
        %854 = vrot.lane.b32.xlu0 %v842, 123
        %v855 = vpop.permute.xlu0 %854
        %856 = vrot.lane.b32.xlu0 %v843, 123
        %v857 = vpop.permute.xlu0 %856
        %858 = vrot.lane.b32.xlu0 %v844, 123
        %v859 = vpop.permute.xlu0 %858
        %860 = vrot.lane.b32.xlu0 %v845, 123
        %v861 = vpop.permute.xlu0 %860
        %862 = vrot.lane.b32.xlu0 %v846, 123
        %v863 = vpop.permute.xlu0 %862
        %864 = vrot.lane.b32.xlu0 %v847, 123
        %v865 = vpop.permute.xlu0 %864
        %vm866 = vcmask 1006592
        %v867 = vsel %vm866, %v855, %v857
        %v868 = vsel %vm866, %v859, %v861
        %v869 = vsel %vm866, %v863, %v865
        %v876 = vadd.f32 %v817, %v867
        %v877 = vadd.f32 %v818, %v857
        %v878 = vadd.f32 %v819, %v868
        %v879 = vadd.f32 %v820, %v861
        %v880 = vadd.f32 %v821, %v869
        %v881 = vadd.f32 %v822, %v865
        %s882 = scalar_lea.vmem %s3, 144
        %v883 = vld [vmem:[%s882] sm:$0xff]
        %v884 = vld [vmem:[%s882 + $0x8] sm:$0xff]
        %v885 = vld [vmem:[%s882 + $0x10] sm:$0xf]
        %887 = vset.pattern.permute.xlu0 0
        %888 = vperm.xlu0 %887, %v883
        %v889 = vpop.permute.xlu0 %888
        %892 = vset.pattern.permute.xlu0 0
        %893 = vperm.xlu0 %892, %v884
        %v894 = vpop.permute.xlu0 %893
        %897 = vset.pattern.permute.xlu0 0
        %898 = vperm.xlu0 %897, %v885
        %v899 = vpop.permute.xlu0 %898
        %v901 = vmul.f32 %v889, %v577
        %v902 = vmul.f32 %v889, %v578
        %v903 = vmul.f32 %v894, %v577
        %v904 = vmul.f32 %v894, %v578
        %v905 = vmul.f32 %v899, %v577
        %v906 = vmul.f32 %v899, %v578
        %913 = vrot.lane.b32.xlu0 %v901, 122
        %v914 = vpop.permute.xlu0 %913
        %915 = vrot.lane.b32.xlu0 %v902, 122
        %v916 = vpop.permute.xlu0 %915
        %917 = vrot.lane.b32.xlu0 %v903, 122
        %v918 = vpop.permute.xlu0 %917
        %919 = vrot.lane.b32.xlu0 %v904, 122
        %v920 = vpop.permute.xlu0 %919
        %921 = vrot.lane.b32.xlu0 %v905, 122
        %v922 = vpop.permute.xlu0 %921
        %923 = vrot.lane.b32.xlu0 %v906, 122
        %v924 = vpop.permute.xlu0 %923
        %vm925 = vcmask 998400
        %v926 = vsel %vm925, %v914, %v916
        %v927 = vsel %vm925, %v918, %v920
        %v928 = vsel %vm925, %v922, %v924
        %v935 = vadd.f32 %v876, %v926
        %v936 = vadd.f32 %v877, %v916
        %v937 = vadd.f32 %v878, %v927
        %v938 = vadd.f32 %v879, %v920
        %v939 = vadd.f32 %v880, %v928
        %v940 = vadd.f32 %v881, %v924
        %s941 = scalar_lea.vmem %s3, 168
        %v942 = vld [vmem:[%s941] sm:$0xff]
        %v943 = vld [vmem:[%s941 + $0x8] sm:$0xff]
        %v944 = vld [vmem:[%s941 + $0x10] sm:$0xf]
        %946 = vset.pattern.permute.xlu0 0
        %947 = vperm.xlu0 %946, %v942
        %v948 = vpop.permute.xlu0 %947
        %951 = vset.pattern.permute.xlu0 0
        %952 = vperm.xlu0 %951, %v943
        %v953 = vpop.permute.xlu0 %952
        %956 = vset.pattern.permute.xlu0 0
        %957 = vperm.xlu0 %956, %v944
        %v958 = vpop.permute.xlu0 %957
        %v960 = vmul.f32 %v948, %v577
        %v961 = vmul.f32 %v948, %v578
        %v962 = vmul.f32 %v953, %v577
        %v963 = vmul.f32 %v953, %v578
        %v964 = vmul.f32 %v958, %v577
        %v965 = vmul.f32 %v958, %v578
        %972 = vrot.lane.b32.xlu0 %v960, 121
        %v973 = vpop.permute.xlu0 %972
        %974 = vrot.lane.b32.xlu0 %v961, 121
        %v975 = vpop.permute.xlu0 %974
        %976 = vrot.lane.b32.xlu0 %v962, 121
        %v977 = vpop.permute.xlu0 %976
        %978 = vrot.lane.b32.xlu0 %v963, 121
        %v979 = vpop.permute.xlu0 %978
        %980 = vrot.lane.b32.xlu0 %v964, 121
        %v981 = vpop.permute.xlu0 %980
        %982 = vrot.lane.b32.xlu0 %v965, 121
        %v983 = vpop.permute.xlu0 %982
        %vm984 = vcmask 990208
        %v985 = vsel %vm984, %v973, %v975
        %v986 = vsel %vm984, %v977, %v979
        %v987 = vsel %vm984, %v981, %v983
        %v994 = vadd.f32 %v935, %v985
        %v995 = vadd.f32 %v936, %v975
        %v996 = vadd.f32 %v937, %v986
        %v997 = vadd.f32 %v938, %v979
        %v998 = vadd.f32 %v939, %v987
        %v999 = vadd.f32 %v940, %v983
        %s1000 = scalar_lea.vmem %s3, 192
        %v1001 = vld [vmem:[%s1000] sm:$0xff]
        %v1002 = vld [vmem:[%s1000 + $0x8] sm:$0xff]
        %v1003 = vld [vmem:[%s1000 + $0x10] sm:$0xf]
        %1005 = vset.pattern.permute.xlu0 0
        %1006 = vperm.xlu0 %1005, %v1001
        %v1007 = vpop.permute.xlu0 %1006
        %1010 = vset.pattern.permute.xlu0 0
        %1011 = vperm.xlu0 %1010, %v1002
        %v1012 = vpop.permute.xlu0 %1011
        %1015 = vset.pattern.permute.xlu0 0
        %1016 = vperm.xlu0 %1015, %v1003
        %v1017 = vpop.permute.xlu0 %1016
        %v1019 = vmul.f32 %v1007, %v577
        %v1020 = vmul.f32 %v1007, %v578
        %v1021 = vmul.f32 %v1012, %v577
        %v1022 = vmul.f32 %v1012, %v578
        %v1023 = vmul.f32 %v1017, %v577
        %v1024 = vmul.f32 %v1017, %v578
        %1031 = vrot.lane.b32.xlu0 %v1019, 120
        %v1032 = vpop.permute.xlu0 %1031
        %1033 = vrot.lane.b32.xlu0 %v1020, 120
        %v1034 = vpop.permute.xlu0 %1033
        %1035 = vrot.lane.b32.xlu0 %v1021, 120
        %v1036 = vpop.permute.xlu0 %1035
        %1037 = vrot.lane.b32.xlu0 %v1022, 120
        %v1038 = vpop.permute.xlu0 %1037
        %1039 = vrot.lane.b32.xlu0 %v1023, 120
        %v1040 = vpop.permute.xlu0 %1039
        %1041 = vrot.lane.b32.xlu0 %v1024, 120
        %v1042 = vpop.permute.xlu0 %1041
        %vm1043 = vcmask 982016
        %v1044 = vsel %vm1043, %v1032, %v1034
        %v1045 = vsel %vm1043, %v1036, %v1038
        %v1046 = vsel %vm1043, %v1040, %v1042
        %v1053 = vadd.f32 %v994, %v1044
        %v1054 = vadd.f32 %v995, %v1034
        %v1055 = vadd.f32 %v996, %v1045
        %v1056 = vadd.f32 %v997, %v1038
        %v1057 = vadd.f32 %v998, %v1046
        %v1058 = vadd.f32 %v999, %v1042
        %s1059 = scalar_lea.vmem %s3, 216
        %v1060 = vld [vmem:[%s1059] sm:$0xff]
        %v1061 = vld [vmem:[%s1059 + $0x8] sm:$0xff]
        %v1062 = vld [vmem:[%s1059 + $0x10] sm:$0xf]
        %1064 = vset.pattern.permute.xlu0 0
        %1065 = vperm.xlu0 %1064, %v1060
        %v1066 = vpop.permute.xlu0 %1065
        %1069 = vset.pattern.permute.xlu0 0
        %1070 = vperm.xlu0 %1069, %v1061
        %v1071 = vpop.permute.xlu0 %1070
        %1074 = vset.pattern.permute.xlu0 0
        %1075 = vperm.xlu0 %1074, %v1062
        %v1076 = vpop.permute.xlu0 %1075
        %v1078 = vmul.f32 %v1066, %v577
        %v1079 = vmul.f32 %v1066, %v578
        %v1080 = vmul.f32 %v1071, %v577
        %v1081 = vmul.f32 %v1071, %v578
        %v1082 = vmul.f32 %v1076, %v577
        %v1083 = vmul.f32 %v1076, %v578
        %1090 = vrot.lane.b32.xlu0 %v1078, 119
        %v1091 = vpop.permute.xlu0 %1090
        %1092 = vrot.lane.b32.xlu0 %v1079, 119
        %v1093 = vpop.permute.xlu0 %1092
        %1094 = vrot.lane.b32.xlu0 %v1080, 119
        %v1095 = vpop.permute.xlu0 %1094
        %1096 = vrot.lane.b32.xlu0 %v1081, 119
        %v1097 = vpop.permute.xlu0 %1096
        %1098 = vrot.lane.b32.xlu0 %v1082, 119
        %v1099 = vpop.permute.xlu0 %1098
        %1100 = vrot.lane.b32.xlu0 %v1083, 119
        %v1101 = vpop.permute.xlu0 %1100
        %vm1102 = vcmask 973824
        %v1103 = vsel %vm1102, %v1091, %v1093
        %v1104 = vsel %vm1102, %v1095, %v1097
        %v1105 = vsel %vm1102, %v1099, %v1101
        %v1112 = vadd.f32 %v1053, %v1103
        %v1113 = vadd.f32 %v1054, %v1093
        %v1114 = vadd.f32 %v1055, %v1104
        %v1115 = vadd.f32 %v1056, %v1097
        %v1116 = vadd.f32 %v1057, %v1105
        %v1117 = vadd.f32 %v1058, %v1101
        %s1118 = scalar_lea.vmem %s3, 240
        %v1119 = vld [vmem:[%s1118] sm:$0xff]
        %v1120 = vld [vmem:[%s1118 + $0x8] sm:$0xff]
        %v1121 = vld [vmem:[%s1118 + $0x10] sm:$0xf]
        %1123 = vset.pattern.permute.xlu0 0
        %1124 = vperm.xlu0 %1123, %v1119
        %v1125 = vpop.permute.xlu0 %1124
        %1128 = vset.pattern.permute.xlu0 0
        %1129 = vperm.xlu0 %1128, %v1120
        %v1130 = vpop.permute.xlu0 %1129
        %1133 = vset.pattern.permute.xlu0 0
        %1134 = vperm.xlu0 %1133, %v1121
        %v1135 = vpop.permute.xlu0 %1134
        %v1137 = vmul.f32 %v1125, %v577
        %v1138 = vmul.f32 %v1125, %v578
        %v1139 = vmul.f32 %v1130, %v577
        %v1140 = vmul.f32 %v1130, %v578
        %v1141 = vmul.f32 %v1135, %v577
        %v1142 = vmul.f32 %v1135, %v578
        %1149 = vrot.lane.b32.xlu0 %v1137, 118
        %v1150 = vpop.permute.xlu0 %1149
        %1151 = vrot.lane.b32.xlu0 %v1138, 118
        %v1152 = vpop.permute.xlu0 %1151
        %1153 = vrot.lane.b32.xlu0 %v1139, 118
        %v1154 = vpop.permute.xlu0 %1153
        %1155 = vrot.lane.b32.xlu0 %v1140, 118
        %v1156 = vpop.permute.xlu0 %1155
        %1157 = vrot.lane.b32.xlu0 %v1141, 118
        %v1158 = vpop.permute.xlu0 %1157
        %1159 = vrot.lane.b32.xlu0 %v1142, 118
        %v1160 = vpop.permute.xlu0 %1159
        %vm1161 = vcmask 965632
        %v1162 = vsel %vm1161, %v1150, %v1152
        %v1163 = vsel %vm1161, %v1154, %v1156
        %v1164 = vsel %vm1161, %v1158, %v1160
        %v1171 = vadd.f32 %v1112, %v1162
        %v1172 = vadd.f32 %v1113, %v1152
        %v1173 = vadd.f32 %v1114, %v1163
        %v1174 = vadd.f32 %v1115, %v1156
        %v1175 = vadd.f32 %v1116, %v1164
        %v1176 = vadd.f32 %v1117, %v1160
        %s1177 = scalar_lea.vmem %s3, 264
        %v1178 = vld [vmem:[%s1177] sm:$0xff]
        %v1179 = vld [vmem:[%s1177 + $0x8] sm:$0xff]
        %v1180 = vld [vmem:[%s1177 + $0x10] sm:$0xf]
        %1182 = vset.pattern.permute.xlu0 0
        %1183 = vperm.xlu0 %1182, %v1178
        %v1184 = vpop.permute.xlu0 %1183
        %1187 = vset.pattern.permute.xlu0 0
        %1188 = vperm.xlu0 %1187, %v1179
        %v1189 = vpop.permute.xlu0 %1188
        %1192 = vset.pattern.permute.xlu0 0
        %1193 = vperm.xlu0 %1192, %v1180
        %v1194 = vpop.permute.xlu0 %1193
        %v1196 = vmul.f32 %v1184, %v577
        %v1197 = vmul.f32 %v1184, %v578
        %v1198 = vmul.f32 %v1189, %v577
        %v1199 = vmul.f32 %v1189, %v578
        %v1200 = vmul.f32 %v1194, %v577
        %v1201 = vmul.f32 %v1194, %v578
        %1208 = vrot.lane.b32.xlu0 %v1196, 117
        %v1209 = vpop.permute.xlu0 %1208
        %1210 = vrot.lane.b32.xlu0 %v1197, 117
        %v1211 = vpop.permute.xlu0 %1210
        %1212 = vrot.lane.b32.xlu0 %v1198, 117
        %v1213 = vpop.permute.xlu0 %1212
        %1214 = vrot.lane.b32.xlu0 %v1199, 117
        %v1215 = vpop.permute.xlu0 %1214
        %1216 = vrot.lane.b32.xlu0 %v1200, 117
        %v1217 = vpop.permute.xlu0 %1216
        %1218 = vrot.lane.b32.xlu0 %v1201, 117
        %v1219 = vpop.permute.xlu0 %1218
        %vm1220 = vcmask 957440
        %v1221 = vsel %vm1220, %v1209, %v1211
        %v1222 = vsel %vm1220, %v1213, %v1215
        %v1223 = vsel %vm1220, %v1217, %v1219
        %v1230 = vadd.f32 %v1171, %v1221
        %v1231 = vadd.f32 %v1172, %v1211
        %v1232 = vadd.f32 %v1173, %v1222
        %v1233 = vadd.f32 %v1174, %v1215
        %v1234 = vadd.f32 %v1175, %v1223
        %v1235 = vadd.f32 %v1176, %v1219
        %s1236 = scalar_lea.vmem %s3, 288
        %v1237 = vld [vmem:[%s1236] sm:$0xff]
        %v1238 = vld [vmem:[%s1236 + $0x8] sm:$0xff]
        %v1239 = vld [vmem:[%s1236 + $0x10] sm:$0xf]
        %1241 = vset.pattern.permute.xlu0 0
        %1242 = vperm.xlu0 %1241, %v1237
        %v1243 = vpop.permute.xlu0 %1242
        %1246 = vset.pattern.permute.xlu0 0
        %1247 = vperm.xlu0 %1246, %v1238
        %v1248 = vpop.permute.xlu0 %1247
        %1251 = vset.pattern.permute.xlu0 0
        %1252 = vperm.xlu0 %1251, %v1239
        %v1253 = vpop.permute.xlu0 %1252
        %v1255 = vmul.f32 %v1243, %v577
        %v1256 = vmul.f32 %v1243, %v578
        %v1257 = vmul.f32 %v1248, %v577
        %v1258 = vmul.f32 %v1248, %v578
        %v1259 = vmul.f32 %v1253, %v577
        %v1260 = vmul.f32 %v1253, %v578
        %1267 = vrot.lane.b32.xlu0 %v1255, 116
        %v1268 = vpop.permute.xlu0 %1267
        %1269 = vrot.lane.b32.xlu0 %v1256, 116
        %v1270 = vpop.permute.xlu0 %1269
        %1271 = vrot.lane.b32.xlu0 %v1257, 116
        %v1272 = vpop.permute.xlu0 %1271
        %1273 = vrot.lane.b32.xlu0 %v1258, 116
        %v1274 = vpop.permute.xlu0 %1273
        %1275 = vrot.lane.b32.xlu0 %v1259, 116
        %v1276 = vpop.permute.xlu0 %1275
        %1277 = vrot.lane.b32.xlu0 %v1260, 116
        %v1278 = vpop.permute.xlu0 %1277
        %vm1279 = vcmask 949248
        %v1280 = vsel %vm1279, %v1268, %v1270
        %v1281 = vsel %vm1279, %v1272, %v1274
        %v1282 = vsel %vm1279, %v1276, %v1278
        %v1289 = vadd.f32 %v1230, %v1280
        %v1290 = vadd.f32 %v1231, %v1270
        %v1291 = vadd.f32 %v1232, %v1281
        %v1292 = vadd.f32 %v1233, %v1274
        %v1293 = vadd.f32 %v1234, %v1282
        %v1294 = vadd.f32 %v1235, %v1278
        %s1295 = scalar_lea.vmem %s3, 312
        %v1296 = vld [vmem:[%s1295] sm:$0xff]
        %v1297 = vld [vmem:[%s1295 + $0x8] sm:$0xff]
        %v1298 = vld [vmem:[%s1295 + $0x10] sm:$0xf]
        %1300 = vset.pattern.permute.xlu0 0
        %1301 = vperm.xlu0 %1300, %v1296
        %v1302 = vpop.permute.xlu0 %1301
        %1305 = vset.pattern.permute.xlu0 0
        %1306 = vperm.xlu0 %1305, %v1297
        %v1307 = vpop.permute.xlu0 %1306
        %1310 = vset.pattern.permute.xlu0 0
        %1311 = vperm.xlu0 %1310, %v1298
        %v1312 = vpop.permute.xlu0 %1311
        %v1314 = vmul.f32 %v1302, %v577
        %v1315 = vmul.f32 %v1302, %v578
        %v1316 = vmul.f32 %v1307, %v577
        %v1317 = vmul.f32 %v1307, %v578
        %v1318 = vmul.f32 %v1312, %v577
        %v1319 = vmul.f32 %v1312, %v578
        %1326 = vrot.lane.b32.xlu0 %v1314, 115
        %v1327 = vpop.permute.xlu0 %1326
        %1328 = vrot.lane.b32.xlu0 %v1315, 115
        %v1329 = vpop.permute.xlu0 %1328
        %1330 = vrot.lane.b32.xlu0 %v1316, 115
        %v1331 = vpop.permute.xlu0 %1330
        %1332 = vrot.lane.b32.xlu0 %v1317, 115
        %v1333 = vpop.permute.xlu0 %1332
        %1334 = vrot.lane.b32.xlu0 %v1318, 115
        %v1335 = vpop.permute.xlu0 %1334
        %1336 = vrot.lane.b32.xlu0 %v1319, 115
        %v1337 = vpop.permute.xlu0 %1336
        %vm1338 = vcmask 941056
        %v1339 = vsel %vm1338, %v1327, %v1329
        %v1340 = vsel %vm1338, %v1331, %v1333
        %v1341 = vsel %vm1338, %v1335, %v1337
        %v1348 = vadd.f32 %v1289, %v1339
        %v1349 = vadd.f32 %v1290, %v1329
        %v1350 = vadd.f32 %v1291, %v1340
        %v1351 = vadd.f32 %v1292, %v1333
        %v1352 = vadd.f32 %v1293, %v1341
        %v1353 = vadd.f32 %v1294, %v1337
        %s1354 = scalar_lea.vmem %s3, 336
        %v1355 = vld [vmem:[%s1354] sm:$0xff]
        %v1356 = vld [vmem:[%s1354 + $0x8] sm:$0xff]
        %v1357 = vld [vmem:[%s1354 + $0x10] sm:$0xf]
        %1359 = vset.pattern.permute.xlu0 0
        %1360 = vperm.xlu0 %1359, %v1355
        %v1361 = vpop.permute.xlu0 %1360
        %1364 = vset.pattern.permute.xlu0 0
        %1365 = vperm.xlu0 %1364, %v1356
        %v1366 = vpop.permute.xlu0 %1365
        %1369 = vset.pattern.permute.xlu0 0
        %1370 = vperm.xlu0 %1369, %v1357
        %v1371 = vpop.permute.xlu0 %1370
        %v1373 = vmul.f32 %v1361, %v577
        %v1374 = vmul.f32 %v1361, %v578
        %v1375 = vmul.f32 %v1366, %v577
        %v1376 = vmul.f32 %v1366, %v578
        %v1377 = vmul.f32 %v1371, %v577
        %v1378 = vmul.f32 %v1371, %v578
        %1385 = vrot.lane.b32.xlu0 %v1373, 114
        %v1386 = vpop.permute.xlu0 %1385
        %1387 = vrot.lane.b32.xlu0 %v1374, 114
        %v1388 = vpop.permute.xlu0 %1387
        %1389 = vrot.lane.b32.xlu0 %v1375, 114
        %v1390 = vpop.permute.xlu0 %1389
        %1391 = vrot.lane.b32.xlu0 %v1376, 114
        %v1392 = vpop.permute.xlu0 %1391
        %1393 = vrot.lane.b32.xlu0 %v1377, 114
        %v1394 = vpop.permute.xlu0 %1393
        %1395 = vrot.lane.b32.xlu0 %v1378, 114
        %v1396 = vpop.permute.xlu0 %1395
        %vm1397 = vcmask 932864
        %v1398 = vsel %vm1397, %v1386, %v1388
        %v1399 = vsel %vm1397, %v1390, %v1392
        %v1400 = vsel %vm1397, %v1394, %v1396
        %v1407 = vadd.f32 %v1348, %v1398
        %v1408 = vadd.f32 %v1349, %v1388
        %v1409 = vadd.f32 %v1350, %v1399
        %v1410 = vadd.f32 %v1351, %v1392
        %v1411 = vadd.f32 %v1352, %v1400
        %v1412 = vadd.f32 %v1353, %v1396
        %v1413 = vld [vmem:[%s4] sm:$0xff]
        %v1414 = vld [vmem:[%s4 + $0x8] sm:$0xff]
        %v1415 = vld [vmem:[%s4 + $0x10] sm:$0xf]
        %1417 = vset.pattern.permute.xlu0 0
        %1418 = vperm.xlu0 %1417, %v1413
        %v1419 = vpop.permute.xlu0 %1418
        %1422 = vset.pattern.permute.xlu0 0
        %1423 = vperm.xlu0 %1422, %v1414
        %v1424 = vpop.permute.xlu0 %1423
        %1427 = vset.pattern.permute.xlu0 0
        %1428 = vperm.xlu0 %1427, %v1415
        %v1429 = vpop.permute.xlu0 %1428
        %v1431 = vadd.f32 %v1407, %v1419
        %v1432 = vadd.f32 %v1408, %v1419
        %v1433 = vadd.f32 %v1409, %v1424
        %v1434 = vadd.f32 %v1410, %v1424
        %v1435 = vadd.f32 %v1411, %v1429
        %v1436 = vadd.f32 %v1412, %v1429
        %vm1437 = vcmp.ge.f32.partialorder %v1431, 0.0
        %vm1438 = vcmp.ge.f32.partialorder %v1432, 0.0
        %vm1439 = vcmp.ge.f32.partialorder %v1433, 0.0
        %vm1440 = vcmp.ge.f32.partialorder %v1434, 0.0
        %vm1441 = vcmp.ge.f32.partialorder %v1435, 0.0
        %vm1442 = vcmp.ge.f32.partialorder %v1436, 0.0
        %v1443 = vmul.f32 %v1431, 0.3
        %v1444 = vmul.f32 %v1432, 0.3
        %v1445 = vmul.f32 %v1433, 0.3
        %v1446 = vmul.f32 %v1434, 0.3
        %v1447 = vmul.f32 %v1435, 0.3
        %v1448 = vmul.f32 %v1436, 0.3
        %v1449 = vsel %vm1437, %v1431, %v1443
        %v1450 = vsel %vm1438, %v1432, %v1444
        %v1451 = vsel %vm1439, %v1433, %v1445
        %v1452 = vsel %vm1440, %v1434, %v1446
        %v1453 = vsel %vm1441, %v1435, %v1447
        %v1454 = vsel %vm1442, %v1436, %v1448
        %v1455 = vld [vmem:[%s5] sm:$0xff]
        %v1456 = vld [vmem:[%s5 + $0x8] sm:$0xff]
        %v1457 = vld [vmem:[%s5 + $0x10] sm:$0xf]
        %v1458 = vld [vmem:[%s6] sm:$0xff]
        %v1459 = vld [vmem:[%s6 + $0x8] sm:$0xff]
        %v1460 = vld [vmem:[%s6 + $0x10] sm:$0xf]
        %1462 = vset.pattern.permute.xlu0 0
        %1463 = vperm.xlu0 %1462, %v1458
        %v1464 = vpop.permute.xlu0 %1463
        %1467 = vset.pattern.permute.xlu0 0
        %1468 = vperm.xlu0 %1467, %v1459
        %v1469 = vpop.permute.xlu0 %1468
        %1472 = vset.pattern.permute.xlu0 0
        %1473 = vperm.xlu0 %1472, %v1460
        %v1474 = vpop.permute.xlu0 %1473
        %vm1476 = vcmask 162816
        %v1478 = vsel %vm1476, %v1455, 0
        %v1481 = vsel %vm1476, %v1456, 0
        %v1484 = vsel %vm1476, %v1457, 0
        %vm1486 = vcmask 1043456
        %v1488 = vsel %vm1486, %v1453, 0
        %v1491 = vsel %vm1486, %v1454, 0
        %1493 = vmatpush.msra.mxu0 0.0
        %1494 = vmatpush.msra.mxu0 0.0
        %1495 = vmatpush.msra.mxu0 0.0
        %1496 = vmatpush.msra.mxu0 0.0
        %1497 = vmatpush.msra.mxu0 0.0
        %1498 = vmatpush.msra.mxu0 0.0
        %1499 = vmatpush.msra.mxu0 0.0
        %1500 = vmatpush.msra.mxu0 0.0
        %1501 = vmatpush.msra.mxu0 0.0
        %1502 = vmatpush.msra.mxu0 0.0
        %1503 = vmatpush.msra.mxu0 0.0
        %1504 = vmatpush.msra.mxu0 0.0
        %1505 = vmatpush.msra.mxu0 0.0
        %1506 = vmatpush.msra.mxu0 %v1488
        %1507 = vmatpush.msra.mxu0 %v1451
        %1508 = vmatpush.msra.mxu0 %v1449
        %1509 = vmatmul.f32.gmra.mxu0 %v1478
        %v1510 = vpop.f32.mrf.mxu0
        %v1511 = vadd.f32 %v1464, %v1510
        %1512 = vmatmul.f32.gmra.mxu0 %v1481
        %v1513 = vpop.f32.mrf.mxu0
        %v1514 = vadd.f32 %v1469, %v1513
        %1515 = vmatmul.f32.gmra.mxu0 %v1484
        %v1516 = vpop.f32.mrf.mxu0
        %v1517 = vadd.f32 %v1474, %v1516
        %1518 = vdwg.mxu0
        %1519 = vmatpush.msra.mxu0 0.0
        %1520 = vmatpush.msra.mxu0 0.0
        %1521 = vmatpush.msra.mxu0 0.0
        %1522 = vmatpush.msra.mxu0 0.0
        %1523 = vmatpush.msra.mxu0 0.0
        %1524 = vmatpush.msra.mxu0 0.0
        %1525 = vmatpush.msra.mxu0 0.0
        %1526 = vmatpush.msra.mxu0 0.0
        %1527 = vmatpush.msra.mxu0 0.0
        %1528 = vmatpush.msra.mxu0 0.0
        %1529 = vmatpush.msra.mxu0 0.0
        %1530 = vmatpush.msra.mxu0 0.0
        %1531 = vmatpush.msra.mxu0 0.0
        %1532 = vmatpush.msra.mxu0 %v1491
        %1533 = vmatpush.msra.mxu0 %v1452
        %1534 = vmatpush.msra.mxu0 %v1450
        %1535 = vmatmul.f32.gmra.mxu0 %v1478
        %v1536 = vpop.f32.mrf.mxu0
        %v1537 = vadd.f32 %v1464, %v1536
        %1538 = vmatmul.f32.gmra.mxu0 %v1481
        %v1539 = vpop.f32.mrf.mxu0
        %v1540 = vadd.f32 %v1469, %v1539
        %1541 = vmatmul.f32.gmra.mxu0 %v1484
        %v1542 = vpop.f32.mrf.mxu0
        %v1543 = vadd.f32 %v1474, %v1542
        %1544 = vdwg.mxu0
        %vm1545 = vcmp.ge.f32.partialorder %v1511, 0.0
        %vm1546 = vcmp.ge.f32.partialorder %v1537, 0.0
        %vm1547 = vcmp.ge.f32.partialorder %v1514, 0.0
        %vm1548 = vcmp.ge.f32.partialorder %v1540, 0.0
        %vm1549 = vcmp.ge.f32.partialorder %v1517, 0.0
        %vm1550 = vcmp.ge.f32.partialorder %v1543, 0.0
        %v1551 = vmul.f32 %v1511, 0.3
        %v1552 = vmul.f32 %v1537, 0.3
        %v1553 = vmul.f32 %v1514, 0.3
        %v1554 = vmul.f32 %v1540, 0.3
        %v1555 = vmul.f32 %v1517, 0.3
        %v1556 = vmul.f32 %v1543, 0.3
        %v1557 = vsel %vm1545, %v1511, %v1551
        %v1558 = vsel %vm1546, %v1537, %v1552
        %v1559 = vsel %vm1547, %v1514, %v1553
        %v1560 = vsel %vm1548, %v1540, %v1554
        %v1561 = vsel %vm1549, %v1517, %v1555
        %v1562 = vsel %vm1550, %v1543, %v1556
        %v1563 = vld [vmem:[%s7] sm:$0xff]
        %v1564 = vld [vmem:[%s7 + $0x8] sm:$0x3]
        %v1565 = vld [vmem:[%s8] sm:$0xff]
        %v1566 = vld [vmem:[%s8 + $0x8] sm:$0x3]
        %1568 = vset.pattern.permute.xlu0 0
        %1569 = vperm.xlu0 %1568, %v1565
        %v1570 = vpop.permute.xlu0 %1569
        %1573 = vset.pattern.permute.xlu0 0
        %1574 = vperm.xlu0 %1573, %v1566
        %v1575 = vpop.permute.xlu0 %1574
        %v1578 = vsel %vm1476, %v1563, 0
        %v1581 = vsel %vm1476, %v1564, 0
        %v1584 = vsel %vm1486, %v1561, 0
        %v1587 = vsel %vm1486, %v1562, 0
        %1589 = vmatpush.msra.mxu0 0.0
        %1590 = vmatpush.msra.mxu0 0.0
        %1591 = vmatpush.msra.mxu0 0.0
        %1592 = vmatpush.msra.mxu0 0.0
        %1593 = vmatpush.msra.mxu0 0.0
        %1594 = vmatpush.msra.mxu0 0.0
        %1595 = vmatpush.msra.mxu0 0.0
        %1596 = vmatpush.msra.mxu0 0.0
        %1597 = vmatpush.msra.mxu0 0.0
        %1598 = vmatpush.msra.mxu0 0.0
        %1599 = vmatpush.msra.mxu0 0.0
        %1600 = vmatpush.msra.mxu0 0.0
        %1601 = vmatpush.msra.mxu0 0.0
        %1602 = vmatpush.msra.mxu0 %v1584
        %1603 = vmatpush.msra.mxu0 %v1559
        %1604 = vmatpush.msra.mxu0 %v1557
        %1605 = vmatmul.f32.gmra.mxu0 %v1578
        %v1606 = vpop.f32.mrf.mxu0
        %v1607 = vadd.f32 %v1570, %v1606
        %1608 = vmatmul.f32.gmra.mxu0 %v1581
        %v1609 = vpop.f32.mrf.mxu0
        %v1610 = vadd.f32 %v1575, %v1609
        %1611 = vdwg.mxu0
        %1612 = vmatpush.msra.mxu0 0.0
        %1613 = vmatpush.msra.mxu0 0.0
        %1614 = vmatpush.msra.mxu0 0.0
        %1615 = vmatpush.msra.mxu0 0.0
        %1616 = vmatpush.msra.mxu0 0.0
        %1617 = vmatpush.msra.mxu0 0.0
        %1618 = vmatpush.msra.mxu0 0.0
        %1619 = vmatpush.msra.mxu0 0.0
        %1620 = vmatpush.msra.mxu0 0.0
        %1621 = vmatpush.msra.mxu0 0.0
        %1622 = vmatpush.msra.mxu0 0.0
        %1623 = vmatpush.msra.mxu0 0.0
        %1624 = vmatpush.msra.mxu0 0.0
        %1625 = vmatpush.msra.mxu0 %v1587
        %1626 = vmatpush.msra.mxu0 %v1560
        %1627 = vmatpush.msra.mxu0 %v1558
        %1628 = vmatmul.f32.gmra.mxu0 %v1578
        %v1629 = vpop.f32.mrf.mxu0
        %v1630 = vadd.f32 %v1570, %v1629
        %1631 = vmatmul.f32.gmra.mxu0 %v1581
        %v1632 = vpop.f32.mrf.mxu0
        %v1633 = vadd.f32 %v1575, %v1632
        %1634 = vdwg.mxu0
        %vm1635 = vcmp.ge.f32.partialorder %v1607, 0.0
        %vm1636 = vcmp.ge.f32.partialorder %v1630, 0.0
        %vm1637 = vcmp.ge.f32.partialorder %v1610, 0.0
        %vm1638 = vcmp.ge.f32.partialorder %v1633, 0.0
        %v1639 = vmul.f32 %v1607, 0.3
        %v1640 = vmul.f32 %v1630, 0.3
        %v1641 = vmul.f32 %v1610, 0.3
        %v1642 = vmul.f32 %v1633, 0.3
        %v1643 = vsel %vm1635, %v1607, %v1639
        %v1644 = vsel %vm1636, %v1630, %v1640
        %v1645 = vsel %vm1637, %v1610, %v1641
        %v1646 = vsel %vm1638, %v1633, %v1642
        %v1647 = vld [vmem:[%s9] sm:$0x1]
        %v1648 = vld [vmem:[#allocation3] sm:$0x1]
        %1650 = vset.pattern.permute.xlu0 0
        %1651 = vperm.xlu0 %1650, %v1648
        %v1652 = vpop.permute.xlu0 %1651
        %v1654 = vperm.slane %v1652, 0
        %vm1655 = vcmask 80896
        %v1657 = vsel %vm1655, %v1647, 0
        %vm1659 = vcmask 1041408
        %v1661 = vsel %vm1659, %v1645, 0
        %v1664 = vsel %vm1659, %v1646, 0
        %1666 = vmatpush.msra.mxu0 0.0
        %1667 = vmatpush.msra.mxu0 0.0
        %1668 = vmatpush.msra.mxu0 0.0
        %1669 = vmatpush.msra.mxu0 0.0
        %1670 = vmatpush.msra.mxu0 0.0
        %1671 = vmatpush.msra.mxu0 0.0
        %1672 = vmatpush.msra.mxu0 0.0
        %1673 = vmatpush.msra.mxu0 0.0
        %1674 = vmatpush.msra.mxu0 0.0
        %1675 = vmatpush.msra.mxu0 0.0
        %1676 = vmatpush.msra.mxu0 0.0
        %1677 = vmatpush.msra.mxu0 0.0
        %1678 = vmatpush.msra.mxu0 0.0
        %1679 = vmatpush.msra.mxu0 0.0
        %1680 = vmatpush.msra.mxu0 %v1661
        %1681 = vmatpush.msra.mxu0 %v1643
        %1682 = vmatmul.f32.gmra.mxu0 %v1657
        %v1683 = vpop.f32.mrf.mxu0
        %v1684 = vadd.f32 %v1654, %v1683
        %1685 = vdwg.mxu0
        %1686 = vmatpush.msra.mxu0 0.0
        %1687 = vmatpush.msra.mxu0 0.0
        %1688 = vmatpush.msra.mxu0 0.0
        %1689 = vmatpush.msra.mxu0 0.0
        %1690 = vmatpush.msra.mxu0 0.0
        %1691 = vmatpush.msra.mxu0 0.0
        %1692 = vmatpush.msra.mxu0 0.0
        %1693 = vmatpush.msra.mxu0 0.0
        %1694 = vmatpush.msra.mxu0 0.0
        %1695 = vmatpush.msra.mxu0 0.0
        %1696 = vmatpush.msra.mxu0 0.0
        %1697 = vmatpush.msra.mxu0 0.0
        %1698 = vmatpush.msra.mxu0 0.0
        %1699 = vmatpush.msra.mxu0 0.0
        %1700 = vmatpush.msra.mxu0 %v1664
        %1701 = vmatpush.msra.mxu0 %v1644
        %1702 = vmatmul.f32.gmra.mxu0 %v1657
        %v1703 = vpop.f32.mrf.mxu0
        %v1704 = vadd.f32 %v1654, %v1703
        %1705 = vdwg.mxu0
        %vm1706 = vcmp.ge.f32.partialorder %v1684, 0.0
        %vm1707 = vcmp.ge.f32.partialorder %v1704, 0.0
        %v1708 = vmul.f32 %v1684, 0.3
        %v1709 = vmul.f32 %v1704, 0.3
        %v1710 = vsel %vm1706, %v1684, %v1708
        %v1711 = vsel %vm1707, %v1704, %v1709
        %v1712 = vld [vmem:[#allocation4] sm:$0x1]
        %1714 = vset.pattern.permute.xlu0 0
        %1715 = vperm.xlu0 %1714, %v1712
        %v1716 = vpop.permute.xlu0 %1715
        %v1718 = vperm.slane %v1716, 0
        %v1719 = vmul.f32 %v1718, %v1710
        %v1720 = vmul.f32 %v1718, %v1711
        %v1721 = vld [vmem:[#allocation5] sm:$0x1]
        %1723 = vset.pattern.permute.xlu0 0
        %1724 = vperm.xlu0 %1723, %v1721
        %v1725 = vpop.permute.xlu0 %1724
        %v1727 = vperm.slane %v1725, 0
        %v1728 = vadd.f32 %v1719, %v1727
        %v1729 = vadd.f32 %v1720, %v1727
        %vm1730 = vcmp.ge.f32.partialorder %v1728, 0.0
        %vm1731 = vcmp.ge.f32.partialorder %v1729, 0.0
        %v1732 = vmul.f32 %v1728, 0.3
        %v1733 = vmul.f32 %v1729, 0.3
        %v1734 = vsel %vm1730, %v1728, %v1732
        %v1735 = vsel %vm1731, %v1729, %v1733
        %v1736 = vld [vmem:[%s13] sm:$0xff]
        %v1737 = vld [vmem:[%s13 + $0x8] sm:$0xff]
        %v1738 = vld [vmem:[%s13 + $0x10] sm:$0xff]
        %v1739 = vld [vmem:[%s13 + $0x18] sm:$0xff]
        %v1740 = vld [vmem:[%s13 + $0x20] sm:$0xff]
        %v1741 = vld [vmem:[%s13 + $0x28] sm:$0xff]
        %v1742 = vld [vmem:[%s13 + $0x30] sm:$0xff]
        %v1743 = vld [vmem:[%s13 + $0x38] sm:$0xff]
        %v1744 = vld [vmem:[%s13 + $0x40] sm:$0xff]
        %v1745 = vld [vmem:[%s13 + $0x48] sm:$0xff]
        %v1746 = vld [vmem:[%s13 + $0x50] sm:$0xff]
        %v1747 = vld [vmem:[%s13 + $0x58] sm:$0xff]
        %v1748 = vld [vmem:[%s13 + $0x60] sm:$0xff]
        %v1749 = vld [vmem:[%s13 + $0x68] sm:$0xff]
        %v1750 = vld [vmem:[%s13 + $0x70] sm:$0xff]
        %v1751 = vld [vmem:[%s13 + $0x78] sm:$0xff]
        %v1752 = vld [vmem:[%s13 + $0x80] sm:$0xff]
        %v1753 = vld [vmem:[%s13 + $0x88] sm:$0xff]
        %v1754 = vld [vmem:[%s13 + $0x90] sm:$0xff]
        %v1755 = vld [vmem:[%s13 + $0x98] sm:$0xff]
        %v1756 = vld [vmem:[%s13 + $0xa0] sm:$0xff]
        %v1757 = vld [vmem:[%s13 + $0xa8] sm:$0xff]
        %v1758 = vld [vmem:[%s13 + $0xb0] sm:$0xff]
        %v1759 = vld [vmem:[%s13 + $0xb8] sm:$0xff]
        %v1760 = vld [vmem:[%s13 + $0xc0] sm:$0xff]
        %v1761 = vld [vmem:[%s13 + $0xc8] sm:$0xff]
        %v1762 = vld [vmem:[%s13 + $0xd0] sm:$0xff]
        %vm1763 = vcmask 719872
        %v1765 = vsel %vm1763, %v1735, 0
        %1767 = vmatpush.msra.mxu0 %v1751
        %1768 = vmatpush.msra.mxu0 %v1750
        %1769 = vmatpush.msra.mxu0 %v1749
        %1770 = vmatpush.msra.mxu0 %v1748
        %1771 = vmatpush.msra.mxu0 %v1747
        %1772 = vmatpush.msra.mxu0 %v1746
        %1773 = vmatpush.msra.mxu0 %v1745
        %1774 = vmatpush.msra.mxu0 %v1744
        %1775 = vmatpush.msra.mxu0 %v1743
        %1776 = vmatpush.msra.mxu0 %v1742
        %1777 = vmatpush.msra.mxu0 %v1741
        %1778 = vmatpush.msra.mxu0 %v1740
        %1779 = vmatpush.msra.mxu0 %v1739
        %1780 = vmatpush.msra.mxu0 %v1738
        %1781 = vmatpush.msra.mxu0 %v1737
        %1782 = vmatpush.msra.mxu0 %v1736
        %1783 = vmatmul.f32.gmra.mxu0 %v1734
        %v1784 = vpop.f32.mrf.mxu0
        %v1785 = vadd.f32 0.0, %v1784
        %1786 = vdwg.mxu0
        %1787 = vmatpush.msra.mxu0 0.0
        %1788 = vmatpush.msra.mxu0 0.0
        %1789 = vmatpush.msra.mxu0 0.0
        %1790 = vmatpush.msra.mxu0 0.0
        %1791 = vmatpush.msra.mxu0 0.0
        %1792 = vmatpush.msra.mxu0 %v1762
        %1793 = vmatpush.msra.mxu0 %v1761
        %1794 = vmatpush.msra.mxu0 %v1760
        %1795 = vmatpush.msra.mxu0 %v1759
        %1796 = vmatpush.msra.mxu0 %v1758
        %1797 = vmatpush.msra.mxu0 %v1757
        %1798 = vmatpush.msra.mxu0 %v1756
        %1799 = vmatpush.msra.mxu0 %v1755
        %1800 = vmatpush.msra.mxu0 %v1754
        %1801 = vmatpush.msra.mxu0 %v1753
        %1802 = vmatpush.msra.mxu0 %v1752
        %1803 = vmatmul.f32.gmra.mxu0 %v1765
        %v1804 = vpop.f32.mrf.mxu0
        %v1805 = vadd.f32 %v1785, %v1804
        %1806 = vdwg.mxu0
        %v1807 = vsel %vm486, %v1805, -inf
        %1808 = vmax.xlane.f32.xlu0 %v1807
        %v1809 = vpop.xlane.xlu0 %1808
        %v1810 = vsub.f32 %v1805, %v1809
        %v1811 = vmul.f32 %v1810, 1.442695
        %v1812 = vpow.pop %v1811
        %v1813 = vsel %vm486, %v1812, 0.0
        %1814 = vadd.xlane.f32.xlu0 %v1813
        %v1815 = vpop.xlane.xlu0 %1814
        %v1816 = vrcp.pop %v1815
        %v1817 = vmul.f32 %v1815, %v1816
        %v1818 = vsub.f32 1.0, %v1817
        %v1819 = vmul.f32 %v1816, %v1818
        %v1820 = vadd.f32 %v1816, %v1819
        %vm1821 = vweird.f32 %v1815
        %vm1822 = vweird.f32 %v1816
        %vm1823 = vmor %vm1821, %vm1822
        %v1824 = vsel %vm1823, %v1816, %v1820
        %v1825 = vand.u32 2147483647, %v1815
        %vm1826 = vcmp.eq.f32.partialorder %v1825, 8.507059e+37
        %v1827 = vand.u32 %v1815, 2147483648
        %v1828 = vor.u32 1.1754944e-38, %v1827
        %v1829 = vsel %vm1826, %v1828, %v1824
        %v1830 = vmul.f32 %v1812, %v1829
        %1831 = vst [vmem:[%s467] sm:$0x1] %v1830
        %s1832 = scalar_lea.vmem %s472, 2
        %v1833 = vld [vmem:[%s1832] sm:$0x3]
        %v1835 = vperm.slane %v1833, 0
        %v1836 = vperm.slane %v1833, 1
        %v1839 = vsel %vm486, %v1835, 0.0
        %v1840 = vsel %vm488, %v1836, 0.0
        %v1841 = vadd.f32 %v1839, %v1840
        %1842 = vadd.xlane.f32.xlu0 %v1841
        %v1843 = vpop.xlane.xlu0 %1842
        %v1844 = vadd.f32 %v1843, 0.0
        %v1845 = vmul.f32 %v1844, %v500
        %v1847 = vperm.slane %v1845, 0
        %v1849 = vsub.f32 %v1833, %v1847
        %v1850 = vmul.f32 %v1849, %v1849
        %v1852 = vperm.slane %v1850, 0
        %v1853 = vperm.slane %v1850, 1
        %v1856 = vsel %vm486, %v1852, 0.0
        %v1857 = vsel %vm488, %v1853, 0.0
        %v1858 = vadd.f32 %v1856, %v1857
        %1859 = vadd.xlane.f32.xlu0 %v1858
        %v1860 = vpop.xlane.xlu0 %1859
        %v1861 = vadd.f32 %v1860, 0.0
        %v1862 = vmul.f32 %v1861, %v500
        %v1863 = vadd.f32 %v1862, 1e-05
        %v1864 = vrsqrt.pop %v1863
        %v1865 = vmul.f32 %v1864, %v1863
        %v1866 = vmul.f32 %v1865, %v1864
        %v1867 = vmul.f32 0.5, %v1866
        %v1868 = vsub.f32 1.5, %v1867
        %v1869 = vmul.f32 %v1864, %v1868
        %vm1870 = vweird.f32 %v1863
        %vm1871 = vweird.f32 %v1864
        %vm1872 = vmor %vm1870, %vm1871
        %v1873 = vsel %vm1872, %v1864, %v1869
        %v1874 = vld [vmem:[%s1] sm:$0x3]
        %v1876 = vperm.slane %v1874, 0
        %v1877 = vperm.slane %v1874, 1
        %v1880 = vmul.f32 %v1873, %v1876
        %v1881 = vmul.f32 %v1873, %v1877
        %v1884 = vrot.slane %v1881, 7
        %v1885 = vsel %vm486, %v1880, %v1884
        %v1887 = vmul.f32 %v1849, %v1885
        %v1888 = vld [vmem:[%s2] sm:$0x3]
        %v1889 = vadd.f32 %v1887, %v1888
        %1891 = vrot.lane.b32.xlu0 %v1889, 7
        %v1892 = vpop.permute.xlu0 %1891
        %v1893 = vrot.slane %v1892, 7
        %v1894 = vsel %vm550, %v1893, %v1892
        %1896 = vst.msk [vmem:[#allocation2] sm:$0x3] %vm555, %v1894
        %v1897 = vld [vmem:[#allocation2] sm:$0x3]
        %v1898 = vld [vmem:[%s3] sm:$0xff]
        %v1899 = vld [vmem:[%s3 + $0x8] sm:$0xff]
        %v1900 = vld [vmem:[%s3 + $0x10] sm:$0xf]
        %1902 = vset.pattern.permute.xlu0 0
        %1903 = vperm.xlu0 %1902, %v1898
        %v1904 = vpop.permute.xlu0 %1903
        %1907 = vset.pattern.permute.xlu0 0
        %1908 = vperm.xlu0 %1907, %v1899
        %v1909 = vpop.permute.xlu0 %1908
        %1912 = vset.pattern.permute.xlu0 0
        %1913 = vperm.xlu0 %1912, %v1900
        %v1914 = vpop.permute.xlu0 %1913
        %v1917 = vperm.slane %v1897, 0
        %v1918 = vperm.slane %v1897, 1
        %v1921 = vmul.f32 %v1904, %v1917
        %v1922 = vmul.f32 %v1904, %v1918
        %v1923 = vmul.f32 %v1909, %v1917
        %v1924 = vmul.f32 %v1909, %v1918
        %v1925 = vmul.f32 %v1914, %v1917
        %v1926 = vmul.f32 %v1914, %v1918
        %v1927 = vld [vmem:[%s587] sm:$0xff]
        %v1928 = vld [vmem:[%s587 + $0x8] sm:$0xff]
        %v1929 = vld [vmem:[%s587 + $0x10] sm:$0xf]
        %1931 = vset.pattern.permute.xlu0 0
        %1932 = vperm.xlu0 %1931, %v1927
        %v1933 = vpop.permute.xlu0 %1932
        %1936 = vset.pattern.permute.xlu0 0
        %1937 = vperm.xlu0 %1936, %v1928
        %v1938 = vpop.permute.xlu0 %1937
        %1941 = vset.pattern.permute.xlu0 0
        %1942 = vperm.xlu0 %1941, %v1929
        %v1943 = vpop.permute.xlu0 %1942
        %v1945 = vmul.f32 %v1933, %v1917
        %v1946 = vmul.f32 %v1933, %v1918
        %v1947 = vmul.f32 %v1938, %v1917
        %v1948 = vmul.f32 %v1938, %v1918
        %v1949 = vmul.f32 %v1943, %v1917
        %v1950 = vmul.f32 %v1943, %v1918
        %1957 = vrot.lane.b32.xlu0 %v1945, 127
        %v1958 = vpop.permute.xlu0 %1957
        %1959 = vrot.lane.b32.xlu0 %v1946, 127
        %v1960 = vpop.permute.xlu0 %1959
        %1961 = vrot.lane.b32.xlu0 %v1947, 127
        %v1962 = vpop.permute.xlu0 %1961
        %1963 = vrot.lane.b32.xlu0 %v1948, 127
        %v1964 = vpop.permute.xlu0 %1963
        %1965 = vrot.lane.b32.xlu0 %v1949, 127
        %v1966 = vpop.permute.xlu0 %1965
        %1967 = vrot.lane.b32.xlu0 %v1950, 127
        %v1968 = vpop.permute.xlu0 %1967
        %v1969 = vsel %vm630, %v1958, %v1960
        %v1970 = vsel %vm630, %v1962, %v1964
        %v1971 = vsel %vm630, %v1966, %v1968
        %v1978 = vadd.f32 %v1921, %v1969
        %v1979 = vadd.f32 %v1922, %v1960
        %v1980 = vadd.f32 %v1923, %v1970
        %v1981 = vadd.f32 %v1924, %v1964
        %v1982 = vadd.f32 %v1925, %v1971
        %v1983 = vadd.f32 %v1926, %v1968
        %v1984 = vld [vmem:[%s646] sm:$0xff]
        %v1985 = vld [vmem:[%s646 + $0x8] sm:$0xff]
        %v1986 = vld [vmem:[%s646 + $0x10] sm:$0xf]
        %1988 = vset.pattern.permute.xlu0 0
        %1989 = vperm.xlu0 %1988, %v1984
        %v1990 = vpop.permute.xlu0 %1989
        %1993 = vset.pattern.permute.xlu0 0
        %1994 = vperm.xlu0 %1993, %v1985
        %v1995 = vpop.permute.xlu0 %1994
        %1998 = vset.pattern.permute.xlu0 0
        %1999 = vperm.xlu0 %1998, %v1986
        %v2000 = vpop.permute.xlu0 %1999
        %v2002 = vmul.f32 %v1990, %v1917
        %v2003 = vmul.f32 %v1990, %v1918
        %v2004 = vmul.f32 %v1995, %v1917
        %v2005 = vmul.f32 %v1995, %v1918
        %v2006 = vmul.f32 %v2000, %v1917
        %v2007 = vmul.f32 %v2000, %v1918
        %2014 = vrot.lane.b32.xlu0 %v2002, 126
        %v2015 = vpop.permute.xlu0 %2014
        %2016 = vrot.lane.b32.xlu0 %v2003, 126
        %v2017 = vpop.permute.xlu0 %2016
        %2018 = vrot.lane.b32.xlu0 %v2004, 126
        %v2019 = vpop.permute.xlu0 %2018
        %2020 = vrot.lane.b32.xlu0 %v2005, 126
        %v2021 = vpop.permute.xlu0 %2020
        %2022 = vrot.lane.b32.xlu0 %v2006, 126
        %v2023 = vpop.permute.xlu0 %2022
        %2024 = vrot.lane.b32.xlu0 %v2007, 126
        %v2025 = vpop.permute.xlu0 %2024
        %v2026 = vsel %vm689, %v2015, %v2017
        %v2027 = vsel %vm689, %v2019, %v2021
        %v2028 = vsel %vm689, %v2023, %v2025
        %v2035 = vadd.f32 %v1978, %v2026
        %v2036 = vadd.f32 %v1979, %v2017
        %v2037 = vadd.f32 %v1980, %v2027
        %v2038 = vadd.f32 %v1981, %v2021
        %v2039 = vadd.f32 %v1982, %v2028
        %v2040 = vadd.f32 %v1983, %v2025
        %v2041 = vld [vmem:[%s705] sm:$0xff]
        %v2042 = vld [vmem:[%s705 + $0x8] sm:$0xff]
        %v2043 = vld [vmem:[%s705 + $0x10] sm:$0xf]
        %2045 = vset.pattern.permute.xlu0 0
        %2046 = vperm.xlu0 %2045, %v2041
        %v2047 = vpop.permute.xlu0 %2046
        %2050 = vset.pattern.permute.xlu0 0
        %2051 = vperm.xlu0 %2050, %v2042
        %v2052 = vpop.permute.xlu0 %2051
        %2055 = vset.pattern.permute.xlu0 0
        %2056 = vperm.xlu0 %2055, %v2043
        %v2057 = vpop.permute.xlu0 %2056
        %v2059 = vmul.f32 %v2047, %v1917
        %v2060 = vmul.f32 %v2047, %v1918
        %v2061 = vmul.f32 %v2052, %v1917
        %v2062 = vmul.f32 %v2052, %v1918
        %v2063 = vmul.f32 %v2057, %v1917
        %v2064 = vmul.f32 %v2057, %v1918
        %2071 = vrot.lane.b32.xlu0 %v2059, 125
        %v2072 = vpop.permute.xlu0 %2071
        %2073 = vrot.lane.b32.xlu0 %v2060, 125
        %v2074 = vpop.permute.xlu0 %2073
        %2075 = vrot.lane.b32.xlu0 %v2061, 125
        %v2076 = vpop.permute.xlu0 %2075
        %2077 = vrot.lane.b32.xlu0 %v2062, 125
        %v2078 = vpop.permute.xlu0 %2077
        %2079 = vrot.lane.b32.xlu0 %v2063, 125
        %v2080 = vpop.permute.xlu0 %2079
        %2081 = vrot.lane.b32.xlu0 %v2064, 125
        %v2082 = vpop.permute.xlu0 %2081
        %v2083 = vsel %vm748, %v2072, %v2074
        %v2084 = vsel %vm748, %v2076, %v2078
        %v2085 = vsel %vm748, %v2080, %v2082
        %v2092 = vadd.f32 %v2035, %v2083
        %v2093 = vadd.f32 %v2036, %v2074
        %v2094 = vadd.f32 %v2037, %v2084
        %v2095 = vadd.f32 %v2038, %v2078
        %v2096 = vadd.f32 %v2039, %v2085
        %v2097 = vadd.f32 %v2040, %v2082
        %v2098 = vld [vmem:[%s764] sm:$0xff]
        %v2099 = vld [vmem:[%s764 + $0x8] sm:$0xff]
        %v2100 = vld [vmem:[%s764 + $0x10] sm:$0xf]
        %2102 = vset.pattern.permute.xlu0 0
        %2103 = vperm.xlu0 %2102, %v2098
        %v2104 = vpop.permute.xlu0 %2103
        %2107 = vset.pattern.permute.xlu0 0
        %2108 = vperm.xlu0 %2107, %v2099
        %v2109 = vpop.permute.xlu0 %2108
        %2112 = vset.pattern.permute.xlu0 0
        %2113 = vperm.xlu0 %2112, %v2100
        %v2114 = vpop.permute.xlu0 %2113
        %v2116 = vmul.f32 %v2104, %v1917
        %v2117 = vmul.f32 %v2104, %v1918
        %v2118 = vmul.f32 %v2109, %v1917
        %v2119 = vmul.f32 %v2109, %v1918
        %v2120 = vmul.f32 %v2114, %v1917
        %v2121 = vmul.f32 %v2114, %v1918
        %2128 = vrot.lane.b32.xlu0 %v2116, 124
        %v2129 = vpop.permute.xlu0 %2128
        %2130 = vrot.lane.b32.xlu0 %v2117, 124
        %v2131 = vpop.permute.xlu0 %2130
        %2132 = vrot.lane.b32.xlu0 %v2118, 124
        %v2133 = vpop.permute.xlu0 %2132
        %2134 = vrot.lane.b32.xlu0 %v2119, 124
        %v2135 = vpop.permute.xlu0 %2134
        %2136 = vrot.lane.b32.xlu0 %v2120, 124
        %v2137 = vpop.permute.xlu0 %2136
        %2138 = vrot.lane.b32.xlu0 %v2121, 124
        %v2139 = vpop.permute.xlu0 %2138
        %v2140 = vsel %vm807, %v2129, %v2131
        %v2141 = vsel %vm807, %v2133, %v2135
        %v2142 = vsel %vm807, %v2137, %v2139
        %v2149 = vadd.f32 %v2092, %v2140
        %v2150 = vadd.f32 %v2093, %v2131
        %v2151 = vadd.f32 %v2094, %v2141
        %v2152 = vadd.f32 %v2095, %v2135
        %v2153 = vadd.f32 %v2096, %v2142
        %v2154 = vadd.f32 %v2097, %v2139
        %v2155 = vld [vmem:[%s823] sm:$0xff]
        %v2156 = vld [vmem:[%s823 + $0x8] sm:$0xff]
        %v2157 = vld [vmem:[%s823 + $0x10] sm:$0xf]
        %2159 = vset.pattern.permute.xlu0 0
        %2160 = vperm.xlu0 %2159, %v2155
        %v2161 = vpop.permute.xlu0 %2160
        %2164 = vset.pattern.permute.xlu0 0
        %2165 = vperm.xlu0 %2164, %v2156
        %v2166 = vpop.permute.xlu0 %2165
        %2169 = vset.pattern.permute.xlu0 0
        %2170 = vperm.xlu0 %2169, %v2157
        %v2171 = vpop.permute.xlu0 %2170
        %v2173 = vmul.f32 %v2161, %v1917
        %v2174 = vmul.f32 %v2161, %v1918
        %v2175 = vmul.f32 %v2166, %v1917
        %v2176 = vmul.f32 %v2166, %v1918
        %v2177 = vmul.f32 %v2171, %v1917
        %v2178 = vmul.f32 %v2171, %v1918
        %2185 = vrot.lane.b32.xlu0 %v2173, 123
        %v2186 = vpop.permute.xlu0 %2185
        %2187 = vrot.lane.b32.xlu0 %v2174, 123
        %v2188 = vpop.permute.xlu0 %2187
        %2189 = vrot.lane.b32.xlu0 %v2175, 123
        %v2190 = vpop.permute.xlu0 %2189
        %2191 = vrot.lane.b32.xlu0 %v2176, 123
        %v2192 = vpop.permute.xlu0 %2191
        %2193 = vrot.lane.b32.xlu0 %v2177, 123
        %v2194 = vpop.permute.xlu0 %2193
        %2195 = vrot.lane.b32.xlu0 %v2178, 123
        %v2196 = vpop.permute.xlu0 %2195
        %v2197 = vsel %vm866, %v2186, %v2188
        %v2198 = vsel %vm866, %v2190, %v2192
        %v2199 = vsel %vm866, %v2194, %v2196
        %v2206 = vadd.f32 %v2149, %v2197
        %v2207 = vadd.f32 %v2150, %v2188
        %v2208 = vadd.f32 %v2151, %v2198
        %v2209 = vadd.f32 %v2152, %v2192
        %v2210 = vadd.f32 %v2153, %v2199
        %v2211 = vadd.f32 %v2154, %v2196
        %v2212 = vld [vmem:[%s882] sm:$0xff]
        %v2213 = vld [vmem:[%s882 + $0x8] sm:$0xff]
        %v2214 = vld [vmem:[%s882 + $0x10] sm:$0xf]
        %2216 = vset.pattern.permute.xlu0 0
        %2217 = vperm.xlu0 %2216, %v2212
        %v2218 = vpop.permute.xlu0 %2217
        %2221 = vset.pattern.permute.xlu0 0
        %2222 = vperm.xlu0 %2221, %v2213
        %v2223 = vpop.permute.xlu0 %2222
        %2226 = vset.pattern.permute.xlu0 0
        %2227 = vperm.xlu0 %2226, %v2214
        %v2228 = vpop.permute.xlu0 %2227
        %v2230 = vmul.f32 %v2218, %v1917
        %v2231 = vmul.f32 %v2218, %v1918
        %v2232 = vmul.f32 %v2223, %v1917
        %v2233 = vmul.f32 %v2223, %v1918
        %v2234 = vmul.f32 %v2228, %v1917
        %v2235 = vmul.f32 %v2228, %v1918
        %2242 = vrot.lane.b32.xlu0 %v2230, 122
        %v2243 = vpop.permute.xlu0 %2242
        %2244 = vrot.lane.b32.xlu0 %v2231, 122
        %v2245 = vpop.permute.xlu0 %2244
        %2246 = vrot.lane.b32.xlu0 %v2232, 122
        %v2247 = vpop.permute.xlu0 %2246
        %2248 = vrot.lane.b32.xlu0 %v2233, 122
        %v2249 = vpop.permute.xlu0 %2248
        %2250 = vrot.lane.b32.xlu0 %v2234, 122
        %v2251 = vpop.permute.xlu0 %2250
        %2252 = vrot.lane.b32.xlu0 %v2235, 122
        %v2253 = vpop.permute.xlu0 %2252
        %v2254 = vsel %vm925, %v2243, %v2245
        %v2255 = vsel %vm925, %v2247, %v2249
        %v2256 = vsel %vm925, %v2251, %v2253
        %v2263 = vadd.f32 %v2206, %v2254
        %v2264 = vadd.f32 %v2207, %v2245
        %v2265 = vadd.f32 %v2208, %v2255
        %v2266 = vadd.f32 %v2209, %v2249
        %v2267 = vadd.f32 %v2210, %v2256
        %v2268 = vadd.f32 %v2211, %v2253
        %v2269 = vld [vmem:[%s941] sm:$0xff]
        %v2270 = vld [vmem:[%s941 + $0x8] sm:$0xff]
        %v2271 = vld [vmem:[%s941 + $0x10] sm:$0xf]
        %2273 = vset.pattern.permute.xlu0 0
        %2274 = vperm.xlu0 %2273, %v2269
        %v2275 = vpop.permute.xlu0 %2274
        %2278 = vset.pattern.permute.xlu0 0
        %2279 = vperm.xlu0 %2278, %v2270
        %v2280 = vpop.permute.xlu0 %2279
        %2283 = vset.pattern.permute.xlu0 0
        %2284 = vperm.xlu0 %2283, %v2271
        %v2285 = vpop.permute.xlu0 %2284
        %v2287 = vmul.f32 %v2275, %v1917
        %v2288 = vmul.f32 %v2275, %v1918
        %v2289 = vmul.f32 %v2280, %v1917
        %v2290 = vmul.f32 %v2280, %v1918
        %v2291 = vmul.f32 %v2285, %v1917
        %v2292 = vmul.f32 %v2285, %v1918
        %2299 = vrot.lane.b32.xlu0 %v2287, 121
        %v2300 = vpop.permute.xlu0 %2299
        %2301 = vrot.lane.b32.xlu0 %v2288, 121
        %v2302 = vpop.permute.xlu0 %2301
        %2303 = vrot.lane.b32.xlu0 %v2289, 121
        %v2304 = vpop.permute.xlu0 %2303
        %2305 = vrot.lane.b32.xlu0 %v2290, 121
        %v2306 = vpop.permute.xlu0 %2305
        %2307 = vrot.lane.b32.xlu0 %v2291, 121
        %v2308 = vpop.permute.xlu0 %2307
        %2309 = vrot.lane.b32.xlu0 %v2292, 121
        %v2310 = vpop.permute.xlu0 %2309
        %v2311 = vsel %vm984, %v2300, %v2302
        %v2312 = vsel %vm984, %v2304, %v2306
        %v2313 = vsel %vm984, %v2308, %v2310
        %v2320 = vadd.f32 %v2263, %v2311
        %v2321 = vadd.f32 %v2264, %v2302
        %v2322 = vadd.f32 %v2265, %v2312
        %v2323 = vadd.f32 %v2266, %v2306
        %v2324 = vadd.f32 %v2267, %v2313
        %v2325 = vadd.f32 %v2268, %v2310
        %v2326 = vld [vmem:[%s1000] sm:$0xff]
        %v2327 = vld [vmem:[%s1000 + $0x8] sm:$0xff]
        %v2328 = vld [vmem:[%s1000 + $0x10] sm:$0xf]
        %2330 = vset.pattern.permute.xlu0 0
        %2331 = vperm.xlu0 %2330, %v2326
        %v2332 = vpop.permute.xlu0 %2331
        %2335 = vset.pattern.permute.xlu0 0
        %2336 = vperm.xlu0 %2335, %v2327
        %v2337 = vpop.permute.xlu0 %2336
        %2340 = vset.pattern.permute.xlu0 0
        %2341 = vperm.xlu0 %2340, %v2328
        %v2342 = vpop.permute.xlu0 %2341
        %v2344 = vmul.f32 %v2332, %v1917
        %v2345 = vmul.f32 %v2332, %v1918
        %v2346 = vmul.f32 %v2337, %v1917
        %v2347 = vmul.f32 %v2337, %v1918
        %v2348 = vmul.f32 %v2342, %v1917
        %v2349 = vmul.f32 %v2342, %v1918
        %2356 = vrot.lane.b32.xlu0 %v2344, 120
        %v2357 = vpop.permute.xlu0 %2356
        %2358 = vrot.lane.b32.xlu0 %v2345, 120
        %v2359 = vpop.permute.xlu0 %2358
        %2360 = vrot.lane.b32.xlu0 %v2346, 120
        %v2361 = vpop.permute.xlu0 %2360
        %2362 = vrot.lane.b32.xlu0 %v2347, 120
        %v2363 = vpop.permute.xlu0 %2362
        %2364 = vrot.lane.b32.xlu0 %v2348, 120
        %v2365 = vpop.permute.xlu0 %2364
        %2366 = vrot.lane.b32.xlu0 %v2349, 120
        %v2367 = vpop.permute.xlu0 %2366
        %v2368 = vsel %vm1043, %v2357, %v2359
        %v2369 = vsel %vm1043, %v2361, %v2363
        %v2370 = vsel %vm1043, %v2365, %v2367
        %v2377 = vadd.f32 %v2320, %v2368
        %v2378 = vadd.f32 %v2321, %v2359
        %v2379 = vadd.f32 %v2322, %v2369
        %v2380 = vadd.f32 %v2323, %v2363
        %v2381 = vadd.f32 %v2324, %v2370
        %v2382 = vadd.f32 %v2325, %v2367
        %v2383 = vld [vmem:[%s1059] sm:$0xff]
        %v2384 = vld [vmem:[%s1059 + $0x8] sm:$0xff]
        %v2385 = vld [vmem:[%s1059 + $0x10] sm:$0xf]
        %2387 = vset.pattern.permute.xlu0 0
        %2388 = vperm.xlu0 %2387, %v2383
        %v2389 = vpop.permute.xlu0 %2388
        %2392 = vset.pattern.permute.xlu0 0
        %2393 = vperm.xlu0 %2392, %v2384
        %v2394 = vpop.permute.xlu0 %2393
        %2397 = vset.pattern.permute.xlu0 0
        %2398 = vperm.xlu0 %2397, %v2385
        %v2399 = vpop.permute.xlu0 %2398
        %v2401 = vmul.f32 %v2389, %v1917
        %v2402 = vmul.f32 %v2389, %v1918
        %v2403 = vmul.f32 %v2394, %v1917
        %v2404 = vmul.f32 %v2394, %v1918
        %v2405 = vmul.f32 %v2399, %v1917
        %v2406 = vmul.f32 %v2399, %v1918
        %2413 = vrot.lane.b32.xlu0 %v2401, 119
        %v2414 = vpop.permute.xlu0 %2413
        %2415 = vrot.lane.b32.xlu0 %v2402, 119
        %v2416 = vpop.permute.xlu0 %2415
        %2417 = vrot.lane.b32.xlu0 %v2403, 119
        %v2418 = vpop.permute.xlu0 %2417
        %2419 = vrot.lane.b32.xlu0 %v2404, 119
        %v2420 = vpop.permute.xlu0 %2419
        %2421 = vrot.lane.b32.xlu0 %v2405, 119
        %v2422 = vpop.permute.xlu0 %2421
        %2423 = vrot.lane.b32.xlu0 %v2406, 119
        %v2424 = vpop.permute.xlu0 %2423
        %v2425 = vsel %vm1102, %v2414, %v2416
        %v2426 = vsel %vm1102, %v2418, %v2420
        %v2427 = vsel %vm1102, %v2422, %v2424
        %v2434 = vadd.f32 %v2377, %v2425
        %v2435 = vadd.f32 %v2378, %v2416
        %v2436 = vadd.f32 %v2379, %v2426
        %v2437 = vadd.f32 %v2380, %v2420
        %v2438 = vadd.f32 %v2381, %v2427
        %v2439 = vadd.f32 %v2382, %v2424
        %v2440 = vld [vmem:[%s1118] sm:$0xff]
        %v2441 = vld [vmem:[%s1118 + $0x8] sm:$0xff]
        %v2442 = vld [vmem:[%s1118 + $0x10] sm:$0xf]
        %2444 = vset.pattern.permute.xlu0 0
        %2445 = vperm.xlu0 %2444, %v2440
        %v2446 = vpop.permute.xlu0 %2445
        %2449 = vset.pattern.permute.xlu0 0
        %2450 = vperm.xlu0 %2449, %v2441
        %v2451 = vpop.permute.xlu0 %2450
        %2454 = vset.pattern.permute.xlu0 0
        %2455 = vperm.xlu0 %2454, %v2442
        %v2456 = vpop.permute.xlu0 %2455
        %v2458 = vmul.f32 %v2446, %v1917
        %v2459 = vmul.f32 %v2446, %v1918
        %v2460 = vmul.f32 %v2451, %v1917
        %v2461 = vmul.f32 %v2451, %v1918
        %v2462 = vmul.f32 %v2456, %v1917
        %v2463 = vmul.f32 %v2456, %v1918
        %2470 = vrot.lane.b32.xlu0 %v2458, 118
        %v2471 = vpop.permute.xlu0 %2470
        %2472 = vrot.lane.b32.xlu0 %v2459, 118
        %v2473 = vpop.permute.xlu0 %2472
        %2474 = vrot.lane.b32.xlu0 %v2460, 118
        %v2475 = vpop.permute.xlu0 %2474
        %2476 = vrot.lane.b32.xlu0 %v2461, 118
        %v2477 = vpop.permute.xlu0 %2476
        %2478 = vrot.lane.b32.xlu0 %v2462, 118
        %v2479 = vpop.permute.xlu0 %2478
        %2480 = vrot.lane.b32.xlu0 %v2463, 118
        %v2481 = vpop.permute.xlu0 %2480
        %v2482 = vsel %vm1161, %v2471, %v2473
        %v2483 = vsel %vm1161, %v2475, %v2477
        %v2484 = vsel %vm1161, %v2479, %v2481
        %v2491 = vadd.f32 %v2434, %v2482
        %v2492 = vadd.f32 %v2435, %v2473
        %v2493 = vadd.f32 %v2436, %v2483
        %v2494 = vadd.f32 %v2437, %v2477
        %v2495 = vadd.f32 %v2438, %v2484
        %v2496 = vadd.f32 %v2439, %v2481
        %v2497 = vld [vmem:[%s1177] sm:$0xff]
        %v2498 = vld [vmem:[%s1177 + $0x8] sm:$0xff]
        %v2499 = vld [vmem:[%s1177 + $0x10] sm:$0xf]
        %2501 = vset.pattern.permute.xlu0 0
        %2502 = vperm.xlu0 %2501, %v2497
        %v2503 = vpop.permute.xlu0 %2502
        %2506 = vset.pattern.permute.xlu0 0
        %2507 = vperm.xlu0 %2506, %v2498
        %v2508 = vpop.permute.xlu0 %2507
        %2511 = vset.pattern.permute.xlu0 0
        %2512 = vperm.xlu0 %2511, %v2499
        %v2513 = vpop.permute.xlu0 %2512
        %v2515 = vmul.f32 %v2503, %v1917
        %v2516 = vmul.f32 %v2503, %v1918
        %v2517 = vmul.f32 %v2508, %v1917
        %v2518 = vmul.f32 %v2508, %v1918
        %v2519 = vmul.f32 %v2513, %v1917
        %v2520 = vmul.f32 %v2513, %v1918
        %2527 = vrot.lane.b32.xlu0 %v2515, 117
        %v2528 = vpop.permute.xlu0 %2527
        %2529 = vrot.lane.b32.xlu0 %v2516, 117
        %v2530 = vpop.permute.xlu0 %2529
        %2531 = vrot.lane.b32.xlu0 %v2517, 117
        %v2532 = vpop.permute.xlu0 %2531
        %2533 = vrot.lane.b32.xlu0 %v2518, 117
        %v2534 = vpop.permute.xlu0 %2533
        %2535 = vrot.lane.b32.xlu0 %v2519, 117
        %v2536 = vpop.permute.xlu0 %2535
        %2537 = vrot.lane.b32.xlu0 %v2520, 117
        %v2538 = vpop.permute.xlu0 %2537
        %v2539 = vsel %vm1220, %v2528, %v2530
        %v2540 = vsel %vm1220, %v2532, %v2534
        %v2541 = vsel %vm1220, %v2536, %v2538
        %v2548 = vadd.f32 %v2491, %v2539
        %v2549 = vadd.f32 %v2492, %v2530
        %v2550 = vadd.f32 %v2493, %v2540
        %v2551 = vadd.f32 %v2494, %v2534
        %v2552 = vadd.f32 %v2495, %v2541
        %v2553 = vadd.f32 %v2496, %v2538
        %v2554 = vld [vmem:[%s1236] sm:$0xff]
        %v2555 = vld [vmem:[%s1236 + $0x8] sm:$0xff]
        %v2556 = vld [vmem:[%s1236 + $0x10] sm:$0xf]
        %2558 = vset.pattern.permute.xlu0 0
        %2559 = vperm.xlu0 %2558, %v2554
        %v2560 = vpop.permute.xlu0 %2559
        %2563 = vset.pattern.permute.xlu0 0
        %2564 = vperm.xlu0 %2563, %v2555
        %v2565 = vpop.permute.xlu0 %2564
        %2568 = vset.pattern.permute.xlu0 0
        %2569 = vperm.xlu0 %2568, %v2556
        %v2570 = vpop.permute.xlu0 %2569
        %v2572 = vmul.f32 %v2560, %v1917
        %v2573 = vmul.f32 %v2560, %v1918
        %v2574 = vmul.f32 %v2565, %v1917
        %v2575 = vmul.f32 %v2565, %v1918
        %v2576 = vmul.f32 %v2570, %v1917
        %v2577 = vmul.f32 %v2570, %v1918
        %2584 = vrot.lane.b32.xlu0 %v2572, 116
        %v2585 = vpop.permute.xlu0 %2584
        %2586 = vrot.lane.b32.xlu0 %v2573, 116
        %v2587 = vpop.permute.xlu0 %2586
        %2588 = vrot.lane.b32.xlu0 %v2574, 116
        %v2589 = vpop.permute.xlu0 %2588
        %2590 = vrot.lane.b32.xlu0 %v2575, 116
        %v2591 = vpop.permute.xlu0 %2590
        %2592 = vrot.lane.b32.xlu0 %v2576, 116
        %v2593 = vpop.permute.xlu0 %2592
        %2594 = vrot.lane.b32.xlu0 %v2577, 116
        %v2595 = vpop.permute.xlu0 %2594
        %v2596 = vsel %vm1279, %v2585, %v2587
        %v2597 = vsel %vm1279, %v2589, %v2591
        %v2598 = vsel %vm1279, %v2593, %v2595
        %v2605 = vadd.f32 %v2548, %v2596
        %v2606 = vadd.f32 %v2549, %v2587
        %v2607 = vadd.f32 %v2550, %v2597
        %v2608 = vadd.f32 %v2551, %v2591
        %v2609 = vadd.f32 %v2552, %v2598
        %v2610 = vadd.f32 %v2553, %v2595
        %v2611 = vld [vmem:[%s1295] sm:$0xff]
        %v2612 = vld [vmem:[%s1295 + $0x8] sm:$0xff]
        %v2613 = vld [vmem:[%s1295 + $0x10] sm:$0xf]
        %2615 = vset.pattern.permute.xlu0 0
        %2616 = vperm.xlu0 %2615, %v2611
        %v2617 = vpop.permute.xlu0 %2616
        %2620 = vset.pattern.permute.xlu0 0
        %2621 = vperm.xlu0 %2620, %v2612
        %v2622 = vpop.permute.xlu0 %2621
        %2625 = vset.pattern.permute.xlu0 0
        %2626 = vperm.xlu0 %2625, %v2613
        %v2627 = vpop.permute.xlu0 %2626
        %v2629 = vmul.f32 %v2617, %v1917
        %v2630 = vmul.f32 %v2617, %v1918
        %v2631 = vmul.f32 %v2622, %v1917
        %v2632 = vmul.f32 %v2622, %v1918
        %v2633 = vmul.f32 %v2627, %v1917
        %v2634 = vmul.f32 %v2627, %v1918
        %2641 = vrot.lane.b32.xlu0 %v2629, 115
        %v2642 = vpop.permute.xlu0 %2641
        %2643 = vrot.lane.b32.xlu0 %v2630, 115
        %v2644 = vpop.permute.xlu0 %2643
        %2645 = vrot.lane.b32.xlu0 %v2631, 115
        %v2646 = vpop.permute.xlu0 %2645
        %2647 = vrot.lane.b32.xlu0 %v2632, 115
        %v2648 = vpop.permute.xlu0 %2647
        %2649 = vrot.lane.b32.xlu0 %v2633, 115
        %v2650 = vpop.permute.xlu0 %2649
        %2651 = vrot.lane.b32.xlu0 %v2634, 115
        %v2652 = vpop.permute.xlu0 %2651
        %v2653 = vsel %vm1338, %v2642, %v2644
        %v2654 = vsel %vm1338, %v2646, %v2648
        %v2655 = vsel %vm1338, %v2650, %v2652
        %v2662 = vadd.f32 %v2605, %v2653
        %v2663 = vadd.f32 %v2606, %v2644
        %v2664 = vadd.f32 %v2607, %v2654
        %v2665 = vadd.f32 %v2608, %v2648
        %v2666 = vadd.f32 %v2609, %v2655
        %v2667 = vadd.f32 %v2610, %v2652
        %v2668 = vld [vmem:[%s1354] sm:$0xff]
        %v2669 = vld [vmem:[%s1354 + $0x8] sm:$0xff]
        %v2670 = vld [vmem:[%s1354 + $0x10] sm:$0xf]
        %2672 = vset.pattern.permute.xlu0 0
        %2673 = vperm.xlu0 %2672, %v2668
        %v2674 = vpop.permute.xlu0 %2673
        %2677 = vset.pattern.permute.xlu0 0
        %2678 = vperm.xlu0 %2677, %v2669
        %v2679 = vpop.permute.xlu0 %2678
        %2682 = vset.pattern.permute.xlu0 0
        %2683 = vperm.xlu0 %2682, %v2670
        %v2684 = vpop.permute.xlu0 %2683
        %v2686 = vmul.f32 %v2674, %v1917
        %v2687 = vmul.f32 %v2674, %v1918
        %v2688 = vmul.f32 %v2679, %v1917
        %v2689 = vmul.f32 %v2679, %v1918
        %v2690 = vmul.f32 %v2684, %v1917
        %v2691 = vmul.f32 %v2684, %v1918
        %2698 = vrot.lane.b32.xlu0 %v2686, 114
        %v2699 = vpop.permute.xlu0 %2698
        %2700 = vrot.lane.b32.xlu0 %v2687, 114
        %v2701 = vpop.permute.xlu0 %2700
        %2702 = vrot.lane.b32.xlu0 %v2688, 114
        %v2703 = vpop.permute.xlu0 %2702
        %2704 = vrot.lane.b32.xlu0 %v2689, 114
        %v2705 = vpop.permute.xlu0 %2704
        %2706 = vrot.lane.b32.xlu0 %v2690, 114
        %v2707 = vpop.permute.xlu0 %2706
        %2708 = vrot.lane.b32.xlu0 %v2691, 114
        %v2709 = vpop.permute.xlu0 %2708
        %v2710 = vsel %vm1397, %v2699, %v2701
        %v2711 = vsel %vm1397, %v2703, %v2705
        %v2712 = vsel %vm1397, %v2707, %v2709
        %v2719 = vadd.f32 %v2662, %v2710
        %v2720 = vadd.f32 %v2663, %v2701
        %v2721 = vadd.f32 %v2664, %v2711
        %v2722 = vadd.f32 %v2665, %v2705
        %v2723 = vadd.f32 %v2666, %v2712
        %v2724 = vadd.f32 %v2667, %v2709
        %v2725 = vld [vmem:[%s4] sm:$0xff]
        %v2726 = vld [vmem:[%s4 + $0x8] sm:$0xff]
        %v2727 = vld [vmem:[%s4 + $0x10] sm:$0xf]
        %2729 = vset.pattern.permute.xlu0 0
        %2730 = vperm.xlu0 %2729, %v2725
        %v2731 = vpop.permute.xlu0 %2730
        %2734 = vset.pattern.permute.xlu0 0
        %2735 = vperm.xlu0 %2734, %v2726
        %v2736 = vpop.permute.xlu0 %2735
        %2739 = vset.pattern.permute.xlu0 0
        %2740 = vperm.xlu0 %2739, %v2727
        %v2741 = vpop.permute.xlu0 %2740
        %v2743 = vadd.f32 %v2719, %v2731
        %v2744 = vadd.f32 %v2720, %v2731
        %v2745 = vadd.f32 %v2721, %v2736
        %v2746 = vadd.f32 %v2722, %v2736
        %v2747 = vadd.f32 %v2723, %v2741
        %v2748 = vadd.f32 %v2724, %v2741
        %vm2749 = vcmp.ge.f32.partialorder %v2743, 0.0
        %vm2750 = vcmp.ge.f32.partialorder %v2744, 0.0
        %vm2751 = vcmp.ge.f32.partialorder %v2745, 0.0
        %vm2752 = vcmp.ge.f32.partialorder %v2746, 0.0
        %vm2753 = vcmp.ge.f32.partialorder %v2747, 0.0
        %vm2754 = vcmp.ge.f32.partialorder %v2748, 0.0
        %v2755 = vmul.f32 %v2743, 0.3
        %v2756 = vmul.f32 %v2744, 0.3
        %v2757 = vmul.f32 %v2745, 0.3
        %v2758 = vmul.f32 %v2746, 0.3
        %v2759 = vmul.f32 %v2747, 0.3
        %v2760 = vmul.f32 %v2748, 0.3
        %v2761 = vsel %vm2749, %v2743, %v2755
        %v2762 = vsel %vm2750, %v2744, %v2756
        %v2763 = vsel %vm2751, %v2745, %v2757
        %v2764 = vsel %vm2752, %v2746, %v2758
        %v2765 = vsel %vm2753, %v2747, %v2759
        %v2766 = vsel %vm2754, %v2748, %v2760
        %v2767 = vld [vmem:[%s5] sm:$0xff]
        %v2768 = vld [vmem:[%s5 + $0x8] sm:$0xff]
        %v2769 = vld [vmem:[%s5 + $0x10] sm:$0xf]
        %v2770 = vld [vmem:[%s6] sm:$0xff]
        %v2771 = vld [vmem:[%s6 + $0x8] sm:$0xff]
        %v2772 = vld [vmem:[%s6 + $0x10] sm:$0xf]
        %2774 = vset.pattern.permute.xlu0 0
        %2775 = vperm.xlu0 %2774, %v2770
        %v2776 = vpop.permute.xlu0 %2775
        %2779 = vset.pattern.permute.xlu0 0
        %2780 = vperm.xlu0 %2779, %v2771
        %v2781 = vpop.permute.xlu0 %2780
        %2784 = vset.pattern.permute.xlu0 0
        %2785 = vperm.xlu0 %2784, %v2772
        %v2786 = vpop.permute.xlu0 %2785
        %v2789 = vsel %vm1476, %v2767, 0
        %v2792 = vsel %vm1476, %v2768, 0
        %v2795 = vsel %vm1476, %v2769, 0
        %v2798 = vsel %vm1486, %v2765, 0
        %v2801 = vsel %vm1486, %v2766, 0
        %2803 = vmatpush.msra.mxu0 0.0
        %2804 = vmatpush.msra.mxu0 0.0
        %2805 = vmatpush.msra.mxu0 0.0
        %2806 = vmatpush.msra.mxu0 0.0
        %2807 = vmatpush.msra.mxu0 0.0
        %2808 = vmatpush.msra.mxu0 0.0
        %2809 = vmatpush.msra.mxu0 0.0
        %2810 = vmatpush.msra.mxu0 0.0
        %2811 = vmatpush.msra.mxu0 0.0
        %2812 = vmatpush.msra.mxu0 0.0
        %2813 = vmatpush.msra.mxu0 0.0
        %2814 = vmatpush.msra.mxu0 0.0
        %2815 = vmatpush.msra.mxu0 0.0
        %2816 = vmatpush.msra.mxu0 %v2798
        %2817 = vmatpush.msra.mxu0 %v2763
        %2818 = vmatpush.msra.mxu0 %v2761
        %2819 = vmatmul.f32.gmra.mxu0 %v2789
        %v2820 = vpop.f32.mrf.mxu0
        %v2821 = vadd.f32 %v2776, %v2820
        %2822 = vmatmul.f32.gmra.mxu0 %v2792
        %v2823 = vpop.f32.mrf.mxu0
        %v2824 = vadd.f32 %v2781, %v2823
        %2825 = vmatmul.f32.gmra.mxu0 %v2795
        %v2826 = vpop.f32.mrf.mxu0
        %v2827 = vadd.f32 %v2786, %v2826
        %2828 = vdwg.mxu0
        %2829 = vmatpush.msra.mxu0 0.0
        %2830 = vmatpush.msra.mxu0 0.0
        %2831 = vmatpush.msra.mxu0 0.0
        %2832 = vmatpush.msra.mxu0 0.0
        %2833 = vmatpush.msra.mxu0 0.0
        %2834 = vmatpush.msra.mxu0 0.0
        %2835 = vmatpush.msra.mxu0 0.0
        %2836 = vmatpush.msra.mxu0 0.0
        %2837 = vmatpush.msra.mxu0 0.0
        %2838 = vmatpush.msra.mxu0 0.0
        %2839 = vmatpush.msra.mxu0 0.0
        %2840 = vmatpush.msra.mxu0 0.0
        %2841 = vmatpush.msra.mxu0 0.0
        %2842 = vmatpush.msra.mxu0 %v2801
        %2843 = vmatpush.msra.mxu0 %v2764
        %2844 = vmatpush.msra.mxu0 %v2762
        %2845 = vmatmul.f32.gmra.mxu0 %v2789
        %v2846 = vpop.f32.mrf.mxu0
        %v2847 = vadd.f32 %v2776, %v2846
        %2848 = vmatmul.f32.gmra.mxu0 %v2792
        %v2849 = vpop.f32.mrf.mxu0
        %v2850 = vadd.f32 %v2781, %v2849
        %2851 = vmatmul.f32.gmra.mxu0 %v2795
        %v2852 = vpop.f32.mrf.mxu0
        %v2853 = vadd.f32 %v2786, %v2852
        %2854 = vdwg.mxu0
        %vm2855 = vcmp.ge.f32.partialorder %v2821, 0.0
        %vm2856 = vcmp.ge.f32.partialorder %v2847, 0.0
        %vm2857 = vcmp.ge.f32.partialorder %v2824, 0.0
        %vm2858 = vcmp.ge.f32.partialorder %v2850, 0.0
        %vm2859 = vcmp.ge.f32.partialorder %v2827, 0.0
        %vm2860 = vcmp.ge.f32.partialorder %v2853, 0.0
        %v2861 = vmul.f32 %v2821, 0.3
        %v2862 = vmul.f32 %v2847, 0.3
        %v2863 = vmul.f32 %v2824, 0.3
        %v2864 = vmul.f32 %v2850, 0.3
        %v2865 = vmul.f32 %v2827, 0.3
        %v2866 = vmul.f32 %v2853, 0.3
        %v2867 = vsel %vm2855, %v2821, %v2861
        %v2868 = vsel %vm2856, %v2847, %v2862
        %v2869 = vsel %vm2857, %v2824, %v2863
        %v2870 = vsel %vm2858, %v2850, %v2864
        %v2871 = vsel %vm2859, %v2827, %v2865
        %v2872 = vsel %vm2860, %v2853, %v2866
        %v2873 = vld [vmem:[%s7] sm:$0xff]
        %v2874 = vld [vmem:[%s7 + $0x8] sm:$0x3]
        %v2875 = vld [vmem:[%s8] sm:$0xff]
        %v2876 = vld [vmem:[%s8 + $0x8] sm:$0x3]
        %2878 = vset.pattern.permute.xlu0 0
        %2879 = vperm.xlu0 %2878, %v2875
        %v2880 = vpop.permute.xlu0 %2879
        %2883 = vset.pattern.permute.xlu0 0
        %2884 = vperm.xlu0 %2883, %v2876
        %v2885 = vpop.permute.xlu0 %2884
        %v2888 = vsel %vm1476, %v2873, 0
        %v2891 = vsel %vm1476, %v2874, 0
        %v2894 = vsel %vm1486, %v2871, 0
        %v2897 = vsel %vm1486, %v2872, 0
        %2899 = vmatpush.msra.mxu0 0.0
        %2900 = vmatpush.msra.mxu0 0.0
        %2901 = vmatpush.msra.mxu0 0.0
        %2902 = vmatpush.msra.mxu0 0.0
        %2903 = vmatpush.msra.mxu0 0.0
        %2904 = vmatpush.msra.mxu0 0.0
        %2905 = vmatpush.msra.mxu0 0.0
        %2906 = vmatpush.msra.mxu0 0.0
        %2907 = vmatpush.msra.mxu0 0.0
        %2908 = vmatpush.msra.mxu0 0.0
        %2909 = vmatpush.msra.mxu0 0.0
        %2910 = vmatpush.msra.mxu0 0.0
        %2911 = vmatpush.msra.mxu0 0.0
        %2912 = vmatpush.msra.mxu0 %v2894
        %2913 = vmatpush.msra.mxu0 %v2869
        %2914 = vmatpush.msra.mxu0 %v2867
        %2915 = vmatmul.f32.gmra.mxu0 %v2888
        %v2916 = vpop.f32.mrf.mxu0
        %v2917 = vadd.f32 %v2880, %v2916
        %2918 = vmatmul.f32.gmra.mxu0 %v2891
        %v2919 = vpop.f32.mrf.mxu0
        %v2920 = vadd.f32 %v2885, %v2919
        %2921 = vdwg.mxu0
        %2922 = vmatpush.msra.mxu0 0.0
        %2923 = vmatpush.msra.mxu0 0.0
        %2924 = vmatpush.msra.mxu0 0.0
        %2925 = vmatpush.msra.mxu0 0.0
        %2926 = vmatpush.msra.mxu0 0.0
        %2927 = vmatpush.msra.mxu0 0.0
        %2928 = vmatpush.msra.mxu0 0.0
        %2929 = vmatpush.msra.mxu0 0.0
        %2930 = vmatpush.msra.mxu0 0.0
        %2931 = vmatpush.msra.mxu0 0.0
        %2932 = vmatpush.msra.mxu0 0.0
        %2933 = vmatpush.msra.mxu0 0.0
        %2934 = vmatpush.msra.mxu0 0.0
        %2935 = vmatpush.msra.mxu0 %v2897
        %2936 = vmatpush.msra.mxu0 %v2870
        %2937 = vmatpush.msra.mxu0 %v2868
        %2938 = vmatmul.f32.gmra.mxu0 %v2888
        %v2939 = vpop.f32.mrf.mxu0
        %v2940 = vadd.f32 %v2880, %v2939
        %2941 = vmatmul.f32.gmra.mxu0 %v2891
        %v2942 = vpop.f32.mrf.mxu0
        %v2943 = vadd.f32 %v2885, %v2942
        %2944 = vdwg.mxu0
        %vm2945 = vcmp.ge.f32.partialorder %v2917, 0.0
        %vm2946 = vcmp.ge.f32.partialorder %v2940, 0.0
        %vm2947 = vcmp.ge.f32.partialorder %v2920, 0.0
        %vm2948 = vcmp.ge.f32.partialorder %v2943, 0.0
        %v2949 = vmul.f32 %v2917, 0.3
        %v2950 = vmul.f32 %v2940, 0.3
        %v2951 = vmul.f32 %v2920, 0.3
        %v2952 = vmul.f32 %v2943, 0.3
        %v2953 = vsel %vm2945, %v2917, %v2949
        %v2954 = vsel %vm2946, %v2940, %v2950
        %v2955 = vsel %vm2947, %v2920, %v2951
        %v2956 = vsel %vm2948, %v2943, %v2952
        %v2957 = vld [vmem:[%s9] sm:$0x1]
        %v2958 = vld [vmem:[#allocation3] sm:$0x1]
        %2960 = vset.pattern.permute.xlu0 0
        %2961 = vperm.xlu0 %2960, %v2958
        %v2962 = vpop.permute.xlu0 %2961
        %v2964 = vperm.slane %v2962, 0
        %v2966 = vsel %vm1655, %v2957, 0
        %v2969 = vsel %vm1659, %v2955, 0
        %v2972 = vsel %vm1659, %v2956, 0
        %2974 = vmatpush.msra.mxu0 0.0
        %2975 = vmatpush.msra.mxu0 0.0
        %2976 = vmatpush.msra.mxu0 0.0
        %2977 = vmatpush.msra.mxu0 0.0
        %2978 = vmatpush.msra.mxu0 0.0
        %2979 = vmatpush.msra.mxu0 0.0
        %2980 = vmatpush.msra.mxu0 0.0
        %2981 = vmatpush.msra.mxu0 0.0
        %2982 = vmatpush.msra.mxu0 0.0
        %2983 = vmatpush.msra.mxu0 0.0
        %2984 = vmatpush.msra.mxu0 0.0
        %2985 = vmatpush.msra.mxu0 0.0
        %2986 = vmatpush.msra.mxu0 0.0
        %2987 = vmatpush.msra.mxu0 0.0
        %2988 = vmatpush.msra.mxu0 %v2969
        %2989 = vmatpush.msra.mxu0 %v2953
        %2990 = vmatmul.f32.gmra.mxu0 %v2966
        %v2991 = vpop.f32.mrf.mxu0
        %v2992 = vadd.f32 %v2964, %v2991
        %2993 = vdwg.mxu0
        %2994 = vmatpush.msra.mxu0 0.0
        %2995 = vmatpush.msra.mxu0 0.0
        %2996 = vmatpush.msra.mxu0 0.0
        %2997 = vmatpush.msra.mxu0 0.0
        %2998 = vmatpush.msra.mxu0 0.0
        %2999 = vmatpush.msra.mxu0 0.0
        %3000 = vmatpush.msra.mxu0 0.0
        %3001 = vmatpush.msra.mxu0 0.0
        %3002 = vmatpush.msra.mxu0 0.0
        %3003 = vmatpush.msra.mxu0 0.0
        %3004 = vmatpush.msra.mxu0 0.0
        %3005 = vmatpush.msra.mxu0 0.0
        %3006 = vmatpush.msra.mxu0 0.0
        %3007 = vmatpush.msra.mxu0 0.0
        %3008 = vmatpush.msra.mxu0 %v2972
        %3009 = vmatpush.msra.mxu0 %v2954
        %3010 = vmatmul.f32.gmra.mxu0 %v2966
        %v3011 = vpop.f32.mrf.mxu0
        %v3012 = vadd.f32 %v2964, %v3011
        %3013 = vdwg.mxu0
        %vm3014 = vcmp.ge.f32.partialorder %v2992, 0.0
        %vm3015 = vcmp.ge.f32.partialorder %v3012, 0.0
        %v3016 = vmul.f32 %v2992, 0.3
        %v3017 = vmul.f32 %v3012, 0.3
        %v3018 = vsel %vm3014, %v2992, %v3016
        %v3019 = vsel %vm3015, %v3012, %v3017
        %v3020 = vld [vmem:[#allocation4] sm:$0x1]
        %3022 = vset.pattern.permute.xlu0 0
        %3023 = vperm.xlu0 %3022, %v3020
        %v3024 = vpop.permute.xlu0 %3023
        %v3026 = vperm.slane %v3024, 0
        %v3027 = vmul.f32 %v3026, %v3018
        %v3028 = vmul.f32 %v3026, %v3019
        %v3029 = vld [vmem:[#allocation5] sm:$0x1]
        %3031 = vset.pattern.permute.xlu0 0
        %3032 = vperm.xlu0 %3031, %v3029
        %v3033 = vpop.permute.xlu0 %3032
        %v3035 = vperm.slane %v3033, 0
        %v3036 = vadd.f32 %v3027, %v3035
        %v3037 = vadd.f32 %v3028, %v3035
        %vm3038 = vcmp.ge.f32.partialorder %v3036, 0.0
        %vm3039 = vcmp.ge.f32.partialorder %v3037, 0.0
        %v3040 = vmul.f32 %v3036, 0.3
        %v3041 = vmul.f32 %v3037, 0.3
        %v3042 = vsel %vm3038, %v3036, %v3040
        %v3043 = vsel %vm3039, %v3037, %v3041
        %v3044 = vld [vmem:[%s13] sm:$0xff]
        %v3045 = vld [vmem:[%s13 + $0x8] sm:$0xff]
        %v3046 = vld [vmem:[%s13 + $0x10] sm:$0xff]
        %v3047 = vld [vmem:[%s13 + $0x18] sm:$0xff]
        %v3048 = vld [vmem:[%s13 + $0x20] sm:$0xff]
        %v3049 = vld [vmem:[%s13 + $0x28] sm:$0xff]
        %v3050 = vld [vmem:[%s13 + $0x30] sm:$0xff]
        %v3051 = vld [vmem:[%s13 + $0x38] sm:$0xff]
        %v3052 = vld [vmem:[%s13 + $0x40] sm:$0xff]
        %v3053 = vld [vmem:[%s13 + $0x48] sm:$0xff]
        %v3054 = vld [vmem:[%s13 + $0x50] sm:$0xff]
        %v3055 = vld [vmem:[%s13 + $0x58] sm:$0xff]
        %v3056 = vld [vmem:[%s13 + $0x60] sm:$0xff]
        %v3057 = vld [vmem:[%s13 + $0x68] sm:$0xff]
        %v3058 = vld [vmem:[%s13 + $0x70] sm:$0xff]
        %v3059 = vld [vmem:[%s13 + $0x78] sm:$0xff]
        %v3060 = vld [vmem:[%s13 + $0x80] sm:$0xff]
        %v3061 = vld [vmem:[%s13 + $0x88] sm:$0xff]
        %v3062 = vld [vmem:[%s13 + $0x90] sm:$0xff]
        %v3063 = vld [vmem:[%s13 + $0x98] sm:$0xff]
        %v3064 = vld [vmem:[%s13 + $0xa0] sm:$0xff]
        %v3065 = vld [vmem:[%s13 + $0xa8] sm:$0xff]
        %v3066 = vld [vmem:[%s13 + $0xb0] sm:$0xff]
        %v3067 = vld [vmem:[%s13 + $0xb8] sm:$0xff]
        %v3068 = vld [vmem:[%s13 + $0xc0] sm:$0xff]
        %v3069 = vld [vmem:[%s13 + $0xc8] sm:$0xff]
        %v3070 = vld [vmem:[%s13 + $0xd0] sm:$0xff]
        %v3072 = vsel %vm1763, %v3043, 0
        %3074 = vmatpush.msra.mxu0 %v3059
        %3075 = vmatpush.msra.mxu0 %v3058
        %3076 = vmatpush.msra.mxu0 %v3057
        %3077 = vmatpush.msra.mxu0 %v3056
        %3078 = vmatpush.msra.mxu0 %v3055
        %3079 = vmatpush.msra.mxu0 %v3054
        %3080 = vmatpush.msra.mxu0 %v3053
        %3081 = vmatpush.msra.mxu0 %v3052
        %3082 = vmatpush.msra.mxu0 %v3051
        %3083 = vmatpush.msra.mxu0 %v3050
        %3084 = vmatpush.msra.mxu0 %v3049
        %3085 = vmatpush.msra.mxu0 %v3048
        %3086 = vmatpush.msra.mxu0 %v3047
        %3087 = vmatpush.msra.mxu0 %v3046
        %3088 = vmatpush.msra.mxu0 %v3045
        %3089 = vmatpush.msra.mxu0 %v3044
        %3090 = vmatmul.f32.gmra.mxu0 %v3042
        %v3091 = vpop.f32.mrf.mxu0
        %v3092 = vadd.f32 0.0, %v3091
        %3093 = vdwg.mxu0
        %3094 = vmatpush.msra.mxu0 0.0
        %3095 = vmatpush.msra.mxu0 0.0
        %3096 = vmatpush.msra.mxu0 0.0
        %3097 = vmatpush.msra.mxu0 0.0
        %3098 = vmatpush.msra.mxu0 0.0
        %3099 = vmatpush.msra.mxu0 %v3070
        %3100 = vmatpush.msra.mxu0 %v3069
        %3101 = vmatpush.msra.mxu0 %v3068
        %3102 = vmatpush.msra.mxu0 %v3067
        %3103 = vmatpush.msra.mxu0 %v3066
        %3104 = vmatpush.msra.mxu0 %v3065
        %3105 = vmatpush.msra.mxu0 %v3064
        %3106 = vmatpush.msra.mxu0 %v3063
        %3107 = vmatpush.msra.mxu0 %v3062
        %3108 = vmatpush.msra.mxu0 %v3061
        %3109 = vmatpush.msra.mxu0 %v3060
        %3110 = vmatmul.f32.gmra.mxu0 %v3072
        %v3111 = vpop.f32.mrf.mxu0
        %v3112 = vadd.f32 %v3092, %v3111
        %3113 = vdwg.mxu0
        %v3114 = vsel %vm486, %v3112, -inf
        %3115 = vmax.xlane.f32.xlu0 %v3114
        %v3116 = vpop.xlane.xlu0 %3115
        %v3117 = vsub.f32 %v3112, %v3116
        %v3118 = vmul.f32 %v3117, 1.442695
        %v3119 = vpow.pop %v3118
        %v3120 = vsel %vm486, %v3119, 0.0
        %3121 = vadd.xlane.f32.xlu0 %v3120
        %v3122 = vpop.xlane.xlu0 %3121
        %v3123 = vrcp.pop %v3122
        %v3124 = vmul.f32 %v3122, %v3123
        %v3125 = vsub.f32 1.0, %v3124
        %v3126 = vmul.f32 %v3123, %v3125
        %v3127 = vadd.f32 %v3123, %v3126
        %vm3128 = vweird.f32 %v3122
        %vm3129 = vweird.f32 %v3123
        %vm3130 = vmor %vm3128, %vm3129
        %v3131 = vsel %vm3130, %v3123, %v3127
        %v3132 = vand.u32 2147483647, %v3122
        %vm3133 = vcmp.eq.f32.partialorder %v3132, 8.507059e+37
        %v3134 = vand.u32 %v3122, 2147483648
        %v3135 = vor.u32 1.1754944e-38, %v3134
        %v3136 = vsel %vm3133, %v3135, %v3131
        %v3137 = vmul.f32 %v3119, %v3136
        %s3138 = scalar_lea.vmem %s467, 1 [#allocation6]
        %3139 = vst [vmem:[%s3138] sm:$0x1] %v3137
        %s3140 = scalar_lea.vmem %s472, 4
        %v3141 = vld [vmem:[%s3140] sm:$0x3]
        %v3143 = vperm.slane %v3141, 0
        %v3144 = vperm.slane %v3141, 1
        %v3147 = vsel %vm486, %v3143, 0.0
        %v3148 = vsel %vm488, %v3144, 0.0
        %v3149 = vadd.f32 %v3147, %v3148
        %3150 = vadd.xlane.f32.xlu0 %v3149
        %v3151 = vpop.xlane.xlu0 %3150
        %v3152 = vadd.f32 %v3151, 0.0
        %v3153 = vmul.f32 %v3152, %v500
        %v3155 = vperm.slane %v3153, 0
        %v3157 = vsub.f32 %v3141, %v3155
        %v3158 = vmul.f32 %v3157, %v3157
        %v3160 = vperm.slane %v3158, 0
        %v3161 = vperm.slane %v3158, 1
        %v3164 = vsel %vm486, %v3160, 0.0
        %v3165 = vsel %vm488, %v3161, 0.0
        %v3166 = vadd.f32 %v3164, %v3165
        %3167 = vadd.xlane.f32.xlu0 %v3166
        %v3168 = vpop.xlane.xlu0 %3167
        %v3169 = vadd.f32 %v3168, 0.0
        %v3170 = vmul.f32 %v3169, %v500
        %v3171 = vadd.f32 %v3170, 1e-05
        %v3172 = vrsqrt.pop %v3171
        %v3173 = vmul.f32 %v3172, %v3171
        %v3174 = vmul.f32 %v3173, %v3172
        %v3175 = vmul.f32 0.5, %v3174
        %v3176 = vsub.f32 1.5, %v3175
        %v3177 = vmul.f32 %v3172, %v3176
        %vm3178 = vweird.f32 %v3171
        %vm3179 = vweird.f32 %v3172
        %vm3180 = vmor %vm3178, %vm3179
        %v3181 = vsel %vm3180, %v3172, %v3177
        %v3182 = vld [vmem:[%s1] sm:$0x3]
        %v3184 = vperm.slane %v3182, 0
        %v3185 = vperm.slane %v3182, 1
        %v3188 = vmul.f32 %v3181, %v3184
        %v3189 = vmul.f32 %v3181, %v3185
        %v3192 = vrot.slane %v3189, 7
        %v3193 = vsel %vm486, %v3188, %v3192
        %v3195 = vmul.f32 %v3157, %v3193
        %v3196 = vld [vmem:[%s2] sm:$0x3]
        %v3197 = vadd.f32 %v3195, %v3196
        %3199 = vrot.lane.b32.xlu0 %v3197, 7
        %v3200 = vpop.permute.xlu0 %3199
        %v3201 = vrot.slane %v3200, 7
        %v3202 = vsel %vm550, %v3201, %v3200
        %3204 = vst.msk [vmem:[#allocation2] sm:$0x3] %vm555, %v3202
        %v3205 = vld [vmem:[#allocation2] sm:$0x3]
        %v3206 = vld [vmem:[%s3] sm:$0xff]
        %v3207 = vld [vmem:[%s3 + $0x8] sm:$0xff]
        %v3208 = vld [vmem:[%s3 + $0x10] sm:$0xf]
        %3210 = vset.pattern.permute.xlu0 0
        %3211 = vperm.xlu0 %3210, %v3206
        %v3212 = vpop.permute.xlu0 %3211
        %3215 = vset.pattern.permute.xlu0 0
        %3216 = vperm.xlu0 %3215, %v3207
        %v3217 = vpop.permute.xlu0 %3216
        %3220 = vset.pattern.permute.xlu0 0
        %3221 = vperm.xlu0 %3220, %v3208
        %v3222 = vpop.permute.xlu0 %3221
        %v3225 = vperm.slane %v3205, 0
        %v3226 = vperm.slane %v3205, 1
        %v3229 = vmul.f32 %v3212, %v3225
        %v3230 = vmul.f32 %v3212, %v3226
        %v3231 = vmul.f32 %v3217, %v3225
        %v3232 = vmul.f32 %v3217, %v3226
        %v3233 = vmul.f32 %v3222, %v3225
        %v3234 = vmul.f32 %v3222, %v3226
        %v3235 = vld [vmem:[%s587] sm:$0xff]
        %v3236 = vld [vmem:[%s587 + $0x8] sm:$0xff]
        %v3237 = vld [vmem:[%s587 + $0x10] sm:$0xf]
        %3239 = vset.pattern.permute.xlu0 0
        %3240 = vperm.xlu0 %3239, %v3235
        %v3241 = vpop.permute.xlu0 %3240
        %3244 = vset.pattern.permute.xlu0 0
        %3245 = vperm.xlu0 %3244, %v3236
        %v3246 = vpop.permute.xlu0 %3245
        %3249 = vset.pattern.permute.xlu0 0
        %3250 = vperm.xlu0 %3249, %v3237
        %v3251 = vpop.permute.xlu0 %3250
        %v3253 = vmul.f32 %v3241, %v3225
        %v3254 = vmul.f32 %v3241, %v3226
        %v3255 = vmul.f32 %v3246, %v3225
        %v3256 = vmul.f32 %v3246, %v3226
        %v3257 = vmul.f32 %v3251, %v3225
        %v3258 = vmul.f32 %v3251, %v3226
        %3265 = vrot.lane.b32.xlu0 %v3253, 127
        %v3266 = vpop.permute.xlu0 %3265
        %3267 = vrot.lane.b32.xlu0 %v3254, 127
        %v3268 = vpop.permute.xlu0 %3267
        %3269 = vrot.lane.b32.xlu0 %v3255, 127
        %v3270 = vpop.permute.xlu0 %3269
        %3271 = vrot.lane.b32.xlu0 %v3256, 127
        %v3272 = vpop.permute.xlu0 %3271
        %3273 = vrot.lane.b32.xlu0 %v3257, 127
        %v3274 = vpop.permute.xlu0 %3273
        %3275 = vrot.lane.b32.xlu0 %v3258, 127
        %v3276 = vpop.permute.xlu0 %3275
        %v3277 = vsel %vm630, %v3266, %v3268
        %v3278 = vsel %vm630, %v3270, %v3272
        %v3279 = vsel %vm630, %v3274, %v3276
        %v3286 = vadd.f32 %v3229, %v3277
        %v3287 = vadd.f32 %v3230, %v3268
        %v3288 = vadd.f32 %v3231, %v3278
        %v3289 = vadd.f32 %v3232, %v3272
        %v3290 = vadd.f32 %v3233, %v3279
        %v3291 = vadd.f32 %v3234, %v3276
        %v3292 = vld [vmem:[%s646] sm:$0xff]
        %v3293 = vld [vmem:[%s646 + $0x8] sm:$0xff]
        %v3294 = vld [vmem:[%s646 + $0x10] sm:$0xf]
        %3296 = vset.pattern.permute.xlu0 0
        %3297 = vperm.xlu0 %3296, %v3292
        %v3298 = vpop.permute.xlu0 %3297
        %3301 = vset.pattern.permute.xlu0 0
        %3302 = vperm.xlu0 %3301, %v3293
        %v3303 = vpop.permute.xlu0 %3302
        %3306 = vset.pattern.permute.xlu0 0
        %3307 = vperm.xlu0 %3306, %v3294
        %v3308 = vpop.permute.xlu0 %3307
        %v3310 = vmul.f32 %v3298, %v3225
        %v3311 = vmul.f32 %v3298, %v3226
        %v3312 = vmul.f32 %v3303, %v3225
        %v3313 = vmul.f32 %v3303, %v3226
        %v3314 = vmul.f32 %v3308, %v3225
        %v3315 = vmul.f32 %v3308, %v3226
        %3322 = vrot.lane.b32.xlu0 %v3310, 126
        %v3323 = vpop.permute.xlu0 %3322
        %3324 = vrot.lane.b32.xlu0 %v3311, 126
        %v3325 = vpop.permute.xlu0 %3324
        %3326 = vrot.lane.b32.xlu0 %v3312, 126
        %v3327 = vpop.permute.xlu0 %3326
        %3328 = vrot.lane.b32.xlu0 %v3313, 126
        %v3329 = vpop.permute.xlu0 %3328
        %3330 = vrot.lane.b32.xlu0 %v3314, 126
        %v3331 = vpop.permute.xlu0 %3330
        %3332 = vrot.lane.b32.xlu0 %v3315, 126
        %v3333 = vpop.permute.xlu0 %3332
        %v3334 = vsel %vm689, %v3323, %v3325
        %v3335 = vsel %vm689, %v3327, %v3329
        %v3336 = vsel %vm689, %v3331, %v3333
        %v3343 = vadd.f32 %v3286, %v3334
        %v3344 = vadd.f32 %v3287, %v3325
        %v3345 = vadd.f32 %v3288, %v3335
        %v3346 = vadd.f32 %v3289, %v3329
        %v3347 = vadd.f32 %v3290, %v3336
        %v3348 = vadd.f32 %v3291, %v3333
        %v3349 = vld [vmem:[%s705] sm:$0xff]
        %v3350 = vld [vmem:[%s705 + $0x8] sm:$0xff]
        %v3351 = vld [vmem:[%s705 + $0x10] sm:$0xf]
        %3353 = vset.pattern.permute.xlu0 0
        %3354 = vperm.xlu0 %3353, %v3349
        %v3355 = vpop.permute.xlu0 %3354
        %3358 = vset.pattern.permute.xlu0 0
        %3359 = vperm.xlu0 %3358, %v3350
        %v3360 = vpop.permute.xlu0 %3359
        %3363 = vset.pattern.permute.xlu0 0
        %3364 = vperm.xlu0 %3363, %v3351
        %v3365 = vpop.permute.xlu0 %3364
        %v3367 = vmul.f32 %v3355, %v3225
        %v3368 = vmul.f32 %v3355, %v3226
        %v3369 = vmul.f32 %v3360, %v3225
        %v3370 = vmul.f32 %v3360, %v3226
        %v3371 = vmul.f32 %v3365, %v3225
        %v3372 = vmul.f32 %v3365, %v3226
        %3379 = vrot.lane.b32.xlu0 %v3367, 125
        %v3380 = vpop.permute.xlu0 %3379
        %3381 = vrot.lane.b32.xlu0 %v3368, 125
        %v3382 = vpop.permute.xlu0 %3381
        %3383 = vrot.lane.b32.xlu0 %v3369, 125
        %v3384 = vpop.permute.xlu0 %3383
        %3385 = vrot.lane.b32.xlu0 %v3370, 125
        %v3386 = vpop.permute.xlu0 %3385
        %3387 = vrot.lane.b32.xlu0 %v3371, 125
        %v3388 = vpop.permute.xlu0 %3387
        %3389 = vrot.lane.b32.xlu0 %v3372, 125
        %v3390 = vpop.permute.xlu0 %3389
        %v3391 = vsel %vm748, %v3380, %v3382
        %v3392 = vsel %vm748, %v3384, %v3386
        %v3393 = vsel %vm748, %v3388, %v3390
        %v3400 = vadd.f32 %v3343, %v3391
        %v3401 = vadd.f32 %v3344, %v3382
        %v3402 = vadd.f32 %v3345, %v3392
        %v3403 = vadd.f32 %v3346, %v3386
        %v3404 = vadd.f32 %v3347, %v3393
        %v3405 = vadd.f32 %v3348, %v3390
        %v3406 = vld [vmem:[%s764] sm:$0xff]
        %v3407 = vld [vmem:[%s764 + $0x8] sm:$0xff]
        %v3408 = vld [vmem:[%s764 + $0x10] sm:$0xf]
        %3410 = vset.pattern.permute.xlu0 0
        %3411 = vperm.xlu0 %3410, %v3406
        %v3412 = vpop.permute.xlu0 %3411
        %3415 = vset.pattern.permute.xlu0 0
        %3416 = vperm.xlu0 %3415, %v3407
        %v3417 = vpop.permute.xlu0 %3416
        %3420 = vset.pattern.permute.xlu0 0
        %3421 = vperm.xlu0 %3420, %v3408
        %v3422 = vpop.permute.xlu0 %3421
        %v3424 = vmul.f32 %v3412, %v3225
        %v3425 = vmul.f32 %v3412, %v3226
        %v3426 = vmul.f32 %v3417, %v3225
        %v3427 = vmul.f32 %v3417, %v3226
        %v3428 = vmul.f32 %v3422, %v3225
        %v3429 = vmul.f32 %v3422, %v3226
        %3436 = vrot.lane.b32.xlu0 %v3424, 124
        %v3437 = vpop.permute.xlu0 %3436
        %3438 = vrot.lane.b32.xlu0 %v3425, 124
        %v3439 = vpop.permute.xlu0 %3438
        %3440 = vrot.lane.b32.xlu0 %v3426, 124
        %v3441 = vpop.permute.xlu0 %3440
        %3442 = vrot.lane.b32.xlu0 %v3427, 124
        %v3443 = vpop.permute.xlu0 %3442
        %3444 = vrot.lane.b32.xlu0 %v3428, 124
        %v3445 = vpop.permute.xlu0 %3444
        %3446 = vrot.lane.b32.xlu0 %v3429, 124
        %v3447 = vpop.permute.xlu0 %3446
        %v3448 = vsel %vm807, %v3437, %v3439
        %v3449 = vsel %vm807, %v3441, %v3443
        %v3450 = vsel %vm807, %v3445, %v3447
        %v3457 = vadd.f32 %v3400, %v3448
        %v3458 = vadd.f32 %v3401, %v3439
        %v3459 = vadd.f32 %v3402, %v3449
        %v3460 = vadd.f32 %v3403, %v3443
        %v3461 = vadd.f32 %v3404, %v3450
        %v3462 = vadd.f32 %v3405, %v3447
        %v3463 = vld [vmem:[%s823] sm:$0xff]
        %v3464 = vld [vmem:[%s823 + $0x8] sm:$0xff]
        %v3465 = vld [vmem:[%s823 + $0x10] sm:$0xf]
        %3467 = vset.pattern.permute.xlu0 0
        %3468 = vperm.xlu0 %3467, %v3463
        %v3469 = vpop.permute.xlu0 %3468
        %3472 = vset.pattern.permute.xlu0 0
        %3473 = vperm.xlu0 %3472, %v3464
        %v3474 = vpop.permute.xlu0 %3473
        %3477 = vset.pattern.permute.xlu0 0
        %3478 = vperm.xlu0 %3477, %v3465
        %v3479 = vpop.permute.xlu0 %3478
        %v3481 = vmul.f32 %v3469, %v3225
        %v3482 = vmul.f32 %v3469, %v3226
        %v3483 = vmul.f32 %v3474, %v3225
        %v3484 = vmul.f32 %v3474, %v3226
        %v3485 = vmul.f32 %v3479, %v3225
        %v3486 = vmul.f32 %v3479, %v3226
        %3493 = vrot.lane.b32.xlu0 %v3481, 123
        %v3494 = vpop.permute.xlu0 %3493
        %3495 = vrot.lane.b32.xlu0 %v3482, 123
        %v3496 = vpop.permute.xlu0 %3495
        %3497 = vrot.lane.b32.xlu0 %v3483, 123
        %v3498 = vpop.permute.xlu0 %3497
        %3499 = vrot.lane.b32.xlu0 %v3484, 123
        %v3500 = vpop.permute.xlu0 %3499
        %3501 = vrot.lane.b32.xlu0 %v3485, 123
        %v3502 = vpop.permute.xlu0 %3501
        %3503 = vrot.lane.b32.xlu0 %v3486, 123
        %v3504 = vpop.permute.xlu0 %3503
        %v3505 = vsel %vm866, %v3494, %v3496
        %v3506 = vsel %vm866, %v3498, %v3500
        %v3507 = vsel %vm866, %v3502, %v3504
        %v3514 = vadd.f32 %v3457, %v3505
        %v3515 = vadd.f32 %v3458, %v3496
        %v3516 = vadd.f32 %v3459, %v3506
        %v3517 = vadd.f32 %v3460, %v3500
        %v3518 = vadd.f32 %v3461, %v3507
        %v3519 = vadd.f32 %v3462, %v3504
        %v3520 = vld [vmem:[%s882] sm:$0xff]
        %v3521 = vld [vmem:[%s882 + $0x8] sm:$0xff]
        %v3522 = vld [vmem:[%s882 + $0x10] sm:$0xf]
        %3524 = vset.pattern.permute.xlu0 0
        %3525 = vperm.xlu0 %3524, %v3520
        %v3526 = vpop.permute.xlu0 %3525
        %3529 = vset.pattern.permute.xlu0 0
        %3530 = vperm.xlu0 %3529, %v3521
        %v3531 = vpop.permute.xlu0 %3530
        %3534 = vset.pattern.permute.xlu0 0
        %3535 = vperm.xlu0 %3534, %v3522
        %v3536 = vpop.permute.xlu0 %3535
        %v3538 = vmul.f32 %v3526, %v3225
        %v3539 = vmul.f32 %v3526, %v3226
        %v3540 = vmul.f32 %v3531, %v3225
        %v3541 = vmul.f32 %v3531, %v3226
        %v3542 = vmul.f32 %v3536, %v3225
        %v3543 = vmul.f32 %v3536, %v3226
        %3550 = vrot.lane.b32.xlu0 %v3538, 122
        %v3551 = vpop.permute.xlu0 %3550
        %3552 = vrot.lane.b32.xlu0 %v3539, 122
        %v3553 = vpop.permute.xlu0 %3552
        %3554 = vrot.lane.b32.xlu0 %v3540, 122
        %v3555 = vpop.permute.xlu0 %3554
        %3556 = vrot.lane.b32.xlu0 %v3541, 122
        %v3557 = vpop.permute.xlu0 %3556
        %3558 = vrot.lane.b32.xlu0 %v3542, 122
        %v3559 = vpop.permute.xlu0 %3558
        %3560 = vrot.lane.b32.xlu0 %v3543, 122
        %v3561 = vpop.permute.xlu0 %3560
        %v3562 = vsel %vm925, %v3551, %v3553
        %v3563 = vsel %vm925, %v3555, %v3557
        %v3564 = vsel %vm925, %v3559, %v3561
        %v3571 = vadd.f32 %v3514, %v3562
        %v3572 = vadd.f32 %v3515, %v3553
        %v3573 = vadd.f32 %v3516, %v3563
        %v3574 = vadd.f32 %v3517, %v3557
        %v3575 = vadd.f32 %v3518, %v3564
        %v3576 = vadd.f32 %v3519, %v3561
        %v3577 = vld [vmem:[%s941] sm:$0xff]
        %v3578 = vld [vmem:[%s941 + $0x8] sm:$0xff]
        %v3579 = vld [vmem:[%s941 + $0x10] sm:$0xf]
        %3581 = vset.pattern.permute.xlu0 0
        %3582 = vperm.xlu0 %3581, %v3577
        %v3583 = vpop.permute.xlu0 %3582
        %3586 = vset.pattern.permute.xlu0 0
        %3587 = vperm.xlu0 %3586, %v3578
        %v3588 = vpop.permute.xlu0 %3587
        %3591 = vset.pattern.permute.xlu0 0
        %3592 = vperm.xlu0 %3591, %v3579
        %v3593 = vpop.permute.xlu0 %3592
        %v3595 = vmul.f32 %v3583, %v3225
        %v3596 = vmul.f32 %v3583, %v3226
        %v3597 = vmul.f32 %v3588, %v3225
        %v3598 = vmul.f32 %v3588, %v3226
        %v3599 = vmul.f32 %v3593, %v3225
        %v3600 = vmul.f32 %v3593, %v3226
        %3607 = vrot.lane.b32.xlu0 %v3595, 121
        %v3608 = vpop.permute.xlu0 %3607
        %3609 = vrot.lane.b32.xlu0 %v3596, 121
        %v3610 = vpop.permute.xlu0 %3609
        %3611 = vrot.lane.b32.xlu0 %v3597, 121
        %v3612 = vpop.permute.xlu0 %3611
        %3613 = vrot.lane.b32.xlu0 %v3598, 121
        %v3614 = vpop.permute.xlu0 %3613
        %3615 = vrot.lane.b32.xlu0 %v3599, 121
        %v3616 = vpop.permute.xlu0 %3615
        %3617 = vrot.lane.b32.xlu0 %v3600, 121
        %v3618 = vpop.permute.xlu0 %3617
        %v3619 = vsel %vm984, %v3608, %v3610
        %v3620 = vsel %vm984, %v3612, %v3614
        %v3621 = vsel %vm984, %v3616, %v3618
        %v3628 = vadd.f32 %v3571, %v3619
        %v3629 = vadd.f32 %v3572, %v3610
        %v3630 = vadd.f32 %v3573, %v3620
        %v3631 = vadd.f32 %v3574, %v3614
        %v3632 = vadd.f32 %v3575, %v3621
        %v3633 = vadd.f32 %v3576, %v3618
        %v3634 = vld [vmem:[%s1000] sm:$0xff]
        %v3635 = vld [vmem:[%s1000 + $0x8] sm:$0xff]
        %v3636 = vld [vmem:[%s1000 + $0x10] sm:$0xf]
        %3638 = vset.pattern.permute.xlu0 0
        %3639 = vperm.xlu0 %3638, %v3634
        %v3640 = vpop.permute.xlu0 %3639
        %3643 = vset.pattern.permute.xlu0 0
        %3644 = vperm.xlu0 %3643, %v3635
        %v3645 = vpop.permute.xlu0 %3644
        %3648 = vset.pattern.permute.xlu0 0
        %3649 = vperm.xlu0 %3648, %v3636
        %v3650 = vpop.permute.xlu0 %3649
        %v3652 = vmul.f32 %v3640, %v3225
        %v3653 = vmul.f32 %v3640, %v3226
        %v3654 = vmul.f32 %v3645, %v3225
        %v3655 = vmul.f32 %v3645, %v3226
        %v3656 = vmul.f32 %v3650, %v3225
        %v3657 = vmul.f32 %v3650, %v3226
        %3664 = vrot.lane.b32.xlu0 %v3652, 120
        %v3665 = vpop.permute.xlu0 %3664
        %3666 = vrot.lane.b32.xlu0 %v3653, 120
        %v3667 = vpop.permute.xlu0 %3666
        %3668 = vrot.lane.b32.xlu0 %v3654, 120
        %v3669 = vpop.permute.xlu0 %3668
        %3670 = vrot.lane.b32.xlu0 %v3655, 120
        %v3671 = vpop.permute.xlu0 %3670
        %3672 = vrot.lane.b32.xlu0 %v3656, 120
        %v3673 = vpop.permute.xlu0 %3672
        %3674 = vrot.lane.b32.xlu0 %v3657, 120
        %v3675 = vpop.permute.xlu0 %3674
        %v3676 = vsel %vm1043, %v3665, %v3667
        %v3677 = vsel %vm1043, %v3669, %v3671
        %v3678 = vsel %vm1043, %v3673, %v3675
        %v3685 = vadd.f32 %v3628, %v3676
        %v3686 = vadd.f32 %v3629, %v3667
        %v3687 = vadd.f32 %v3630, %v3677
        %v3688 = vadd.f32 %v3631, %v3671
        %v3689 = vadd.f32 %v3632, %v3678
        %v3690 = vadd.f32 %v3633, %v3675
        %v3691 = vld [vmem:[%s1059] sm:$0xff]
        %v3692 = vld [vmem:[%s1059 + $0x8] sm:$0xff]
        %v3693 = vld [vmem:[%s1059 + $0x10] sm:$0xf]
        %3695 = vset.pattern.permute.xlu0 0
        %3696 = vperm.xlu0 %3695, %v3691
        %v3697 = vpop.permute.xlu0 %3696
        %3700 = vset.pattern.permute.xlu0 0
        %3701 = vperm.xlu0 %3700, %v3692
        %v3702 = vpop.permute.xlu0 %3701
        %3705 = vset.pattern.permute.xlu0 0
        %3706 = vperm.xlu0 %3705, %v3693
        %v3707 = vpop.permute.xlu0 %3706
        %v3709 = vmul.f32 %v3697, %v3225
        %v3710 = vmul.f32 %v3697, %v3226
        %v3711 = vmul.f32 %v3702, %v3225
        %v3712 = vmul.f32 %v3702, %v3226
        %v3713 = vmul.f32 %v3707, %v3225
        %v3714 = vmul.f32 %v3707, %v3226
        %3721 = vrot.lane.b32.xlu0 %v3709, 119
        %v3722 = vpop.permute.xlu0 %3721
        %3723 = vrot.lane.b32.xlu0 %v3710, 119
        %v3724 = vpop.permute.xlu0 %3723
        %3725 = vrot.lane.b32.xlu0 %v3711, 119
        %v3726 = vpop.permute.xlu0 %3725
        %3727 = vrot.lane.b32.xlu0 %v3712, 119
        %v3728 = vpop.permute.xlu0 %3727
        %3729 = vrot.lane.b32.xlu0 %v3713, 119
        %v3730 = vpop.permute.xlu0 %3729
        %3731 = vrot.lane.b32.xlu0 %v3714, 119
        %v3732 = vpop.permute.xlu0 %3731
        %v3733 = vsel %vm1102, %v3722, %v3724
        %v3734 = vsel %vm1102, %v3726, %v3728
        %v3735 = vsel %vm1102, %v3730, %v3732
        %v3742 = vadd.f32 %v3685, %v3733
        %v3743 = vadd.f32 %v3686, %v3724
        %v3744 = vadd.f32 %v3687, %v3734
        %v3745 = vadd.f32 %v3688, %v3728
        %v3746 = vadd.f32 %v3689, %v3735
        %v3747 = vadd.f32 %v3690, %v3732
        %v3748 = vld [vmem:[%s1118] sm:$0xff]
        %v3749 = vld [vmem:[%s1118 + $0x8] sm:$0xff]
        %v3750 = vld [vmem:[%s1118 + $0x10] sm:$0xf]
        %3752 = vset.pattern.permute.xlu0 0
        %3753 = vperm.xlu0 %3752, %v3748
        %v3754 = vpop.permute.xlu0 %3753
        %3757 = vset.pattern.permute.xlu0 0
        %3758 = vperm.xlu0 %3757, %v3749
        %v3759 = vpop.permute.xlu0 %3758
        %3762 = vset.pattern.permute.xlu0 0
        %3763 = vperm.xlu0 %3762, %v3750
        %v3764 = vpop.permute.xlu0 %3763
        %v3766 = vmul.f32 %v3754, %v3225
        %v3767 = vmul.f32 %v3754, %v3226
        %v3768 = vmul.f32 %v3759, %v3225
        %v3769 = vmul.f32 %v3759, %v3226
        %v3770 = vmul.f32 %v3764, %v3225
        %v3771 = vmul.f32 %v3764, %v3226
        %3778 = vrot.lane.b32.xlu0 %v3766, 118
        %v3779 = vpop.permute.xlu0 %3778
        %3780 = vrot.lane.b32.xlu0 %v3767, 118
        %v3781 = vpop.permute.xlu0 %3780
        %3782 = vrot.lane.b32.xlu0 %v3768, 118
        %v3783 = vpop.permute.xlu0 %3782
        %3784 = vrot.lane.b32.xlu0 %v3769, 118
        %v3785 = vpop.permute.xlu0 %3784
        %3786 = vrot.lane.b32.xlu0 %v3770, 118
        %v3787 = vpop.permute.xlu0 %3786
        %3788 = vrot.lane.b32.xlu0 %v3771, 118
        %v3789 = vpop.permute.xlu0 %3788
        %v3790 = vsel %vm1161, %v3779, %v3781
        %v3791 = vsel %vm1161, %v3783, %v3785
        %v3792 = vsel %vm1161, %v3787, %v3789
        %v3799 = vadd.f32 %v3742, %v3790
        %v3800 = vadd.f32 %v3743, %v3781
        %v3801 = vadd.f32 %v3744, %v3791
        %v3802 = vadd.f32 %v3745, %v3785
        %v3803 = vadd.f32 %v3746, %v3792
        %v3804 = vadd.f32 %v3747, %v3789
        %v3805 = vld [vmem:[%s1177] sm:$0xff]
        %v3806 = vld [vmem:[%s1177 + $0x8] sm:$0xff]
        %v3807 = vld [vmem:[%s1177 + $0x10] sm:$0xf]
        %3809 = vset.pattern.permute.xlu0 0
        %3810 = vperm.xlu0 %3809, %v3805
        %v3811 = vpop.permute.xlu0 %3810
        %3814 = vset.pattern.permute.xlu0 0
        %3815 = vperm.xlu0 %3814, %v3806
        %v3816 = vpop.permute.xlu0 %3815
        %3819 = vset.pattern.permute.xlu0 0
        %3820 = vperm.xlu0 %3819, %v3807
        %v3821 = vpop.permute.xlu0 %3820
        %v3823 = vmul.f32 %v3811, %v3225
        %v3824 = vmul.f32 %v3811, %v3226
        %v3825 = vmul.f32 %v3816, %v3225
        %v3826 = vmul.f32 %v3816, %v3226
        %v3827 = vmul.f32 %v3821, %v3225
        %v3828 = vmul.f32 %v3821, %v3226
        %3835 = vrot.lane.b32.xlu0 %v3823, 117
        %v3836 = vpop.permute.xlu0 %3835
        %3837 = vrot.lane.b32.xlu0 %v3824, 117
        %v3838 = vpop.permute.xlu0 %3837
        %3839 = vrot.lane.b32.xlu0 %v3825, 117
        %v3840 = vpop.permute.xlu0 %3839
        %3841 = vrot.lane.b32.xlu0 %v3826, 117
        %v3842 = vpop.permute.xlu0 %3841
        %3843 = vrot.lane.b32.xlu0 %v3827, 117
        %v3844 = vpop.permute.xlu0 %3843
        %3845 = vrot.lane.b32.xlu0 %v3828, 117
        %v3846 = vpop.permute.xlu0 %3845
        %v3847 = vsel %vm1220, %v3836, %v3838
        %v3848 = vsel %vm1220, %v3840, %v3842
        %v3849 = vsel %vm1220, %v3844, %v3846
        %v3856 = vadd.f32 %v3799, %v3847
        %v3857 = vadd.f32 %v3800, %v3838
        %v3858 = vadd.f32 %v3801, %v3848
        %v3859 = vadd.f32 %v3802, %v3842
        %v3860 = vadd.f32 %v3803, %v3849
        %v3861 = vadd.f32 %v3804, %v3846
        %v3862 = vld [vmem:[%s1236] sm:$0xff]
        %v3863 = vld [vmem:[%s1236 + $0x8] sm:$0xff]
        %v3864 = vld [vmem:[%s1236 + $0x10] sm:$0xf]
        %3866 = vset.pattern.permute.xlu0 0
        %3867 = vperm.xlu0 %3866, %v3862
        %v3868 = vpop.permute.xlu0 %3867
        %3871 = vset.pattern.permute.xlu0 0
        %3872 = vperm.xlu0 %3871, %v3863
        %v3873 = vpop.permute.xlu0 %3872
        %3876 = vset.pattern.permute.xlu0 0
        %3877 = vperm.xlu0 %3876, %v3864
        %v3878 = vpop.permute.xlu0 %3877
        %v3880 = vmul.f32 %v3868, %v3225
        %v3881 = vmul.f32 %v3868, %v3226
        %v3882 = vmul.f32 %v3873, %v3225
        %v3883 = vmul.f32 %v3873, %v3226
        %v3884 = vmul.f32 %v3878, %v3225
        %v3885 = vmul.f32 %v3878, %v3226
        %3892 = vrot.lane.b32.xlu0 %v3880, 116
        %v3893 = vpop.permute.xlu0 %3892
        %3894 = vrot.lane.b32.xlu0 %v3881, 116
        %v3895 = vpop.permute.xlu0 %3894
        %3896 = vrot.lane.b32.xlu0 %v3882, 116
        %v3897 = vpop.permute.xlu0 %3896
        %3898 = vrot.lane.b32.xlu0 %v3883, 116
        %v3899 = vpop.permute.xlu0 %3898
        %3900 = vrot.lane.b32.xlu0 %v3884, 116
        %v3901 = vpop.permute.xlu0 %3900
        %3902 = vrot.lane.b32.xlu0 %v3885, 116
        %v3903 = vpop.permute.xlu0 %3902
        %v3904 = vsel %vm1279, %v3893, %v3895
        %v3905 = vsel %vm1279, %v3897, %v3899
        %v3906 = vsel %vm1279, %v3901, %v3903
        %v3913 = vadd.f32 %v3856, %v3904
        %v3914 = vadd.f32 %v3857, %v3895
        %v3915 = vadd.f32 %v3858, %v3905
        %v3916 = vadd.f32 %v3859, %v3899
        %v3917 = vadd.f32 %v3860, %v3906
        %v3918 = vadd.f32 %v3861, %v3903
        %v3919 = vld [vmem:[%s1295] sm:$0xff]
        %v3920 = vld [vmem:[%s1295 + $0x8] sm:$0xff]
        %v3921 = vld [vmem:[%s1295 + $0x10] sm:$0xf]
        %3923 = vset.pattern.permute.xlu0 0
        %3924 = vperm.xlu0 %3923, %v3919
        %v3925 = vpop.permute.xlu0 %3924
        %3928 = vset.pattern.permute.xlu0 0
        %3929 = vperm.xlu0 %3928, %v3920
        %v3930 = vpop.permute.xlu0 %3929
        %3933 = vset.pattern.permute.xlu0 0
        %3934 = vperm.xlu0 %3933, %v3921
        %v3935 = vpop.permute.xlu0 %3934
        %v3937 = vmul.f32 %v3925, %v3225
        %v3938 = vmul.f32 %v3925, %v3226
        %v3939 = vmul.f32 %v3930, %v3225
        %v3940 = vmul.f32 %v3930, %v3226
        %v3941 = vmul.f32 %v3935, %v3225
        %v3942 = vmul.f32 %v3935, %v3226
        %3949 = vrot.lane.b32.xlu0 %v3937, 115
        %v3950 = vpop.permute.xlu0 %3949
        %3951 = vrot.lane.b32.xlu0 %v3938, 115
        %v3952 = vpop.permute.xlu0 %3951
        %3953 = vrot.lane.b32.xlu0 %v3939, 115
        %v3954 = vpop.permute.xlu0 %3953
        %3955 = vrot.lane.b32.xlu0 %v3940, 115
        %v3956 = vpop.permute.xlu0 %3955
        %3957 = vrot.lane.b32.xlu0 %v3941, 115
        %v3958 = vpop.permute.xlu0 %3957
        %3959 = vrot.lane.b32.xlu0 %v3942, 115
        %v3960 = vpop.permute.xlu0 %3959
        %v3961 = vsel %vm1338, %v3950, %v3952
        %v3962 = vsel %vm1338, %v3954, %v3956
        %v3963 = vsel %vm1338, %v3958, %v3960
        %v3970 = vadd.f32 %v3913, %v3961
        %v3971 = vadd.f32 %v3914, %v3952
        %v3972 = vadd.f32 %v3915, %v3962
        %v3973 = vadd.f32 %v3916, %v3956
        %v3974 = vadd.f32 %v3917, %v3963
        %v3975 = vadd.f32 %v3918, %v3960
        %v3976 = vld [vmem:[%s1354] sm:$0xff]
        %v3977 = vld [vmem:[%s1354 + $0x8] sm:$0xff]
        %v3978 = vld [vmem:[%s1354 + $0x10] sm:$0xf]
        %3980 = vset.pattern.permute.xlu0 0
        %3981 = vperm.xlu0 %3980, %v3976
        %v3982 = vpop.permute.xlu0 %3981
        %3985 = vset.pattern.permute.xlu0 0
        %3986 = vperm.xlu0 %3985, %v3977
        %v3987 = vpop.permute.xlu0 %3986
        %3990 = vset.pattern.permute.xlu0 0
        %3991 = vperm.xlu0 %3990, %v3978
        %v3992 = vpop.permute.xlu0 %3991
        %v3994 = vmul.f32 %v3982, %v3225
        %v3995 = vmul.f32 %v3982, %v3226
        %v3996 = vmul.f32 %v3987, %v3225
        %v3997 = vmul.f32 %v3987, %v3226
        %v3998 = vmul.f32 %v3992, %v3225
        %v3999 = vmul.f32 %v3992, %v3226
        %4006 = vrot.lane.b32.xlu0 %v3994, 114
        %v4007 = vpop.permute.xlu0 %4006
        %4008 = vrot.lane.b32.xlu0 %v3995, 114
        %v4009 = vpop.permute.xlu0 %4008
        %4010 = vrot.lane.b32.xlu0 %v3996, 114
        %v4011 = vpop.permute.xlu0 %4010
        %4012 = vrot.lane.b32.xlu0 %v3997, 114
        %v4013 = vpop.permute.xlu0 %4012
        %4014 = vrot.lane.b32.xlu0 %v3998, 114
        %v4015 = vpop.permute.xlu0 %4014
        %4016 = vrot.lane.b32.xlu0 %v3999, 114
        %v4017 = vpop.permute.xlu0 %4016
        %v4018 = vsel %vm1397, %v4007, %v4009
        %v4019 = vsel %vm1397, %v4011, %v4013
        %v4020 = vsel %vm1397, %v4015, %v4017
        %v4027 = vadd.f32 %v3970, %v4018
        %v4028 = vadd.f32 %v3971, %v4009
        %v4029 = vadd.f32 %v3972, %v4019
        %v4030 = vadd.f32 %v3973, %v4013
        %v4031 = vadd.f32 %v3974, %v4020
        %v4032 = vadd.f32 %v3975, %v4017
        %v4033 = vld [vmem:[%s4] sm:$0xff]
        %v4034 = vld [vmem:[%s4 + $0x8] sm:$0xff]
        %v4035 = vld [vmem:[%s4 + $0x10] sm:$0xf]
        %4037 = vset.pattern.permute.xlu0 0
        %4038 = vperm.xlu0 %4037, %v4033
        %v4039 = vpop.permute.xlu0 %4038
        %4042 = vset.pattern.permute.xlu0 0
        %4043 = vperm.xlu0 %4042, %v4034
        %v4044 = vpop.permute.xlu0 %4043
        %4047 = vset.pattern.permute.xlu0 0
        %4048 = vperm.xlu0 %4047, %v4035
        %v4049 = vpop.permute.xlu0 %4048
        %v4051 = vadd.f32 %v4027, %v4039
        %v4052 = vadd.f32 %v4028, %v4039
        %v4053 = vadd.f32 %v4029, %v4044
        %v4054 = vadd.f32 %v4030, %v4044
        %v4055 = vadd.f32 %v4031, %v4049
        %v4056 = vadd.f32 %v4032, %v4049
        %vm4057 = vcmp.ge.f32.partialorder %v4051, 0.0
        %vm4058 = vcmp.ge.f32.partialorder %v4052, 0.0
        %vm4059 = vcmp.ge.f32.partialorder %v4053, 0.0
        %vm4060 = vcmp.ge.f32.partialorder %v4054, 0.0
        %vm4061 = vcmp.ge.f32.partialorder %v4055, 0.0
        %vm4062 = vcmp.ge.f32.partialorder %v4056, 0.0
        %v4063 = vmul.f32 %v4051, 0.3
        %v4064 = vmul.f32 %v4052, 0.3
        %v4065 = vmul.f32 %v4053, 0.3
        %v4066 = vmul.f32 %v4054, 0.3
        %v4067 = vmul.f32 %v4055, 0.3
        %v4068 = vmul.f32 %v4056, 0.3
        %v4069 = vsel %vm4057, %v4051, %v4063
        %v4070 = vsel %vm4058, %v4052, %v4064
        %v4071 = vsel %vm4059, %v4053, %v4065
        %v4072 = vsel %vm4060, %v4054, %v4066
        %v4073 = vsel %vm4061, %v4055, %v4067
        %v4074 = vsel %vm4062, %v4056, %v4068
        %v4075 = vld [vmem:[%s5] sm:$0xff]
        %v4076 = vld [vmem:[%s5 + $0x8] sm:$0xff]
        %v4077 = vld [vmem:[%s5 + $0x10] sm:$0xf]
        %v4078 = vld [vmem:[%s6] sm:$0xff]
        %v4079 = vld [vmem:[%s6 + $0x8] sm:$0xff]
        %v4080 = vld [vmem:[%s6 + $0x10] sm:$0xf]
        %4082 = vset.pattern.permute.xlu0 0
        %4083 = vperm.xlu0 %4082, %v4078
        %v4084 = vpop.permute.xlu0 %4083
        %4087 = vset.pattern.permute.xlu0 0
        %4088 = vperm.xlu0 %4087, %v4079
        %v4089 = vpop.permute.xlu0 %4088
        %4092 = vset.pattern.permute.xlu0 0
        %4093 = vperm.xlu0 %4092, %v4080
        %v4094 = vpop.permute.xlu0 %4093
        %v4097 = vsel %vm1476, %v4075, 0
        %v4100 = vsel %vm1476, %v4076, 0
        %v4103 = vsel %vm1476, %v4077, 0
        %v4106 = vsel %vm1486, %v4073, 0
        %v4109 = vsel %vm1486, %v4074, 0
        %4111 = vmatpush.msra.mxu0 0.0
        %4112 = vmatpush.msra.mxu0 0.0
        %4113 = vmatpush.msra.mxu0 0.0
        %4114 = vmatpush.msra.mxu0 0.0
        %4115 = vmatpush.msra.mxu0 0.0
        %4116 = vmatpush.msra.mxu0 0.0
        %4117 = vmatpush.msra.mxu0 0.0
        %4118 = vmatpush.msra.mxu0 0.0
        %4119 = vmatpush.msra.mxu0 0.0
        %4120 = vmatpush.msra.mxu0 0.0
        %4121 = vmatpush.msra.mxu0 0.0
        %4122 = vmatpush.msra.mxu0 0.0
        %4123 = vmatpush.msra.mxu0 0.0
        %4124 = vmatpush.msra.mxu0 %v4106
        %4125 = vmatpush.msra.mxu0 %v4071
        %4126 = vmatpush.msra.mxu0 %v4069
        %4127 = vmatmul.f32.gmra.mxu0 %v4097
        %v4128 = vpop.f32.mrf.mxu0
        %v4129 = vadd.f32 %v4084, %v4128
        %4130 = vmatmul.f32.gmra.mxu0 %v4100
        %v4131 = vpop.f32.mrf.mxu0
        %v4132 = vadd.f32 %v4089, %v4131
        %4133 = vmatmul.f32.gmra.mxu0 %v4103
        %v4134 = vpop.f32.mrf.mxu0
        %v4135 = vadd.f32 %v4094, %v4134
        %4136 = vdwg.mxu0
        %4137 = vmatpush.msra.mxu0 0.0
        %4138 = vmatpush.msra.mxu0 0.0
        %4139 = vmatpush.msra.mxu0 0.0
        %4140 = vmatpush.msra.mxu0 0.0
        %4141 = vmatpush.msra.mxu0 0.0
        %4142 = vmatpush.msra.mxu0 0.0
        %4143 = vmatpush.msra.mxu0 0.0
        %4144 = vmatpush.msra.mxu0 0.0
        %4145 = vmatpush.msra.mxu0 0.0
        %4146 = vmatpush.msra.mxu0 0.0
        %4147 = vmatpush.msra.mxu0 0.0
        %4148 = vmatpush.msra.mxu0 0.0
        %4149 = vmatpush.msra.mxu0 0.0
        %4150 = vmatpush.msra.mxu0 %v4109
        %4151 = vmatpush.msra.mxu0 %v4072
        %4152 = vmatpush.msra.mxu0 %v4070
        %4153 = vmatmul.f32.gmra.mxu0 %v4097
        %v4154 = vpop.f32.mrf.mxu0
        %v4155 = vadd.f32 %v4084, %v4154
        %4156 = vmatmul.f32.gmra.mxu0 %v4100
        %v4157 = vpop.f32.mrf.mxu0
        %v4158 = vadd.f32 %v4089, %v4157
        %4159 = vmatmul.f32.gmra.mxu0 %v4103
        %v4160 = vpop.f32.mrf.mxu0
        %v4161 = vadd.f32 %v4094, %v4160
        %4162 = vdwg.mxu0
        %vm4163 = vcmp.ge.f32.partialorder %v4129, 0.0
        %vm4164 = vcmp.ge.f32.partialorder %v4155, 0.0
        %vm4165 = vcmp.ge.f32.partialorder %v4132, 0.0
        %vm4166 = vcmp.ge.f32.partialorder %v4158, 0.0
        %vm4167 = vcmp.ge.f32.partialorder %v4135, 0.0
        %vm4168 = vcmp.ge.f32.partialorder %v4161, 0.0
        %v4169 = vmul.f32 %v4129, 0.3
        %v4170 = vmul.f32 %v4155, 0.3
        %v4171 = vmul.f32 %v4132, 0.3
        %v4172 = vmul.f32 %v4158, 0.3
        %v4173 = vmul.f32 %v4135, 0.3
        %v4174 = vmul.f32 %v4161, 0.3
        %v4175 = vsel %vm4163, %v4129, %v4169
        %v4176 = vsel %vm4164, %v4155, %v4170
        %v4177 = vsel %vm4165, %v4132, %v4171
        %v4178 = vsel %vm4166, %v4158, %v4172
        %v4179 = vsel %vm4167, %v4135, %v4173
        %v4180 = vsel %vm4168, %v4161, %v4174
        %v4181 = vld [vmem:[%s7] sm:$0xff]
        %v4182 = vld [vmem:[%s7 + $0x8] sm:$0x3]
        %v4183 = vld [vmem:[%s8] sm:$0xff]
        %v4184 = vld [vmem:[%s8 + $0x8] sm:$0x3]
        %4186 = vset.pattern.permute.xlu0 0
        %4187 = vperm.xlu0 %4186, %v4183
        %v4188 = vpop.permute.xlu0 %4187
        %4191 = vset.pattern.permute.xlu0 0
        %4192 = vperm.xlu0 %4191, %v4184
        %v4193 = vpop.permute.xlu0 %4192
        %v4196 = vsel %vm1476, %v4181, 0
        %v4199 = vsel %vm1476, %v4182, 0
        %v4202 = vsel %vm1486, %v4179, 0
        %v4205 = vsel %vm1486, %v4180, 0
        %4207 = vmatpush.msra.mxu0 0.0
        %4208 = vmatpush.msra.mxu0 0.0
        %4209 = vmatpush.msra.mxu0 0.0
        %4210 = vmatpush.msra.mxu0 0.0
        %4211 = vmatpush.msra.mxu0 0.0
        %4212 = vmatpush.msra.mxu0 0.0
        %4213 = vmatpush.msra.mxu0 0.0
        %4214 = vmatpush.msra.mxu0 0.0
        %4215 = vmatpush.msra.mxu0 0.0
        %4216 = vmatpush.msra.mxu0 0.0
        %4217 = vmatpush.msra.mxu0 0.0
        %4218 = vmatpush.msra.mxu0 0.0
        %4219 = vmatpush.msra.mxu0 0.0
        %4220 = vmatpush.msra.mxu0 %v4202
        %4221 = vmatpush.msra.mxu0 %v4177
        %4222 = vmatpush.msra.mxu0 %v4175
        %4223 = vmatmul.f32.gmra.mxu0 %v4196
        %v4224 = vpop.f32.mrf.mxu0
        %v4225 = vadd.f32 %v4188, %v4224
        %4226 = vmatmul.f32.gmra.mxu0 %v4199
        %v4227 = vpop.f32.mrf.mxu0
        %v4228 = vadd.f32 %v4193, %v4227
        %4229 = vdwg.mxu0
        %4230 = vmatpush.msra.mxu0 0.0
        %4231 = vmatpush.msra.mxu0 0.0
        %4232 = vmatpush.msra.mxu0 0.0
        %4233 = vmatpush.msra.mxu0 0.0
        %4234 = vmatpush.msra.mxu0 0.0
        %4235 = vmatpush.msra.mxu0 0.0
        %4236 = vmatpush.msra.mxu0 0.0
        %4237 = vmatpush.msra.mxu0 0.0
        %4238 = vmatpush.msra.mxu0 0.0
        %4239 = vmatpush.msra.mxu0 0.0
        %4240 = vmatpush.msra.mxu0 0.0
        %4241 = vmatpush.msra.mxu0 0.0
        %4242 = vmatpush.msra.mxu0 0.0
        %4243 = vmatpush.msra.mxu0 %v4205
        %4244 = vmatpush.msra.mxu0 %v4178
        %4245 = vmatpush.msra.mxu0 %v4176
        %4246 = vmatmul.f32.gmra.mxu0 %v4196
        %v4247 = vpop.f32.mrf.mxu0
        %v4248 = vadd.f32 %v4188, %v4247
        %4249 = vmatmul.f32.gmra.mxu0 %v4199
        %v4250 = vpop.f32.mrf.mxu0
        %v4251 = vadd.f32 %v4193, %v4250
        %4252 = vdwg.mxu0
        %vm4253 = vcmp.ge.f32.partialorder %v4225, 0.0
        %vm4254 = vcmp.ge.f32.partialorder %v4248, 0.0
        %vm4255 = vcmp.ge.f32.partialorder %v4228, 0.0
        %vm4256 = vcmp.ge.f32.partialorder %v4251, 0.0
        %v4257 = vmul.f32 %v4225, 0.3
        %v4258 = vmul.f32 %v4248, 0.3
        %v4259 = vmul.f32 %v4228, 0.3
        %v4260 = vmul.f32 %v4251, 0.3
        %v4261 = vsel %vm4253, %v4225, %v4257
        %v4262 = vsel %vm4254, %v4248, %v4258
        %v4263 = vsel %vm4255, %v4228, %v4259
        %v4264 = vsel %vm4256, %v4251, %v4260
        %v4265 = vld [vmem:[%s9] sm:$0x1]
        %v4266 = vld [vmem:[#allocation3] sm:$0x1]
        %4268 = vset.pattern.permute.xlu0 0
        %4269 = vperm.xlu0 %4268, %v4266
        %v4270 = vpop.permute.xlu0 %4269
        %v4272 = vperm.slane %v4270, 0
        %v4274 = vsel %vm1655, %v4265, 0
        %v4277 = vsel %vm1659, %v4263, 0
        %v4280 = vsel %vm1659, %v4264, 0
        %4282 = vmatpush.msra.mxu0 0.0
        %4283 = vmatpush.msra.mxu0 0.0
        %4284 = vmatpush.msra.mxu0 0.0
        %4285 = vmatpush.msra.mxu0 0.0
        %4286 = vmatpush.msra.mxu0 0.0
        %4287 = vmatpush.msra.mxu0 0.0
        %4288 = vmatpush.msra.mxu0 0.0
        %4289 = vmatpush.msra.mxu0 0.0
        %4290 = vmatpush.msra.mxu0 0.0
        %4291 = vmatpush.msra.mxu0 0.0
        %4292 = vmatpush.msra.mxu0 0.0
        %4293 = vmatpush.msra.mxu0 0.0
        %4294 = vmatpush.msra.mxu0 0.0
        %4295 = vmatpush.msra.mxu0 0.0
        %4296 = vmatpush.msra.mxu0 %v4277
        %4297 = vmatpush.msra.mxu0 %v4261
        %4298 = vmatmul.f32.gmra.mxu0 %v4274
        %v4299 = vpop.f32.mrf.mxu0
        %v4300 = vadd.f32 %v4272, %v4299
        %4301 = vdwg.mxu0
        %4302 = vmatpush.msra.mxu0 0.0
        %4303 = vmatpush.msra.mxu0 0.0
        %4304 = vmatpush.msra.mxu0 0.0
        %4305 = vmatpush.msra.mxu0 0.0
        %4306 = vmatpush.msra.mxu0 0.0
        %4307 = vmatpush.msra.mxu0 0.0
        %4308 = vmatpush.msra.mxu0 0.0
        %4309 = vmatpush.msra.mxu0 0.0
        %4310 = vmatpush.msra.mxu0 0.0
        %4311 = vmatpush.msra.mxu0 0.0
        %4312 = vmatpush.msra.mxu0 0.0
        %4313 = vmatpush.msra.mxu0 0.0
        %4314 = vmatpush.msra.mxu0 0.0
        %4315 = vmatpush.msra.mxu0 0.0
        %4316 = vmatpush.msra.mxu0 %v4280
        %4317 = vmatpush.msra.mxu0 %v4262
        %4318 = vmatmul.f32.gmra.mxu0 %v4274
        %v4319 = vpop.f32.mrf.mxu0
        %v4320 = vadd.f32 %v4272, %v4319
        %4321 = vdwg.mxu0
        %vm4322 = vcmp.ge.f32.partialorder %v4300, 0.0
        %vm4323 = vcmp.ge.f32.partialorder %v4320, 0.0
        %v4324 = vmul.f32 %v4300, 0.3
        %v4325 = vmul.f32 %v4320, 0.3
        %v4326 = vsel %vm4322, %v4300, %v4324
        %v4327 = vsel %vm4323, %v4320, %v4325
        %v4328 = vld [vmem:[#allocation4] sm:$0x1]
        %4330 = vset.pattern.permute.xlu0 0
        %4331 = vperm.xlu0 %4330, %v4328
        %v4332 = vpop.permute.xlu0 %4331
        %v4334 = vperm.slane %v4332, 0
        %v4335 = vmul.f32 %v4334, %v4326
        %v4336 = vmul.f32 %v4334, %v4327
        %v4337 = vld [vmem:[#allocation5] sm:$0x1]
        %4339 = vset.pattern.permute.xlu0 0
        %4340 = vperm.xlu0 %4339, %v4337
        %v4341 = vpop.permute.xlu0 %4340
        %v4343 = vperm.slane %v4341, 0
        %v4344 = vadd.f32 %v4335, %v4343
        %v4345 = vadd.f32 %v4336, %v4343
        %vm4346 = vcmp.ge.f32.partialorder %v4344, 0.0
        %vm4347 = vcmp.ge.f32.partialorder %v4345, 0.0
        %v4348 = vmul.f32 %v4344, 0.3
        %v4349 = vmul.f32 %v4345, 0.3
        %v4350 = vsel %vm4346, %v4344, %v4348
        %v4351 = vsel %vm4347, %v4345, %v4349
        %v4352 = vld [vmem:[%s13] sm:$0xff]
        %v4353 = vld [vmem:[%s13 + $0x8] sm:$0xff]
        %v4354 = vld [vmem:[%s13 + $0x10] sm:$0xff]
        %v4355 = vld [vmem:[%s13 + $0x18] sm:$0xff]
        %v4356 = vld [vmem:[%s13 + $0x20] sm:$0xff]
        %v4357 = vld [vmem:[%s13 + $0x28] sm:$0xff]
        %v4358 = vld [vmem:[%s13 + $0x30] sm:$0xff]
        %v4359 = vld [vmem:[%s13 + $0x38] sm:$0xff]
        %v4360 = vld [vmem:[%s13 + $0x40] sm:$0xff]
        %v4361 = vld [vmem:[%s13 + $0x48] sm:$0xff]
        %v4362 = vld [vmem:[%s13 + $0x50] sm:$0xff]
        %v4363 = vld [vmem:[%s13 + $0x58] sm:$0xff]
        %v4364 = vld [vmem:[%s13 + $0x60] sm:$0xff]
        %v4365 = vld [vmem:[%s13 + $0x68] sm:$0xff]
        %v4366 = vld [vmem:[%s13 + $0x70] sm:$0xff]
        %v4367 = vld [vmem:[%s13 + $0x78] sm:$0xff]
        %v4368 = vld [vmem:[%s13 + $0x80] sm:$0xff]
        %v4369 = vld [vmem:[%s13 + $0x88] sm:$0xff]
        %v4370 = vld [vmem:[%s13 + $0x90] sm:$0xff]
        %v4371 = vld [vmem:[%s13 + $0x98] sm:$0xff]
        %v4372 = vld [vmem:[%s13 + $0xa0] sm:$0xff]
        %v4373 = vld [vmem:[%s13 + $0xa8] sm:$0xff]
        %v4374 = vld [vmem:[%s13 + $0xb0] sm:$0xff]
        %v4375 = vld [vmem:[%s13 + $0xb8] sm:$0xff]
        %v4376 = vld [vmem:[%s13 + $0xc0] sm:$0xff]
        %v4377 = vld [vmem:[%s13 + $0xc8] sm:$0xff]
        %v4378 = vld [vmem:[%s13 + $0xd0] sm:$0xff]
        %v4380 = vsel %vm1763, %v4351, 0
        %4382 = vmatpush.msra.mxu0 %v4367
        %4383 = vmatpush.msra.mxu0 %v4366
        %4384 = vmatpush.msra.mxu0 %v4365
        %4385 = vmatpush.msra.mxu0 %v4364
        %4386 = vmatpush.msra.mxu0 %v4363
        %4387 = vmatpush.msra.mxu0 %v4362
        %4388 = vmatpush.msra.mxu0 %v4361
        %4389 = vmatpush.msra.mxu0 %v4360
        %4390 = vmatpush.msra.mxu0 %v4359
        %4391 = vmatpush.msra.mxu0 %v4358
        %4392 = vmatpush.msra.mxu0 %v4357
        %4393 = vmatpush.msra.mxu0 %v4356
        %4394 = vmatpush.msra.mxu0 %v4355
        %4395 = vmatpush.msra.mxu0 %v4354
        %4396 = vmatpush.msra.mxu0 %v4353
        %4397 = vmatpush.msra.mxu0 %v4352
        %4398 = vmatmul.f32.gmra.mxu0 %v4350
        %v4399 = vpop.f32.mrf.mxu0
        %v4400 = vadd.f32 0.0, %v4399
        %4401 = vdwg.mxu0
        %4402 = vmatpush.msra.mxu0 0.0
        %4403 = vmatpush.msra.mxu0 0.0
        %4404 = vmatpush.msra.mxu0 0.0
        %4405 = vmatpush.msra.mxu0 0.0
        %4406 = vmatpush.msra.mxu0 0.0
        %4407 = vmatpush.msra.mxu0 %v4378
        %4408 = vmatpush.msra.mxu0 %v4377
        %4409 = vmatpush.msra.mxu0 %v4376
        %4410 = vmatpush.msra.mxu0 %v4375
        %4411 = vmatpush.msra.mxu0 %v4374
        %4412 = vmatpush.msra.mxu0 %v4373
        %4413 = vmatpush.msra.mxu0 %v4372
        %4414 = vmatpush.msra.mxu0 %v4371
        %4415 = vmatpush.msra.mxu0 %v4370
        %4416 = vmatpush.msra.mxu0 %v4369
        %4417 = vmatpush.msra.mxu0 %v4368
        %4418 = vmatmul.f32.gmra.mxu0 %v4380
        %v4419 = vpop.f32.mrf.mxu0
        %v4420 = vadd.f32 %v4400, %v4419
        %4421 = vdwg.mxu0
        %v4422 = vsel %vm486, %v4420, -inf
        %4423 = vmax.xlane.f32.xlu0 %v4422
        %v4424 = vpop.xlane.xlu0 %4423
        %v4425 = vsub.f32 %v4420, %v4424
        %v4426 = vmul.f32 %v4425, 1.442695
        %v4427 = vpow.pop %v4426
        %v4428 = vsel %vm486, %v4427, 0.0
        %4429 = vadd.xlane.f32.xlu0 %v4428
        %v4430 = vpop.xlane.xlu0 %4429
        %v4431 = vrcp.pop %v4430
        %v4432 = vmul.f32 %v4430, %v4431
        %v4433 = vsub.f32 1.0, %v4432
        %v4434 = vmul.f32 %v4431, %v4433
        %v4435 = vadd.f32 %v4431, %v4434
        %vm4436 = vweird.f32 %v4430
        %vm4437 = vweird.f32 %v4431
        %vm4438 = vmor %vm4436, %vm4437
        %v4439 = vsel %vm4438, %v4431, %v4435
        %v4440 = vand.u32 2147483647, %v4430
        %vm4441 = vcmp.eq.f32.partialorder %v4440, 8.507059e+37
        %v4442 = vand.u32 %v4430, 2147483648
        %v4443 = vor.u32 1.1754944e-38, %v4442
        %v4444 = vsel %vm4441, %v4443, %v4439
        %v4445 = vmul.f32 %v4427, %v4444
        %s4446 = scalar_lea.vmem %s467, 2 [#allocation6]
        %4447 = vst [vmem:[%s4446] sm:$0x1] %v4445
        %s4448 = scalar_lea.vmem %s472, 6
        %v4449 = vld [vmem:[%s4448] sm:$0x3]
        %v4451 = vperm.slane %v4449, 0
        %v4452 = vperm.slane %v4449, 1
        %v4455 = vsel %vm486, %v4451, 0.0
        %v4456 = vsel %vm488, %v4452, 0.0
        %v4457 = vadd.f32 %v4455, %v4456
        %4458 = vadd.xlane.f32.xlu0 %v4457
        %v4459 = vpop.xlane.xlu0 %4458
        %v4460 = vadd.f32 %v4459, 0.0
        %v4461 = vmul.f32 %v4460, %v500
        %v4463 = vperm.slane %v4461, 0
        %v4465 = vsub.f32 %v4449, %v4463
        %v4466 = vmul.f32 %v4465, %v4465
        %v4468 = vperm.slane %v4466, 0
        %v4469 = vperm.slane %v4466, 1
        %v4472 = vsel %vm486, %v4468, 0.0
        %v4473 = vsel %vm488, %v4469, 0.0
        %v4474 = vadd.f32 %v4472, %v4473
        %4475 = vadd.xlane.f32.xlu0 %v4474
        %v4476 = vpop.xlane.xlu0 %4475
        %v4477 = vadd.f32 %v4476, 0.0
        %v4478 = vmul.f32 %v4477, %v500
        %v4479 = vadd.f32 %v4478, 1e-05
        %v4480 = vrsqrt.pop %v4479
        %v4481 = vmul.f32 %v4480, %v4479
        %v4482 = vmul.f32 %v4481, %v4480
        %v4483 = vmul.f32 0.5, %v4482
        %v4484 = vsub.f32 1.5, %v4483
        %v4485 = vmul.f32 %v4480, %v4484
        %vm4486 = vweird.f32 %v4479
        %vm4487 = vweird.f32 %v4480
        %vm4488 = vmor %vm4486, %vm4487
        %v4489 = vsel %vm4488, %v4480, %v4485
        %v4490 = vld [vmem:[%s1] sm:$0x3]
        %v4492 = vperm.slane %v4490, 0
        %v4493 = vperm.slane %v4490, 1
        %v4496 = vmul.f32 %v4489, %v4492
        %v4497 = vmul.f32 %v4489, %v4493
        %v4500 = vrot.slane %v4497, 7
        %v4501 = vsel %vm486, %v4496, %v4500
        %v4503 = vmul.f32 %v4465, %v4501
        %v4504 = vld [vmem:[%s2] sm:$0x3]
        %v4505 = vadd.f32 %v4503, %v4504
        %4507 = vrot.lane.b32.xlu0 %v4505, 7
        %v4508 = vpop.permute.xlu0 %4507
        %v4509 = vrot.slane %v4508, 7
        %v4510 = vsel %vm550, %v4509, %v4508
        %4512 = vst.msk [vmem:[#allocation2] sm:$0x3] %vm555, %v4510
        %v4513 = vld [vmem:[#allocation2] sm:$0x3]
        %v4514 = vld [vmem:[%s3] sm:$0xff]
        %v4515 = vld [vmem:[%s3 + $0x8] sm:$0xff]
        %v4516 = vld [vmem:[%s3 + $0x10] sm:$0xf]
        %4518 = vset.pattern.permute.xlu0 0
        %4519 = vperm.xlu0 %4518, %v4514
        %v4520 = vpop.permute.xlu0 %4519
        %4523 = vset.pattern.permute.xlu0 0
        %4524 = vperm.xlu0 %4523, %v4515
        %v4525 = vpop.permute.xlu0 %4524
        %4528 = vset.pattern.permute.xlu0 0
        %4529 = vperm.xlu0 %4528, %v4516
        %v4530 = vpop.permute.xlu0 %4529
        %v4533 = vperm.slane %v4513, 0
        %v4534 = vperm.slane %v4513, 1
        %v4537 = vmul.f32 %v4520, %v4533
        %v4538 = vmul.f32 %v4520, %v4534
        %v4539 = vmul.f32 %v4525, %v4533
        %v4540 = vmul.f32 %v4525, %v4534
        %v4541 = vmul.f32 %v4530, %v4533
        %v4542 = vmul.f32 %v4530, %v4534
        %v4543 = vld [vmem:[%s587] sm:$0xff]
        %v4544 = vld [vmem:[%s587 + $0x8] sm:$0xff]
        %v4545 = vld [vmem:[%s587 + $0x10] sm:$0xf]
        %4547 = vset.pattern.permute.xlu0 0
        %4548 = vperm.xlu0 %4547, %v4543
        %v4549 = vpop.permute.xlu0 %4548
        %4552 = vset.pattern.permute.xlu0 0
        %4553 = vperm.xlu0 %4552, %v4544
        %v4554 = vpop.permute.xlu0 %4553
        %4557 = vset.pattern.permute.xlu0 0
        %4558 = vperm.xlu0 %4557, %v4545
        %v4559 = vpop.permute.xlu0 %4558
        %v4561 = vmul.f32 %v4549, %v4533
        %v4562 = vmul.f32 %v4549, %v4534
        %v4563 = vmul.f32 %v4554, %v4533
        %v4564 = vmul.f32 %v4554, %v4534
        %v4565 = vmul.f32 %v4559, %v4533
        %v4566 = vmul.f32 %v4559, %v4534
        %4573 = vrot.lane.b32.xlu0 %v4561, 127
        %v4574 = vpop.permute.xlu0 %4573
        %4575 = vrot.lane.b32.xlu0 %v4562, 127
        %v4576 = vpop.permute.xlu0 %4575
        %4577 = vrot.lane.b32.xlu0 %v4563, 127
        %v4578 = vpop.permute.xlu0 %4577
        %4579 = vrot.lane.b32.xlu0 %v4564, 127
        %v4580 = vpop.permute.xlu0 %4579
        %4581 = vrot.lane.b32.xlu0 %v4565, 127
        %v4582 = vpop.permute.xlu0 %4581
        %4583 = vrot.lane.b32.xlu0 %v4566, 127
        %v4584 = vpop.permute.xlu0 %4583
        %v4585 = vsel %vm630, %v4574, %v4576
        %v4586 = vsel %vm630, %v4578, %v4580
        %v4587 = vsel %vm630, %v4582, %v4584
        %v4594 = vadd.f32 %v4537, %v4585
        %v4595 = vadd.f32 %v4538, %v4576
        %v4596 = vadd.f32 %v4539, %v4586
        %v4597 = vadd.f32 %v4540, %v4580
        %v4598 = vadd.f32 %v4541, %v4587
        %v4599 = vadd.f32 %v4542, %v4584
        %v4600 = vld [vmem:[%s646] sm:$0xff]
        %v4601 = vld [vmem:[%s646 + $0x8] sm:$0xff]
        %v4602 = vld [vmem:[%s646 + $0x10] sm:$0xf]
        %4604 = vset.pattern.permute.xlu0 0
        %4605 = vperm.xlu0 %4604, %v4600
        %v4606 = vpop.permute.xlu0 %4605
        %4609 = vset.pattern.permute.xlu0 0
        %4610 = vperm.xlu0 %4609, %v4601
        %v4611 = vpop.permute.xlu0 %4610
        %4614 = vset.pattern.permute.xlu0 0
        %4615 = vperm.xlu0 %4614, %v4602
        %v4616 = vpop.permute.xlu0 %4615
        %v4618 = vmul.f32 %v4606, %v4533
        %v4619 = vmul.f32 %v4606, %v4534
        %v4620 = vmul.f32 %v4611, %v4533
        %v4621 = vmul.f32 %v4611, %v4534
        %v4622 = vmul.f32 %v4616, %v4533
        %v4623 = vmul.f32 %v4616, %v4534
        %4630 = vrot.lane.b32.xlu0 %v4618, 126
        %v4631 = vpop.permute.xlu0 %4630
        %4632 = vrot.lane.b32.xlu0 %v4619, 126
        %v4633 = vpop.permute.xlu0 %4632
        %4634 = vrot.lane.b32.xlu0 %v4620, 126
        %v4635 = vpop.permute.xlu0 %4634
        %4636 = vrot.lane.b32.xlu0 %v4621, 126
        %v4637 = vpop.permute.xlu0 %4636
        %4638 = vrot.lane.b32.xlu0 %v4622, 126
        %v4639 = vpop.permute.xlu0 %4638
        %4640 = vrot.lane.b32.xlu0 %v4623, 126
        %v4641 = vpop.permute.xlu0 %4640
        %v4642 = vsel %vm689, %v4631, %v4633
        %v4643 = vsel %vm689, %v4635, %v4637
        %v4644 = vsel %vm689, %v4639, %v4641
        %v4651 = vadd.f32 %v4594, %v4642
        %v4652 = vadd.f32 %v4595, %v4633
        %v4653 = vadd.f32 %v4596, %v4643
        %v4654 = vadd.f32 %v4597, %v4637
        %v4655 = vadd.f32 %v4598, %v4644
        %v4656 = vadd.f32 %v4599, %v4641
        %v4657 = vld [vmem:[%s705] sm:$0xff]
        %v4658 = vld [vmem:[%s705 + $0x8] sm:$0xff]
        %v4659 = vld [vmem:[%s705 + $0x10] sm:$0xf]
        %4661 = vset.pattern.permute.xlu0 0
        %4662 = vperm.xlu0 %4661, %v4657
        %v4663 = vpop.permute.xlu0 %4662
        %4666 = vset.pattern.permute.xlu0 0
        %4667 = vperm.xlu0 %4666, %v4658
        %v4668 = vpop.permute.xlu0 %4667
        %4671 = vset.pattern.permute.xlu0 0
        %4672 = vperm.xlu0 %4671, %v4659
        %v4673 = vpop.permute.xlu0 %4672
        %v4675 = vmul.f32 %v4663, %v4533
        %v4676 = vmul.f32 %v4663, %v4534
        %v4677 = vmul.f32 %v4668, %v4533
        %v4678 = vmul.f32 %v4668, %v4534
        %v4679 = vmul.f32 %v4673, %v4533
        %v4680 = vmul.f32 %v4673, %v4534
        %4687 = vrot.lane.b32.xlu0 %v4675, 125
        %v4688 = vpop.permute.xlu0 %4687
        %4689 = vrot.lane.b32.xlu0 %v4676, 125
        %v4690 = vpop.permute.xlu0 %4689
        %4691 = vrot.lane.b32.xlu0 %v4677, 125
        %v4692 = vpop.permute.xlu0 %4691
        %4693 = vrot.lane.b32.xlu0 %v4678, 125
        %v4694 = vpop.permute.xlu0 %4693
        %4695 = vrot.lane.b32.xlu0 %v4679, 125
        %v4696 = vpop.permute.xlu0 %4695
        %4697 = vrot.lane.b32.xlu0 %v4680, 125
        %v4698 = vpop.permute.xlu0 %4697
        %v4699 = vsel %vm748, %v4688, %v4690
        %v4700 = vsel %vm748, %v4692, %v4694
        %v4701 = vsel %vm748, %v4696, %v4698
        %v4708 = vadd.f32 %v4651, %v4699
        %v4709 = vadd.f32 %v4652, %v4690
        %v4710 = vadd.f32 %v4653, %v4700
        %v4711 = vadd.f32 %v4654, %v4694
        %v4712 = vadd.f32 %v4655, %v4701
        %v4713 = vadd.f32 %v4656, %v4698
        %v4714 = vld [vmem:[%s764] sm:$0xff]
        %v4715 = vld [vmem:[%s764 + $0x8] sm:$0xff]
        %v4716 = vld [vmem:[%s764 + $0x10] sm:$0xf]
        %4718 = vset.pattern.permute.xlu0 0
        %4719 = vperm.xlu0 %4718, %v4714
        %v4720 = vpop.permute.xlu0 %4719
        %4723 = vset.pattern.permute.xlu0 0
        %4724 = vperm.xlu0 %4723, %v4715
        %v4725 = vpop.permute.xlu0 %4724
        %4728 = vset.pattern.permute.xlu0 0
        %4729 = vperm.xlu0 %4728, %v4716
        %v4730 = vpop.permute.xlu0 %4729
        %v4732 = vmul.f32 %v4720, %v4533
        %v4733 = vmul.f32 %v4720, %v4534
        %v4734 = vmul.f32 %v4725, %v4533
        %v4735 = vmul.f32 %v4725, %v4534
        %v4736 = vmul.f32 %v4730, %v4533
        %v4737 = vmul.f32 %v4730, %v4534
        %4744 = vrot.lane.b32.xlu0 %v4732, 124
        %v4745 = vpop.permute.xlu0 %4744
        %4746 = vrot.lane.b32.xlu0 %v4733, 124
        %v4747 = vpop.permute.xlu0 %4746
        %4748 = vrot.lane.b32.xlu0 %v4734, 124
        %v4749 = vpop.permute.xlu0 %4748
        %4750 = vrot.lane.b32.xlu0 %v4735, 124
        %v4751 = vpop.permute.xlu0 %4750
        %4752 = vrot.lane.b32.xlu0 %v4736, 124
        %v4753 = vpop.permute.xlu0 %4752
        %4754 = vrot.lane.b32.xlu0 %v4737, 124
        %v4755 = vpop.permute.xlu0 %4754
        %v4756 = vsel %vm807, %v4745, %v4747
        %v4757 = vsel %vm807, %v4749, %v4751
        %v4758 = vsel %vm807, %v4753, %v4755
        %v4765 = vadd.f32 %v4708, %v4756
        %v4766 = vadd.f32 %v4709, %v4747
        %v4767 = vadd.f32 %v4710, %v4757
        %v4768 = vadd.f32 %v4711, %v4751
        %v4769 = vadd.f32 %v4712, %v4758
        %v4770 = vadd.f32 %v4713, %v4755
        %v4771 = vld [vmem:[%s823] sm:$0xff]
        %v4772 = vld [vmem:[%s823 + $0x8] sm:$0xff]
        %v4773 = vld [vmem:[%s823 + $0x10] sm:$0xf]
        %4775 = vset.pattern.permute.xlu0 0
        %4776 = vperm.xlu0 %4775, %v4771
        %v4777 = vpop.permute.xlu0 %4776
        %4780 = vset.pattern.permute.xlu0 0
        %4781 = vperm.xlu0 %4780, %v4772
        %v4782 = vpop.permute.xlu0 %4781
        %4785 = vset.pattern.permute.xlu0 0
        %4786 = vperm.xlu0 %4785, %v4773
        %v4787 = vpop.permute.xlu0 %4786
        %v4789 = vmul.f32 %v4777, %v4533
        %v4790 = vmul.f32 %v4777, %v4534
        %v4791 = vmul.f32 %v4782, %v4533
        %v4792 = vmul.f32 %v4782, %v4534
        %v4793 = vmul.f32 %v4787, %v4533
        %v4794 = vmul.f32 %v4787, %v4534
        %4801 = vrot.lane.b32.xlu0 %v4789, 123
        %v4802 = vpop.permute.xlu0 %4801
        %4803 = vrot.lane.b32.xlu0 %v4790, 123
        %v4804 = vpop.permute.xlu0 %4803
        %4805 = vrot.lane.b32.xlu0 %v4791, 123
        %v4806 = vpop.permute.xlu0 %4805
        %4807 = vrot.lane.b32.xlu0 %v4792, 123
        %v4808 = vpop.permute.xlu0 %4807
        %4809 = vrot.lane.b32.xlu0 %v4793, 123
        %v4810 = vpop.permute.xlu0 %4809
        %4811 = vrot.lane.b32.xlu0 %v4794, 123
        %v4812 = vpop.permute.xlu0 %4811
        %v4813 = vsel %vm866, %v4802, %v4804
        %v4814 = vsel %vm866, %v4806, %v4808
        %v4815 = vsel %vm866, %v4810, %v4812
        %v4822 = vadd.f32 %v4765, %v4813
        %v4823 = vadd.f32 %v4766, %v4804
        %v4824 = vadd.f32 %v4767, %v4814
        %v4825 = vadd.f32 %v4768, %v4808
        %v4826 = vadd.f32 %v4769, %v4815
        %v4827 = vadd.f32 %v4770, %v4812
        %v4828 = vld [vmem:[%s882] sm:$0xff]
        %v4829 = vld [vmem:[%s882 + $0x8] sm:$0xff]
        %v4830 = vld [vmem:[%s882 + $0x10] sm:$0xf]
        %4832 = vset.pattern.permute.xlu0 0
        %4833 = vperm.xlu0 %4832, %v4828
        %v4834 = vpop.permute.xlu0 %4833
        %4837 = vset.pattern.permute.xlu0 0
        %4838 = vperm.xlu0 %4837, %v4829
        %v4839 = vpop.permute.xlu0 %4838
        %4842 = vset.pattern.permute.xlu0 0
        %4843 = vperm.xlu0 %4842, %v4830
        %v4844 = vpop.permute.xlu0 %4843
        %v4846 = vmul.f32 %v4834, %v4533
        %v4847 = vmul.f32 %v4834, %v4534
        %v4848 = vmul.f32 %v4839, %v4533
        %v4849 = vmul.f32 %v4839, %v4534
        %v4850 = vmul.f32 %v4844, %v4533
        %v4851 = vmul.f32 %v4844, %v4534
        %4858 = vrot.lane.b32.xlu0 %v4846, 122
        %v4859 = vpop.permute.xlu0 %4858
        %4860 = vrot.lane.b32.xlu0 %v4847, 122
        %v4861 = vpop.permute.xlu0 %4860
        %4862 = vrot.lane.b32.xlu0 %v4848, 122
        %v4863 = vpop.permute.xlu0 %4862
        %4864 = vrot.lane.b32.xlu0 %v4849, 122
        %v4865 = vpop.permute.xlu0 %4864
        %4866 = vrot.lane.b32.xlu0 %v4850, 122
        %v4867 = vpop.permute.xlu0 %4866
        %4868 = vrot.lane.b32.xlu0 %v4851, 122
        %v4869 = vpop.permute.xlu0 %4868
        %v4870 = vsel %vm925, %v4859, %v4861
        %v4871 = vsel %vm925, %v4863, %v4865
        %v4872 = vsel %vm925, %v4867, %v4869
        %v4879 = vadd.f32 %v4822, %v4870
        %v4880 = vadd.f32 %v4823, %v4861
        %v4881 = vadd.f32 %v4824, %v4871
        %v4882 = vadd.f32 %v4825, %v4865
        %v4883 = vadd.f32 %v4826, %v4872
        %v4884 = vadd.f32 %v4827, %v4869
        %v4885 = vld [vmem:[%s941] sm:$0xff]
        %v4886 = vld [vmem:[%s941 + $0x8] sm:$0xff]
        %v4887 = vld [vmem:[%s941 + $0x10] sm:$0xf]
        %4889 = vset.pattern.permute.xlu0 0
        %4890 = vperm.xlu0 %4889, %v4885
        %v4891 = vpop.permute.xlu0 %4890
        %4894 = vset.pattern.permute.xlu0 0
        %4895 = vperm.xlu0 %4894, %v4886
        %v4896 = vpop.permute.xlu0 %4895
        %4899 = vset.pattern.permute.xlu0 0
        %4900 = vperm.xlu0 %4899, %v4887
        %v4901 = vpop.permute.xlu0 %4900
        %v4903 = vmul.f32 %v4891, %v4533
        %v4904 = vmul.f32 %v4891, %v4534
        %v4905 = vmul.f32 %v4896, %v4533
        %v4906 = vmul.f32 %v4896, %v4534
        %v4907 = vmul.f32 %v4901, %v4533
        %v4908 = vmul.f32 %v4901, %v4534
        %4915 = vrot.lane.b32.xlu0 %v4903, 121
        %v4916 = vpop.permute.xlu0 %4915
        %4917 = vrot.lane.b32.xlu0 %v4904, 121
        %v4918 = vpop.permute.xlu0 %4917
        %4919 = vrot.lane.b32.xlu0 %v4905, 121
        %v4920 = vpop.permute.xlu0 %4919
        %4921 = vrot.lane.b32.xlu0 %v4906, 121
        %v4922 = vpop.permute.xlu0 %4921
        %4923 = vrot.lane.b32.xlu0 %v4907, 121
        %v4924 = vpop.permute.xlu0 %4923
        %4925 = vrot.lane.b32.xlu0 %v4908, 121
        %v4926 = vpop.permute.xlu0 %4925
        %v4927 = vsel %vm984, %v4916, %v4918
        %v4928 = vsel %vm984, %v4920, %v4922
        %v4929 = vsel %vm984, %v4924, %v4926
        %v4936 = vadd.f32 %v4879, %v4927
        %v4937 = vadd.f32 %v4880, %v4918
        %v4938 = vadd.f32 %v4881, %v4928
        %v4939 = vadd.f32 %v4882, %v4922
        %v4940 = vadd.f32 %v4883, %v4929
        %v4941 = vadd.f32 %v4884, %v4926
        %v4942 = vld [vmem:[%s1000] sm:$0xff]
        %v4943 = vld [vmem:[%s1000 + $0x8] sm:$0xff]
        %v4944 = vld [vmem:[%s1000 + $0x10] sm:$0xf]
        %4946 = vset.pattern.permute.xlu0 0
        %4947 = vperm.xlu0 %4946, %v4942
        %v4948 = vpop.permute.xlu0 %4947
        %4951 = vset.pattern.permute.xlu0 0
        %4952 = vperm.xlu0 %4951, %v4943
        %v4953 = vpop.permute.xlu0 %4952
        %4956 = vset.pattern.permute.xlu0 0
        %4957 = vperm.xlu0 %4956, %v4944
        %v4958 = vpop.permute.xlu0 %4957
        %v4960 = vmul.f32 %v4948, %v4533
        %v4961 = vmul.f32 %v4948, %v4534
        %v4962 = vmul.f32 %v4953, %v4533
        %v4963 = vmul.f32 %v4953, %v4534
        %v4964 = vmul.f32 %v4958, %v4533
        %v4965 = vmul.f32 %v4958, %v4534
        %4972 = vrot.lane.b32.xlu0 %v4960, 120
        %v4973 = vpop.permute.xlu0 %4972
        %4974 = vrot.lane.b32.xlu0 %v4961, 120
        %v4975 = vpop.permute.xlu0 %4974
        %4976 = vrot.lane.b32.xlu0 %v4962, 120
        %v4977 = vpop.permute.xlu0 %4976
        %4978 = vrot.lane.b32.xlu0 %v4963, 120
        %v4979 = vpop.permute.xlu0 %4978
        %4980 = vrot.lane.b32.xlu0 %v4964, 120
        %v4981 = vpop.permute.xlu0 %4980
        %4982 = vrot.lane.b32.xlu0 %v4965, 120
        %v4983 = vpop.permute.xlu0 %4982
        %v4984 = vsel %vm1043, %v4973, %v4975
        %v4985 = vsel %vm1043, %v4977, %v4979
        %v4986 = vsel %vm1043, %v4981, %v4983
        %v4993 = vadd.f32 %v4936, %v4984
        %v4994 = vadd.f32 %v4937, %v4975
        %v4995 = vadd.f32 %v4938, %v4985
        %v4996 = vadd.f32 %v4939, %v4979
        %v4997 = vadd.f32 %v4940, %v4986
        %v4998 = vadd.f32 %v4941, %v4983
        %v4999 = vld [vmem:[%s1059] sm:$0xff]
        %v5000 = vld [vmem:[%s1059 + $0x8] sm:$0xff]
        %v5001 = vld [vmem:[%s1059 + $0x10] sm:$0xf]
        %5003 = vset.pattern.permute.xlu0 0
        %5004 = vperm.xlu0 %5003, %v4999
        %v5005 = vpop.permute.xlu0 %5004
        %5008 = vset.pattern.permute.xlu0 0
        %5009 = vperm.xlu0 %5008, %v5000
        %v5010 = vpop.permute.xlu0 %5009
        %5013 = vset.pattern.permute.xlu0 0
        %5014 = vperm.xlu0 %5013, %v5001
        %v5015 = vpop.permute.xlu0 %5014
        %v5017 = vmul.f32 %v5005, %v4533
        %v5018 = vmul.f32 %v5005, %v4534
        %v5019 = vmul.f32 %v5010, %v4533
        %v5020 = vmul.f32 %v5010, %v4534
        %v5021 = vmul.f32 %v5015, %v4533
        %v5022 = vmul.f32 %v5015, %v4534
        %5029 = vrot.lane.b32.xlu0 %v5017, 119
        %v5030 = vpop.permute.xlu0 %5029
        %5031 = vrot.lane.b32.xlu0 %v5018, 119
        %v5032 = vpop.permute.xlu0 %5031
        %5033 = vrot.lane.b32.xlu0 %v5019, 119
        %v5034 = vpop.permute.xlu0 %5033
        %5035 = vrot.lane.b32.xlu0 %v5020, 119
        %v5036 = vpop.permute.xlu0 %5035
        %5037 = vrot.lane.b32.xlu0 %v5021, 119
        %v5038 = vpop.permute.xlu0 %5037
        %5039 = vrot.lane.b32.xlu0 %v5022, 119
        %v5040 = vpop.permute.xlu0 %5039
        %v5041 = vsel %vm1102, %v5030, %v5032
        %v5042 = vsel %vm1102, %v5034, %v5036
        %v5043 = vsel %vm1102, %v5038, %v5040
        %v5050 = vadd.f32 %v4993, %v5041
        %v5051 = vadd.f32 %v4994, %v5032
        %v5052 = vadd.f32 %v4995, %v5042
        %v5053 = vadd.f32 %v4996, %v5036
        %v5054 = vadd.f32 %v4997, %v5043
        %v5055 = vadd.f32 %v4998, %v5040
        %v5056 = vld [vmem:[%s1118] sm:$0xff]
        %v5057 = vld [vmem:[%s1118 + $0x8] sm:$0xff]
        %v5058 = vld [vmem:[%s1118 + $0x10] sm:$0xf]
        %5060 = vset.pattern.permute.xlu0 0
        %5061 = vperm.xlu0 %5060, %v5056
        %v5062 = vpop.permute.xlu0 %5061
        %5065 = vset.pattern.permute.xlu0 0
        %5066 = vperm.xlu0 %5065, %v5057
        %v5067 = vpop.permute.xlu0 %5066
        %5070 = vset.pattern.permute.xlu0 0
        %5071 = vperm.xlu0 %5070, %v5058
        %v5072 = vpop.permute.xlu0 %5071
        %v5074 = vmul.f32 %v5062, %v4533
        %v5075 = vmul.f32 %v5062, %v4534
        %v5076 = vmul.f32 %v5067, %v4533
        %v5077 = vmul.f32 %v5067, %v4534
        %v5078 = vmul.f32 %v5072, %v4533
        %v5079 = vmul.f32 %v5072, %v4534
        %5086 = vrot.lane.b32.xlu0 %v5074, 118
        %v5087 = vpop.permute.xlu0 %5086
        %5088 = vrot.lane.b32.xlu0 %v5075, 118
        %v5089 = vpop.permute.xlu0 %5088
        %5090 = vrot.lane.b32.xlu0 %v5076, 118
        %v5091 = vpop.permute.xlu0 %5090
        %5092 = vrot.lane.b32.xlu0 %v5077, 118
        %v5093 = vpop.permute.xlu0 %5092
        %5094 = vrot.lane.b32.xlu0 %v5078, 118
        %v5095 = vpop.permute.xlu0 %5094
        %5096 = vrot.lane.b32.xlu0 %v5079, 118
        %v5097 = vpop.permute.xlu0 %5096
        %v5098 = vsel %vm1161, %v5087, %v5089
        %v5099 = vsel %vm1161, %v5091, %v5093
        %v5100 = vsel %vm1161, %v5095, %v5097
        %v5107 = vadd.f32 %v5050, %v5098
        %v5108 = vadd.f32 %v5051, %v5089
        %v5109 = vadd.f32 %v5052, %v5099
        %v5110 = vadd.f32 %v5053, %v5093
        %v5111 = vadd.f32 %v5054, %v5100
        %v5112 = vadd.f32 %v5055, %v5097
        %v5113 = vld [vmem:[%s1177] sm:$0xff]
        %v5114 = vld [vmem:[%s1177 + $0x8] sm:$0xff]
        %v5115 = vld [vmem:[%s1177 + $0x10] sm:$0xf]
        %5117 = vset.pattern.permute.xlu0 0
        %5118 = vperm.xlu0 %5117, %v5113
        %v5119 = vpop.permute.xlu0 %5118
        %5122 = vset.pattern.permute.xlu0 0
        %5123 = vperm.xlu0 %5122, %v5114
        %v5124 = vpop.permute.xlu0 %5123
        %5127 = vset.pattern.permute.xlu0 0
        %5128 = vperm.xlu0 %5127, %v5115
        %v5129 = vpop.permute.xlu0 %5128
        %v5131 = vmul.f32 %v5119, %v4533
        %v5132 = vmul.f32 %v5119, %v4534
        %v5133 = vmul.f32 %v5124, %v4533
        %v5134 = vmul.f32 %v5124, %v4534
        %v5135 = vmul.f32 %v5129, %v4533
        %v5136 = vmul.f32 %v5129, %v4534
        %5143 = vrot.lane.b32.xlu0 %v5131, 117
        %v5144 = vpop.permute.xlu0 %5143
        %5145 = vrot.lane.b32.xlu0 %v5132, 117
        %v5146 = vpop.permute.xlu0 %5145
        %5147 = vrot.lane.b32.xlu0 %v5133, 117
        %v5148 = vpop.permute.xlu0 %5147
        %5149 = vrot.lane.b32.xlu0 %v5134, 117
        %v5150 = vpop.permute.xlu0 %5149
        %5151 = vrot.lane.b32.xlu0 %v5135, 117
        %v5152 = vpop.permute.xlu0 %5151
        %5153 = vrot.lane.b32.xlu0 %v5136, 117
        %v5154 = vpop.permute.xlu0 %5153
        %v5155 = vsel %vm1220, %v5144, %v5146
        %v5156 = vsel %vm1220, %v5148, %v5150
        %v5157 = vsel %vm1220, %v5152, %v5154
        %v5164 = vadd.f32 %v5107, %v5155
        %v5165 = vadd.f32 %v5108, %v5146
        %v5166 = vadd.f32 %v5109, %v5156
        %v5167 = vadd.f32 %v5110, %v5150
        %v5168 = vadd.f32 %v5111, %v5157
        %v5169 = vadd.f32 %v5112, %v5154
        %v5170 = vld [vmem:[%s1236] sm:$0xff]
        %v5171 = vld [vmem:[%s1236 + $0x8] sm:$0xff]
        %v5172 = vld [vmem:[%s1236 + $0x10] sm:$0xf]
        %5174 = vset.pattern.permute.xlu0 0
        %5175 = vperm.xlu0 %5174, %v5170
        %v5176 = vpop.permute.xlu0 %5175
        %5179 = vset.pattern.permute.xlu0 0
        %5180 = vperm.xlu0 %5179, %v5171
        %v5181 = vpop.permute.xlu0 %5180
        %5184 = vset.pattern.permute.xlu0 0
        %5185 = vperm.xlu0 %5184, %v5172
        %v5186 = vpop.permute.xlu0 %5185
        %v5188 = vmul.f32 %v5176, %v4533
        %v5189 = vmul.f32 %v5176, %v4534
        %v5190 = vmul.f32 %v5181, %v4533
        %v5191 = vmul.f32 %v5181, %v4534
        %v5192 = vmul.f32 %v5186, %v4533
        %v5193 = vmul.f32 %v5186, %v4534
        %5200 = vrot.lane.b32.xlu0 %v5188, 116
        %v5201 = vpop.permute.xlu0 %5200
        %5202 = vrot.lane.b32.xlu0 %v5189, 116
        %v5203 = vpop.permute.xlu0 %5202
        %5204 = vrot.lane.b32.xlu0 %v5190, 116
        %v5205 = vpop.permute.xlu0 %5204
        %5206 = vrot.lane.b32.xlu0 %v5191, 116
        %v5207 = vpop.permute.xlu0 %5206
        %5208 = vrot.lane.b32.xlu0 %v5192, 116
        %v5209 = vpop.permute.xlu0 %5208
        %5210 = vrot.lane.b32.xlu0 %v5193, 116
        %v5211 = vpop.permute.xlu0 %5210
        %v5212 = vsel %vm1279, %v5201, %v5203
        %v5213 = vsel %vm1279, %v5205, %v5207
        %v5214 = vsel %vm1279, %v5209, %v5211
        %v5221 = vadd.f32 %v5164, %v5212
        %v5222 = vadd.f32 %v5165, %v5203
        %v5223 = vadd.f32 %v5166, %v5213
        %v5224 = vadd.f32 %v5167, %v5207
        %v5225 = vadd.f32 %v5168, %v5214
        %v5226 = vadd.f32 %v5169, %v5211
        %v5227 = vld [vmem:[%s1295] sm:$0xff]
        %v5228 = vld [vmem:[%s1295 + $0x8] sm:$0xff]
        %v5229 = vld [vmem:[%s1295 + $0x10] sm:$0xf]
        %5231 = vset.pattern.permute.xlu0 0
        %5232 = vperm.xlu0 %5231, %v5227
        %v5233 = vpop.permute.xlu0 %5232
        %5236 = vset.pattern.permute.xlu0 0
        %5237 = vperm.xlu0 %5236, %v5228
        %v5238 = vpop.permute.xlu0 %5237
        %5241 = vset.pattern.permute.xlu0 0
        %5242 = vperm.xlu0 %5241, %v5229
        %v5243 = vpop.permute.xlu0 %5242
        %v5245 = vmul.f32 %v5233, %v4533
        %v5246 = vmul.f32 %v5233, %v4534
        %v5247 = vmul.f32 %v5238, %v4533
        %v5248 = vmul.f32 %v5238, %v4534
        %v5249 = vmul.f32 %v5243, %v4533
        %v5250 = vmul.f32 %v5243, %v4534
        %5257 = vrot.lane.b32.xlu0 %v5245, 115
        %v5258 = vpop.permute.xlu0 %5257
        %5259 = vrot.lane.b32.xlu0 %v5246, 115
        %v5260 = vpop.permute.xlu0 %5259
        %5261 = vrot.lane.b32.xlu0 %v5247, 115
        %v5262 = vpop.permute.xlu0 %5261
        %5263 = vrot.lane.b32.xlu0 %v5248, 115
        %v5264 = vpop.permute.xlu0 %5263
        %5265 = vrot.lane.b32.xlu0 %v5249, 115
        %v5266 = vpop.permute.xlu0 %5265
        %5267 = vrot.lane.b32.xlu0 %v5250, 115
        %v5268 = vpop.permute.xlu0 %5267
        %v5269 = vsel %vm1338, %v5258, %v5260
        %v5270 = vsel %vm1338, %v5262, %v5264
        %v5271 = vsel %vm1338, %v5266, %v5268
        %v5278 = vadd.f32 %v5221, %v5269
        %v5279 = vadd.f32 %v5222, %v5260
        %v5280 = vadd.f32 %v5223, %v5270
        %v5281 = vadd.f32 %v5224, %v5264
        %v5282 = vadd.f32 %v5225, %v5271
        %v5283 = vadd.f32 %v5226, %v5268
        %v5284 = vld [vmem:[%s1354] sm:$0xff]
        %v5285 = vld [vmem:[%s1354 + $0x8] sm:$0xff]
        %v5286 = vld [vmem:[%s1354 + $0x10] sm:$0xf]
        %5288 = vset.pattern.permute.xlu0 0
        %5289 = vperm.xlu0 %5288, %v5284
        %v5290 = vpop.permute.xlu0 %5289
        %5293 = vset.pattern.permute.xlu0 0
        %5294 = vperm.xlu0 %5293, %v5285
        %v5295 = vpop.permute.xlu0 %5294
        %5298 = vset.pattern.permute.xlu0 0
        %5299 = vperm.xlu0 %5298, %v5286
        %v5300 = vpop.permute.xlu0 %5299
        %v5302 = vmul.f32 %v5290, %v4533
        %v5303 = vmul.f32 %v5290, %v4534
        %v5304 = vmul.f32 %v5295, %v4533
        %v5305 = vmul.f32 %v5295, %v4534
        %v5306 = vmul.f32 %v5300, %v4533
        %v5307 = vmul.f32 %v5300, %v4534
        %5314 = vrot.lane.b32.xlu0 %v5302, 114
        %v5315 = vpop.permute.xlu0 %5314
        %5316 = vrot.lane.b32.xlu0 %v5303, 114
        %v5317 = vpop.permute.xlu0 %5316
        %5318 = vrot.lane.b32.xlu0 %v5304, 114
        %v5319 = vpop.permute.xlu0 %5318
        %5320 = vrot.lane.b32.xlu0 %v5305, 114
        %v5321 = vpop.permute.xlu0 %5320
        %5322 = vrot.lane.b32.xlu0 %v5306, 114
        %v5323 = vpop.permute.xlu0 %5322
        %5324 = vrot.lane.b32.xlu0 %v5307, 114
        %v5325 = vpop.permute.xlu0 %5324
        %v5326 = vsel %vm1397, %v5315, %v5317
        %v5327 = vsel %vm1397, %v5319, %v5321
        %v5328 = vsel %vm1397, %v5323, %v5325
        %v5335 = vadd.f32 %v5278, %v5326
        %v5336 = vadd.f32 %v5279, %v5317
        %v5337 = vadd.f32 %v5280, %v5327
        %v5338 = vadd.f32 %v5281, %v5321
        %v5339 = vadd.f32 %v5282, %v5328
        %v5340 = vadd.f32 %v5283, %v5325
        %v5341 = vld [vmem:[%s4] sm:$0xff]
        %v5342 = vld [vmem:[%s4 + $0x8] sm:$0xff]
        %v5343 = vld [vmem:[%s4 + $0x10] sm:$0xf]
        %5345 = vset.pattern.permute.xlu0 0
        %5346 = vperm.xlu0 %5345, %v5341
        %v5347 = vpop.permute.xlu0 %5346
        %5350 = vset.pattern.permute.xlu0 0
        %5351 = vperm.xlu0 %5350, %v5342
        %v5352 = vpop.permute.xlu0 %5351
        %5355 = vset.pattern.permute.xlu0 0
        %5356 = vperm.xlu0 %5355, %v5343
        %v5357 = vpop.permute.xlu0 %5356
        %v5359 = vadd.f32 %v5335, %v5347
        %v5360 = vadd.f32 %v5336, %v5347
        %v5361 = vadd.f32 %v5337, %v5352
        %v5362 = vadd.f32 %v5338, %v5352
        %v5363 = vadd.f32 %v5339, %v5357
        %v5364 = vadd.f32 %v5340, %v5357
        %vm5365 = vcmp.ge.f32.partialorder %v5359, 0.0
        %vm5366 = vcmp.ge.f32.partialorder %v5360, 0.0
        %vm5367 = vcmp.ge.f32.partialorder %v5361, 0.0
        %vm5368 = vcmp.ge.f32.partialorder %v5362, 0.0
        %vm5369 = vcmp.ge.f32.partialorder %v5363, 0.0
        %vm5370 = vcmp.ge.f32.partialorder %v5364, 0.0
        %v5371 = vmul.f32 %v5359, 0.3
        %v5372 = vmul.f32 %v5360, 0.3
        %v5373 = vmul.f32 %v5361, 0.3
        %v5374 = vmul.f32 %v5362, 0.3
        %v5375 = vmul.f32 %v5363, 0.3
        %v5376 = vmul.f32 %v5364, 0.3
        %v5377 = vsel %vm5365, %v5359, %v5371
        %v5378 = vsel %vm5366, %v5360, %v5372
        %v5379 = vsel %vm5367, %v5361, %v5373
        %v5380 = vsel %vm5368, %v5362, %v5374
        %v5381 = vsel %vm5369, %v5363, %v5375
        %v5382 = vsel %vm5370, %v5364, %v5376
        %v5383 = vld [vmem:[%s5] sm:$0xff]
        %v5384 = vld [vmem:[%s5 + $0x8] sm:$0xff]
        %v5385 = vld [vmem:[%s5 + $0x10] sm:$0xf]
        %v5386 = vld [vmem:[%s6] sm:$0xff]
        %v5387 = vld [vmem:[%s6 + $0x8] sm:$0xff]
        %v5388 = vld [vmem:[%s6 + $0x10] sm:$0xf]
        %5390 = vset.pattern.permute.xlu0 0
        %5391 = vperm.xlu0 %5390, %v5386
        %v5392 = vpop.permute.xlu0 %5391
        %5395 = vset.pattern.permute.xlu0 0
        %5396 = vperm.xlu0 %5395, %v5387
        %v5397 = vpop.permute.xlu0 %5396
        %5400 = vset.pattern.permute.xlu0 0
        %5401 = vperm.xlu0 %5400, %v5388
        %v5402 = vpop.permute.xlu0 %5401
        %v5405 = vsel %vm1476, %v5383, 0
        %v5408 = vsel %vm1476, %v5384, 0
        %v5411 = vsel %vm1476, %v5385, 0
        %v5414 = vsel %vm1486, %v5381, 0
        %v5417 = vsel %vm1486, %v5382, 0
        %5419 = vmatpush.msra.mxu0 0.0
        %5420 = vmatpush.msra.mxu0 0.0
        %5421 = vmatpush.msra.mxu0 0.0
        %5422 = vmatpush.msra.mxu0 0.0
        %5423 = vmatpush.msra.mxu0 0.0
        %5424 = vmatpush.msra.mxu0 0.0
        %5425 = vmatpush.msra.mxu0 0.0
        %5426 = vmatpush.msra.mxu0 0.0
        %5427 = vmatpush.msra.mxu0 0.0
        %5428 = vmatpush.msra.mxu0 0.0
        %5429 = vmatpush.msra.mxu0 0.0
        %5430 = vmatpush.msra.mxu0 0.0
        %5431 = vmatpush.msra.mxu0 0.0
        %5432 = vmatpush.msra.mxu0 %v5414
        %5433 = vmatpush.msra.mxu0 %v5379
        %5434 = vmatpush.msra.mxu0 %v5377
        %5435 = vmatmul.f32.gmra.mxu0 %v5405
        %v5436 = vpop.f32.mrf.mxu0
        %v5437 = vadd.f32 %v5392, %v5436
        %5438 = vmatmul.f32.gmra.mxu0 %v5408
        %v5439 = vpop.f32.mrf.mxu0
        %v5440 = vadd.f32 %v5397, %v5439
        %5441 = vmatmul.f32.gmra.mxu0 %v5411
        %v5442 = vpop.f32.mrf.mxu0
        %v5443 = vadd.f32 %v5402, %v5442
        %5444 = vdwg.mxu0
        %5445 = vmatpush.msra.mxu0 0.0
        %5446 = vmatpush.msra.mxu0 0.0
        %5447 = vmatpush.msra.mxu0 0.0
        %5448 = vmatpush.msra.mxu0 0.0
        %5449 = vmatpush.msra.mxu0 0.0
        %5450 = vmatpush.msra.mxu0 0.0
        %5451 = vmatpush.msra.mxu0 0.0
        %5452 = vmatpush.msra.mxu0 0.0
        %5453 = vmatpush.msra.mxu0 0.0
        %5454 = vmatpush.msra.mxu0 0.0
        %5455 = vmatpush.msra.mxu0 0.0
        %5456 = vmatpush.msra.mxu0 0.0
        %5457 = vmatpush.msra.mxu0 0.0
        %5458 = vmatpush.msra.mxu0 %v5417
        %5459 = vmatpush.msra.mxu0 %v5380
        %5460 = vmatpush.msra.mxu0 %v5378
        %5461 = vmatmul.f32.gmra.mxu0 %v5405
        %v5462 = vpop.f32.mrf.mxu0
        %v5463 = vadd.f32 %v5392, %v5462
        %5464 = vmatmul.f32.gmra.mxu0 %v5408
        %v5465 = vpop.f32.mrf.mxu0
        %v5466 = vadd.f32 %v5397, %v5465
        %5467 = vmatmul.f32.gmra.mxu0 %v5411
        %v5468 = vpop.f32.mrf.mxu0
        %v5469 = vadd.f32 %v5402, %v5468
        %5470 = vdwg.mxu0
        %vm5471 = vcmp.ge.f32.partialorder %v5437, 0.0
        %vm5472 = vcmp.ge.f32.partialorder %v5463, 0.0
        %vm5473 = vcmp.ge.f32.partialorder %v5440, 0.0
        %vm5474 = vcmp.ge.f32.partialorder %v5466, 0.0
        %vm5475 = vcmp.ge.f32.partialorder %v5443, 0.0
        %vm5476 = vcmp.ge.f32.partialorder %v5469, 0.0
        %v5477 = vmul.f32 %v5437, 0.3
        %v5478 = vmul.f32 %v5463, 0.3
        %v5479 = vmul.f32 %v5440, 0.3
        %v5480 = vmul.f32 %v5466, 0.3
        %v5481 = vmul.f32 %v5443, 0.3
        %v5482 = vmul.f32 %v5469, 0.3
        %v5483 = vsel %vm5471, %v5437, %v5477
        %v5484 = vsel %vm5472, %v5463, %v5478
        %v5485 = vsel %vm5473, %v5440, %v5479
        %v5486 = vsel %vm5474, %v5466, %v5480
        %v5487 = vsel %vm5475, %v5443, %v5481
        %v5488 = vsel %vm5476, %v5469, %v5482
        %v5489 = vld [vmem:[%s7] sm:$0xff]
        %v5490 = vld [vmem:[%s7 + $0x8] sm:$0x3]
        %v5491 = vld [vmem:[%s8] sm:$0xff]
        %v5492 = vld [vmem:[%s8 + $0x8] sm:$0x3]
        %5494 = vset.pattern.permute.xlu0 0
        %5495 = vperm.xlu0 %5494, %v5491
        %v5496 = vpop.permute.xlu0 %5495
        %5499 = vset.pattern.permute.xlu0 0
        %5500 = vperm.xlu0 %5499, %v5492
        %v5501 = vpop.permute.xlu0 %5500
        %v5504 = vsel %vm1476, %v5489, 0
        %v5507 = vsel %vm1476, %v5490, 0
        %v5510 = vsel %vm1486, %v5487, 0
        %v5513 = vsel %vm1486, %v5488, 0
        %5515 = vmatpush.msra.mxu0 0.0
        %5516 = vmatpush.msra.mxu0 0.0
        %5517 = vmatpush.msra.mxu0 0.0
        %5518 = vmatpush.msra.mxu0 0.0
        %5519 = vmatpush.msra.mxu0 0.0
        %5520 = vmatpush.msra.mxu0 0.0
        %5521 = vmatpush.msra.mxu0 0.0
        %5522 = vmatpush.msra.mxu0 0.0
        %5523 = vmatpush.msra.mxu0 0.0
        %5524 = vmatpush.msra.mxu0 0.0
        %5525 = vmatpush.msra.mxu0 0.0
        %5526 = vmatpush.msra.mxu0 0.0
        %5527 = vmatpush.msra.mxu0 0.0
        %5528 = vmatpush.msra.mxu0 %v5510
        %5529 = vmatpush.msra.mxu0 %v5485
        %5530 = vmatpush.msra.mxu0 %v5483
        %5531 = vmatmul.f32.gmra.mxu0 %v5504
        %v5532 = vpop.f32.mrf.mxu0
        %v5533 = vadd.f32 %v5496, %v5532
        %5534 = vmatmul.f32.gmra.mxu0 %v5507
        %v5535 = vpop.f32.mrf.mxu0
        %v5536 = vadd.f32 %v5501, %v5535
        %5537 = vdwg.mxu0
        %5538 = vmatpush.msra.mxu0 0.0
        %5539 = vmatpush.msra.mxu0 0.0
        %5540 = vmatpush.msra.mxu0 0.0
        %5541 = vmatpush.msra.mxu0 0.0
        %5542 = vmatpush.msra.mxu0 0.0
        %5543 = vmatpush.msra.mxu0 0.0
        %5544 = vmatpush.msra.mxu0 0.0
        %5545 = vmatpush.msra.mxu0 0.0
        %5546 = vmatpush.msra.mxu0 0.0
        %5547 = vmatpush.msra.mxu0 0.0
        %5548 = vmatpush.msra.mxu0 0.0
        %5549 = vmatpush.msra.mxu0 0.0
        %5550 = vmatpush.msra.mxu0 0.0
        %5551 = vmatpush.msra.mxu0 %v5513
        %5552 = vmatpush.msra.mxu0 %v5486
        %5553 = vmatpush.msra.mxu0 %v5484
        %5554 = vmatmul.f32.gmra.mxu0 %v5504
        %v5555 = vpop.f32.mrf.mxu0
        %v5556 = vadd.f32 %v5496, %v5555
        %5557 = vmatmul.f32.gmra.mxu0 %v5507
        %v5558 = vpop.f32.mrf.mxu0
        %v5559 = vadd.f32 %v5501, %v5558
        %5560 = vdwg.mxu0
        %vm5561 = vcmp.ge.f32.partialorder %v5533, 0.0
        %vm5562 = vcmp.ge.f32.partialorder %v5556, 0.0
        %vm5563 = vcmp.ge.f32.partialorder %v5536, 0.0
        %vm5564 = vcmp.ge.f32.partialorder %v5559, 0.0
        %v5565 = vmul.f32 %v5533, 0.3
        %v5566 = vmul.f32 %v5556, 0.3
        %v5567 = vmul.f32 %v5536, 0.3
        %v5568 = vmul.f32 %v5559, 0.3
        %v5569 = vsel %vm5561, %v5533, %v5565
        %v5570 = vsel %vm5562, %v5556, %v5566
        %v5571 = vsel %vm5563, %v5536, %v5567
        %v5572 = vsel %vm5564, %v5559, %v5568
        %v5573 = vld [vmem:[%s9] sm:$0x1]
        %v5574 = vld [vmem:[#allocation3] sm:$0x1]
        %5576 = vset.pattern.permute.xlu0 0
        %5577 = vperm.xlu0 %5576, %v5574
        %v5578 = vpop.permute.xlu0 %5577
        %v5580 = vperm.slane %v5578, 0
        %v5582 = vsel %vm1655, %v5573, 0
        %v5585 = vsel %vm1659, %v5571, 0
        %v5588 = vsel %vm1659, %v5572, 0
        %5590 = vmatpush.msra.mxu0 0.0
        %5591 = vmatpush.msra.mxu0 0.0
        %5592 = vmatpush.msra.mxu0 0.0
        %5593 = vmatpush.msra.mxu0 0.0
        %5594 = vmatpush.msra.mxu0 0.0
        %5595 = vmatpush.msra.mxu0 0.0
        %5596 = vmatpush.msra.mxu0 0.0
        %5597 = vmatpush.msra.mxu0 0.0
        %5598 = vmatpush.msra.mxu0 0.0
        %5599 = vmatpush.msra.mxu0 0.0
        %5600 = vmatpush.msra.mxu0 0.0
        %5601 = vmatpush.msra.mxu0 0.0
        %5602 = vmatpush.msra.mxu0 0.0
        %5603 = vmatpush.msra.mxu0 0.0
        %5604 = vmatpush.msra.mxu0 %v5585
        %5605 = vmatpush.msra.mxu0 %v5569
        %5606 = vmatmul.f32.gmra.mxu0 %v5582
        %v5607 = vpop.f32.mrf.mxu0
        %v5608 = vadd.f32 %v5580, %v5607
        %5609 = vdwg.mxu0
        %5610 = vmatpush.msra.mxu0 0.0
        %5611 = vmatpush.msra.mxu0 0.0
        %5612 = vmatpush.msra.mxu0 0.0
        %5613 = vmatpush.msra.mxu0 0.0
        %5614 = vmatpush.msra.mxu0 0.0
        %5615 = vmatpush.msra.mxu0 0.0
        %5616 = vmatpush.msra.mxu0 0.0
        %5617 = vmatpush.msra.mxu0 0.0
        %5618 = vmatpush.msra.mxu0 0.0
        %5619 = vmatpush.msra.mxu0 0.0
        %5620 = vmatpush.msra.mxu0 0.0
        %5621 = vmatpush.msra.mxu0 0.0
        %5622 = vmatpush.msra.mxu0 0.0
        %5623 = vmatpush.msra.mxu0 0.0
        %5624 = vmatpush.msra.mxu0 %v5588
        %5625 = vmatpush.msra.mxu0 %v5570
        %5626 = vmatmul.f32.gmra.mxu0 %v5582
        %v5627 = vpop.f32.mrf.mxu0
        %v5628 = vadd.f32 %v5580, %v5627
        %5629 = vdwg.mxu0
        %vm5630 = vcmp.ge.f32.partialorder %v5608, 0.0
        %vm5631 = vcmp.ge.f32.partialorder %v5628, 0.0
        %v5632 = vmul.f32 %v5608, 0.3
        %v5633 = vmul.f32 %v5628, 0.3
        %v5634 = vsel %vm5630, %v5608, %v5632
        %v5635 = vsel %vm5631, %v5628, %v5633
        %v5636 = vld [vmem:[#allocation4] sm:$0x1]
        %5638 = vset.pattern.permute.xlu0 0
        %5639 = vperm.xlu0 %5638, %v5636
        %v5640 = vpop.permute.xlu0 %5639
        %v5642 = vperm.slane %v5640, 0
        %v5643 = vmul.f32 %v5642, %v5634
        %v5644 = vmul.f32 %v5642, %v5635
        %v5645 = vld [vmem:[#allocation5] sm:$0x1]
        %5647 = vset.pattern.permute.xlu0 0
        %5648 = vperm.xlu0 %5647, %v5645
        %v5649 = vpop.permute.xlu0 %5648
        %v5651 = vperm.slane %v5649, 0
        %v5652 = vadd.f32 %v5643, %v5651
        %v5653 = vadd.f32 %v5644, %v5651
        %vm5654 = vcmp.ge.f32.partialorder %v5652, 0.0
        %vm5655 = vcmp.ge.f32.partialorder %v5653, 0.0
        %v5656 = vmul.f32 %v5652, 0.3
        %v5657 = vmul.f32 %v5653, 0.3
        %v5658 = vsel %vm5654, %v5652, %v5656
        %v5659 = vsel %vm5655, %v5653, %v5657
        %v5660 = vld [vmem:[%s13] sm:$0xff]
        %v5661 = vld [vmem:[%s13 + $0x8] sm:$0xff]
        %v5662 = vld [vmem:[%s13 + $0x10] sm:$0xff]
        %v5663 = vld [vmem:[%s13 + $0x18] sm:$0xff]
        %v5664 = vld [vmem:[%s13 + $0x20] sm:$0xff]
        %v5665 = vld [vmem:[%s13 + $0x28] sm:$0xff]
        %v5666 = vld [vmem:[%s13 + $0x30] sm:$0xff]
        %v5667 = vld [vmem:[%s13 + $0x38] sm:$0xff]
        %v5668 = vld [vmem:[%s13 + $0x40] sm:$0xff]
        %v5669 = vld [vmem:[%s13 + $0x48] sm:$0xff]
        %v5670 = vld [vmem:[%s13 + $0x50] sm:$0xff]
        %v5671 = vld [vmem:[%s13 + $0x58] sm:$0xff]
        %v5672 = vld [vmem:[%s13 + $0x60] sm:$0xff]
        %v5673 = vld [vmem:[%s13 + $0x68] sm:$0xff]
        %v5674 = vld [vmem:[%s13 + $0x70] sm:$0xff]
        %v5675 = vld [vmem:[%s13 + $0x78] sm:$0xff]
        %v5676 = vld [vmem:[%s13 + $0x80] sm:$0xff]
        %v5677 = vld [vmem:[%s13 + $0x88] sm:$0xff]
        %v5678 = vld [vmem:[%s13 + $0x90] sm:$0xff]
        %v5679 = vld [vmem:[%s13 + $0x98] sm:$0xff]
        %v5680 = vld [vmem:[%s13 + $0xa0] sm:$0xff]
        %v5681 = vld [vmem:[%s13 + $0xa8] sm:$0xff]
        %v5682 = vld [vmem:[%s13 + $0xb0] sm:$0xff]
        %v5683 = vld [vmem:[%s13 + $0xb8] sm:$0xff]
        %v5684 = vld [vmem:[%s13 + $0xc0] sm:$0xff]
        %v5685 = vld [vmem:[%s13 + $0xc8] sm:$0xff]
        %v5686 = vld [vmem:[%s13 + $0xd0] sm:$0xff]
        %v5688 = vsel %vm1763, %v5659, 0
        %5690 = vmatpush.msra.mxu0 %v5675
        %5691 = vmatpush.msra.mxu0 %v5674
        %5692 = vmatpush.msra.mxu0 %v5673
        %5693 = vmatpush.msra.mxu0 %v5672
        %5694 = vmatpush.msra.mxu0 %v5671
        %5695 = vmatpush.msra.mxu0 %v5670
        %5696 = vmatpush.msra.mxu0 %v5669
        %5697 = vmatpush.msra.mxu0 %v5668
        %5698 = vmatpush.msra.mxu0 %v5667
        %5699 = vmatpush.msra.mxu0 %v5666
        %5700 = vmatpush.msra.mxu0 %v5665
        %5701 = vmatpush.msra.mxu0 %v5664
        %5702 = vmatpush.msra.mxu0 %v5663
        %5703 = vmatpush.msra.mxu0 %v5662
        %5704 = vmatpush.msra.mxu0 %v5661
        %5705 = vmatpush.msra.mxu0 %v5660
        %5706 = vmatmul.f32.gmra.mxu0 %v5658
        %v5707 = vpop.f32.mrf.mxu0
        %v5708 = vadd.f32 0.0, %v5707
        %5709 = vdwg.mxu0
        %5710 = vmatpush.msra.mxu0 0.0
        %5711 = vmatpush.msra.mxu0 0.0
        %5712 = vmatpush.msra.mxu0 0.0
        %5713 = vmatpush.msra.mxu0 0.0
        %5714 = vmatpush.msra.mxu0 0.0
        %5715 = vmatpush.msra.mxu0 %v5686
        %5716 = vmatpush.msra.mxu0 %v5685
        %5717 = vmatpush.msra.mxu0 %v5684
        %5718 = vmatpush.msra.mxu0 %v5683
        %5719 = vmatpush.msra.mxu0 %v5682
        %5720 = vmatpush.msra.mxu0 %v5681
        %5721 = vmatpush.msra.mxu0 %v5680
        %5722 = vmatpush.msra.mxu0 %v5679
        %5723 = vmatpush.msra.mxu0 %v5678
        %5724 = vmatpush.msra.mxu0 %v5677
        %5725 = vmatpush.msra.mxu0 %v5676
        %5726 = vmatmul.f32.gmra.mxu0 %v5688
        %v5727 = vpop.f32.mrf.mxu0
        %v5728 = vadd.f32 %v5708, %v5727
        %5729 = vdwg.mxu0
        %v5730 = vsel %vm486, %v5728, -inf
        %5731 = vmax.xlane.f32.xlu0 %v5730
        %v5732 = vpop.xlane.xlu0 %5731
        %v5733 = vsub.f32 %v5728, %v5732
        %v5734 = vmul.f32 %v5733, 1.442695
        %v5735 = vpow.pop %v5734
        %v5736 = vsel %vm486, %v5735, 0.0
        %5737 = vadd.xlane.f32.xlu0 %v5736
        %v5738 = vpop.xlane.xlu0 %5737
        %v5739 = vrcp.pop %v5738
        %v5740 = vmul.f32 %v5738, %v5739
        %v5741 = vsub.f32 1.0, %v5740
        %v5742 = vmul.f32 %v5739, %v5741
        %v5743 = vadd.f32 %v5739, %v5742
        %vm5744 = vweird.f32 %v5738
        %vm5745 = vweird.f32 %v5739
        %vm5746 = vmor %vm5744, %vm5745
        %v5747 = vsel %vm5746, %v5739, %v5743
        %v5748 = vand.u32 2147483647, %v5738
        %vm5749 = vcmp.eq.f32.partialorder %v5748, 8.507059e+37
        %v5750 = vand.u32 %v5738, 2147483648
        %v5751 = vor.u32 1.1754944e-38, %v5750
        %v5752 = vsel %vm5749, %v5751, %v5747
        %v5753 = vmul.f32 %v5735, %v5752
        %s5754 = scalar_lea.vmem %s467, 3 [#allocation6]
        %5755 = vst [vmem:[%s5754] sm:$0x1] %v5753
        %s5756 = sand.u32 %s341, 1
        %s5757 = scalar_lea.sflag [#allocation7], %s5756
        %s5758 = sand.u32 %s341, 1
        %s5759 = smul.addr %s5758, 4
        %s5760 = scalar_lea.vmem [#allocation6], %s5759
        // Predicated region
        $region77: #{tpu_custom_call.1} parent=75 // pred_check
          %p5761 = pneg %p351
        $region78: #{tpu_custom_call.1} parent=75 // pred_check_branch
          %5763 = sbr.rel (%p5761) target = $region80
        $region79: #{tpu_custom_call.1} parent=75 // pred_region
          %s5764 = smul.u32 4, %s34
          %5766 = vsyncadd %s5757, 0
          %s5767 = scalar_lea.hbm %s14, %s5764
          %s5768 = sshll.u32 %s5760, 4
          %s5769 = int_to_ptr.vmem [resolvable:$true] %s5768
          %s5770 = sshll.u32 %s5767, 4
          %s5771 = int_to_ptr.hbm [resolvable:$true] %s5770
          %5776 = dma.vmem_to_hbm [thread:$0]  %s5769, 64, %s5771, %s5757, 16, 16, 1
        $region80: #{tpu_custom_call.1} parent=75 // pred_fallthru
          _
      $region76: #{tpu_custom_call.1} parent=5 // pred_fallthru
        _
      %p5777 = scmp.le.s32.totalorder 2, %s29
      // Predicated region
      $region81: #{tpu_custom_call.1} parent=5 // pred_check
        %p5778 = pneg %p5777
      $region82: #{tpu_custom_call.1} parent=5 // pred_check_branch
        %5780 = sbr.rel (%p5778) target = $region84
      $region83: #{tpu_custom_call.1} parent=5 // pred_region
        %s5781 = ssub.s32 %s29, 2
        // Predicated region
        $region85: #{tpu_custom_call.1} parent=83 // pred_check
          %p5782 = pneg %p357
        $region86: #{tpu_custom_call.1} parent=83 // pred_check_branch
          %5784 = sbr.rel (%p5782) target = $region88
        $region87: #{tpu_custom_call.1} parent=83 // pred_region
          %s5785 = sand.u32 %s342, 1
          %s5786 = scalar_lea.sflag [#allocation7], %s5785
          %s5787 = sand.u32 %s342, 1
          %s5788 = smul.addr %s5787, 4
          %s5789 = scalar_lea.vmem [#allocation6], %s5788
          %5791 = dma.done %s5786, 64
        $region88: #{tpu_custom_call.1} parent=83 // pred_fallthru
          _
      $region84: #{tpu_custom_call.1} parent=5 // pred_fallthru
        _
    $region6: #{tpu_custom_call.1} parent=1 // loop_footer
      %s33 = sadd.s32 1, %s29
    $region7: #{tpu_custom_call.1} parent=1 // loop_footer_branch
      %28 = sbr.rel target = $region3
    $region8: #{tpu_custom_call.1} parent=1 // loop_exit
      _
    %5792 = vsyncpa [#allocation7], 1
    %s5793 = scalar_lea.sflag [#allocation7], 1
    %5794 = vsyncpa %s5793, 1

</llo_original>
